<compile_context>
chip_gen: v5e
topology: v5e:2x2
jax: 0.10.0
libtpu: 0.0.40
codegen_flags: <defaults>
</compile_context>

<pallas_src>
import functools

import jax
import jax.numpy as jnp
from jax.experimental import pallas as pl
from jax.experimental.pallas import tpu as pltpu


# ---------------------------------------------------------------------------
# Kernel A: [adaptive-avg-pool(4x4) + 1x1 conv + BN(eval)] as one lane-dense
# matmul, + ReLU epilogue.
#   x_ref:     (RB, C*S)   pooling-window rows (f32, cast to bf16 for the MXU)
#   w_ref:     (C*S, 128)  conv weight replicated per window elem, * BNscale/S (bf16)
#   shift_ref: (1, 128)    beta - mean * scale (f32)
#   o_ref:     (RB, 128)   f32
# ---------------------------------------------------------------------------
def pool_conv_bn_relu_kernel(x_ref, w_ref, shift_ref, o_ref):
    y = jnp.dot(x_ref[...].astype(jnp.bfloat16), w_ref[...],
                preferred_element_type=jnp.float32)
    y = y + shift_ref[...]
    o_ref[...] = jnp.maximum(y, 0.0)


# ---------------------------------------------------------------------------
# Kernel B: fc1 (2048 -> 1024) + ReLU + [dropout eval = identity] + fc2.
# Single grid step: full bf16 fc1/fc2 weights resident in VMEM, f32 accumulate,
# 128-lane-padded output (lane-dense stores).
# ---------------------------------------------------------------------------
def mlp_kernel(feat_ref, w1_ref, b1_ref, w2_ref, b2_ref, o_ref):
    h = jnp.dot(feat_ref[...].astype(jnp.bfloat16), w1_ref[...],
                preferred_element_type=jnp.float32) + b1_ref[...]
    h = jnp.maximum(h, 0.0)
    # TODO(synk): F.dropout(p=0.7) is identity in eval/inference mode; training-mode
    # stochastic dropout is not implemented here.
    o_ref[...] = (jnp.dot(h.astype(jnp.bfloat16), w2_ref[...],
                          preferred_element_type=jnp.float32) + b2_ref[...])


# ---------------------------------------------------------------------------
# One-time (outside jit) parameter repacking.
# ---------------------------------------------------------------------------
def pack_params(params, in_channels, num_classes, spatial_hw):
    H, W = spatial_hw
    assert H % 4 == 0 and W % 4 == 0
    S = (H // 4) * (W // 4)
    eps = 1e-5

    scale = params["bn_gamma"] / jnp.sqrt(params["bn_var"] + eps)            # (128,)
    shift = params["bn_beta"] - params["bn_mean"] * scale                    # (128,)

    # 1x1 conv weight -> (C, 128); fold BN scale and the 1/S pooling factor;
    # replicate each channel's row S times so the pool becomes part of the matmul.
    wc = params["conv_w"].reshape(128, in_channels).T                        # (C, 128)
    wcs = (wc * scale[None, :]) / float(S)
    wcs = jnp.repeat(wcs, S, axis=0).astype(jnp.bfloat16)                    # (C*S, 128)

    # torch.flatten(x, 1) is channel-major (idx = oc*16 + s); kernel-A output is
    # spatial-major (idx = s*128 + oc) -> fold the permutation into fc1 weight.
    w1 = params["fc1_w"]                                                     # (1024, 2048)
    w1p = w1.reshape(1024, 128, 16).transpose(2, 1, 0).reshape(2048, 1024)
    w1p = w1p.astype(jnp.bfloat16)
    b1 = params["fc1_b"].reshape(1, 1024).astype(jnp.float32)

    # Pad fc2 output lanes to a multiple of 128 for lane-dense stores.
    nc_pad = ((num_classes + 127) // 128) * 128
    w2p = jnp.zeros((1024, nc_pad), jnp.float32).at[:, :num_classes].set(
        params["fc2_w"].T.astype(jnp.float32)).astype(jnp.bfloat16)
    b2p = jnp.zeros((1, nc_pad), jnp.float32).at[0, :num_classes].set(
        params["fc2_b"].astype(jnp.float32))

    return {
        "wcs": wcs,
        "shift": shift.reshape(1, 128).astype(jnp.float32),
        "w1p": w1p,
        "b1": b1,
        "w2p": w2p,
        "b2p": b2p,
    }


# ---------------------------------------------------------------------------
# Forward (jitted): x (NCHW f32) + packed params -> (N, num_classes) f32
# ---------------------------------------------------------------------------
def inception_aux_forward(x, packed, *, num_classes):
    N, C, H, W = x.shape
    assert H % 4 == 0 and W % 4 == 0, "adaptive pool implemented for H,W % 4 == 0"
    # TODO(synk): the real GoogLeNet aux input is 14x14 (uneven adaptive-pool
    # windows); that case is not covered by this uniform-window implementation.
    hb, wb = H // 4, W // 4
    S = hb * wb
    R = N * 16
    CS = C * S

    # Rearrange NCHW into lane-dense pooling-window rows:
    #   row = n*16 + oh*4 + ow, col = c*S + dh*wb + dw.
    # TODO(synk): for large inputs this XLA transpose costs one extra HBM pass
    # over x; it could be folded into kernel A via an index_map gather over
    # (n, oh, ow) windows.
    x_rows = x.reshape(N, C, 4, hb, 4, wb).transpose(0, 2, 4, 1, 3, 5).reshape(R, CS)

    # Row block: process everything in one step when R is small; 256-row tiles
    # otherwise (fills the 256-wide MXU on v6e/v7x, gives a "parallel" axis for
    # v7x's two TensorCores when R > 256).
    RB = R if R <= 256 else 256
    assert R % RB == 0

    feat = pl.pallas_call(
        pool_conv_bn_relu_kernel,
        out_shape=jax.ShapeDtypeStruct((R, 128), jnp.float32),
        grid=(R // RB,),
        in_specs=[
            pl.BlockSpec((RB, CS), lambda i: (i, 0)),
            pl.BlockSpec((CS, 128), lambda i: (0, 0)),
            pl.BlockSpec((1, 128), lambda i: (0, 0)),
        ],
        out_specs=pl.BlockSpec((RB, 128), lambda i: (i, 0)),
        compiler_params=pltpu.CompilerParams(
            dimension_semantics=("parallel",),
            vmem_limit_bytes=32 * 1024 * 1024),
    )(x_rows, packed["wcs"], packed["shift"])

    # feat is spatial-major; reshape (R,128) -> (N, 2048) with col = s*128 + oc.
    # The torch.flatten channel-major order is already folded into w1p.
    feat2 = feat.reshape(N, 16 * 128)

    NC_PAD = packed["w2p"].shape[1]
    out = pl.pallas_call(
        mlp_kernel,
        out_shape=jax.ShapeDtypeStruct((N, NC_PAD), jnp.float32),
        grid=(1,),
        in_specs=[
            pl.BlockSpec((N, 2048), lambda j: (0, 0)),
            pl.BlockSpec((2048, 1024), lambda j: (0, 0)),
            pl.BlockSpec((1, 1024), lambda j: (0, 0)),
            pl.BlockSpec((1024, NC_PAD), lambda j: (0, 0)),
            pl.BlockSpec((1, NC_PAD), lambda j: (0, 0)),
        ],
        out_specs=pl.BlockSpec((N, NC_PAD), lambda j: (0, 0)),
        compiler_params=pltpu.CompilerParams(
            dimension_semantics=("arbitrary",),
            vmem_limit_bytes=32 * 1024 * 1024),
    )(feat2, packed["w1p"], packed["b1"], packed["w2p"], packed["b2p"])

    return out[:, :num_classes]


# ---------------------------------------------------------------------------
# Pure-JAX f32 reference (mirrors the PyTorch forward, eval mode)
# ---------------------------------------------------------------------------
def inception_aux_reference(x, params, *, num_classes):
    N, C, H, W = x.shape
    p = x.reshape(N, C, 4, H // 4, 4, W // 4).mean(axis=(3, 5))              # (N,C,4,4)
    w = params["conv_w"].reshape(128, C)
    y = jnp.einsum("ncij,oc->noij", p, w)
    eps = 1e-5
    scale = params["bn_gamma"] / jnp.sqrt(params["bn_var"] + eps)
    shift = params["bn_beta"] - params["bn_mean"] * scale
    y = y * scale[None, :, None, None] + shift[None, :, None, None]
    y = jnp.maximum(y, 0.0)
    flat = y.reshape(N, 128 * 16)
    h = jnp.maximum(flat @ params["fc1_w"].T + params["fc1_b"], 0.0)
    return h @ params["fc2_w"].T + params["fc2_b"]


def make_params(key, in_channels, num_classes):
    ks = jax.random.split(key, 8)
    return {
        "conv_w": jax.random.normal(ks[0], (128, in_channels, 1, 1), jnp.float32) * 0.1,
        "bn_gamma": 1.0 + 0.05 * jax.random.normal(ks[1], (128,), jnp.float32),
        "bn_beta": 0.05 * jax.random.normal(ks[2], (128,), jnp.float32),
        "bn_mean": 0.05 * jax.random.normal(ks[3], (128,), jnp.float32),
        "bn_var": jnp.abs(jax.random.normal(ks[4], (128,), jnp.float32)) * 0.1 + 0.9,
        "fc1_w": jax.random.normal(ks[5], (1024, 2048), jnp.float32) * 0.02,
        "fc1_b": 0.02 * jax.random.normal(ks[6], (1024,), jnp.float32),
        "fc2_w": jax.random.normal(ks[7], (num_classes, 1024), jnp.float32) * 0.02,
        "fc2_b": jnp.zeros((num_classes,), jnp.float32),
    }


if __name__ == "__main__":
    N, C, H, W = 2, 8, 16, 16
    num_classes = 10

    key = jax.random.PRNGKey(0)
    kx, kp = jax.random.split(key)
    x = jax.random.normal(kx, (N, C, H, W), jnp.float32)
    params = make_params(kp, C, num_classes)

    # Pre-pack weights once, outside the jitted forward.
    packed = pack_params(params, C, num_classes, (H, W))

    fwd = jax.jit(functools.partial(inception_aux_forward, num_classes=num_classes))
    out = jax.block_until_ready(fwd(x, packed))

    ref = inception_aux_reference(x, params, num_classes=num_classes)
    assert out.shape == (N, num_classes)
    max_err = jnp.max(jnp.abs(out - ref))
    # bf16 MXU weights -> loosened tolerance vs the pure-f32 reference.
    assert jnp.allclose(out, ref, atol=1e-2, rtol=1e-2), f"max abs err = {max_err}"

    print("KERNEL_OK")
</pallas_src>

<mosaic_0001>
module attributes {stable_mosaic.version = 11 : i64} {
  func.func @pool_conv_bn_relu_kernel(%arg0: i32, %arg1: memref<32x128xf32, #tpu.memory_space<vmem>>, %arg2: memref<128x128xbf16, #tpu.memory_space<vmem>>, %arg3: memref<1x128xf32, #tpu.memory_space<vmem>>, %arg4: memref<32x128xf32, #tpu.memory_space<vmem>>) attributes {dimension_semantics = [#tpu.dimension_semantics<parallel>], iteration_bounds = array<i64: 1>, scalar_prefetch = 0 : i64, scratch_operands = 0 : i64, tpu.core_type = #tpu.core_type<tc>, window_params = [{transform_indices = @transform_0, window_bounds = array<i64: 32, 128>}, {pipeline_mode = #tpu.pipeline_mode<synchronous>, transform_indices = @transform_1, window_bounds = array<i64: 128, 128>}, {pipeline_mode = #tpu.pipeline_mode<synchronous>, transform_indices = @transform_2, window_bounds = array<i64: 1, 128>}, {transform_indices = @transform_3, window_bounds = array<i64: 32, 128>}]} {
    %c0 = arith.constant 0 : index
    %c0_0 = arith.constant 0 : index
    %0 = vector.load %arg1[%c0, %c0_0] : memref<32x128xf32, #tpu.memory_space<vmem>>, vector<32x128xf32>
    %1 = arith.truncf %0 : vector<32x128xf32> to vector<32x128xbf16>
    %c0_1 = arith.constant 0 : index
    %c0_2 = arith.constant 0 : index
    %2 = vector.load %arg2[%c0_1, %c0_2] : memref<128x128xbf16, #tpu.memory_space<vmem>>, vector<128x128xbf16>
    %cst = arith.constant dense<0.000000e+00> : vector<32x128xf32>
    %3 = tpu.matmul %1, %2, %cst {dimension_numbers = #tpu.dot_dimension_numbers<[1], [0], [0], [1], [0, 0, 1, 1], [], []>} : vector<32x128xbf16>, vector<128x128xbf16>, vector<32x128xf32> -> vector<32x128xf32>
    %c0_3 = arith.constant 0 : index
    %c0_4 = arith.constant 0 : index
    %4 = vector.load %arg3[%c0_3, %c0_4] : memref<1x128xf32, #tpu.memory_space<vmem>>, vector<1x128xf32>
    %5 = vector.broadcast %4 : vector<1x128xf32> to vector<32x128xf32>
    %6 = arith.addf %3, %5 : vector<32x128xf32>
    %cst_5 = arith.constant 0.000000e+00 : f32
    %7 = vector.broadcast %cst_5 : f32 to vector<32x128xf32>
    %8 = arith.maximumf %6, %7 : vector<32x128xf32>
    %c0_6 = arith.constant 0 : index
    %c0_7 = arith.constant 0 : index
    %9 = vector.load %arg4[%c0_6, %c0_7] : memref<32x128xf32, #tpu.memory_space<vmem>>, vector<32x128xf32>
    tpu.vector_store %arg4[%c0_6, %c0_7], %8 {strides = array<i32>} : memref<32x128xf32, #tpu.memory_space<vmem>>, vector<32x128xf32>,
    return
  }
  func.func @transform_0(%arg0: i32) -> (i32, i32) {
    %c0_i32 = arith.constant 0 : i32
    %c0_i32_0 = arith.constant 0 : i32
    return %arg0, %c0_i32 : i32, i32
  }
  func.func @transform_1(%arg0: i32) -> (i32, i32) {
    %c0_i32 = arith.constant 0 : i32
    %c0_i32_0 = arith.constant 0 : i32
    %c0_i32_1 = arith.constant 0 : i32
    return %c0_i32, %c0_i32_0 : i32, i32
  }
  func.func @transform_2(%arg0: i32) -> (i32, i32) {
    %c0_i32 = arith.constant 0 : i32
    %c0_i32_0 = arith.constant 0 : i32
    %c0_i32_1 = arith.constant 0 : i32
    return %c0_i32, %c0_i32_0 : i32, i32
  }
  func.func @transform_3(%arg0: i32) -> (i32, i32) {
    %c0_i32 = arith.constant 0 : i32
    %c0_i32_0 = arith.constant 0 : i32
    return %arg0, %c0_i32 : i32, i32
  }
}

module attributes {stable_mosaic.version = 11 : i64} {
  func.func @mlp_kernel(%arg0: i32, %arg1: memref<2x2048xf32, #tpu.memory_space<vmem>>, %arg2: memref<2048x1024xbf16, #tpu.memory_space<vmem>>, %arg3: memref<1x1024xf32, #tpu.memory_space<vmem>>, %arg4: memref<1024x128xbf16, #tpu.memory_space<vmem>>, %arg5: memref<1x128xf32, #tpu.memory_space<vmem>>, %arg6: memref<2x128xf32, #tpu.memory_space<vmem>>) attributes {dimension_semantics = [#tpu.dimension_semantics<arbitrary>], iteration_bounds = array<i64: 1>, scalar_prefetch = 0 : i64, scratch_operands = 0 : i64, tpu.core_type = #tpu.core_type<tc>, window_params = [{pipeline_mode = #tpu.pipeline_mode<synchronous>, transform_indices = @transform_0, window_bounds = array<i64: 2, 2048>}, {pipeline_mode = #tpu.pipeline_mode<synchronous>, transform_indices = @transform_1, window_bounds = array<i64: 2048, 1024>}, {pipeline_mode = #tpu.pipeline_mode<synchronous>, transform_indices = @transform_2, window_bounds = array<i64: 1, 1024>}, {pipeline_mode = #tpu.pipeline_mode<synchronous>, transform_indices = @transform_3, window_bounds = array<i64: 1024, 128>}, {pipeline_mode = #tpu.pipeline_mode<synchronous>, transform_indices = @transform_4, window_bounds = array<i64: 1, 128>}, {pipeline_mode = #tpu.pipeline_mode<synchronous>, transform_indices = @transform_5, window_bounds = array<i64: 2, 128>}]} {
    %c0 = arith.constant 0 : index
    %c0_0 = arith.constant 0 : index
    %0 = vector.load %arg1[%c0, %c0_0] : memref<2x2048xf32, #tpu.memory_space<vmem>>, vector<2x2048xf32>
    %1 = arith.truncf %0 : vector<2x2048xf32> to vector<2x2048xbf16>
    %c0_1 = arith.constant 0 : index
    %c0_2 = arith.constant 0 : index
    %2 = vector.load %arg2[%c0_1, %c0_2] : memref<2048x1024xbf16, #tpu.memory_space<vmem>>, vector<2048x1024xbf16>
    %cst = arith.constant dense<0.000000e+00> : vector<2x1024xf32>
    %3 = tpu.matmul %1, %2, %cst {dimension_numbers = #tpu.dot_dimension_numbers<[1], [0], [0], [1], [0, 0, 1, 1], [], []>} : vector<2x2048xbf16>, vector<2048x1024xbf16>, vector<2x1024xf32> -> vector<2x1024xf32>
    %c0_3 = arith.constant 0 : index
    %c0_4 = arith.constant 0 : index
    %4 = vector.load %arg3[%c0_3, %c0_4] : memref<1x1024xf32, #tpu.memory_space<vmem>>, vector<1x1024xf32>
    %5 = vector.broadcast %4 : vector<1x1024xf32> to vector<2x1024xf32>
    %6 = arith.addf %3, %5 : vector<2x1024xf32>
    %cst_5 = arith.constant 0.000000e+00 : f32
    %7 = vector.broadcast %cst_5 : f32 to vector<2x1024xf32>
    %8 = arith.maximumf %6, %7 : vector<2x1024xf32>
    %9 = arith.truncf %8 : vector<2x1024xf32> to vector<2x1024xbf16>
    %c0_6 = arith.constant 0 : index
    %c0_7 = arith.constant 0 : index
    %10 = vector.load %arg4[%c0_6, %c0_7] : memref<1024x128xbf16, #tpu.memory_space<vmem>>, vector<1024x128xbf16>
    %cst_8 = arith.constant dense<0.000000e+00> : vector<2x128xf32>
    %11 = tpu.matmul %9, %10, %cst_8 {dimension_numbers = #tpu.dot_dimension_numbers<[1], [0], [0], [1], [0, 0, 1, 1], [], []>} : vector<2x1024xbf16>, vector<1024x128xbf16>, vector<2x128xf32> -> vector<2x128xf32>
    %c0_9 = arith.constant 0 : index
    %c0_10 = arith.constant 0 : index
    %12 = vector.load %arg5[%c0_9, %c0_10] : memref<1x128xf32, #tpu.memory_space<vmem>>, vector<1x128xf32>
    %13 = vector.broadcast %12 : vector<1x128xf32> to vector<2x128xf32>
    %14 = arith.addf %11, %13 : vector<2x128xf32>
    %c0_11 = arith.constant 0 : index
    %c0_12 = arith.constant 0 : index
    %15 = vector.load %arg6[%c0_11, %c0_12] : memref<2x128xf32, #tpu.memory_space<vmem>>, vector<2x128xf32>
    tpu.vector_store %arg6[%c0_11, %c0_12], %14 {strides = array<i32>} : memref<2x128xf32, #tpu.memory_space<vmem>>, vector<2x128xf32>,
    return
  }
  func.func @transform_0(%arg0: i32) -> (i32, i32) {
    %c0_i32 = arith.constant 0 : i32
    %c0_i32_0 = arith.constant 0 : i32
    %c0_i32_1 = arith.constant 0 : i32
    return %c0_i32, %c0_i32_0 : i32, i32
  }
  func.func @transform_1(%arg0: i32) -> (i32, i32) {
    %c0_i32 = arith.constant 0 : i32
    %c0_i32_0 = arith.constant 0 : i32
    %c0_i32_1 = arith.constant 0 : i32
    return %c0_i32, %c0_i32_0 : i32, i32
  }
  func.func @transform_2(%arg0: i32) -> (i32, i32) {
    %c0_i32 = arith.constant 0 : i32
    %c0_i32_0 = arith.constant 0 : i32
    %c0_i32_1 = arith.constant 0 : i32
    return %c0_i32, %c0_i32_0 : i32, i32
  }
  func.func @transform_3(%arg0: i32) -> (i32, i32) {
    %c0_i32 = arith.constant 0 : i32
    %c0_i32_0 = arith.constant 0 : i32
    %c0_i32_1 = arith.constant 0 : i32
    return %c0_i32, %c0_i32_0 : i32, i32
  }
  func.func @transform_4(%arg0: i32) -> (i32, i32) {
    %c0_i32 = arith.constant 0 : i32
    %c0_i32_0 = arith.constant 0 : i32
    %c0_i32_1 = arith.constant 0 : i32
    return %c0_i32, %c0_i32_0 : i32, i32
  }
  func.func @transform_5(%arg0: i32) -> (i32, i32) {
    %c0_i32 = arith.constant 0 : i32
    %c0_i32_0 = arith.constant 0 : i32
    %c0_i32_1 = arith.constant 0 : i32
    return %c0_i32, %c0_i32_0 : i32, i32
  }
}

</mosaic_0001>

<llo_original>
// kernel: inception_aux_forward.2
$region0: #{inception_aux_forward.2}
  #allocation0 [shape = 'u32[]', space=smem, size = 0x4, offset = 0x4, fixed_abs, tag = 'smem constant byte address 0x4 - core index']
  #allocation1 [shape = 'u32[72,128]{1,0:T(1,128)}', space=vmem, size = 0x9000, scoped, tag = 'internal scratch']
  %s0 = inlined_call_operand.vmem [shape: f32[32,128], index: 0, kind: input, shape index: {}]
  %s1 = inlined_call_operand.hbm [shape: bf16[128,128], index: 1, kind: input, shape index: {}]
  %s2 = inlined_call_operand.hbm [shape: f32[1,128], index: 2, kind: input, shape index: {}]
  %s3 = inlined_call_operand.vmem [shape: f32[32,128], index: 3, kind: output, shape index: {}]
  %s4 = sld [smem:[#allocation0]]
  $region30: #{inception_aux_forward.2} parent=0
    _
  %s6 = ssub.s32 1, %s4
  %s7 = scalar_select 0, %s6, %s4
  $region1: #{inception_aux_forward.2} parent=0
    #allocation2 [shape = 'u8[32768]{0}', space=vmem, size = 0x8000, scoped, tag = 'input window, operand 1, single buffered']
    #allocation3 [shape = 's32[1]{0}', space=sflag, size = 0x4, scoped, tag = 'scoped memory for inception_aux_forward.2']
    #allocation4 [shape = 'u8[512]{0}', space=vmem, size = 0x400, scoped, tag = 'input window, operand 2, single buffered']
    #allocation5 [shape = 's32[1]{0}', space=sflag, size = 0x4, scoped, tag = 'scoped memory for inception_aux_forward.2']
    %8 = vsyncpa [#allocation3], 0
    %9 = vsyncpa [#allocation5], 0
    // Predicated region
    $region2: #{inception_aux_forward.2} parent=1 // pred_check
      _
    $region3: #{inception_aux_forward.2} parent=1 // pred_check_branch
      %11 = sbr.rel (0) target = $region5
    $region4: #{inception_aux_forward.2} parent=1 // pred_region
      _
    $region5: #{inception_aux_forward.2} parent=1 // pred_fallthru
      _
    // Predicated region
    $region6: #{inception_aux_forward.2} parent=1 // pred_check
      _
    $region7: #{inception_aux_forward.2} parent=1 // pred_check_branch
      %13 = sbr.rel (0) target = $region9
    $region8: #{inception_aux_forward.2} parent=1 // pred_region
      %15 = vsyncadd [#allocation3], 0
      %s16 = sshll.u32 %s1, 4
      %s17 = int_to_ptr.hbm [resolvable:$true] %s16
      %s18 = sshll.u32 [#allocation2], 4
      %s19 = int_to_ptr.vmem [resolvable:$true] %s18
      %24 = dma.hbm_to_vmem [thread:$0]  %s17, 1024, %s19, [#allocation3], 64, 64, 4
    $region9: #{inception_aux_forward.2} parent=1 // pred_fallthru
      _
    // Predicated region
    $region10: #{inception_aux_forward.2} parent=1 // pred_check
      _
    $region11: #{inception_aux_forward.2} parent=1 // pred_check_branch
      %26 = sbr.rel (0) target = $region13
    $region12: #{inception_aux_forward.2} parent=1 // pred_region
      %28 = vsyncadd [#allocation5], 0
      %s30 = sshll.u32 %s2, 4
      %s31 = int_to_ptr.hbm [resolvable:$true] %s30
      %s32 = sshll.u32 [#allocation4], 4
      %s33 = int_to_ptr.vmem [resolvable:$true] %s32
      %35 = dma.hbm_to_vmem [thread:$0]  %s31, 16, %s33, [#allocation5]
    $region13: #{inception_aux_forward.2} parent=1 // pred_fallthru
      _
    // Predicated region
    $region14: #{inception_aux_forward.2} parent=1 // pred_check
      _
    $region15: #{inception_aux_forward.2} parent=1 // pred_check_branch
      %37 = sbr.rel (0) target = $region17
    $region16: #{inception_aux_forward.2} parent=1 // pred_region
      %39 = dma.done [#allocation3], 1024
    $region17: #{inception_aux_forward.2} parent=1 // pred_fallthru
      _
    // Predicated region
    $region18: #{inception_aux_forward.2} parent=1 // pred_check
      _
    $region19: #{inception_aux_forward.2} parent=1 // pred_check_branch
      %41 = sbr.rel (0) target = $region21
    $region20: #{inception_aux_forward.2} parent=1 // pred_region
      %43 = dma.done [#allocation5], 16
    $region21: #{inception_aux_forward.2} parent=1 // pred_fallthru
      _
    %v44 = vld [vmem:[%s0] sm:$0xff]
    %v45 = vld [vmem:[%s0 + $0x8] sm:$0xff]
    %v46 = vld [vmem:[%s0 + $0x10] sm:$0xff]
    %v47 = vld [vmem:[%s0 + $0x18] sm:$0xff]
    %v48 = vpack.c.bf16 %v45, %v44
    %v49 = vpack.c.bf16 %v47, %v46
    %v50 = vld [vmem:[#allocation2] sm:$0xf]
    %v51 = vld [vmem:[#allocation2 + $0x4] sm:$0xf]
    %v52 = vld [vmem:[#allocation2 + $0x8] sm:$0xf]
    %v53 = vld [vmem:[#allocation2 + $0xc] sm:$0xf]
    %v54 = vld [vmem:[#allocation2 + $0x10] sm:$0xf]
    %v55 = vld [vmem:[#allocation2 + $0x14] sm:$0xf]
    %v56 = vld [vmem:[#allocation2 + $0x18] sm:$0xf]
    %v57 = vld [vmem:[#allocation2 + $0x1c] sm:$0xf]
    %v58 = vld [vmem:[#allocation2 + $0x20] sm:$0xf]
    %v59 = vld [vmem:[#allocation2 + $0x24] sm:$0xf]
    %v60 = vld [vmem:[#allocation2 + $0x28] sm:$0xf]
    %v61 = vld [vmem:[#allocation2 + $0x2c] sm:$0xf]
    %v62 = vld [vmem:[#allocation2 + $0x30] sm:$0xf]
    %v63 = vld [vmem:[#allocation2 + $0x34] sm:$0xf]
    %v64 = vld [vmem:[#allocation2 + $0x38] sm:$0xf]
    %v65 = vld [vmem:[#allocation2 + $0x3c] sm:$0xf]
    %v66 = vld [vmem:[#allocation4] sm:$0x1]
    %v68 = vperm.slane %v66, 0
    %v86 = vunpack.c.l.b16 %v50
    %v87 = vunpack.c.l.b16 %v51
    %v88 = vunpack.c.l.b16 %v52
    %v89 = vunpack.c.l.b16 %v53
    %v90 = vunpack.c.l.b16 %v54
    %v91 = vunpack.c.l.b16 %v55
    %v92 = vunpack.c.l.b16 %v56
    %v93 = vunpack.c.l.b16 %v57
    %v94 = vunpack.c.l.b16 %v58
    %v95 = vunpack.c.l.b16 %v59
    %v96 = vunpack.c.l.b16 %v60
    %v97 = vunpack.c.l.b16 %v61
    %v98 = vunpack.c.l.b16 %v62
    %v99 = vunpack.c.l.b16 %v63
    %v100 = vunpack.c.l.b16 %v64
    %v101 = vunpack.c.l.b16 %v65
    %v102 = vpack.c.b16 %v87, %v86
    %v103 = vpack.c.b16 %v89, %v88
    %v104 = vpack.c.b16 %v91, %v90
    %v105 = vpack.c.b16 %v93, %v92
    %v106 = vpack.c.b16 %v95, %v94
    %v107 = vpack.c.b16 %v97, %v96
    %v108 = vpack.c.b16 %v99, %v98
    %v109 = vpack.c.b16 %v101, %v100
    %118 = vmatpush.bf16.msra.mxu0 %v109
    %119 = vmatpush.bf16.msra.mxu0 %v108
    %120 = vmatpush.bf16.msra.mxu0 %v107
    %121 = vmatpush.bf16.msra.mxu0 %v106
    %122 = vmatpush.bf16.msra.mxu0 %v105
    %123 = vmatpush.bf16.msra.mxu0 %v104
    %124 = vmatpush.bf16.msra.mxu0 %v103
    %125 = vmatpush.bf16.msra.mxu0 %v102
    %126 = vmatmul.bf16.gmra.mxu0 %v48
    %v127 = vpop.f32.mrf.mxu0
    %v128 = vadd.f32 %v68, %v127
    %v129 = vpop.f32.mrf.mxu0
    %v130 = vadd.f32 %v68, %v129
    %131 = vmatmul.bf16.gmra.mxu0 %v49
    %v132 = vpop.f32.mrf.mxu0
    %v133 = vadd.f32 %v68, %v132
    %v134 = vpop.f32.mrf.mxu0
    %v135 = vadd.f32 %v68, %v134
    %136 = vdwg.mxu0
    %v137 = vmax.f32 %v128, 0.0
    %v138 = vmax.f32 %v130, 0.0
    %v139 = vmax.f32 %v133, 0.0
    %v140 = vmax.f32 %v135, 0.0
    %141 = vst [vmem:[%s3] sm:$0xff] %v137
    %142 = vst [vmem:[%s3 + $0x8] sm:$0xff] %v138
    %143 = vst [vmem:[%s3 + $0x10] sm:$0xff] %v139
    %144 = vst [vmem:[%s3 + $0x18] sm:$0xff] %v140
    // Predicated region
    $region22: #{inception_aux_forward.2} parent=1 // pred_check
      _
    $region23: #{inception_aux_forward.2} parent=1 // pred_check_branch
      %146 = sbr.rel (0) target = $region25
    $region24: #{inception_aux_forward.2} parent=1 // pred_region
      _
    $region25: #{inception_aux_forward.2} parent=1 // pred_fallthru
      _
    // Predicated region
    $region26: #{inception_aux_forward.2} parent=1 // pred_check
      _
    $region27: #{inception_aux_forward.2} parent=1 // pred_check_branch
      %148 = sbr.rel (0) target = $region29
    $region28: #{inception_aux_forward.2} parent=1 // pred_region
      _
    $region29: #{inception_aux_forward.2} parent=1 // pred_fallthru
      _
    %149 = vsyncpa [#allocation3], 1
    %150 = vsyncpa [#allocation5], 1

// kernel: inception_aux_forward.3
$region0: #{inception_aux_forward.3}
  #allocation0 [shape = 'u32[]', space=smem, size = 0x4, offset = 0x4, fixed_abs, tag = 'smem constant byte address 0x4 - core index']
  #allocation1 [shape = 'u32[72,128]{1,0:T(1,128)}', space=vmem, size = 0x9000, scoped, tag = 'internal scratch']
  %s0 = inlined_call_operand.vmem [shape: f32[2,2048], index: 0, kind: input, shape index: {}]
  %s1 = inlined_call_operand.hbm [shape: bf16[2048,1024], index: 1, kind: input, shape index: {}]
  %s2 = inlined_call_operand.hbm [shape: f32[1,1024], index: 2, kind: input, shape index: {}]
  %s3 = inlined_call_operand.hbm [shape: bf16[1024,128], index: 3, kind: input, shape index: {}]
  %s4 = inlined_call_operand.hbm [shape: f32[1,128], index: 4, kind: input, shape index: {}]
  %s5 = inlined_call_operand.hbm [shape: f32[2,128], index: 5, kind: output, shape index: {}]
  %s6 = sld [smem:[#allocation0]]
  $region46: #{inception_aux_forward.3} parent=0
    _
  %s8 = ssub.s32 1, %s6
  %s9 = scalar_select 0, %s8, %s6
  $region1: #{inception_aux_forward.3} parent=0
    #allocation2 [shape = 'u8[4194304]{0}', space=vmem, size = 0x400000, scoped, tag = 'input window, operand 1, single buffered']
    #allocation3 [shape = 's32[1]{0}', space=sflag, size = 0x4, scoped, tag = 'scoped memory for inception_aux_forward.3']
    #allocation4 [shape = 's32[1]{0}', space=sflag, size = 0x4, scoped, tag = 'scoped memory for inception_aux_forward.3']
    #allocation5 [shape = 'u8[4096]{0}', space=vmem, size = 0x1000, scoped, tag = 'input window, operand 2, single buffered']
    #allocation6 [shape = 's32[1]{0}', space=sflag, size = 0x4, scoped, tag = 'scoped memory for inception_aux_forward.3']
    #allocation7 [shape = 'u8[262144]{0}', space=vmem, size = 0x40000, scoped, tag = 'input window, operand 3, single buffered']
    #allocation8 [shape = 'u8[512]{0}', space=vmem, size = 0x400, scoped, tag = 'input window, operand 4, single buffered']
    #allocation9 [shape = 's32[1]{0}', space=sflag, size = 0x4, scoped, tag = 'scoped memory for inception_aux_forward.3']
    #allocation10 [shape = 'u8[1024]{0}', space=vmem, size = 0x400, scoped, tag = 'output window, operand 0, single buffered']
    %10 = vsyncpa [#allocation3], 0
    %11 = vsyncpa [#allocation6], 0
    %12 = vsyncpa [#allocation9], 0
    %13 = vsyncpa [#allocation4], 0
    // Predicated region
    $region2: #{inception_aux_forward.3} parent=1 // pred_check
      _
    $region3: #{inception_aux_forward.3} parent=1 // pred_check_branch
      %15 = sbr.rel (0) target = $region5
    $region4: #{inception_aux_forward.3} parent=1 // pred_region
      _
    $region5: #{inception_aux_forward.3} parent=1 // pred_fallthru
      _
    // Predicated region
    $region6: #{inception_aux_forward.3} parent=1 // pred_check
      _
    $region7: #{inception_aux_forward.3} parent=1 // pred_check_branch
      %17 = sbr.rel (0) target = $region9
    $region8: #{inception_aux_forward.3} parent=1 // pred_region
      %19 = vsyncadd [#allocation3], 0
      %s20 = sshll.u32 %s1, 4
      %s21 = int_to_ptr.hbm [resolvable:$true] %s20
      %s22 = sshll.u32 [#allocation2], 4
      %s23 = int_to_ptr.vmem [resolvable:$true] %s22
      %28 = dma.hbm_to_vmem [thread:$0]  %s21, 131072, %s23, [#allocation3], 512, 512, 32
    $region9: #{inception_aux_forward.3} parent=1 // pred_fallthru
      _
    // Predicated region
    $region10: #{inception_aux_forward.3} parent=1 // pred_check
      _
    $region11: #{inception_aux_forward.3} parent=1 // pred_check_branch
      %30 = sbr.rel (0) target = $region13
    $region12: #{inception_aux_forward.3} parent=1 // pred_region
      %32 = vsyncadd [#allocation6], 0
      %s34 = sshll.u32 %s2, 4
      %s35 = int_to_ptr.hbm [resolvable:$true] %s34
      %s36 = sshll.u32 [#allocation5], 4
      %s37 = int_to_ptr.vmem [resolvable:$true] %s36
      %39 = dma.hbm_to_vmem [thread:$0]  %s35, 128, %s37, [#allocation6]
    $region13: #{inception_aux_forward.3} parent=1 // pred_fallthru
      _
    // Predicated region
    $region14: #{inception_aux_forward.3} parent=1 // pred_check
      _
    $region15: #{inception_aux_forward.3} parent=1 // pred_check_branch
      %41 = sbr.rel (0) target = $region17
    $region16: #{inception_aux_forward.3} parent=1 // pred_region
      %43 = vsyncadd [#allocation6], 0
      %s44 = sshll.u32 %s3, 4
      %s45 = int_to_ptr.hbm [resolvable:$true] %s44
      %s46 = sshll.u32 [#allocation7], 4
      %s47 = int_to_ptr.vmem [resolvable:$true] %s46
      %52 = dma.hbm_to_vmem [thread:$0]  %s45, 8192, %s47, [#allocation6], 64, 64, 4
    $region17: #{inception_aux_forward.3} parent=1 // pred_fallthru
      _
    // Predicated region
    $region18: #{inception_aux_forward.3} parent=1 // pred_check
      _
    $region19: #{inception_aux_forward.3} parent=1 // pred_check_branch
      %54 = sbr.rel (0) target = $region21
    $region20: #{inception_aux_forward.3} parent=1 // pred_region
      %56 = vsyncadd [#allocation9], 0
      %s58 = sshll.u32 %s4, 4
      %s59 = int_to_ptr.hbm [resolvable:$true] %s58
      %s60 = sshll.u32 [#allocation8], 4
      %s61 = int_to_ptr.vmem [resolvable:$true] %s60
      %63 = dma.hbm_to_vmem [thread:$0]  %s59, 16, %s61, [#allocation9]
    $region21: #{inception_aux_forward.3} parent=1 // pred_fallthru
      _
    // Predicated region
    $region22: #{inception_aux_forward.3} parent=1 // pred_check
      _
    $region23: #{inception_aux_forward.3} parent=1 // pred_check_branch
      %65 = sbr.rel (0) target = $region25
    $region24: #{inception_aux_forward.3} parent=1 // pred_region
      %67 = dma.done [#allocation3], 131072
    $region25: #{inception_aux_forward.3} parent=1 // pred_fallthru
      _
    // Predicated region
    $region26: #{inception_aux_forward.3} parent=1 // pred_check
      _
    $region27: #{inception_aux_forward.3} parent=1 // pred_check_branch
      %69 = sbr.rel (0) target = $region29
    $region28: #{inception_aux_forward.3} parent=1 // pred_region
      %71 = dma.done [#allocation6], 128
    $region29: #{inception_aux_forward.3} parent=1 // pred_fallthru
      _
    // Predicated region
    $region30: #{inception_aux_forward.3} parent=1 // pred_check
      _
    $region31: #{inception_aux_forward.3} parent=1 // pred_check_branch
      %73 = sbr.rel (0) target = $region33
    $region32: #{inception_aux_forward.3} parent=1 // pred_region
      %75 = dma.done [#allocation6], 8192
    $region33: #{inception_aux_forward.3} parent=1 // pred_fallthru
      _
    // Predicated region
    $region34: #{inception_aux_forward.3} parent=1 // pred_check
      _
    $region35: #{inception_aux_forward.3} parent=1 // pred_check_branch
      %77 = sbr.rel (0) target = $region37
    $region36: #{inception_aux_forward.3} parent=1 // pred_region
      %79 = dma.done [#allocation9], 16
    $region37: #{inception_aux_forward.3} parent=1 // pred_fallthru
      _
    %v80 = vld [vmem:[%s0] sm:$0xff]
    %v81 = vld [vmem:[%s0 + $0x8] sm:$0xff]
    %v82 = vld [vmem:[%s0 + $0x10] sm:$0xff]
    %v83 = vld [vmem:[%s0 + $0x18] sm:$0xff]
    %88 = vst [vmem:[#allocation1] ss:$4 sm:$0xff] %v80
    %s89 = scalar_lea.vmem [#allocation1], 32
    %90 = vst [vmem:[%s89] ss:$4 sm:$0xff] %v81
    %v91 = vld.sshfl [vmem:[#allocation1] sm:$0xff pattern:$0x73625140]
    %v92 = vld.sshfl [vmem:[#allocation1 + $0x8] sm:$0xff pattern:$0x73625140]
    %v93 = vld.sshfl [vmem:[#allocation1 + $0x10] sm:$0xff pattern:$0x73625140]
    %v94 = vld.sshfl [vmem:[#allocation1 + $0x18] sm:$0xff pattern:$0x73625140]
    %v95 = vld.sshfl [vmem:[#allocation1 + $0x20] sm:$0xff pattern:$0x73625140]
    %v96 = vld.sshfl [vmem:[#allocation1 + $0x28] sm:$0xff pattern:$0x73625140]
    %v97 = vld.sshfl [vmem:[#allocation1 + $0x30] sm:$0xff pattern:$0x73625140]
    %v98 = vld.sshfl [vmem:[#allocation1 + $0x38] sm:$0xff pattern:$0x73625140]
    %99 = vst [vmem:[#allocation1] ss:$4 sm:$0xff] %v82
    %100 = vst [vmem:[%s89] ss:$4 sm:$0xff] %v83
    %v101 = vld.sshfl [vmem:[#allocation1] sm:$0xff pattern:$0x73625140]
    %v102 = vld.sshfl [vmem:[#allocation1 + $0x8] sm:$0xff pattern:$0x73625140]
    %v103 = vld.sshfl [vmem:[#allocation1 + $0x10] sm:$0xff pattern:$0x73625140]
    %v104 = vld.sshfl [vmem:[#allocation1 + $0x18] sm:$0xff pattern:$0x73625140]
    %v105 = vld.sshfl [vmem:[#allocation1 + $0x20] sm:$0xff pattern:$0x73625140]
    %v106 = vld.sshfl [vmem:[#allocation1 + $0x28] sm:$0xff pattern:$0x73625140]
    %v107 = vld.sshfl [vmem:[#allocation1 + $0x30] sm:$0xff pattern:$0x73625140]
    %v108 = vld.sshfl [vmem:[#allocation1 + $0x38] sm:$0xff pattern:$0x73625140]
    %v125 = vpack.c.bf16 %v91, %v91
    %v126 = vpack.c.bf16 %v92, %v92
    %v127 = vpack.c.bf16 %v93, %v93
    %v128 = vpack.c.bf16 %v94, %v94
    %v129 = vpack.c.bf16 %v95, %v95
    %v130 = vpack.c.bf16 %v96, %v96
    %v131 = vpack.c.bf16 %v97, %v97
    %v132 = vpack.c.bf16 %v98, %v98
    %v133 = vpack.c.bf16 %v101, %v101
    %v134 = vpack.c.bf16 %v102, %v102
    %v135 = vpack.c.bf16 %v103, %v103
    %v136 = vpack.c.bf16 %v104, %v104
    %v137 = vpack.c.bf16 %v105, %v105
    %v138 = vpack.c.bf16 %v106, %v106
    %v139 = vpack.c.bf16 %v107, %v107
    %v140 = vpack.c.bf16 %v108, %v108
    %v141 = vld [vmem:[#allocation2] sm:$0xff]
    %v142 = vld [vmem:[#allocation2 + $0x8] sm:$0xff]
    %v143 = vld [vmem:[#allocation2 + $0x10] sm:$0xff]
    %v144 = vld [vmem:[#allocation2 + $0x18] sm:$0xff]
    %v145 = vld [vmem:[#allocation2 + $0x20] sm:$0xff]
    %v146 = vld [vmem:[#allocation2 + $0x28] sm:$0xff]
    %v147 = vld [vmem:[#allocation2 + $0x30] sm:$0xff]
    %v148 = vld [vmem:[#allocation2 + $0x38] sm:$0xff]
    %v149 = vld [vmem:[#allocation2 + $0x40] sm:$0xff]
    %v150 = vld [vmem:[#allocation2 + $0x48] sm:$0xff]
    %v151 = vld [vmem:[#allocation2 + $0x50] sm:$0xff]
    %v152 = vld [vmem:[#allocation2 + $0x58] sm:$0xff]
    %v153 = vld [vmem:[#allocation2 + $0x60] sm:$0xff]
    %v154 = vld [vmem:[#allocation2 + $0x68] sm:$0xff]
    %v155 = vld [vmem:[#allocation2 + $0x70] sm:$0xff]
    %v156 = vld [vmem:[#allocation2 + $0x78] sm:$0xff]
    %v157 = vld [vmem:[#allocation2 + $0x80] sm:$0xff]
    %v158 = vld [vmem:[#allocation2 + $0x88] sm:$0xff]
    %v159 = vld [vmem:[#allocation2 + $0x90] sm:$0xff]
    %v160 = vld [vmem:[#allocation2 + $0x98] sm:$0xff]
    %v161 = vld [vmem:[#allocation2 + $0xa0] sm:$0xff]
    %v162 = vld [vmem:[#allocation2 + $0xa8] sm:$0xff]
    %v163 = vld [vmem:[#allocation2 + $0xb0] sm:$0xff]
    %v164 = vld [vmem:[#allocation2 + $0xb8] sm:$0xff]
    %v165 = vld [vmem:[#allocation2 + $0xc0] sm:$0xff]
    %v166 = vld [vmem:[#allocation2 + $0xc8] sm:$0xff]
    %v167 = vld [vmem:[#allocation2 + $0xd0] sm:$0xff]
    %v168 = vld [vmem:[#allocation2 + $0xd8] sm:$0xff]
    %v169 = vld [vmem:[#allocation2 + $0xe0] sm:$0xff]
    %v170 = vld [vmem:[#allocation2 + $0xe8] sm:$0xff]
    %v171 = vld [vmem:[#allocation2 + $0xf0] sm:$0xff]
    %v172 = vld [vmem:[#allocation2 + $0xf8] sm:$0xff]
    %v173 = vld [vmem:[#allocation2 + $0x100] sm:$0xff]
    %v174 = vld [vmem:[#allocation2 + $0x108] sm:$0xff]
    %v175 = vld [vmem:[#allocation2 + $0x110] sm:$0xff]
    %v176 = vld [vmem:[#allocation2 + $0x118] sm:$0xff]
    %v177 = vld [vmem:[#allocation2 + $0x120] sm:$0xff]
    %v178 = vld [vmem:[#allocation2 + $0x128] sm:$0xff]
    %v179 = vld [vmem:[#allocation2 + $0x130] sm:$0xff]
    %v180 = vld [vmem:[#allocation2 + $0x138] sm:$0xff]
    %v181 = vld [vmem:[#allocation2 + $0x140] sm:$0xff]
    %v182 = vld [vmem:[#allocation2 + $0x148] sm:$0xff]
    %v183 = vld [vmem:[#allocation2 + $0x150] sm:$0xff]
    %v184 = vld [vmem:[#allocation2 + $0x158] sm:$0xff]
    %v185 = vld [vmem:[#allocation2 + $0x160] sm:$0xff]
    %v186 = vld [vmem:[#allocation2 + $0x168] sm:$0xff]
    %v187 = vld [vmem:[#allocation2 + $0x170] sm:$0xff]
    %v188 = vld [vmem:[#allocation2 + $0x178] sm:$0xff]
    %v189 = vld [vmem:[#allocation2 + $0x180] sm:$0xff]
    %v190 = vld [vmem:[#allocation2 + $0x188] sm:$0xff]
    %v191 = vld [vmem:[#allocation2 + $0x190] sm:$0xff]
    %v192 = vld [vmem:[#allocation2 + $0x198] sm:$0xff]
    %v193 = vld [vmem:[#allocation2 + $0x1a0] sm:$0xff]
    %v194 = vld [vmem:[#allocation2 + $0x1a8] sm:$0xff]
    %v195 = vld [vmem:[#allocation2 + $0x1b0] sm:$0xff]
    %v196 = vld [vmem:[#allocation2 + $0x1b8] sm:$0xff]
    %v197 = vld [vmem:[#allocation2 + $0x1c0] sm:$0xff]
    %v198 = vld [vmem:[#allocation2 + $0x1c8] sm:$0xff]
    %v199 = vld [vmem:[#allocation2 + $0x1d0] sm:$0xff]
    %v200 = vld [vmem:[#allocation2 + $0x1d8] sm:$0xff]
    %v201 = vld [vmem:[#allocation2 + $0x1e0] sm:$0xff]
    %v202 = vld [vmem:[#allocation2 + $0x1e8] sm:$0xff]
    %v203 = vld [vmem:[#allocation2 + $0x1f0] sm:$0xff]
    %v204 = vld [vmem:[#allocation2 + $0x1f8] sm:$0xff]
    %v205 = vld [vmem:[#allocation2 + $0x200] sm:$0xff]
    %v206 = vld [vmem:[#allocation2 + $0x208] sm:$0xff]
    %v207 = vld [vmem:[#allocation2 + $0x210] sm:$0xff]
    %v208 = vld [vmem:[#allocation2 + $0x218] sm:$0xff]
    %v209 = vld [vmem:[#allocation2 + $0x220] sm:$0xff]
    %v210 = vld [vmem:[#allocation2 + $0x228] sm:$0xff]
    %v211 = vld [vmem:[#allocation2 + $0x230] sm:$0xff]
    %v212 = vld [vmem:[#allocation2 + $0x238] sm:$0xff]
    %v213 = vld [vmem:[#allocation2 + $0x240] sm:$0xff]
    %v214 = vld [vmem:[#allocation2 + $0x248] sm:$0xff]
    %v215 = vld [vmem:[#allocation2 + $0x250] sm:$0xff]
    %v216 = vld [vmem:[#allocation2 + $0x258] sm:$0xff]
    %v217 = vld [vmem:[#allocation2 + $0x260] sm:$0xff]
    %v218 = vld [vmem:[#allocation2 + $0x268] sm:$0xff]
    %v219 = vld [vmem:[#allocation2 + $0x270] sm:$0xff]
    %v220 = vld [vmem:[#allocation2 + $0x278] sm:$0xff]
    %v221 = vld [vmem:[#allocation2 + $0x280] sm:$0xff]
    %v222 = vld [vmem:[#allocation2 + $0x288] sm:$0xff]
    %v223 = vld [vmem:[#allocation2 + $0x290] sm:$0xff]
    %v224 = vld [vmem:[#allocation2 + $0x298] sm:$0xff]
    %v225 = vld [vmem:[#allocation2 + $0x2a0] sm:$0xff]
    %v226 = vld [vmem:[#allocation2 + $0x2a8] sm:$0xff]
    %v227 = vld [vmem:[#allocation2 + $0x2b0] sm:$0xff]
    %v228 = vld [vmem:[#allocation2 + $0x2b8] sm:$0xff]
    %v229 = vld [vmem:[#allocation2 + $0x2c0] sm:$0xff]
    %v230 = vld [vmem:[#allocation2 + $0x2c8] sm:$0xff]
    %v231 = vld [vmem:[#allocation2 + $0x2d0] sm:$0xff]
    %v232 = vld [vmem:[#allocation2 + $0x2d8] sm:$0xff]
    %v233 = vld [vmem:[#allocation2 + $0x2e0] sm:$0xff]
    %v234 = vld [vmem:[#allocation2 + $0x2e8] sm:$0xff]
    %v235 = vld [vmem:[#allocation2 + $0x2f0] sm:$0xff]
    %v236 = vld [vmem:[#allocation2 + $0x2f8] sm:$0xff]
    %v237 = vld [vmem:[#allocation2 + $0x300] sm:$0xff]
    %v238 = vld [vmem:[#allocation2 + $0x308] sm:$0xff]
    %v239 = vld [vmem:[#allocation2 + $0x310] sm:$0xff]
    %v240 = vld [vmem:[#allocation2 + $0x318] sm:$0xff]
    %v241 = vld [vmem:[#allocation2 + $0x320] sm:$0xff]
    %v242 = vld [vmem:[#allocation2 + $0x328] sm:$0xff]
    %v243 = vld [vmem:[#allocation2 + $0x330] sm:$0xff]
    %v244 = vld [vmem:[#allocation2 + $0x338] sm:$0xff]
    %v245 = vld [vmem:[#allocation2 + $0x340] sm:$0xff]
    %v246 = vld [vmem:[#allocation2 + $0x348] sm:$0xff]
    %v247 = vld [vmem:[#allocation2 + $0x350] sm:$0xff]
    %v248 = vld [vmem:[#allocation2 + $0x358] sm:$0xff]
    %v249 = vld [vmem:[#allocation2 + $0x360] sm:$0xff]
    %v250 = vld [vmem:[#allocation2 + $0x368] sm:$0xff]
    %v251 = vld [vmem:[#allocation2 + $0x370] sm:$0xff]
    %v252 = vld [vmem:[#allocation2 + $0x378] sm:$0xff]
    %v253 = vld [vmem:[#allocation2 + $0x380] sm:$0xff]
    %v254 = vld [vmem:[#allocation2 + $0x388] sm:$0xff]
    %v255 = vld [vmem:[#allocation2 + $0x390] sm:$0xff]
    %v256 = vld [vmem:[#allocation2 + $0x398] sm:$0xff]
    %v257 = vld [vmem:[#allocation2 + $0x3a0] sm:$0xff]
    %v258 = vld [vmem:[#allocation2 + $0x3a8] sm:$0xff]
    %v259 = vld [vmem:[#allocation2 + $0x3b0] sm:$0xff]
    %v260 = vld [vmem:[#allocation2 + $0x3b8] sm:$0xff]
    %v261 = vld [vmem:[#allocation2 + $0x3c0] sm:$0xff]
    %v262 = vld [vmem:[#allocation2 + $0x3c8] sm:$0xff]
    %v263 = vld [vmem:[#allocation2 + $0x3d0] sm:$0xff]
    %v264 = vld [vmem:[#allocation2 + $0x3d8] sm:$0xff]
    %v265 = vld [vmem:[#allocation2 + $0x3e0] sm:$0xff]
    %v266 = vld [vmem:[#allocation2 + $0x3e8] sm:$0xff]
    %v267 = vld [vmem:[#allocation2 + $0x3f0] sm:$0xff]
    %v268 = vld [vmem:[#allocation2 + $0x3f8] sm:$0xff]
    %v269 = vld [vmem:[#allocation2 + $0x400] sm:$0xff]
    %v270 = vld [vmem:[#allocation2 + $0x408] sm:$0xff]
    %v271 = vld [vmem:[#allocation2 + $0x410] sm:$0xff]
    %v272 = vld [vmem:[#allocation2 + $0x418] sm:$0xff]
    %v273 = vld [vmem:[#allocation2 + $0x420] sm:$0xff]
    %v274 = vld [vmem:[#allocation2 + $0x428] sm:$0xff]
    %v275 = vld [vmem:[#allocation2 + $0x430] sm:$0xff]
    %v276 = vld [vmem:[#allocation2 + $0x438] sm:$0xff]
    %v277 = vld [vmem:[#allocation2 + $0x440] sm:$0xff]
    %v278 = vld [vmem:[#allocation2 + $0x448] sm:$0xff]
    %v279 = vld [vmem:[#allocation2 + $0x450] sm:$0xff]
    %v280 = vld [vmem:[#allocation2 + $0x458] sm:$0xff]
    %v281 = vld [vmem:[#allocation2 + $0x460] sm:$0xff]
    %v282 = vld [vmem:[#allocation2 + $0x468] sm:$0xff]
    %v283 = vld [vmem:[#allocation2 + $0x470] sm:$0xff]
    %v284 = vld [vmem:[#allocation2 + $0x478] sm:$0xff]
    %v285 = vld [vmem:[#allocation2 + $0x480] sm:$0xff]
    %v286 = vld [vmem:[#allocation2 + $0x488] sm:$0xff]
    %v287 = vld [vmem:[#allocation2 + $0x490] sm:$0xff]
    %v288 = vld [vmem:[#allocation2 + $0x498] sm:$0xff]
    %v289 = vld [vmem:[#allocation2 + $0x4a0] sm:$0xff]
    %v290 = vld [vmem:[#allocation2 + $0x4a8] sm:$0xff]
    %v291 = vld [vmem:[#allocation2 + $0x4b0] sm:$0xff]
    %v292 = vld [vmem:[#allocation2 + $0x4b8] sm:$0xff]
    %v293 = vld [vmem:[#allocation2 + $0x4c0] sm:$0xff]
    %v294 = vld [vmem:[#allocation2 + $0x4c8] sm:$0xff]
    %v295 = vld [vmem:[#allocation2 + $0x4d0] sm:$0xff]
    %v296 = vld [vmem:[#allocation2 + $0x4d8] sm:$0xff]
    %v297 = vld [vmem:[#allocation2 + $0x4e0] sm:$0xff]
    %v298 = vld [vmem:[#allocation2 + $0x4e8] sm:$0xff]
    %v299 = vld [vmem:[#allocation2 + $0x4f0] sm:$0xff]
    %v300 = vld [vmem:[#allocation2 + $0x4f8] sm:$0xff]
    %v301 = vld [vmem:[#allocation2 + $0x500] sm:$0xff]
    %v302 = vld [vmem:[#allocation2 + $0x508] sm:$0xff]
    %v303 = vld [vmem:[#allocation2 + $0x510] sm:$0xff]
    %v304 = vld [vmem:[#allocation2 + $0x518] sm:$0xff]
    %v305 = vld [vmem:[#allocation2 + $0x520] sm:$0xff]
    %v306 = vld [vmem:[#allocation2 + $0x528] sm:$0xff]
    %v307 = vld [vmem:[#allocation2 + $0x530] sm:$0xff]
    %v308 = vld [vmem:[#allocation2 + $0x538] sm:$0xff]
    %v309 = vld [vmem:[#allocation2 + $0x540] sm:$0xff]
    %v310 = vld [vmem:[#allocation2 + $0x548] sm:$0xff]
    %v311 = vld [vmem:[#allocation2 + $0x550] sm:$0xff]
    %v312 = vld [vmem:[#allocation2 + $0x558] sm:$0xff]
    %v313 = vld [vmem:[#allocation2 + $0x560] sm:$0xff]
    %v314 = vld [vmem:[#allocation2 + $0x568] sm:$0xff]
    %v315 = vld [vmem:[#allocation2 + $0x570] sm:$0xff]
    %v316 = vld [vmem:[#allocation2 + $0x578] sm:$0xff]
    %v317 = vld [vmem:[#allocation2 + $0x580] sm:$0xff]
    %v318 = vld [vmem:[#allocation2 + $0x588] sm:$0xff]
    %v319 = vld [vmem:[#allocation2 + $0x590] sm:$0xff]
    %v320 = vld [vmem:[#allocation2 + $0x598] sm:$0xff]
    %v321 = vld [vmem:[#allocation2 + $0x5a0] sm:$0xff]
    %v322 = vld [vmem:[#allocation2 + $0x5a8] sm:$0xff]
    %v323 = vld [vmem:[#allocation2 + $0x5b0] sm:$0xff]
    %v324 = vld [vmem:[#allocation2 + $0x5b8] sm:$0xff]
    %v325 = vld [vmem:[#allocation2 + $0x5c0] sm:$0xff]
    %v326 = vld [vmem:[#allocation2 + $0x5c8] sm:$0xff]
    %v327 = vld [vmem:[#allocation2 + $0x5d0] sm:$0xff]
    %v328 = vld [vmem:[#allocation2 + $0x5d8] sm:$0xff]
    %v329 = vld [vmem:[#allocation2 + $0x5e0] sm:$0xff]
    %v330 = vld [vmem:[#allocation2 + $0x5e8] sm:$0xff]
    %v331 = vld [vmem:[#allocation2 + $0x5f0] sm:$0xff]
    %v332 = vld [vmem:[#allocation2 + $0x5f8] sm:$0xff]
    %v333 = vld [vmem:[#allocation2 + $0x600] sm:$0xff]
    %v334 = vld [vmem:[#allocation2 + $0x608] sm:$0xff]
    %v335 = vld [vmem:[#allocation2 + $0x610] sm:$0xff]
    %v336 = vld [vmem:[#allocation2 + $0x618] sm:$0xff]
    %v337 = vld [vmem:[#allocation2 + $0x620] sm:$0xff]
    %v338 = vld [vmem:[#allocation2 + $0x628] sm:$0xff]
    %v339 = vld [vmem:[#allocation2 + $0x630] sm:$0xff]
    %v340 = vld [vmem:[#allocation2 + $0x638] sm:$0xff]
    %v341 = vld [vmem:[#allocation2 + $0x640] sm:$0xff]
    %v342 = vld [vmem:[#allocation2 + $0x648] sm:$0xff]
    %v343 = vld [vmem:[#allocation2 + $0x650] sm:$0xff]
    %v344 = vld [vmem:[#allocation2 + $0x658] sm:$0xff]
    %v345 = vld [vmem:[#allocation2 + $0x660] sm:$0xff]
    %v346 = vld [vmem:[#allocation2 + $0x668] sm:$0xff]
    %v347 = vld [vmem:[#allocation2 + $0x670] sm:$0xff]
    %v348 = vld [vmem:[#allocation2 + $0x678] sm:$0xff]
    %v349 = vld [vmem:[#allocation2 + $0x680] sm:$0xff]
    %v350 = vld [vmem:[#allocation2 + $0x688] sm:$0xff]
    %v351 = vld [vmem:[#allocation2 + $0x690] sm:$0xff]
    %v352 = vld [vmem:[#allocation2 + $0x698] sm:$0xff]
    %v353 = vld [vmem:[#allocation2 + $0x6a0] sm:$0xff]
    %v354 = vld [vmem:[#allocation2 + $0x6a8] sm:$0xff]
    %v355 = vld [vmem:[#allocation2 + $0x6b0] sm:$0xff]
    %v356 = vld [vmem:[#allocation2 + $0x6b8] sm:$0xff]
    %v357 = vld [vmem:[#allocation2 + $0x6c0] sm:$0xff]
    %v358 = vld [vmem:[#allocation2 + $0x6c8] sm:$0xff]
    %v359 = vld [vmem:[#allocation2 + $0x6d0] sm:$0xff]
    %v360 = vld [vmem:[#allocation2 + $0x6d8] sm:$0xff]
    %v361 = vld [vmem:[#allocation2 + $0x6e0] sm:$0xff]
    %v362 = vld [vmem:[#allocation2 + $0x6e8] sm:$0xff]
    %v363 = vld [vmem:[#allocation2 + $0x6f0] sm:$0xff]
    %v364 = vld [vmem:[#allocation2 + $0x6f8] sm:$0xff]
    %v365 = vld [vmem:[#allocation2 + $0x700] sm:$0xff]
    %v366 = vld [vmem:[#allocation2 + $0x708] sm:$0xff]
    %v367 = vld [vmem:[#allocation2 + $0x710] sm:$0xff]
    %v368 = vld [vmem:[#allocation2 + $0x718] sm:$0xff]
    %v369 = vld [vmem:[#allocation2 + $0x720] sm:$0xff]
    %v370 = vld [vmem:[#allocation2 + $0x728] sm:$0xff]
    %v371 = vld [vmem:[#allocation2 + $0x730] sm:$0xff]
    %v372 = vld [vmem:[#allocation2 + $0x738] sm:$0xff]
    %v373 = vld [vmem:[#allocation2 + $0x740] sm:$0xff]
    %v374 = vld [vmem:[#allocation2 + $0x748] sm:$0xff]
    %v375 = vld [vmem:[#allocation2 + $0x750] sm:$0xff]
    %v376 = vld [vmem:[#allocation2 + $0x758] sm:$0xff]
    %v377 = vld [vmem:[#allocation2 + $0x760] sm:$0xff]
    %v378 = vld [vmem:[#allocation2 + $0x768] sm:$0xff]
    %v379 = vld [vmem:[#allocation2 + $0x770] sm:$0xff]
    %v380 = vld [vmem:[#allocation2 + $0x778] sm:$0xff]
    %v381 = vld [vmem:[#allocation2 + $0x780] sm:$0xff]
    %v382 = vld [vmem:[#allocation2 + $0x788] sm:$0xff]
    %v383 = vld [vmem:[#allocation2 + $0x790] sm:$0xff]
    %v384 = vld [vmem:[#allocation2 + $0x798] sm:$0xff]
    %v385 = vld [vmem:[#allocation2 + $0x7a0] sm:$0xff]
    %v386 = vld [vmem:[#allocation2 + $0x7a8] sm:$0xff]
    %v387 = vld [vmem:[#allocation2 + $0x7b0] sm:$0xff]
    %v388 = vld [vmem:[#allocation2 + $0x7b8] sm:$0xff]
    %v389 = vld [vmem:[#allocation2 + $0x7c0] sm:$0xff]
    %v390 = vld [vmem:[#allocation2 + $0x7c8] sm:$0xff]
    %v391 = vld [vmem:[#allocation2 + $0x7d0] sm:$0xff]
    %v392 = vld [vmem:[#allocation2 + $0x7d8] sm:$0xff]
    %v393 = vld [vmem:[#allocation2 + $0x7e0] sm:$0xff]
    %v394 = vld [vmem:[#allocation2 + $0x7e8] sm:$0xff]
    %v395 = vld [vmem:[#allocation2 + $0x7f0] sm:$0xff]
    %v396 = vld [vmem:[#allocation2 + $0x7f8] sm:$0xff]
    %v397 = vld [vmem:[#allocation2 + $0x800] sm:$0xff]
    %v398 = vld [vmem:[#allocation2 + $0x808] sm:$0xff]
    %v399 = vld [vmem:[#allocation2 + $0x810] sm:$0xff]
    %v400 = vld [vmem:[#allocation2 + $0x818] sm:$0xff]
    %v401 = vld [vmem:[#allocation2 + $0x820] sm:$0xff]
    %v402 = vld [vmem:[#allocation2 + $0x828] sm:$0xff]
    %v403 = vld [vmem:[#allocation2 + $0x830] sm:$0xff]
    %v404 = vld [vmem:[#allocation2 + $0x838] sm:$0xff]
    %v405 = vld [vmem:[#allocation2 + $0x840] sm:$0xff]
    %v406 = vld [vmem:[#allocation2 + $0x848] sm:$0xff]
    %v407 = vld [vmem:[#allocation2 + $0x850] sm:$0xff]
    %v408 = vld [vmem:[#allocation2 + $0x858] sm:$0xff]
    %v409 = vld [vmem:[#allocation2 + $0x860] sm:$0xff]
    %v410 = vld [vmem:[#allocation2 + $0x868] sm:$0xff]
    %v411 = vld [vmem:[#allocation2 + $0x870] sm:$0xff]
    %v412 = vld [vmem:[#allocation2 + $0x878] sm:$0xff]
    %v413 = vld [vmem:[#allocation2 + $0x880] sm:$0xff]
    %v414 = vld [vmem:[#allocation2 + $0x888] sm:$0xff]
    %v415 = vld [vmem:[#allocation2 + $0x890] sm:$0xff]
    %v416 = vld [vmem:[#allocation2 + $0x898] sm:$0xff]
    %v417 = vld [vmem:[#allocation2 + $0x8a0] sm:$0xff]
    %v418 = vld [vmem:[#allocation2 + $0x8a8] sm:$0xff]
    %v419 = vld [vmem:[#allocation2 + $0x8b0] sm:$0xff]
    %v420 = vld [vmem:[#allocation2 + $0x8b8] sm:$0xff]
    %v421 = vld [vmem:[#allocation2 + $0x8c0] sm:$0xff]
    %v422 = vld [vmem:[#allocation2 + $0x8c8] sm:$0xff]
    %v423 = vld [vmem:[#allocation2 + $0x8d0] sm:$0xff]
    %v424 = vld [vmem:[#allocation2 + $0x8d8] sm:$0xff]
    %v425 = vld [vmem:[#allocation2 + $0x8e0] sm:$0xff]
    %v426 = vld [vmem:[#allocation2 + $0x8e8] sm:$0xff]
    %v427 = vld [vmem:[#allocation2 + $0x8f0] sm:$0xff]
    %v428 = vld [vmem:[#allocation2 + $0x8f8] sm:$0xff]
    %v429 = vld [vmem:[#allocation2 + $0x900] sm:$0xff]
    %v430 = vld [vmem:[#allocation2 + $0x908] sm:$0xff]
    %v431 = vld [vmem:[#allocation2 + $0x910] sm:$0xff]
    %v432 = vld [vmem:[#allocation2 + $0x918] sm:$0xff]
    %v433 = vld [vmem:[#allocation2 + $0x920] sm:$0xff]
    %v434 = vld [vmem:[#allocation2 + $0x928] sm:$0xff]
    %v435 = vld [vmem:[#allocation2 + $0x930] sm:$0xff]
    %v436 = vld [vmem:[#allocation2 + $0x938] sm:$0xff]
    %v437 = vld [vmem:[#allocation2 + $0x940] sm:$0xff]
    %v438 = vld [vmem:[#allocation2 + $0x948] sm:$0xff]
    %v439 = vld [vmem:[#allocation2 + $0x950] sm:$0xff]
    %v440 = vld [vmem:[#allocation2 + $0x958] sm:$0xff]
    %v441 = vld [vmem:[#allocation2 + $0x960] sm:$0xff]
    %v442 = vld [vmem:[#allocation2 + $0x968] sm:$0xff]
    %v443 = vld [vmem:[#allocation2 + $0x970] sm:$0xff]
    %v444 = vld [vmem:[#allocation2 + $0x978] sm:$0xff]
    %v445 = vld [vmem:[#allocation2 + $0x980] sm:$0xff]
    %v446 = vld [vmem:[#allocation2 + $0x988] sm:$0xff]
    %v447 = vld [vmem:[#allocation2 + $0x990] sm:$0xff]
    %v448 = vld [vmem:[#allocation2 + $0x998] sm:$0xff]
    %v449 = vld [vmem:[#allocation2 + $0x9a0] sm:$0xff]
    %v450 = vld [vmem:[#allocation2 + $0x9a8] sm:$0xff]
    %v451 = vld [vmem:[#allocation2 + $0x9b0] sm:$0xff]
    %v452 = vld [vmem:[#allocation2 + $0x9b8] sm:$0xff]
    %v453 = vld [vmem:[#allocation2 + $0x9c0] sm:$0xff]
    %v454 = vld [vmem:[#allocation2 + $0x9c8] sm:$0xff]
    %v455 = vld [vmem:[#allocation2 + $0x9d0] sm:$0xff]
    %v456 = vld [vmem:[#allocation2 + $0x9d8] sm:$0xff]
    %v457 = vld [vmem:[#allocation2 + $0x9e0] sm:$0xff]
    %v458 = vld [vmem:[#allocation2 + $0x9e8] sm:$0xff]
    %v459 = vld [vmem:[#allocation2 + $0x9f0] sm:$0xff]
    %v460 = vld [vmem:[#allocation2 + $0x9f8] sm:$0xff]
    %v461 = vld [vmem:[#allocation2 + $0xa00] sm:$0xff]
    %v462 = vld [vmem:[#allocation2 + $0xa08] sm:$0xff]
    %v463 = vld [vmem:[#allocation2 + $0xa10] sm:$0xff]
    %v464 = vld [vmem:[#allocation2 + $0xa18] sm:$0xff]
    %v465 = vld [vmem:[#allocation2 + $0xa20] sm:$0xff]
    %v466 = vld [vmem:[#allocation2 + $0xa28] sm:$0xff]
    %v467 = vld [vmem:[#allocation2 + $0xa30] sm:$0xff]
    %v468 = vld [vmem:[#allocation2 + $0xa38] sm:$0xff]
    %v469 = vld [vmem:[#allocation2 + $0xa40] sm:$0xff]
    %v470 = vld [vmem:[#allocation2 + $0xa48] sm:$0xff]
    %v471 = vld [vmem:[#allocation2 + $0xa50] sm:$0xff]
    %v472 = vld [vmem:[#allocation2 + $0xa58] sm:$0xff]
    %v473 = vld [vmem:[#allocation2 + $0xa60] sm:$0xff]
    %v474 = vld [vmem:[#allocation2 + $0xa68] sm:$0xff]
    %v475 = vld [vmem:[#allocation2 + $0xa70] sm:$0xff]
    %v476 = vld [vmem:[#allocation2 + $0xa78] sm:$0xff]
    %v477 = vld [vmem:[#allocation2 + $0xa80] sm:$0xff]
    %v478 = vld [vmem:[#allocation2 + $0xa88] sm:$0xff]
    %v479 = vld [vmem:[#allocation2 + $0xa90] sm:$0xff]
    %v480 = vld [vmem:[#allocation2 + $0xa98] sm:$0xff]
    %v481 = vld [vmem:[#allocation2 + $0xaa0] sm:$0xff]
    %v482 = vld [vmem:[#allocation2 + $0xaa8] sm:$0xff]
    %v483 = vld [vmem:[#allocation2 + $0xab0] sm:$0xff]
    %v484 = vld [vmem:[#allocation2 + $0xab8] sm:$0xff]
    %v485 = vld [vmem:[#allocation2 + $0xac0] sm:$0xff]
    %v486 = vld [vmem:[#allocation2 + $0xac8] sm:$0xff]
    %v487 = vld [vmem:[#allocation2 + $0xad0] sm:$0xff]
    %v488 = vld [vmem:[#allocation2 + $0xad8] sm:$0xff]
    %v489 = vld [vmem:[#allocation2 + $0xae0] sm:$0xff]
    %v490 = vld [vmem:[#allocation2 + $0xae8] sm:$0xff]
    %v491 = vld [vmem:[#allocation2 + $0xaf0] sm:$0xff]
    %v492 = vld [vmem:[#allocation2 + $0xaf8] sm:$0xff]
    %v493 = vld [vmem:[#allocation2 + $0xb00] sm:$0xff]
    %v494 = vld [vmem:[#allocation2 + $0xb08] sm:$0xff]
    %v495 = vld [vmem:[#allocation2 + $0xb10] sm:$0xff]
    %v496 = vld [vmem:[#allocation2 + $0xb18] sm:$0xff]
    %v497 = vld [vmem:[#allocation2 + $0xb20] sm:$0xff]
    %v498 = vld [vmem:[#allocation2 + $0xb28] sm:$0xff]
    %v499 = vld [vmem:[#allocation2 + $0xb30] sm:$0xff]
    %v500 = vld [vmem:[#allocation2 + $0xb38] sm:$0xff]
    %v501 = vld [vmem:[#allocation2 + $0xb40] sm:$0xff]
    %v502 = vld [vmem:[#allocation2 + $0xb48] sm:$0xff]
    %v503 = vld [vmem:[#allocation2 + $0xb50] sm:$0xff]
    %v504 = vld [vmem:[#allocation2 + $0xb58] sm:$0xff]
    %v505 = vld [vmem:[#allocation2 + $0xb60] sm:$0xff]
    %v506 = vld [vmem:[#allocation2 + $0xb68] sm:$0xff]
    %v507 = vld [vmem:[#allocation2 + $0xb70] sm:$0xff]
    %v508 = vld [vmem:[#allocation2 + $0xb78] sm:$0xff]
    %v509 = vld [vmem:[#allocation2 + $0xb80] sm:$0xff]
    %v510 = vld [vmem:[#allocation2 + $0xb88] sm:$0xff]
    %v511 = vld [vmem:[#allocation2 + $0xb90] sm:$0xff]
    %v512 = vld [vmem:[#allocation2 + $0xb98] sm:$0xff]
    %v513 = vld [vmem:[#allocation2 + $0xba0] sm:$0xff]
    %v514 = vld [vmem:[#allocation2 + $0xba8] sm:$0xff]
    %v515 = vld [vmem:[#allocation2 + $0xbb0] sm:$0xff]
    %v516 = vld [vmem:[#allocation2 + $0xbb8] sm:$0xff]
    %v517 = vld [vmem:[#allocation2 + $0xbc0] sm:$0xff]
    %v518 = vld [vmem:[#allocation2 + $0xbc8] sm:$0xff]
    %v519 = vld [vmem:[#allocation2 + $0xbd0] sm:$0xff]
    %v520 = vld [vmem:[#allocation2 + $0xbd8] sm:$0xff]
    %v521 = vld [vmem:[#allocation2 + $0xbe0] sm:$0xff]
    %v522 = vld [vmem:[#allocation2 + $0xbe8] sm:$0xff]
    %v523 = vld [vmem:[#allocation2 + $0xbf0] sm:$0xff]
    %v524 = vld [vmem:[#allocation2 + $0xbf8] sm:$0xff]
    %v525 = vld [vmem:[#allocation2 + $0xc00] sm:$0xff]
    %v526 = vld [vmem:[#allocation2 + $0xc08] sm:$0xff]
    %v527 = vld [vmem:[#allocation2 + $0xc10] sm:$0xff]
    %v528 = vld [vmem:[#allocation2 + $0xc18] sm:$0xff]
    %v529 = vld [vmem:[#allocation2 + $0xc20] sm:$0xff]
    %v530 = vld [vmem:[#allocation2 + $0xc28] sm:$0xff]
    %v531 = vld [vmem:[#allocation2 + $0xc30] sm:$0xff]
    %v532 = vld [vmem:[#allocation2 + $0xc38] sm:$0xff]
    %v533 = vld [vmem:[#allocation2 + $0xc40] sm:$0xff]
    %v534 = vld [vmem:[#allocation2 + $0xc48] sm:$0xff]
    %v535 = vld [vmem:[#allocation2 + $0xc50] sm:$0xff]
    %v536 = vld [vmem:[#allocation2 + $0xc58] sm:$0xff]
    %v537 = vld [vmem:[#allocation2 + $0xc60] sm:$0xff]
    %v538 = vld [vmem:[#allocation2 + $0xc68] sm:$0xff]
    %v539 = vld [vmem:[#allocation2 + $0xc70] sm:$0xff]
    %v540 = vld [vmem:[#allocation2 + $0xc78] sm:$0xff]
    %v541 = vld [vmem:[#allocation2 + $0xc80] sm:$0xff]
    %v542 = vld [vmem:[#allocation2 + $0xc88] sm:$0xff]
    %v543 = vld [vmem:[#allocation2 + $0xc90] sm:$0xff]
    %v544 = vld [vmem:[#allocation2 + $0xc98] sm:$0xff]
    %v545 = vld [vmem:[#allocation2 + $0xca0] sm:$0xff]
    %v546 = vld [vmem:[#allocation2 + $0xca8] sm:$0xff]
    %v547 = vld [vmem:[#allocation2 + $0xcb0] sm:$0xff]
    %v548 = vld [vmem:[#allocation2 + $0xcb8] sm:$0xff]
    %v549 = vld [vmem:[#allocation2 + $0xcc0] sm:$0xff]
    %v550 = vld [vmem:[#allocation2 + $0xcc8] sm:$0xff]
    %v551 = vld [vmem:[#allocation2 + $0xcd0] sm:$0xff]
    %v552 = vld [vmem:[#allocation2 + $0xcd8] sm:$0xff]
    %v553 = vld [vmem:[#allocation2 + $0xce0] sm:$0xff]
    %v554 = vld [vmem:[#allocation2 + $0xce8] sm:$0xff]
    %v555 = vld [vmem:[#allocation2 + $0xcf0] sm:$0xff]
    %v556 = vld [vmem:[#allocation2 + $0xcf8] sm:$0xff]
    %v557 = vld [vmem:[#allocation2 + $0xd00] sm:$0xff]
    %v558 = vld [vmem:[#allocation2 + $0xd08] sm:$0xff]
    %v559 = vld [vmem:[#allocation2 + $0xd10] sm:$0xff]
    %v560 = vld [vmem:[#allocation2 + $0xd18] sm:$0xff]
    %v561 = vld [vmem:[#allocation2 + $0xd20] sm:$0xff]
    %v562 = vld [vmem:[#allocation2 + $0xd28] sm:$0xff]
    %v563 = vld [vmem:[#allocation2 + $0xd30] sm:$0xff]
    %v564 = vld [vmem:[#allocation2 + $0xd38] sm:$0xff]
    %v565 = vld [vmem:[#allocation2 + $0xd40] sm:$0xff]
    %v566 = vld [vmem:[#allocation2 + $0xd48] sm:$0xff]
    %v567 = vld [vmem:[#allocation2 + $0xd50] sm:$0xff]
    %v568 = vld [vmem:[#allocation2 + $0xd58] sm:$0xff]
    %v569 = vld [vmem:[#allocation2 + $0xd60] sm:$0xff]
    %v570 = vld [vmem:[#allocation2 + $0xd68] sm:$0xff]
    %v571 = vld [vmem:[#allocation2 + $0xd70] sm:$0xff]
    %v572 = vld [vmem:[#allocation2 + $0xd78] sm:$0xff]
    %v573 = vld [vmem:[#allocation2 + $0xd80] sm:$0xff]
    %v574 = vld [vmem:[#allocation2 + $0xd88] sm:$0xff]
    %v575 = vld [vmem:[#allocation2 + $0xd90] sm:$0xff]
    %v576 = vld [vmem:[#allocation2 + $0xd98] sm:$0xff]
    %v577 = vld [vmem:[#allocation2 + $0xda0] sm:$0xff]
    %v578 = vld [vmem:[#allocation2 + $0xda8] sm:$0xff]
    %v579 = vld [vmem:[#allocation2 + $0xdb0] sm:$0xff]
    %v580 = vld [vmem:[#allocation2 + $0xdb8] sm:$0xff]
    %v581 = vld [vmem:[#allocation2 + $0xdc0] sm:$0xff]
    %v582 = vld [vmem:[#allocation2 + $0xdc8] sm:$0xff]
    %v583 = vld [vmem:[#allocation2 + $0xdd0] sm:$0xff]
    %v584 = vld [vmem:[#allocation2 + $0xdd8] sm:$0xff]
    %v585 = vld [vmem:[#allocation2 + $0xde0] sm:$0xff]
    %v586 = vld [vmem:[#allocation2 + $0xde8] sm:$0xff]
    %v587 = vld [vmem:[#allocation2 + $0xdf0] sm:$0xff]
    %v588 = vld [vmem:[#allocation2 + $0xdf8] sm:$0xff]
    %v589 = vld [vmem:[#allocation2 + $0xe00] sm:$0xff]
    %v590 = vld [vmem:[#allocation2 + $0xe08] sm:$0xff]
    %v591 = vld [vmem:[#allocation2 + $0xe10] sm:$0xff]
    %v592 = vld [vmem:[#allocation2 + $0xe18] sm:$0xff]
    %v593 = vld [vmem:[#allocation2 + $0xe20] sm:$0xff]
    %v594 = vld [vmem:[#allocation2 + $0xe28] sm:$0xff]
    %v595 = vld [vmem:[#allocation2 + $0xe30] sm:$0xff]
    %v596 = vld [vmem:[#allocation2 + $0xe38] sm:$0xff]
    %v597 = vld [vmem:[#allocation2 + $0xe40] sm:$0xff]
    %v598 = vld [vmem:[#allocation2 + $0xe48] sm:$0xff]
    %v599 = vld [vmem:[#allocation2 + $0xe50] sm:$0xff]
    %v600 = vld [vmem:[#allocation2 + $0xe58] sm:$0xff]
    %v601 = vld [vmem:[#allocation2 + $0xe60] sm:$0xff]
    %v602 = vld [vmem:[#allocation2 + $0xe68] sm:$0xff]
    %v603 = vld [vmem:[#allocation2 + $0xe70] sm:$0xff]
    %v604 = vld [vmem:[#allocation2 + $0xe78] sm:$0xff]
    %v605 = vld [vmem:[#allocation2 + $0xe80] sm:$0xff]
    %v606 = vld [vmem:[#allocation2 + $0xe88] sm:$0xff]
    %v607 = vld [vmem:[#allocation2 + $0xe90] sm:$0xff]
    %v608 = vld [vmem:[#allocation2 + $0xe98] sm:$0xff]
    %v609 = vld [vmem:[#allocation2 + $0xea0] sm:$0xff]
    %v610 = vld [vmem:[#allocation2 + $0xea8] sm:$0xff]
    %v611 = vld [vmem:[#allocation2 + $0xeb0] sm:$0xff]
    %v612 = vld [vmem:[#allocation2 + $0xeb8] sm:$0xff]
    %v613 = vld [vmem:[#allocation2 + $0xec0] sm:$0xff]
    %v614 = vld [vmem:[#allocation2 + $0xec8] sm:$0xff]
    %v615 = vld [vmem:[#allocation2 + $0xed0] sm:$0xff]
    %v616 = vld [vmem:[#allocation2 + $0xed8] sm:$0xff]
    %v617 = vld [vmem:[#allocation2 + $0xee0] sm:$0xff]
    %v618 = vld [vmem:[#allocation2 + $0xee8] sm:$0xff]
    %v619 = vld [vmem:[#allocation2 + $0xef0] sm:$0xff]
    %v620 = vld [vmem:[#allocation2 + $0xef8] sm:$0xff]
    %v621 = vld [vmem:[#allocation2 + $0xf00] sm:$0xff]
    %v622 = vld [vmem:[#allocation2 + $0xf08] sm:$0xff]
    %v623 = vld [vmem:[#allocation2 + $0xf10] sm:$0xff]
    %v624 = vld [vmem:[#allocation2 + $0xf18] sm:$0xff]
    %v625 = vld [vmem:[#allocation2 + $0xf20] sm:$0xff]
    %v626 = vld [vmem:[#allocation2 + $0xf28] sm:$0xff]
    %v627 = vld [vmem:[#allocation2 + $0xf30] sm:$0xff]
    %v628 = vld [vmem:[#allocation2 + $0xf38] sm:$0xff]
    %v629 = vld [vmem:[#allocation2 + $0xf40] sm:$0xff]
    %v630 = vld [vmem:[#allocation2 + $0xf48] sm:$0xff]
    %v631 = vld [vmem:[#allocation2 + $0xf50] sm:$0xff]
    %v632 = vld [vmem:[#allocation2 + $0xf58] sm:$0xff]
    %v633 = vld [vmem:[#allocation2 + $0xf60] sm:$0xff]
    %v634 = vld [vmem:[#allocation2 + $0xf68] sm:$0xff]
    %v635 = vld [vmem:[#allocation2 + $0xf70] sm:$0xff]
    %v636 = vld [vmem:[#allocation2 + $0xf78] sm:$0xff]
    %v637 = vld [vmem:[#allocation2 + $0xf80] sm:$0xff]
    %v638 = vld [vmem:[#allocation2 + $0xf88] sm:$0xff]
    %v639 = vld [vmem:[#allocation2 + $0xf90] sm:$0xff]
    %v640 = vld [vmem:[#allocation2 + $0xf98] sm:$0xff]
    %v641 = vld [vmem:[#allocation2 + $0xfa0] sm:$0xff]
    %v642 = vld [vmem:[#allocation2 + $0xfa8] sm:$0xff]
    %v643 = vld [vmem:[#allocation2 + $0xfb0] sm:$0xff]
    %v644 = vld [vmem:[#allocation2 + $0xfb8] sm:$0xff]
    %v645 = vld [vmem:[#allocation2 + $0xfc0] sm:$0xff]
    %v646 = vld [vmem:[#allocation2 + $0xfc8] sm:$0xff]
    %v647 = vld [vmem:[#allocation2 + $0xfd0] sm:$0xff]
    %v648 = vld [vmem:[#allocation2 + $0xfd8] sm:$0xff]
    %v649 = vld [vmem:[#allocation2 + $0xfe0] sm:$0xff]
    %v650 = vld [vmem:[#allocation2 + $0xfe8] sm:$0xff]
    %v651 = vld [vmem:[#allocation2 + $0xff0] sm:$0xff]
    %v652 = vld [vmem:[#allocation2 + $0xff8] sm:$0xff]
    %v653 = vld [vmem:[#allocation2 + $0x1000] sm:$0xff]
    %v654 = vld [vmem:[#allocation2 + $0x1008] sm:$0xff]
    %v655 = vld [vmem:[#allocation2 + $0x1010] sm:$0xff]
    %v656 = vld [vmem:[#allocation2 + $0x1018] sm:$0xff]
    %v657 = vld [vmem:[#allocation2 + $0x1020] sm:$0xff]
    %v658 = vld [vmem:[#allocation2 + $0x1028] sm:$0xff]
    %v659 = vld [vmem:[#allocation2 + $0x1030] sm:$0xff]
    %v660 = vld [vmem:[#allocation2 + $0x1038] sm:$0xff]
    %v661 = vld [vmem:[#allocation2 + $0x1040] sm:$0xff]
    %v662 = vld [vmem:[#allocation2 + $0x1048] sm:$0xff]
    %v663 = vld [vmem:[#allocation2 + $0x1050] sm:$0xff]
    %v664 = vld [vmem:[#allocation2 + $0x1058] sm:$0xff]
    %v665 = vld [vmem:[#allocation2 + $0x1060] sm:$0xff]
    %v666 = vld [vmem:[#allocation2 + $0x1068] sm:$0xff]
    %v667 = vld [vmem:[#allocation2 + $0x1070] sm:$0xff]
    %v668 = vld [vmem:[#allocation2 + $0x1078] sm:$0xff]
    %v669 = vld [vmem:[#allocation2 + $0x1080] sm:$0xff]
    %v670 = vld [vmem:[#allocation2 + $0x1088] sm:$0xff]
    %v671 = vld [vmem:[#allocation2 + $0x1090] sm:$0xff]
    %v672 = vld [vmem:[#allocation2 + $0x1098] sm:$0xff]
    %v673 = vld [vmem:[#allocation2 + $0x10a0] sm:$0xff]
    %v674 = vld [vmem:[#allocation2 + $0x10a8] sm:$0xff]
    %v675 = vld [vmem:[#allocation2 + $0x10b0] sm:$0xff]
    %v676 = vld [vmem:[#allocation2 + $0x10b8] sm:$0xff]
    %v677 = vld [vmem:[#allocation2 + $0x10c0] sm:$0xff]
    %v678 = vld [vmem:[#allocation2 + $0x10c8] sm:$0xff]
    %v679 = vld [vmem:[#allocation2 + $0x10d0] sm:$0xff]
    %v680 = vld [vmem:[#allocation2 + $0x10d8] sm:$0xff]
    %v681 = vld [vmem:[#allocation2 + $0x10e0] sm:$0xff]
    %v682 = vld [vmem:[#allocation2 + $0x10e8] sm:$0xff]
    %v683 = vld [vmem:[#allocation2 + $0x10f0] sm:$0xff]
    %v684 = vld [vmem:[#allocation2 + $0x10f8] sm:$0xff]
    %v685 = vld [vmem:[#allocation2 + $0x1100] sm:$0xff]
    %v686 = vld [vmem:[#allocation2 + $0x1108] sm:$0xff]
    %v687 = vld [vmem:[#allocation2 + $0x1110] sm:$0xff]
    %v688 = vld [vmem:[#allocation2 + $0x1118] sm:$0xff]
    %v689 = vld [vmem:[#allocation2 + $0x1120] sm:$0xff]
    %v690 = vld [vmem:[#allocation2 + $0x1128] sm:$0xff]
    %v691 = vld [vmem:[#allocation2 + $0x1130] sm:$0xff]
    %v692 = vld [vmem:[#allocation2 + $0x1138] sm:$0xff]
    %v693 = vld [vmem:[#allocation2 + $0x1140] sm:$0xff]
    %v694 = vld [vmem:[#allocation2 + $0x1148] sm:$0xff]
    %v695 = vld [vmem:[#allocation2 + $0x1150] sm:$0xff]
    %v696 = vld [vmem:[#allocation2 + $0x1158] sm:$0xff]
    %v697 = vld [vmem:[#allocation2 + $0x1160] sm:$0xff]
    %v698 = vld [vmem:[#allocation2 + $0x1168] sm:$0xff]
    %v699 = vld [vmem:[#allocation2 + $0x1170] sm:$0xff]
    %v700 = vld [vmem:[#allocation2 + $0x1178] sm:$0xff]
    %v701 = vld [vmem:[#allocation2 + $0x1180] sm:$0xff]
    %v702 = vld [vmem:[#allocation2 + $0x1188] sm:$0xff]
    %v703 = vld [vmem:[#allocation2 + $0x1190] sm:$0xff]
    %v704 = vld [vmem:[#allocation2 + $0x1198] sm:$0xff]
    %v705 = vld [vmem:[#allocation2 + $0x11a0] sm:$0xff]
    %v706 = vld [vmem:[#allocation2 + $0x11a8] sm:$0xff]
    %v707 = vld [vmem:[#allocation2 + $0x11b0] sm:$0xff]
    %v708 = vld [vmem:[#allocation2 + $0x11b8] sm:$0xff]
    %v709 = vld [vmem:[#allocation2 + $0x11c0] sm:$0xff]
    %v710 = vld [vmem:[#allocation2 + $0x11c8] sm:$0xff]
    %v711 = vld [vmem:[#allocation2 + $0x11d0] sm:$0xff]
    %v712 = vld [vmem:[#allocation2 + $0x11d8] sm:$0xff]
    %v713 = vld [vmem:[#allocation2 + $0x11e0] sm:$0xff]
    %v714 = vld [vmem:[#allocation2 + $0x11e8] sm:$0xff]
    %v715 = vld [vmem:[#allocation2 + $0x11f0] sm:$0xff]
    %v716 = vld [vmem:[#allocation2 + $0x11f8] sm:$0xff]
    %v717 = vld [vmem:[#allocation2 + $0x1200] sm:$0xff]
    %v718 = vld [vmem:[#allocation2 + $0x1208] sm:$0xff]
    %v719 = vld [vmem:[#allocation2 + $0x1210] sm:$0xff]
    %v720 = vld [vmem:[#allocation2 + $0x1218] sm:$0xff]
    %v721 = vld [vmem:[#allocation2 + $0x1220] sm:$0xff]
    %v722 = vld [vmem:[#allocation2 + $0x1228] sm:$0xff]
    %v723 = vld [vmem:[#allocation2 + $0x1230] sm:$0xff]
    %v724 = vld [vmem:[#allocation2 + $0x1238] sm:$0xff]
    %v725 = vld [vmem:[#allocation2 + $0x1240] sm:$0xff]
    %v726 = vld [vmem:[#allocation2 + $0x1248] sm:$0xff]
    %v727 = vld [vmem:[#allocation2 + $0x1250] sm:$0xff]
    %v728 = vld [vmem:[#allocation2 + $0x1258] sm:$0xff]
    %v729 = vld [vmem:[#allocation2 + $0x1260] sm:$0xff]
    %v730 = vld [vmem:[#allocation2 + $0x1268] sm:$0xff]
    %v731 = vld [vmem:[#allocation2 + $0x1270] sm:$0xff]
    %v732 = vld [vmem:[#allocation2 + $0x1278] sm:$0xff]
    %v733 = vld [vmem:[#allocation2 + $0x1280] sm:$0xff]
    %v734 = vld [vmem:[#allocation2 + $0x1288] sm:$0xff]
    %v735 = vld [vmem:[#allocation2 + $0x1290] sm:$0xff]
    %v736 = vld [vmem:[#allocation2 + $0x1298] sm:$0xff]
    %v737 = vld [vmem:[#allocation2 + $0x12a0] sm:$0xff]
    %v738 = vld [vmem:[#allocation2 + $0x12a8] sm:$0xff]
    %v739 = vld [vmem:[#allocation2 + $0x12b0] sm:$0xff]
    %v740 = vld [vmem:[#allocation2 + $0x12b8] sm:$0xff]
    %v741 = vld [vmem:[#allocation2 + $0x12c0] sm:$0xff]
    %v742 = vld [vmem:[#allocation2 + $0x12c8] sm:$0xff]
    %v743 = vld [vmem:[#allocation2 + $0x12d0] sm:$0xff]
    %v744 = vld [vmem:[#allocation2 + $0x12d8] sm:$0xff]
    %v745 = vld [vmem:[#allocation2 + $0x12e0] sm:$0xff]
    %v746 = vld [vmem:[#allocation2 + $0x12e8] sm:$0xff]
    %v747 = vld [vmem:[#allocation2 + $0x12f0] sm:$0xff]
    %v748 = vld [vmem:[#allocation2 + $0x12f8] sm:$0xff]
    %v749 = vld [vmem:[#allocation2 + $0x1300] sm:$0xff]
    %v750 = vld [vmem:[#allocation2 + $0x1308] sm:$0xff]
    %v751 = vld [vmem:[#allocation2 + $0x1310] sm:$0xff]
    %v752 = vld [vmem:[#allocation2 + $0x1318] sm:$0xff]
    %v753 = vld [vmem:[#allocation2 + $0x1320] sm:$0xff]
    %v754 = vld [vmem:[#allocation2 + $0x1328] sm:$0xff]
    %v755 = vld [vmem:[#allocation2 + $0x1330] sm:$0xff]
    %v756 = vld [vmem:[#allocation2 + $0x1338] sm:$0xff]
    %v757 = vld [vmem:[#allocation2 + $0x1340] sm:$0xff]
    %v758 = vld [vmem:[#allocation2 + $0x1348] sm:$0xff]
    %v759 = vld [vmem:[#allocation2 + $0x1350] sm:$0xff]
    %v760 = vld [vmem:[#allocation2 + $0x1358] sm:$0xff]
    %v761 = vld [vmem:[#allocation2 + $0x1360] sm:$0xff]
    %v762 = vld [vmem:[#allocation2 + $0x1368] sm:$0xff]
    %v763 = vld [vmem:[#allocation2 + $0x1370] sm:$0xff]
    %v764 = vld [vmem:[#allocation2 + $0x1378] sm:$0xff]
    %v765 = vld [vmem:[#allocation2 + $0x1380] sm:$0xff]
    %v766 = vld [vmem:[#allocation2 + $0x1388] sm:$0xff]
    %v767 = vld [vmem:[#allocation2 + $0x1390] sm:$0xff]
    %v768 = vld [vmem:[#allocation2 + $0x1398] sm:$0xff]
    %v769 = vld [vmem:[#allocation2 + $0x13a0] sm:$0xff]
    %v770 = vld [vmem:[#allocation2 + $0x13a8] sm:$0xff]
    %v771 = vld [vmem:[#allocation2 + $0x13b0] sm:$0xff]
    %v772 = vld [vmem:[#allocation2 + $0x13b8] sm:$0xff]
    %v773 = vld [vmem:[#allocation2 + $0x13c0] sm:$0xff]
    %v774 = vld [vmem:[#allocation2 + $0x13c8] sm:$0xff]
    %v775 = vld [vmem:[#allocation2 + $0x13d0] sm:$0xff]
    %v776 = vld [vmem:[#allocation2 + $0x13d8] sm:$0xff]
    %v777 = vld [vmem:[#allocation2 + $0x13e0] sm:$0xff]
    %v778 = vld [vmem:[#allocation2 + $0x13e8] sm:$0xff]
    %v779 = vld [vmem:[#allocation2 + $0x13f0] sm:$0xff]
    %v780 = vld [vmem:[#allocation2 + $0x13f8] sm:$0xff]
    %v781 = vld [vmem:[#allocation2 + $0x1400] sm:$0xff]
    %v782 = vld [vmem:[#allocation2 + $0x1408] sm:$0xff]
    %v783 = vld [vmem:[#allocation2 + $0x1410] sm:$0xff]
    %v784 = vld [vmem:[#allocation2 + $0x1418] sm:$0xff]
    %v785 = vld [vmem:[#allocation2 + $0x1420] sm:$0xff]
    %v786 = vld [vmem:[#allocation2 + $0x1428] sm:$0xff]
    %v787 = vld [vmem:[#allocation2 + $0x1430] sm:$0xff]
    %v788 = vld [vmem:[#allocation2 + $0x1438] sm:$0xff]
    %v789 = vld [vmem:[#allocation2 + $0x1440] sm:$0xff]
    %v790 = vld [vmem:[#allocation2 + $0x1448] sm:$0xff]
    %v791 = vld [vmem:[#allocation2 + $0x1450] sm:$0xff]
    %v792 = vld [vmem:[#allocation2 + $0x1458] sm:$0xff]
    %v793 = vld [vmem:[#allocation2 + $0x1460] sm:$0xff]
    %v794 = vld [vmem:[#allocation2 + $0x1468] sm:$0xff]
    %v795 = vld [vmem:[#allocation2 + $0x1470] sm:$0xff]
    %v796 = vld [vmem:[#allocation2 + $0x1478] sm:$0xff]
    %v797 = vld [vmem:[#allocation2 + $0x1480] sm:$0xff]
    %v798 = vld [vmem:[#allocation2 + $0x1488] sm:$0xff]
    %v799 = vld [vmem:[#allocation2 + $0x1490] sm:$0xff]
    %v800 = vld [vmem:[#allocation2 + $0x1498] sm:$0xff]
    %v801 = vld [vmem:[#allocation2 + $0x14a0] sm:$0xff]
    %v802 = vld [vmem:[#allocation2 + $0x14a8] sm:$0xff]
    %v803 = vld [vmem:[#allocation2 + $0x14b0] sm:$0xff]
    %v804 = vld [vmem:[#allocation2 + $0x14b8] sm:$0xff]
    %v805 = vld [vmem:[#allocation2 + $0x14c0] sm:$0xff]
    %v806 = vld [vmem:[#allocation2 + $0x14c8] sm:$0xff]
    %v807 = vld [vmem:[#allocation2 + $0x14d0] sm:$0xff]
    %v808 = vld [vmem:[#allocation2 + $0x14d8] sm:$0xff]
    %v809 = vld [vmem:[#allocation2 + $0x14e0] sm:$0xff]
    %v810 = vld [vmem:[#allocation2 + $0x14e8] sm:$0xff]
    %v811 = vld [vmem:[#allocation2 + $0x14f0] sm:$0xff]
    %v812 = vld [vmem:[#allocation2 + $0x14f8] sm:$0xff]
    %v813 = vld [vmem:[#allocation2 + $0x1500] sm:$0xff]
    %v814 = vld [vmem:[#allocation2 + $0x1508] sm:$0xff]
    %v815 = vld [vmem:[#allocation2 + $0x1510] sm:$0xff]
    %v816 = vld [vmem:[#allocation2 + $0x1518] sm:$0xff]
    %v817 = vld [vmem:[#allocation2 + $0x1520] sm:$0xff]
    %v818 = vld [vmem:[#allocation2 + $0x1528] sm:$0xff]
    %v819 = vld [vmem:[#allocation2 + $0x1530] sm:$0xff]
    %v820 = vld [vmem:[#allocation2 + $0x1538] sm:$0xff]
    %v821 = vld [vmem:[#allocation2 + $0x1540] sm:$0xff]
    %v822 = vld [vmem:[#allocation2 + $0x1548] sm:$0xff]
    %v823 = vld [vmem:[#allocation2 + $0x1550] sm:$0xff]
    %v824 = vld [vmem:[#allocation2 + $0x1558] sm:$0xff]
    %v825 = vld [vmem:[#allocation2 + $0x1560] sm:$0xff]
    %v826 = vld [vmem:[#allocation2 + $0x1568] sm:$0xff]
    %v827 = vld [vmem:[#allocation2 + $0x1570] sm:$0xff]
    %v828 = vld [vmem:[#allocation2 + $0x1578] sm:$0xff]
    %v829 = vld [vmem:[#allocation2 + $0x1580] sm:$0xff]
    %v830 = vld [vmem:[#allocation2 + $0x1588] sm:$0xff]
    %v831 = vld [vmem:[#allocation2 + $0x1590] sm:$0xff]
    %v832 = vld [vmem:[#allocation2 + $0x1598] sm:$0xff]
    %v833 = vld [vmem:[#allocation2 + $0x15a0] sm:$0xff]
    %v834 = vld [vmem:[#allocation2 + $0x15a8] sm:$0xff]
    %v835 = vld [vmem:[#allocation2 + $0x15b0] sm:$0xff]
    %v836 = vld [vmem:[#allocation2 + $0x15b8] sm:$0xff]
    %v837 = vld [vmem:[#allocation2 + $0x15c0] sm:$0xff]
    %v838 = vld [vmem:[#allocation2 + $0x15c8] sm:$0xff]
    %v839 = vld [vmem:[#allocation2 + $0x15d0] sm:$0xff]
    %v840 = vld [vmem:[#allocation2 + $0x15d8] sm:$0xff]
    %v841 = vld [vmem:[#allocation2 + $0x15e0] sm:$0xff]
    %v842 = vld [vmem:[#allocation2 + $0x15e8] sm:$0xff]
    %v843 = vld [vmem:[#allocation2 + $0x15f0] sm:$0xff]
    %v844 = vld [vmem:[#allocation2 + $0x15f8] sm:$0xff]
    %v845 = vld [vmem:[#allocation2 + $0x1600] sm:$0xff]
    %v846 = vld [vmem:[#allocation2 + $0x1608] sm:$0xff]
    %v847 = vld [vmem:[#allocation2 + $0x1610] sm:$0xff]
    %v848 = vld [vmem:[#allocation2 + $0x1618] sm:$0xff]
    %v849 = vld [vmem:[#allocation2 + $0x1620] sm:$0xff]
    %v850 = vld [vmem:[#allocation2 + $0x1628] sm:$0xff]
    %v851 = vld [vmem:[#allocation2 + $0x1630] sm:$0xff]
    %v852 = vld [vmem:[#allocation2 + $0x1638] sm:$0xff]
    %v853 = vld [vmem:[#allocation2 + $0x1640] sm:$0xff]
    %v854 = vld [vmem:[#allocation2 + $0x1648] sm:$0xff]
    %v855 = vld [vmem:[#allocation2 + $0x1650] sm:$0xff]
    %v856 = vld [vmem:[#allocation2 + $0x1658] sm:$0xff]
    %v857 = vld [vmem:[#allocation2 + $0x1660] sm:$0xff]
    %v858 = vld [vmem:[#allocation2 + $0x1668] sm:$0xff]
    %v859 = vld [vmem:[#allocation2 + $0x1670] sm:$0xff]
    %v860 = vld [vmem:[#allocation2 + $0x1678] sm:$0xff]
    %v861 = vld [vmem:[#allocation2 + $0x1680] sm:$0xff]
    %v862 = vld [vmem:[#allocation2 + $0x1688] sm:$0xff]
    %v863 = vld [vmem:[#allocation2 + $0x1690] sm:$0xff]
    %v864 = vld [vmem:[#allocation2 + $0x1698] sm:$0xff]
    %v865 = vld [vmem:[#allocation2 + $0x16a0] sm:$0xff]
    %v866 = vld [vmem:[#allocation2 + $0x16a8] sm:$0xff]
    %v867 = vld [vmem:[#allocation2 + $0x16b0] sm:$0xff]
    %v868 = vld [vmem:[#allocation2 + $0x16b8] sm:$0xff]
    %v869 = vld [vmem:[#allocation2 + $0x16c0] sm:$0xff]
    %v870 = vld [vmem:[#allocation2 + $0x16c8] sm:$0xff]
    %v871 = vld [vmem:[#allocation2 + $0x16d0] sm:$0xff]
    %v872 = vld [vmem:[#allocation2 + $0x16d8] sm:$0xff]
    %v873 = vld [vmem:[#allocation2 + $0x16e0] sm:$0xff]
    %v874 = vld [vmem:[#allocation2 + $0x16e8] sm:$0xff]
    %v875 = vld [vmem:[#allocation2 + $0x16f0] sm:$0xff]
    %v876 = vld [vmem:[#allocation2 + $0x16f8] sm:$0xff]
    %v877 = vld [vmem:[#allocation2 + $0x1700] sm:$0xff]
    %v878 = vld [vmem:[#allocation2 + $0x1708] sm:$0xff]
    %v879 = vld [vmem:[#allocation2 + $0x1710] sm:$0xff]
    %v880 = vld [vmem:[#allocation2 + $0x1718] sm:$0xff]
    %v881 = vld [vmem:[#allocation2 + $0x1720] sm:$0xff]
    %v882 = vld [vmem:[#allocation2 + $0x1728] sm:$0xff]
    %v883 = vld [vmem:[#allocation2 + $0x1730] sm:$0xff]
    %v884 = vld [vmem:[#allocation2 + $0x1738] sm:$0xff]
    %v885 = vld [vmem:[#allocation2 + $0x1740] sm:$0xff]
    %v886 = vld [vmem:[#allocation2 + $0x1748] sm:$0xff]
    %v887 = vld [vmem:[#allocation2 + $0x1750] sm:$0xff]
    %v888 = vld [vmem:[#allocation2 + $0x1758] sm:$0xff]
    %v889 = vld [vmem:[#allocation2 + $0x1760] sm:$0xff]
    %v890 = vld [vmem:[#allocation2 + $0x1768] sm:$0xff]
    %v891 = vld [vmem:[#allocation2 + $0x1770] sm:$0xff]
    %v892 = vld [vmem:[#allocation2 + $0x1778] sm:$0xff]
    %v893 = vld [vmem:[#allocation2 + $0x1780] sm:$0xff]
    %v894 = vld [vmem:[#allocation2 + $0x1788] sm:$0xff]
    %v895 = vld [vmem:[#allocation2 + $0x1790] sm:$0xff]
    %v896 = vld [vmem:[#allocation2 + $0x1798] sm:$0xff]
    %v897 = vld [vmem:[#allocation2 + $0x17a0] sm:$0xff]
    %v898 = vld [vmem:[#allocation2 + $0x17a8] sm:$0xff]
    %v899 = vld [vmem:[#allocation2 + $0x17b0] sm:$0xff]
    %v900 = vld [vmem:[#allocation2 + $0x17b8] sm:$0xff]
    %v901 = vld [vmem:[#allocation2 + $0x17c0] sm:$0xff]
    %v902 = vld [vmem:[#allocation2 + $0x17c8] sm:$0xff]
    %v903 = vld [vmem:[#allocation2 + $0x17d0] sm:$0xff]
    %v904 = vld [vmem:[#allocation2 + $0x17d8] sm:$0xff]
    %v905 = vld [vmem:[#allocation2 + $0x17e0] sm:$0xff]
    %v906 = vld [vmem:[#allocation2 + $0x17e8] sm:$0xff]
    %v907 = vld [vmem:[#allocation2 + $0x17f0] sm:$0xff]
    %v908 = vld [vmem:[#allocation2 + $0x17f8] sm:$0xff]
    %v909 = vld [vmem:[#allocation2 + $0x1800] sm:$0xff]
    %v910 = vld [vmem:[#allocation2 + $0x1808] sm:$0xff]
    %v911 = vld [vmem:[#allocation2 + $0x1810] sm:$0xff]
    %v912 = vld [vmem:[#allocation2 + $0x1818] sm:$0xff]
    %v913 = vld [vmem:[#allocation2 + $0x1820] sm:$0xff]
    %v914 = vld [vmem:[#allocation2 + $0x1828] sm:$0xff]
    %v915 = vld [vmem:[#allocation2 + $0x1830] sm:$0xff]
    %v916 = vld [vmem:[#allocation2 + $0x1838] sm:$0xff]
    %v917 = vld [vmem:[#allocation2 + $0x1840] sm:$0xff]
    %v918 = vld [vmem:[#allocation2 + $0x1848] sm:$0xff]
    %v919 = vld [vmem:[#allocation2 + $0x1850] sm:$0xff]
    %v920 = vld [vmem:[#allocation2 + $0x1858] sm:$0xff]
    %v921 = vld [vmem:[#allocation2 + $0x1860] sm:$0xff]
    %v922 = vld [vmem:[#allocation2 + $0x1868] sm:$0xff]
    %v923 = vld [vmem:[#allocation2 + $0x1870] sm:$0xff]
    %v924 = vld [vmem:[#allocation2 + $0x1878] sm:$0xff]
    %v925 = vld [vmem:[#allocation2 + $0x1880] sm:$0xff]
    %v926 = vld [vmem:[#allocation2 + $0x1888] sm:$0xff]
    %v927 = vld [vmem:[#allocation2 + $0x1890] sm:$0xff]
    %v928 = vld [vmem:[#allocation2 + $0x1898] sm:$0xff]
    %v929 = vld [vmem:[#allocation2 + $0x18a0] sm:$0xff]
    %v930 = vld [vmem:[#allocation2 + $0x18a8] sm:$0xff]
    %v931 = vld [vmem:[#allocation2 + $0x18b0] sm:$0xff]
    %v932 = vld [vmem:[#allocation2 + $0x18b8] sm:$0xff]
    %v933 = vld [vmem:[#allocation2 + $0x18c0] sm:$0xff]
    %v934 = vld [vmem:[#allocation2 + $0x18c8] sm:$0xff]
    %v935 = vld [vmem:[#allocation2 + $0x18d0] sm:$0xff]
    %v936 = vld [vmem:[#allocation2 + $0x18d8] sm:$0xff]
    %v937 = vld [vmem:[#allocation2 + $0x18e0] sm:$0xff]
    %v938 = vld [vmem:[#allocation2 + $0x18e8] sm:$0xff]
    %v939 = vld [vmem:[#allocation2 + $0x18f0] sm:$0xff]
    %v940 = vld [vmem:[#allocation2 + $0x18f8] sm:$0xff]
    %v941 = vld [vmem:[#allocation2 + $0x1900] sm:$0xff]
    %v942 = vld [vmem:[#allocation2 + $0x1908] sm:$0xff]
    %v943 = vld [vmem:[#allocation2 + $0x1910] sm:$0xff]
    %v944 = vld [vmem:[#allocation2 + $0x1918] sm:$0xff]
    %v945 = vld [vmem:[#allocation2 + $0x1920] sm:$0xff]
    %v946 = vld [vmem:[#allocation2 + $0x1928] sm:$0xff]
    %v947 = vld [vmem:[#allocation2 + $0x1930] sm:$0xff]
    %v948 = vld [vmem:[#allocation2 + $0x1938] sm:$0xff]
    %v949 = vld [vmem:[#allocation2 + $0x1940] sm:$0xff]
    %v950 = vld [vmem:[#allocation2 + $0x1948] sm:$0xff]
    %v951 = vld [vmem:[#allocation2 + $0x1950] sm:$0xff]
    %v952 = vld [vmem:[#allocation2 + $0x1958] sm:$0xff]
    %v953 = vld [vmem:[#allocation2 + $0x1960] sm:$0xff]
    %v954 = vld [vmem:[#allocation2 + $0x1968] sm:$0xff]
    %v955 = vld [vmem:[#allocation2 + $0x1970] sm:$0xff]
    %v956 = vld [vmem:[#allocation2 + $0x1978] sm:$0xff]
    %v957 = vld [vmem:[#allocation2 + $0x1980] sm:$0xff]
    %v958 = vld [vmem:[#allocation2 + $0x1988] sm:$0xff]
    %v959 = vld [vmem:[#allocation2 + $0x1990] sm:$0xff]
    %v960 = vld [vmem:[#allocation2 + $0x1998] sm:$0xff]
    %v961 = vld [vmem:[#allocation2 + $0x19a0] sm:$0xff]
    %v962 = vld [vmem:[#allocation2 + $0x19a8] sm:$0xff]
    %v963 = vld [vmem:[#allocation2 + $0x19b0] sm:$0xff]
    %v964 = vld [vmem:[#allocation2 + $0x19b8] sm:$0xff]
    %v965 = vld [vmem:[#allocation2 + $0x19c0] sm:$0xff]
    %v966 = vld [vmem:[#allocation2 + $0x19c8] sm:$0xff]
    %v967 = vld [vmem:[#allocation2 + $0x19d0] sm:$0xff]
    %v968 = vld [vmem:[#allocation2 + $0x19d8] sm:$0xff]
    %v969 = vld [vmem:[#allocation2 + $0x19e0] sm:$0xff]
    %v970 = vld [vmem:[#allocation2 + $0x19e8] sm:$0xff]
    %v971 = vld [vmem:[#allocation2 + $0x19f0] sm:$0xff]
    %v972 = vld [vmem:[#allocation2 + $0x19f8] sm:$0xff]
    %v973 = vld [vmem:[#allocation2 + $0x1a00] sm:$0xff]
    %v974 = vld [vmem:[#allocation2 + $0x1a08] sm:$0xff]
    %v975 = vld [vmem:[#allocation2 + $0x1a10] sm:$0xff]
    %v976 = vld [vmem:[#allocation2 + $0x1a18] sm:$0xff]
    %v977 = vld [vmem:[#allocation2 + $0x1a20] sm:$0xff]
    %v978 = vld [vmem:[#allocation2 + $0x1a28] sm:$0xff]
    %v979 = vld [vmem:[#allocation2 + $0x1a30] sm:$0xff]
    %v980 = vld [vmem:[#allocation2 + $0x1a38] sm:$0xff]
    %v981 = vld [vmem:[#allocation2 + $0x1a40] sm:$0xff]
    %v982 = vld [vmem:[#allocation2 + $0x1a48] sm:$0xff]
    %v983 = vld [vmem:[#allocation2 + $0x1a50] sm:$0xff]
    %v984 = vld [vmem:[#allocation2 + $0x1a58] sm:$0xff]
    %v985 = vld [vmem:[#allocation2 + $0x1a60] sm:$0xff]
    %v986 = vld [vmem:[#allocation2 + $0x1a68] sm:$0xff]
    %v987 = vld [vmem:[#allocation2 + $0x1a70] sm:$0xff]
    %v988 = vld [vmem:[#allocation2 + $0x1a78] sm:$0xff]
    %v989 = vld [vmem:[#allocation2 + $0x1a80] sm:$0xff]
    %v990 = vld [vmem:[#allocation2 + $0x1a88] sm:$0xff]
    %v991 = vld [vmem:[#allocation2 + $0x1a90] sm:$0xff]
    %v992 = vld [vmem:[#allocation2 + $0x1a98] sm:$0xff]
    %v993 = vld [vmem:[#allocation2 + $0x1aa0] sm:$0xff]
    %v994 = vld [vmem:[#allocation2 + $0x1aa8] sm:$0xff]
    %v995 = vld [vmem:[#allocation2 + $0x1ab0] sm:$0xff]
    %v996 = vld [vmem:[#allocation2 + $0x1ab8] sm:$0xff]
    %v997 = vld [vmem:[#allocation2 + $0x1ac0] sm:$0xff]
    %v998 = vld [vmem:[#allocation2 + $0x1ac8] sm:$0xff]
    %v999 = vld [vmem:[#allocation2 + $0x1ad0] sm:$0xff]
    %v1000 = vld [vmem:[#allocation2 + $0x1ad8] sm:$0xff]
    %v1001 = vld [vmem:[#allocation2 + $0x1ae0] sm:$0xff]
    %v1002 = vld [vmem:[#allocation2 + $0x1ae8] sm:$0xff]
    %v1003 = vld [vmem:[#allocation2 + $0x1af0] sm:$0xff]
    %v1004 = vld [vmem:[#allocation2 + $0x1af8] sm:$0xff]
    %v1005 = vld [vmem:[#allocation2 + $0x1b00] sm:$0xff]
    %v1006 = vld [vmem:[#allocation2 + $0x1b08] sm:$0xff]
    %v1007 = vld [vmem:[#allocation2 + $0x1b10] sm:$0xff]
    %v1008 = vld [vmem:[#allocation2 + $0x1b18] sm:$0xff]
    %v1009 = vld [vmem:[#allocation2 + $0x1b20] sm:$0xff]
    %v1010 = vld [vmem:[#allocation2 + $0x1b28] sm:$0xff]
    %v1011 = vld [vmem:[#allocation2 + $0x1b30] sm:$0xff]
    %v1012 = vld [vmem:[#allocation2 + $0x1b38] sm:$0xff]
    %v1013 = vld [vmem:[#allocation2 + $0x1b40] sm:$0xff]
    %v1014 = vld [vmem:[#allocation2 + $0x1b48] sm:$0xff]
    %v1015 = vld [vmem:[#allocation2 + $0x1b50] sm:$0xff]
    %v1016 = vld [vmem:[#allocation2 + $0x1b58] sm:$0xff]
    %v1017 = vld [vmem:[#allocation2 + $0x1b60] sm:$0xff]
    %v1018 = vld [vmem:[#allocation2 + $0x1b68] sm:$0xff]
    %v1019 = vld [vmem:[#allocation2 + $0x1b70] sm:$0xff]
    %v1020 = vld [vmem:[#allocation2 + $0x1b78] sm:$0xff]
    %v1021 = vld [vmem:[#allocation2 + $0x1b80] sm:$0xff]
    %v1022 = vld [vmem:[#allocation2 + $0x1b88] sm:$0xff]
    %v1023 = vld [vmem:[#allocation2 + $0x1b90] sm:$0xff]
    %v1024 = vld [vmem:[#allocation2 + $0x1b98] sm:$0xff]
    %v1025 = vld [vmem:[#allocation2 + $0x1ba0] sm:$0xff]
    %v1026 = vld [vmem:[#allocation2 + $0x1ba8] sm:$0xff]
    %v1027 = vld [vmem:[#allocation2 + $0x1bb0] sm:$0xff]
    %v1028 = vld [vmem:[#allocation2 + $0x1bb8] sm:$0xff]
    %v1029 = vld [vmem:[#allocation2 + $0x1bc0] sm:$0xff]
    %v1030 = vld [vmem:[#allocation2 + $0x1bc8] sm:$0xff]
    %v1031 = vld [vmem:[#allocation2 + $0x1bd0] sm:$0xff]
    %v1032 = vld [vmem:[#allocation2 + $0x1bd8] sm:$0xff]
    %v1033 = vld [vmem:[#allocation2 + $0x1be0] sm:$0xff]
    %v1034 = vld [vmem:[#allocation2 + $0x1be8] sm:$0xff]
    %v1035 = vld [vmem:[#allocation2 + $0x1bf0] sm:$0xff]
    %v1036 = vld [vmem:[#allocation2 + $0x1bf8] sm:$0xff]
    %v1037 = vld [vmem:[#allocation2 + $0x1c00] sm:$0xff]
    %v1038 = vld [vmem:[#allocation2 + $0x1c08] sm:$0xff]
    %v1039 = vld [vmem:[#allocation2 + $0x1c10] sm:$0xff]
    %v1040 = vld [vmem:[#allocation2 + $0x1c18] sm:$0xff]
    %v1041 = vld [vmem:[#allocation2 + $0x1c20] sm:$0xff]
    %v1042 = vld [vmem:[#allocation2 + $0x1c28] sm:$0xff]
    %v1043 = vld [vmem:[#allocation2 + $0x1c30] sm:$0xff]
    %v1044 = vld [vmem:[#allocation2 + $0x1c38] sm:$0xff]
    %v1045 = vld [vmem:[#allocation2 + $0x1c40] sm:$0xff]
    %v1046 = vld [vmem:[#allocation2 + $0x1c48] sm:$0xff]
    %v1047 = vld [vmem:[#allocation2 + $0x1c50] sm:$0xff]
    %v1048 = vld [vmem:[#allocation2 + $0x1c58] sm:$0xff]
    %v1049 = vld [vmem:[#allocation2 + $0x1c60] sm:$0xff]
    %v1050 = vld [vmem:[#allocation2 + $0x1c68] sm:$0xff]
    %v1051 = vld [vmem:[#allocation2 + $0x1c70] sm:$0xff]
    %v1052 = vld [vmem:[#allocation2 + $0x1c78] sm:$0xff]
    %v1053 = vld [vmem:[#allocation2 + $0x1c80] sm:$0xff]
    %v1054 = vld [vmem:[#allocation2 + $0x1c88] sm:$0xff]
    %v1055 = vld [vmem:[#allocation2 + $0x1c90] sm:$0xff]
    %v1056 = vld [vmem:[#allocation2 + $0x1c98] sm:$0xff]
    %v1057 = vld [vmem:[#allocation2 + $0x1ca0] sm:$0xff]
    %v1058 = vld [vmem:[#allocation2 + $0x1ca8] sm:$0xff]
    %v1059 = vld [vmem:[#allocation2 + $0x1cb0] sm:$0xff]
    %v1060 = vld [vmem:[#allocation2 + $0x1cb8] sm:$0xff]
    %v1061 = vld [vmem:[#allocation2 + $0x1cc0] sm:$0xff]
    %v1062 = vld [vmem:[#allocation2 + $0x1cc8] sm:$0xff]
    %v1063 = vld [vmem:[#allocation2 + $0x1cd0] sm:$0xff]
    %v1064 = vld [vmem:[#allocation2 + $0x1cd8] sm:$0xff]
    %v1065 = vld [vmem:[#allocation2 + $0x1ce0] sm:$0xff]
    %v1066 = vld [vmem:[#allocation2 + $0x1ce8] sm:$0xff]
    %v1067 = vld [vmem:[#allocation2 + $0x1cf0] sm:$0xff]
    %v1068 = vld [vmem:[#allocation2 + $0x1cf8] sm:$0xff]
    %v1069 = vld [vmem:[#allocation2 + $0x1d00] sm:$0xff]
    %v1070 = vld [vmem:[#allocation2 + $0x1d08] sm:$0xff]
    %v1071 = vld [vmem:[#allocation2 + $0x1d10] sm:$0xff]
    %v1072 = vld [vmem:[#allocation2 + $0x1d18] sm:$0xff]
    %v1073 = vld [vmem:[#allocation2 + $0x1d20] sm:$0xff]
    %v1074 = vld [vmem:[#allocation2 + $0x1d28] sm:$0xff]
    %v1075 = vld [vmem:[#allocation2 + $0x1d30] sm:$0xff]
    %v1076 = vld [vmem:[#allocation2 + $0x1d38] sm:$0xff]
    %v1077 = vld [vmem:[#allocation2 + $0x1d40] sm:$0xff]
    %v1078 = vld [vmem:[#allocation2 + $0x1d48] sm:$0xff]
    %v1079 = vld [vmem:[#allocation2 + $0x1d50] sm:$0xff]
    %v1080 = vld [vmem:[#allocation2 + $0x1d58] sm:$0xff]
    %v1081 = vld [vmem:[#allocation2 + $0x1d60] sm:$0xff]
    %v1082 = vld [vmem:[#allocation2 + $0x1d68] sm:$0xff]
    %v1083 = vld [vmem:[#allocation2 + $0x1d70] sm:$0xff]
    %v1084 = vld [vmem:[#allocation2 + $0x1d78] sm:$0xff]
    %v1085 = vld [vmem:[#allocation2 + $0x1d80] sm:$0xff]
    %v1086 = vld [vmem:[#allocation2 + $0x1d88] sm:$0xff]
    %v1087 = vld [vmem:[#allocation2 + $0x1d90] sm:$0xff]
    %v1088 = vld [vmem:[#allocation2 + $0x1d98] sm:$0xff]
    %v1089 = vld [vmem:[#allocation2 + $0x1da0] sm:$0xff]
    %v1090 = vld [vmem:[#allocation2 + $0x1da8] sm:$0xff]
    %v1091 = vld [vmem:[#allocation2 + $0x1db0] sm:$0xff]
    %v1092 = vld [vmem:[#allocation2 + $0x1db8] sm:$0xff]
    %v1093 = vld [vmem:[#allocation2 + $0x1dc0] sm:$0xff]
    %v1094 = vld [vmem:[#allocation2 + $0x1dc8] sm:$0xff]
    %v1095 = vld [vmem:[#allocation2 + $0x1dd0] sm:$0xff]
    %v1096 = vld [vmem:[#allocation2 + $0x1dd8] sm:$0xff]
    %v1097 = vld [vmem:[#allocation2 + $0x1de0] sm:$0xff]
    %v1098 = vld [vmem:[#allocation2 + $0x1de8] sm:$0xff]
    %v1099 = vld [vmem:[#allocation2 + $0x1df0] sm:$0xff]
    %v1100 = vld [vmem:[#allocation2 + $0x1df8] sm:$0xff]
    %v1101 = vld [vmem:[#allocation2 + $0x1e00] sm:$0xff]
    %v1102 = vld [vmem:[#allocation2 + $0x1e08] sm:$0xff]
    %v1103 = vld [vmem:[#allocation2 + $0x1e10] sm:$0xff]
    %v1104 = vld [vmem:[#allocation2 + $0x1e18] sm:$0xff]
    %v1105 = vld [vmem:[#allocation2 + $0x1e20] sm:$0xff]
    %v1106 = vld [vmem:[#allocation2 + $0x1e28] sm:$0xff]
    %v1107 = vld [vmem:[#allocation2 + $0x1e30] sm:$0xff]
    %v1108 = vld [vmem:[#allocation2 + $0x1e38] sm:$0xff]
    %v1109 = vld [vmem:[#allocation2 + $0x1e40] sm:$0xff]
    %v1110 = vld [vmem:[#allocation2 + $0x1e48] sm:$0xff]
    %v1111 = vld [vmem:[#allocation2 + $0x1e50] sm:$0xff]
    %v1112 = vld [vmem:[#allocation2 + $0x1e58] sm:$0xff]
    %v1113 = vld [vmem:[#allocation2 + $0x1e60] sm:$0xff]
    %v1114 = vld [vmem:[#allocation2 + $0x1e68] sm:$0xff]
    %v1115 = vld [vmem:[#allocation2 + $0x1e70] sm:$0xff]
    %v1116 = vld [vmem:[#allocation2 + $0x1e78] sm:$0xff]
    %v1117 = vld [vmem:[#allocation2 + $0x1e80] sm:$0xff]
    %v1118 = vld [vmem:[#allocation2 + $0x1e88] sm:$0xff]
    %v1119 = vld [vmem:[#allocation2 + $0x1e90] sm:$0xff]
    %v1120 = vld [vmem:[#allocation2 + $0x1e98] sm:$0xff]
    %v1121 = vld [vmem:[#allocation2 + $0x1ea0] sm:$0xff]
    %v1122 = vld [vmem:[#allocation2 + $0x1ea8] sm:$0xff]
    %v1123 = vld [vmem:[#allocation2 + $0x1eb0] sm:$0xff]
    %v1124 = vld [vmem:[#allocation2 + $0x1eb8] sm:$0xff]
    %v1125 = vld [vmem:[#allocation2 + $0x1ec0] sm:$0xff]
    %v1126 = vld [vmem:[#allocation2 + $0x1ec8] sm:$0xff]
    %v1127 = vld [vmem:[#allocation2 + $0x1ed0] sm:$0xff]
    %v1128 = vld [vmem:[#allocation2 + $0x1ed8] sm:$0xff]
    %v1129 = vld [vmem:[#allocation2 + $0x1ee0] sm:$0xff]
    %v1130 = vld [vmem:[#allocation2 + $0x1ee8] sm:$0xff]
    %v1131 = vld [vmem:[#allocation2 + $0x1ef0] sm:$0xff]
    %v1132 = vld [vmem:[#allocation2 + $0x1ef8] sm:$0xff]
    %v1133 = vld [vmem:[#allocation2 + $0x1f00] sm:$0xff]
    %v1134 = vld [vmem:[#allocation2 + $0x1f08] sm:$0xff]
    %v1135 = vld [vmem:[#allocation2 + $0x1f10] sm:$0xff]
    %v1136 = vld [vmem:[#allocation2 + $0x1f18] sm:$0xff]
    %v1137 = vld [vmem:[#allocation2 + $0x1f20] sm:$0xff]
    %v1138 = vld [vmem:[#allocation2 + $0x1f28] sm:$0xff]
    %v1139 = vld [vmem:[#allocation2 + $0x1f30] sm:$0xff]
    %v1140 = vld [vmem:[#allocation2 + $0x1f38] sm:$0xff]
    %v1141 = vld [vmem:[#allocation2 + $0x1f40] sm:$0xff]
    %v1142 = vld [vmem:[#allocation2 + $0x1f48] sm:$0xff]
    %v1143 = vld [vmem:[#allocation2 + $0x1f50] sm:$0xff]
    %v1144 = vld [vmem:[#allocation2 + $0x1f58] sm:$0xff]
    %v1145 = vld [vmem:[#allocation2 + $0x1f60] sm:$0xff]
    %v1146 = vld [vmem:[#allocation2 + $0x1f68] sm:$0xff]
    %v1147 = vld [vmem:[#allocation2 + $0x1f70] sm:$0xff]
    %v1148 = vld [vmem:[#allocation2 + $0x1f78] sm:$0xff]
    %v1149 = vld [vmem:[#allocation2 + $0x1f80] sm:$0xff]
    %v1150 = vld [vmem:[#allocation2 + $0x1f88] sm:$0xff]
    %v1151 = vld [vmem:[#allocation2 + $0x1f90] sm:$0xff]
    %v1152 = vld [vmem:[#allocation2 + $0x1f98] sm:$0xff]
    %v1153 = vld [vmem:[#allocation2 + $0x1fa0] sm:$0xff]
    %v1154 = vld [vmem:[#allocation2 + $0x1fa8] sm:$0xff]
    %v1155 = vld [vmem:[#allocation2 + $0x1fb0] sm:$0xff]
    %v1156 = vld [vmem:[#allocation2 + $0x1fb8] sm:$0xff]
    %v1157 = vld [vmem:[#allocation2 + $0x1fc0] sm:$0xff]
    %v1158 = vld [vmem:[#allocation2 + $0x1fc8] sm:$0xff]
    %v1159 = vld [vmem:[#allocation2 + $0x1fd0] sm:$0xff]
    %v1160 = vld [vmem:[#allocation2 + $0x1fd8] sm:$0xff]
    %v1161 = vld [vmem:[#allocation2 + $0x1fe0] sm:$0xff]
    %v1162 = vld [vmem:[#allocation2 + $0x1fe8] sm:$0xff]
    %v1163 = vld [vmem:[#allocation2 + $0x1ff0] sm:$0xff]
    %v1164 = vld [vmem:[#allocation2 + $0x1ff8] sm:$0xff]
    %v1165 = vld [vmem:[#allocation5] sm:$0xff]
    %v1167 = vperm.slane %v1165, 0
    %v1168 = vperm.slane %v1165, 1
    %v1169 = vperm.slane %v1165, 2
    %v1170 = vperm.slane %v1165, 3
    %v1171 = vperm.slane %v1165, 4
    %v1172 = vperm.slane %v1165, 5
    %v1173 = vperm.slane %v1165, 6
    %v1174 = vperm.slane %v1165, 7
    %v2207 = vunpack.c.l.b16 %v141
    %v2208 = vunpack.c.h.b16 %v141
    %v2209 = vunpack.c.l.b16 %v142
    %v2210 = vunpack.c.h.b16 %v142
    %v2211 = vunpack.c.l.b16 %v143
    %v2212 = vunpack.c.h.b16 %v143
    %v2213 = vunpack.c.l.b16 %v144
    %v2214 = vunpack.c.h.b16 %v144
    %v2215 = vunpack.c.l.b16 %v145
    %v2216 = vunpack.c.h.b16 %v145
    %v2217 = vunpack.c.l.b16 %v146
    %v2218 = vunpack.c.h.b16 %v146
    %v2219 = vunpack.c.l.b16 %v147
    %v2220 = vunpack.c.h.b16 %v147
    %v2221 = vunpack.c.l.b16 %v148
    %v2222 = vunpack.c.h.b16 %v148
    %v2223 = vunpack.c.l.b16 %v149
    %v2224 = vunpack.c.h.b16 %v149
    %v2225 = vunpack.c.l.b16 %v150
    %v2226 = vunpack.c.h.b16 %v150
    %v2227 = vunpack.c.l.b16 %v151
    %v2228 = vunpack.c.h.b16 %v151
    %v2229 = vunpack.c.l.b16 %v152
    %v2230 = vunpack.c.h.b16 %v152
    %v2231 = vunpack.c.l.b16 %v153
    %v2232 = vunpack.c.h.b16 %v153
    %v2233 = vunpack.c.l.b16 %v154
    %v2234 = vunpack.c.h.b16 %v154
    %v2235 = vunpack.c.l.b16 %v155
    %v2236 = vunpack.c.h.b16 %v155
    %v2237 = vunpack.c.l.b16 %v156
    %v2238 = vunpack.c.h.b16 %v156
    %v2239 = vunpack.c.l.b16 %v157
    %v2240 = vunpack.c.h.b16 %v157
    %v2241 = vunpack.c.l.b16 %v158
    %v2242 = vunpack.c.h.b16 %v158
    %v2243 = vunpack.c.l.b16 %v159
    %v2244 = vunpack.c.h.b16 %v159
    %v2245 = vunpack.c.l.b16 %v160
    %v2246 = vunpack.c.h.b16 %v160
    %v2247 = vunpack.c.l.b16 %v161
    %v2248 = vunpack.c.h.b16 %v161
    %v2249 = vunpack.c.l.b16 %v162
    %v2250 = vunpack.c.h.b16 %v162
    %v2251 = vunpack.c.l.b16 %v163
    %v2252 = vunpack.c.h.b16 %v163
    %v2253 = vunpack.c.l.b16 %v164
    %v2254 = vunpack.c.h.b16 %v164
    %v2255 = vunpack.c.l.b16 %v165
    %v2256 = vunpack.c.h.b16 %v165
    %v2257 = vunpack.c.l.b16 %v166
    %v2258 = vunpack.c.h.b16 %v166
    %v2259 = vunpack.c.l.b16 %v167
    %v2260 = vunpack.c.h.b16 %v167
    %v2261 = vunpack.c.l.b16 %v168
    %v2262 = vunpack.c.h.b16 %v168
    %v2263 = vunpack.c.l.b16 %v169
    %v2264 = vunpack.c.h.b16 %v169
    %v2265 = vunpack.c.l.b16 %v170
    %v2266 = vunpack.c.h.b16 %v170
    %v2267 = vunpack.c.l.b16 %v171
    %v2268 = vunpack.c.h.b16 %v171
    %v2269 = vunpack.c.l.b16 %v172
    %v2270 = vunpack.c.h.b16 %v172
    %v2271 = vunpack.c.l.b16 %v173
    %v2272 = vunpack.c.h.b16 %v173
    %v2273 = vunpack.c.l.b16 %v174
    %v2274 = vunpack.c.h.b16 %v174
    %v2275 = vunpack.c.l.b16 %v175
    %v2276 = vunpack.c.h.b16 %v175
    %v2277 = vunpack.c.l.b16 %v176
    %v2278 = vunpack.c.h.b16 %v176
    %v2279 = vunpack.c.l.b16 %v177
    %v2280 = vunpack.c.h.b16 %v177
    %v2281 = vunpack.c.l.b16 %v178
    %v2282 = vunpack.c.h.b16 %v178
    %v2283 = vunpack.c.l.b16 %v179
    %v2284 = vunpack.c.h.b16 %v179
    %v2285 = vunpack.c.l.b16 %v180
    %v2286 = vunpack.c.h.b16 %v180
    %v2287 = vunpack.c.l.b16 %v181
    %v2288 = vunpack.c.h.b16 %v181
    %v2289 = vunpack.c.l.b16 %v182
    %v2290 = vunpack.c.h.b16 %v182
    %v2291 = vunpack.c.l.b16 %v183
    %v2292 = vunpack.c.h.b16 %v183
    %v2293 = vunpack.c.l.b16 %v184
    %v2294 = vunpack.c.h.b16 %v184
    %v2295 = vunpack.c.l.b16 %v185
    %v2296 = vunpack.c.h.b16 %v185
    %v2297 = vunpack.c.l.b16 %v186
    %v2298 = vunpack.c.h.b16 %v186
    %v2299 = vunpack.c.l.b16 %v187
    %v2300 = vunpack.c.h.b16 %v187
    %v2301 = vunpack.c.l.b16 %v188
    %v2302 = vunpack.c.h.b16 %v188
    %v2303 = vunpack.c.l.b16 %v189
    %v2304 = vunpack.c.h.b16 %v189
    %v2305 = vunpack.c.l.b16 %v190
    %v2306 = vunpack.c.h.b16 %v190
    %v2307 = vunpack.c.l.b16 %v191
    %v2308 = vunpack.c.h.b16 %v191
    %v2309 = vunpack.c.l.b16 %v192
    %v2310 = vunpack.c.h.b16 %v192
    %v2311 = vunpack.c.l.b16 %v193
    %v2312 = vunpack.c.h.b16 %v193
    %v2313 = vunpack.c.l.b16 %v194
    %v2314 = vunpack.c.h.b16 %v194
    %v2315 = vunpack.c.l.b16 %v195
    %v2316 = vunpack.c.h.b16 %v195
    %v2317 = vunpack.c.l.b16 %v196
    %v2318 = vunpack.c.h.b16 %v196
    %v2319 = vunpack.c.l.b16 %v197
    %v2320 = vunpack.c.h.b16 %v197
    %v2321 = vunpack.c.l.b16 %v198
    %v2322 = vunpack.c.h.b16 %v198
    %v2323 = vunpack.c.l.b16 %v199
    %v2324 = vunpack.c.h.b16 %v199
    %v2325 = vunpack.c.l.b16 %v200
    %v2326 = vunpack.c.h.b16 %v200
    %v2327 = vunpack.c.l.b16 %v201
    %v2328 = vunpack.c.h.b16 %v201
    %v2329 = vunpack.c.l.b16 %v202
    %v2330 = vunpack.c.h.b16 %v202
    %v2331 = vunpack.c.l.b16 %v203
    %v2332 = vunpack.c.h.b16 %v203
    %v2333 = vunpack.c.l.b16 %v204
    %v2334 = vunpack.c.h.b16 %v204
    %v2335 = vunpack.c.l.b16 %v205
    %v2336 = vunpack.c.h.b16 %v205
    %v2337 = vunpack.c.l.b16 %v206
    %v2338 = vunpack.c.h.b16 %v206
    %v2339 = vunpack.c.l.b16 %v207
    %v2340 = vunpack.c.h.b16 %v207
    %v2341 = vunpack.c.l.b16 %v208
    %v2342 = vunpack.c.h.b16 %v208
    %v2343 = vunpack.c.l.b16 %v209
    %v2344 = vunpack.c.h.b16 %v209
    %v2345 = vunpack.c.l.b16 %v210
    %v2346 = vunpack.c.h.b16 %v210
    %v2347 = vunpack.c.l.b16 %v211
    %v2348 = vunpack.c.h.b16 %v211
    %v2349 = vunpack.c.l.b16 %v212
    %v2350 = vunpack.c.h.b16 %v212
    %v2351 = vunpack.c.l.b16 %v213
    %v2352 = vunpack.c.h.b16 %v213
    %v2353 = vunpack.c.l.b16 %v214
    %v2354 = vunpack.c.h.b16 %v214
    %v2355 = vunpack.c.l.b16 %v215
    %v2356 = vunpack.c.h.b16 %v215
    %v2357 = vunpack.c.l.b16 %v216
    %v2358 = vunpack.c.h.b16 %v216
    %v2359 = vunpack.c.l.b16 %v217
    %v2360 = vunpack.c.h.b16 %v217
    %v2361 = vunpack.c.l.b16 %v218
    %v2362 = vunpack.c.h.b16 %v218
    %v2363 = vunpack.c.l.b16 %v219
    %v2364 = vunpack.c.h.b16 %v219
    %v2365 = vunpack.c.l.b16 %v220
    %v2366 = vunpack.c.h.b16 %v220
    %v2367 = vunpack.c.l.b16 %v221
    %v2368 = vunpack.c.h.b16 %v221
    %v2369 = vunpack.c.l.b16 %v222
    %v2370 = vunpack.c.h.b16 %v222
    %v2371 = vunpack.c.l.b16 %v223
    %v2372 = vunpack.c.h.b16 %v223
    %v2373 = vunpack.c.l.b16 %v224
    %v2374 = vunpack.c.h.b16 %v224
    %v2375 = vunpack.c.l.b16 %v225
    %v2376 = vunpack.c.h.b16 %v225
    %v2377 = vunpack.c.l.b16 %v226
    %v2378 = vunpack.c.h.b16 %v226
    %v2379 = vunpack.c.l.b16 %v227
    %v2380 = vunpack.c.h.b16 %v227
    %v2381 = vunpack.c.l.b16 %v228
    %v2382 = vunpack.c.h.b16 %v228
    %v2383 = vunpack.c.l.b16 %v229
    %v2384 = vunpack.c.h.b16 %v229
    %v2385 = vunpack.c.l.b16 %v230
    %v2386 = vunpack.c.h.b16 %v230
    %v2387 = vunpack.c.l.b16 %v231
    %v2388 = vunpack.c.h.b16 %v231
    %v2389 = vunpack.c.l.b16 %v232
    %v2390 = vunpack.c.h.b16 %v232
    %v2391 = vunpack.c.l.b16 %v233
    %v2392 = vunpack.c.h.b16 %v233
    %v2393 = vunpack.c.l.b16 %v234
    %v2394 = vunpack.c.h.b16 %v234
    %v2395 = vunpack.c.l.b16 %v235
    %v2396 = vunpack.c.h.b16 %v235
    %v2397 = vunpack.c.l.b16 %v236
    %v2398 = vunpack.c.h.b16 %v236
    %v2399 = vunpack.c.l.b16 %v237
    %v2400 = vunpack.c.h.b16 %v237
    %v2401 = vunpack.c.l.b16 %v238
    %v2402 = vunpack.c.h.b16 %v238
    %v2403 = vunpack.c.l.b16 %v239
    %v2404 = vunpack.c.h.b16 %v239
    %v2405 = vunpack.c.l.b16 %v240
    %v2406 = vunpack.c.h.b16 %v240
    %v2407 = vunpack.c.l.b16 %v241
    %v2408 = vunpack.c.h.b16 %v241
    %v2409 = vunpack.c.l.b16 %v242
    %v2410 = vunpack.c.h.b16 %v242
    %v2411 = vunpack.c.l.b16 %v243
    %v2412 = vunpack.c.h.b16 %v243
    %v2413 = vunpack.c.l.b16 %v244
    %v2414 = vunpack.c.h.b16 %v244
    %v2415 = vunpack.c.l.b16 %v245
    %v2416 = vunpack.c.h.b16 %v245
    %v2417 = vunpack.c.l.b16 %v246
    %v2418 = vunpack.c.h.b16 %v246
    %v2419 = vunpack.c.l.b16 %v247
    %v2420 = vunpack.c.h.b16 %v247
    %v2421 = vunpack.c.l.b16 %v248
    %v2422 = vunpack.c.h.b16 %v248
    %v2423 = vunpack.c.l.b16 %v249
    %v2424 = vunpack.c.h.b16 %v249
    %v2425 = vunpack.c.l.b16 %v250
    %v2426 = vunpack.c.h.b16 %v250
    %v2427 = vunpack.c.l.b16 %v251
    %v2428 = vunpack.c.h.b16 %v251
    %v2429 = vunpack.c.l.b16 %v252
    %v2430 = vunpack.c.h.b16 %v252
    %v2431 = vunpack.c.l.b16 %v253
    %v2432 = vunpack.c.h.b16 %v253
    %v2433 = vunpack.c.l.b16 %v254
    %v2434 = vunpack.c.h.b16 %v254
    %v2435 = vunpack.c.l.b16 %v255
    %v2436 = vunpack.c.h.b16 %v255
    %v2437 = vunpack.c.l.b16 %v256
    %v2438 = vunpack.c.h.b16 %v256
    %v2439 = vunpack.c.l.b16 %v257
    %v2440 = vunpack.c.h.b16 %v257
    %v2441 = vunpack.c.l.b16 %v258
    %v2442 = vunpack.c.h.b16 %v258
    %v2443 = vunpack.c.l.b16 %v259
    %v2444 = vunpack.c.h.b16 %v259
    %v2445 = vunpack.c.l.b16 %v260
    %v2446 = vunpack.c.h.b16 %v260
    %v2447 = vunpack.c.l.b16 %v261
    %v2448 = vunpack.c.h.b16 %v261
    %v2449 = vunpack.c.l.b16 %v262
    %v2450 = vunpack.c.h.b16 %v262
    %v2451 = vunpack.c.l.b16 %v263
    %v2452 = vunpack.c.h.b16 %v263
    %v2453 = vunpack.c.l.b16 %v264
    %v2454 = vunpack.c.h.b16 %v264
    %v2455 = vunpack.c.l.b16 %v265
    %v2456 = vunpack.c.h.b16 %v265
    %v2457 = vunpack.c.l.b16 %v266
    %v2458 = vunpack.c.h.b16 %v266
    %v2459 = vunpack.c.l.b16 %v267
    %v2460 = vunpack.c.h.b16 %v267
    %v2461 = vunpack.c.l.b16 %v268
    %v2462 = vunpack.c.h.b16 %v268
    %v2463 = vunpack.c.l.b16 %v269
    %v2464 = vunpack.c.h.b16 %v269
    %v2465 = vunpack.c.l.b16 %v270
    %v2466 = vunpack.c.h.b16 %v270
    %v2467 = vunpack.c.l.b16 %v271
    %v2468 = vunpack.c.h.b16 %v271
    %v2469 = vunpack.c.l.b16 %v272
    %v2470 = vunpack.c.h.b16 %v272
    %v2471 = vunpack.c.l.b16 %v273
    %v2472 = vunpack.c.h.b16 %v273
    %v2473 = vunpack.c.l.b16 %v274
    %v2474 = vunpack.c.h.b16 %v274
    %v2475 = vunpack.c.l.b16 %v275
    %v2476 = vunpack.c.h.b16 %v275
    %v2477 = vunpack.c.l.b16 %v276
    %v2478 = vunpack.c.h.b16 %v276
    %v2479 = vunpack.c.l.b16 %v277
    %v2480 = vunpack.c.h.b16 %v277
    %v2481 = vunpack.c.l.b16 %v278
    %v2482 = vunpack.c.h.b16 %v278
    %v2483 = vunpack.c.l.b16 %v279
    %v2484 = vunpack.c.h.b16 %v279
    %v2485 = vunpack.c.l.b16 %v280
    %v2486 = vunpack.c.h.b16 %v280
    %v2487 = vunpack.c.l.b16 %v281
    %v2488 = vunpack.c.h.b16 %v281
    %v2489 = vunpack.c.l.b16 %v282
    %v2490 = vunpack.c.h.b16 %v282
    %v2491 = vunpack.c.l.b16 %v283
    %v2492 = vunpack.c.h.b16 %v283
    %v2493 = vunpack.c.l.b16 %v284
    %v2494 = vunpack.c.h.b16 %v284
    %v2495 = vunpack.c.l.b16 %v285
    %v2496 = vunpack.c.h.b16 %v285
    %v2497 = vunpack.c.l.b16 %v286
    %v2498 = vunpack.c.h.b16 %v286
    %v2499 = vunpack.c.l.b16 %v287
    %v2500 = vunpack.c.h.b16 %v287
    %v2501 = vunpack.c.l.b16 %v288
    %v2502 = vunpack.c.h.b16 %v288
    %v2503 = vunpack.c.l.b16 %v289
    %v2504 = vunpack.c.h.b16 %v289
    %v2505 = vunpack.c.l.b16 %v290
    %v2506 = vunpack.c.h.b16 %v290
    %v2507 = vunpack.c.l.b16 %v291
    %v2508 = vunpack.c.h.b16 %v291
    %v2509 = vunpack.c.l.b16 %v292
    %v2510 = vunpack.c.h.b16 %v292
    %v2511 = vunpack.c.l.b16 %v293
    %v2512 = vunpack.c.h.b16 %v293
    %v2513 = vunpack.c.l.b16 %v294
    %v2514 = vunpack.c.h.b16 %v294
    %v2515 = vunpack.c.l.b16 %v295
    %v2516 = vunpack.c.h.b16 %v295
    %v2517 = vunpack.c.l.b16 %v296
    %v2518 = vunpack.c.h.b16 %v296
    %v2519 = vunpack.c.l.b16 %v297
    %v2520 = vunpack.c.h.b16 %v297
    %v2521 = vunpack.c.l.b16 %v298
    %v2522 = vunpack.c.h.b16 %v298
    %v2523 = vunpack.c.l.b16 %v299
    %v2524 = vunpack.c.h.b16 %v299
    %v2525 = vunpack.c.l.b16 %v300
    %v2526 = vunpack.c.h.b16 %v300
    %v2527 = vunpack.c.l.b16 %v301
    %v2528 = vunpack.c.h.b16 %v301
    %v2529 = vunpack.c.l.b16 %v302
    %v2530 = vunpack.c.h.b16 %v302
    %v2531 = vunpack.c.l.b16 %v303
    %v2532 = vunpack.c.h.b16 %v303
    %v2533 = vunpack.c.l.b16 %v304
    %v2534 = vunpack.c.h.b16 %v304
    %v2535 = vunpack.c.l.b16 %v305
    %v2536 = vunpack.c.h.b16 %v305
    %v2537 = vunpack.c.l.b16 %v306
    %v2538 = vunpack.c.h.b16 %v306
    %v2539 = vunpack.c.l.b16 %v307
    %v2540 = vunpack.c.h.b16 %v307
    %v2541 = vunpack.c.l.b16 %v308
    %v2542 = vunpack.c.h.b16 %v308
    %v2543 = vunpack.c.l.b16 %v309
    %v2544 = vunpack.c.h.b16 %v309
    %v2545 = vunpack.c.l.b16 %v310
    %v2546 = vunpack.c.h.b16 %v310
    %v2547 = vunpack.c.l.b16 %v311
    %v2548 = vunpack.c.h.b16 %v311
    %v2549 = vunpack.c.l.b16 %v312
    %v2550 = vunpack.c.h.b16 %v312
    %v2551 = vunpack.c.l.b16 %v313
    %v2552 = vunpack.c.h.b16 %v313
    %v2553 = vunpack.c.l.b16 %v314
    %v2554 = vunpack.c.h.b16 %v314
    %v2555 = vunpack.c.l.b16 %v315
    %v2556 = vunpack.c.h.b16 %v315
    %v2557 = vunpack.c.l.b16 %v316
    %v2558 = vunpack.c.h.b16 %v316
    %v2559 = vunpack.c.l.b16 %v317
    %v2560 = vunpack.c.h.b16 %v317
    %v2561 = vunpack.c.l.b16 %v318
    %v2562 = vunpack.c.h.b16 %v318
    %v2563 = vunpack.c.l.b16 %v319
    %v2564 = vunpack.c.h.b16 %v319
    %v2565 = vunpack.c.l.b16 %v320
    %v2566 = vunpack.c.h.b16 %v320
    %v2567 = vunpack.c.l.b16 %v321
    %v2568 = vunpack.c.h.b16 %v321
    %v2569 = vunpack.c.l.b16 %v322
    %v2570 = vunpack.c.h.b16 %v322
    %v2571 = vunpack.c.l.b16 %v323
    %v2572 = vunpack.c.h.b16 %v323
    %v2573 = vunpack.c.l.b16 %v324
    %v2574 = vunpack.c.h.b16 %v324
    %v2575 = vunpack.c.l.b16 %v325
    %v2576 = vunpack.c.h.b16 %v325
    %v2577 = vunpack.c.l.b16 %v326
    %v2578 = vunpack.c.h.b16 %v326
    %v2579 = vunpack.c.l.b16 %v327
    %v2580 = vunpack.c.h.b16 %v327
    %v2581 = vunpack.c.l.b16 %v328
    %v2582 = vunpack.c.h.b16 %v328
    %v2583 = vunpack.c.l.b16 %v329
    %v2584 = vunpack.c.h.b16 %v329
    %v2585 = vunpack.c.l.b16 %v330
    %v2586 = vunpack.c.h.b16 %v330
    %v2587 = vunpack.c.l.b16 %v331
    %v2588 = vunpack.c.h.b16 %v331
    %v2589 = vunpack.c.l.b16 %v332
    %v2590 = vunpack.c.h.b16 %v332
    %v2591 = vunpack.c.l.b16 %v333
    %v2592 = vunpack.c.h.b16 %v333
    %v2593 = vunpack.c.l.b16 %v334
    %v2594 = vunpack.c.h.b16 %v334
    %v2595 = vunpack.c.l.b16 %v335
    %v2596 = vunpack.c.h.b16 %v335
    %v2597 = vunpack.c.l.b16 %v336
    %v2598 = vunpack.c.h.b16 %v336
    %v2599 = vunpack.c.l.b16 %v337
    %v2600 = vunpack.c.h.b16 %v337
    %v2601 = vunpack.c.l.b16 %v338
    %v2602 = vunpack.c.h.b16 %v338
    %v2603 = vunpack.c.l.b16 %v339
    %v2604 = vunpack.c.h.b16 %v339
    %v2605 = vunpack.c.l.b16 %v340
    %v2606 = vunpack.c.h.b16 %v340
    %v2607 = vunpack.c.l.b16 %v341
    %v2608 = vunpack.c.h.b16 %v341
    %v2609 = vunpack.c.l.b16 %v342
    %v2610 = vunpack.c.h.b16 %v342
    %v2611 = vunpack.c.l.b16 %v343
    %v2612 = vunpack.c.h.b16 %v343
    %v2613 = vunpack.c.l.b16 %v344
    %v2614 = vunpack.c.h.b16 %v344
    %v2615 = vunpack.c.l.b16 %v345
    %v2616 = vunpack.c.h.b16 %v345
    %v2617 = vunpack.c.l.b16 %v346
    %v2618 = vunpack.c.h.b16 %v346
    %v2619 = vunpack.c.l.b16 %v347
    %v2620 = vunpack.c.h.b16 %v347
    %v2621 = vunpack.c.l.b16 %v348
    %v2622 = vunpack.c.h.b16 %v348
    %v2623 = vunpack.c.l.b16 %v349
    %v2624 = vunpack.c.h.b16 %v349
    %v2625 = vunpack.c.l.b16 %v350
    %v2626 = vunpack.c.h.b16 %v350
    %v2627 = vunpack.c.l.b16 %v351
    %v2628 = vunpack.c.h.b16 %v351
    %v2629 = vunpack.c.l.b16 %v352
    %v2630 = vunpack.c.h.b16 %v352
    %v2631 = vunpack.c.l.b16 %v353
    %v2632 = vunpack.c.h.b16 %v353
    %v2633 = vunpack.c.l.b16 %v354
    %v2634 = vunpack.c.h.b16 %v354
    %v2635 = vunpack.c.l.b16 %v355
    %v2636 = vunpack.c.h.b16 %v355
    %v2637 = vunpack.c.l.b16 %v356
    %v2638 = vunpack.c.h.b16 %v356
    %v2639 = vunpack.c.l.b16 %v357
    %v2640 = vunpack.c.h.b16 %v357
    %v2641 = vunpack.c.l.b16 %v358
    %v2642 = vunpack.c.h.b16 %v358
    %v2643 = vunpack.c.l.b16 %v359
    %v2644 = vunpack.c.h.b16 %v359
    %v2645 = vunpack.c.l.b16 %v360
    %v2646 = vunpack.c.h.b16 %v360
    %v2647 = vunpack.c.l.b16 %v361
    %v2648 = vunpack.c.h.b16 %v361
    %v2649 = vunpack.c.l.b16 %v362
    %v2650 = vunpack.c.h.b16 %v362
    %v2651 = vunpack.c.l.b16 %v363
    %v2652 = vunpack.c.h.b16 %v363
    %v2653 = vunpack.c.l.b16 %v364
    %v2654 = vunpack.c.h.b16 %v364
    %v2655 = vunpack.c.l.b16 %v365
    %v2656 = vunpack.c.h.b16 %v365
    %v2657 = vunpack.c.l.b16 %v366
    %v2658 = vunpack.c.h.b16 %v366
    %v2659 = vunpack.c.l.b16 %v367
    %v2660 = vunpack.c.h.b16 %v367
    %v2661 = vunpack.c.l.b16 %v368
    %v2662 = vunpack.c.h.b16 %v368
    %v2663 = vunpack.c.l.b16 %v369
    %v2664 = vunpack.c.h.b16 %v369
    %v2665 = vunpack.c.l.b16 %v370
    %v2666 = vunpack.c.h.b16 %v370
    %v2667 = vunpack.c.l.b16 %v371
    %v2668 = vunpack.c.h.b16 %v371
    %v2669 = vunpack.c.l.b16 %v372
    %v2670 = vunpack.c.h.b16 %v372
    %v2671 = vunpack.c.l.b16 %v373
    %v2672 = vunpack.c.h.b16 %v373
    %v2673 = vunpack.c.l.b16 %v374
    %v2674 = vunpack.c.h.b16 %v374
    %v2675 = vunpack.c.l.b16 %v375
    %v2676 = vunpack.c.h.b16 %v375
    %v2677 = vunpack.c.l.b16 %v376
    %v2678 = vunpack.c.h.b16 %v376
    %v2679 = vunpack.c.l.b16 %v377
    %v2680 = vunpack.c.h.b16 %v377
    %v2681 = vunpack.c.l.b16 %v378
    %v2682 = vunpack.c.h.b16 %v378
    %v2683 = vunpack.c.l.b16 %v379
    %v2684 = vunpack.c.h.b16 %v379
    %v2685 = vunpack.c.l.b16 %v380
    %v2686 = vunpack.c.h.b16 %v380
    %v2687 = vunpack.c.l.b16 %v381
    %v2688 = vunpack.c.h.b16 %v381
    %v2689 = vunpack.c.l.b16 %v382
    %v2690 = vunpack.c.h.b16 %v382
    %v2691 = vunpack.c.l.b16 %v383
    %v2692 = vunpack.c.h.b16 %v383
    %v2693 = vunpack.c.l.b16 %v384
    %v2694 = vunpack.c.h.b16 %v384
    %v2695 = vunpack.c.l.b16 %v385
    %v2696 = vunpack.c.h.b16 %v385
    %v2697 = vunpack.c.l.b16 %v386
    %v2698 = vunpack.c.h.b16 %v386
    %v2699 = vunpack.c.l.b16 %v387
    %v2700 = vunpack.c.h.b16 %v387
    %v2701 = vunpack.c.l.b16 %v388
    %v2702 = vunpack.c.h.b16 %v388
    %v2703 = vunpack.c.l.b16 %v389
    %v2704 = vunpack.c.h.b16 %v389
    %v2705 = vunpack.c.l.b16 %v390
    %v2706 = vunpack.c.h.b16 %v390
    %v2707 = vunpack.c.l.b16 %v391
    %v2708 = vunpack.c.h.b16 %v391
    %v2709 = vunpack.c.l.b16 %v392
    %v2710 = vunpack.c.h.b16 %v392
    %v2711 = vunpack.c.l.b16 %v393
    %v2712 = vunpack.c.h.b16 %v393
    %v2713 = vunpack.c.l.b16 %v394
    %v2714 = vunpack.c.h.b16 %v394
    %v2715 = vunpack.c.l.b16 %v395
    %v2716 = vunpack.c.h.b16 %v395
    %v2717 = vunpack.c.l.b16 %v396
    %v2718 = vunpack.c.h.b16 %v396
    %v2719 = vunpack.c.l.b16 %v397
    %v2720 = vunpack.c.h.b16 %v397
    %v2721 = vunpack.c.l.b16 %v398
    %v2722 = vunpack.c.h.b16 %v398
    %v2723 = vunpack.c.l.b16 %v399
    %v2724 = vunpack.c.h.b16 %v399
    %v2725 = vunpack.c.l.b16 %v400
    %v2726 = vunpack.c.h.b16 %v400
    %v2727 = vunpack.c.l.b16 %v401
    %v2728 = vunpack.c.h.b16 %v401
    %v2729 = vunpack.c.l.b16 %v402
    %v2730 = vunpack.c.h.b16 %v402
    %v2731 = vunpack.c.l.b16 %v403
    %v2732 = vunpack.c.h.b16 %v403
    %v2733 = vunpack.c.l.b16 %v404
    %v2734 = vunpack.c.h.b16 %v404
    %v2735 = vunpack.c.l.b16 %v405
    %v2736 = vunpack.c.h.b16 %v405
    %v2737 = vunpack.c.l.b16 %v406
    %v2738 = vunpack.c.h.b16 %v406
    %v2739 = vunpack.c.l.b16 %v407
    %v2740 = vunpack.c.h.b16 %v407
    %v2741 = vunpack.c.l.b16 %v408
    %v2742 = vunpack.c.h.b16 %v408
    %v2743 = vunpack.c.l.b16 %v409
    %v2744 = vunpack.c.h.b16 %v409
    %v2745 = vunpack.c.l.b16 %v410
    %v2746 = vunpack.c.h.b16 %v410
    %v2747 = vunpack.c.l.b16 %v411
    %v2748 = vunpack.c.h.b16 %v411
    %v2749 = vunpack.c.l.b16 %v412
    %v2750 = vunpack.c.h.b16 %v412
    %v2751 = vunpack.c.l.b16 %v413
    %v2752 = vunpack.c.h.b16 %v413
    %v2753 = vunpack.c.l.b16 %v414
    %v2754 = vunpack.c.h.b16 %v414
    %v2755 = vunpack.c.l.b16 %v415
    %v2756 = vunpack.c.h.b16 %v415
    %v2757 = vunpack.c.l.b16 %v416
    %v2758 = vunpack.c.h.b16 %v416
    %v2759 = vunpack.c.l.b16 %v417
    %v2760 = vunpack.c.h.b16 %v417
    %v2761 = vunpack.c.l.b16 %v418
    %v2762 = vunpack.c.h.b16 %v418
    %v2763 = vunpack.c.l.b16 %v419
    %v2764 = vunpack.c.h.b16 %v419
    %v2765 = vunpack.c.l.b16 %v420
    %v2766 = vunpack.c.h.b16 %v420
    %v2767 = vunpack.c.l.b16 %v421
    %v2768 = vunpack.c.h.b16 %v421
    %v2769 = vunpack.c.l.b16 %v422
    %v2770 = vunpack.c.h.b16 %v422
    %v2771 = vunpack.c.l.b16 %v423
    %v2772 = vunpack.c.h.b16 %v423
    %v2773 = vunpack.c.l.b16 %v424
    %v2774 = vunpack.c.h.b16 %v424
    %v2775 = vunpack.c.l.b16 %v425
    %v2776 = vunpack.c.h.b16 %v425
    %v2777 = vunpack.c.l.b16 %v426
    %v2778 = vunpack.c.h.b16 %v426
    %v2779 = vunpack.c.l.b16 %v427
    %v2780 = vunpack.c.h.b16 %v427
    %v2781 = vunpack.c.l.b16 %v428
    %v2782 = vunpack.c.h.b16 %v428
    %v2783 = vunpack.c.l.b16 %v429
    %v2784 = vunpack.c.h.b16 %v429
    %v2785 = vunpack.c.l.b16 %v430
    %v2786 = vunpack.c.h.b16 %v430
    %v2787 = vunpack.c.l.b16 %v431
    %v2788 = vunpack.c.h.b16 %v431
    %v2789 = vunpack.c.l.b16 %v432
    %v2790 = vunpack.c.h.b16 %v432
    %v2791 = vunpack.c.l.b16 %v433
    %v2792 = vunpack.c.h.b16 %v433
    %v2793 = vunpack.c.l.b16 %v434
    %v2794 = vunpack.c.h.b16 %v434
    %v2795 = vunpack.c.l.b16 %v435
    %v2796 = vunpack.c.h.b16 %v435
    %v2797 = vunpack.c.l.b16 %v436
    %v2798 = vunpack.c.h.b16 %v436
    %v2799 = vunpack.c.l.b16 %v437
    %v2800 = vunpack.c.h.b16 %v437
    %v2801 = vunpack.c.l.b16 %v438
    %v2802 = vunpack.c.h.b16 %v438
    %v2803 = vunpack.c.l.b16 %v439
    %v2804 = vunpack.c.h.b16 %v439
    %v2805 = vunpack.c.l.b16 %v440
    %v2806 = vunpack.c.h.b16 %v440
    %v2807 = vunpack.c.l.b16 %v441
    %v2808 = vunpack.c.h.b16 %v441
    %v2809 = vunpack.c.l.b16 %v442
    %v2810 = vunpack.c.h.b16 %v442
    %v2811 = vunpack.c.l.b16 %v443
    %v2812 = vunpack.c.h.b16 %v443
    %v2813 = vunpack.c.l.b16 %v444
    %v2814 = vunpack.c.h.b16 %v444
    %v2815 = vunpack.c.l.b16 %v445
    %v2816 = vunpack.c.h.b16 %v445
    %v2817 = vunpack.c.l.b16 %v446
    %v2818 = vunpack.c.h.b16 %v446
    %v2819 = vunpack.c.l.b16 %v447
    %v2820 = vunpack.c.h.b16 %v447
    %v2821 = vunpack.c.l.b16 %v448
    %v2822 = vunpack.c.h.b16 %v448
    %v2823 = vunpack.c.l.b16 %v449
    %v2824 = vunpack.c.h.b16 %v449
    %v2825 = vunpack.c.l.b16 %v450
    %v2826 = vunpack.c.h.b16 %v450
    %v2827 = vunpack.c.l.b16 %v451
    %v2828 = vunpack.c.h.b16 %v451
    %v2829 = vunpack.c.l.b16 %v452
    %v2830 = vunpack.c.h.b16 %v452
    %v2831 = vunpack.c.l.b16 %v453
    %v2832 = vunpack.c.h.b16 %v453
    %v2833 = vunpack.c.l.b16 %v454
    %v2834 = vunpack.c.h.b16 %v454
    %v2835 = vunpack.c.l.b16 %v455
    %v2836 = vunpack.c.h.b16 %v455
    %v2837 = vunpack.c.l.b16 %v456
    %v2838 = vunpack.c.h.b16 %v456
    %v2839 = vunpack.c.l.b16 %v457
    %v2840 = vunpack.c.h.b16 %v457
    %v2841 = vunpack.c.l.b16 %v458
    %v2842 = vunpack.c.h.b16 %v458
    %v2843 = vunpack.c.l.b16 %v459
    %v2844 = vunpack.c.h.b16 %v459
    %v2845 = vunpack.c.l.b16 %v460
    %v2846 = vunpack.c.h.b16 %v460
    %v2847 = vunpack.c.l.b16 %v461
    %v2848 = vunpack.c.h.b16 %v461
    %v2849 = vunpack.c.l.b16 %v462
    %v2850 = vunpack.c.h.b16 %v462
    %v2851 = vunpack.c.l.b16 %v463
    %v2852 = vunpack.c.h.b16 %v463
    %v2853 = vunpack.c.l.b16 %v464
    %v2854 = vunpack.c.h.b16 %v464
    %v2855 = vunpack.c.l.b16 %v465
    %v2856 = vunpack.c.h.b16 %v465
    %v2857 = vunpack.c.l.b16 %v466
    %v2858 = vunpack.c.h.b16 %v466
    %v2859 = vunpack.c.l.b16 %v467
    %v2860 = vunpack.c.h.b16 %v467
    %v2861 = vunpack.c.l.b16 %v468
    %v2862 = vunpack.c.h.b16 %v468
    %v2863 = vunpack.c.l.b16 %v469
    %v2864 = vunpack.c.h.b16 %v469
    %v2865 = vunpack.c.l.b16 %v470
    %v2866 = vunpack.c.h.b16 %v470
    %v2867 = vunpack.c.l.b16 %v471
    %v2868 = vunpack.c.h.b16 %v471
    %v2869 = vunpack.c.l.b16 %v472
    %v2870 = vunpack.c.h.b16 %v472
    %v2871 = vunpack.c.l.b16 %v473
    %v2872 = vunpack.c.h.b16 %v473
    %v2873 = vunpack.c.l.b16 %v474
    %v2874 = vunpack.c.h.b16 %v474
    %v2875 = vunpack.c.l.b16 %v475
    %v2876 = vunpack.c.h.b16 %v475
    %v2877 = vunpack.c.l.b16 %v476
    %v2878 = vunpack.c.h.b16 %v476
    %v2879 = vunpack.c.l.b16 %v477
    %v2880 = vunpack.c.h.b16 %v477
    %v2881 = vunpack.c.l.b16 %v478
    %v2882 = vunpack.c.h.b16 %v478
    %v2883 = vunpack.c.l.b16 %v479
    %v2884 = vunpack.c.h.b16 %v479
    %v2885 = vunpack.c.l.b16 %v480
    %v2886 = vunpack.c.h.b16 %v480
    %v2887 = vunpack.c.l.b16 %v481
    %v2888 = vunpack.c.h.b16 %v481
    %v2889 = vunpack.c.l.b16 %v482
    %v2890 = vunpack.c.h.b16 %v482
    %v2891 = vunpack.c.l.b16 %v483
    %v2892 = vunpack.c.h.b16 %v483
    %v2893 = vunpack.c.l.b16 %v484
    %v2894 = vunpack.c.h.b16 %v484
    %v2895 = vunpack.c.l.b16 %v485
    %v2896 = vunpack.c.h.b16 %v485
    %v2897 = vunpack.c.l.b16 %v486
    %v2898 = vunpack.c.h.b16 %v486
    %v2899 = vunpack.c.l.b16 %v487
    %v2900 = vunpack.c.h.b16 %v487
    %v2901 = vunpack.c.l.b16 %v488
    %v2902 = vunpack.c.h.b16 %v488
    %v2903 = vunpack.c.l.b16 %v489
    %v2904 = vunpack.c.h.b16 %v489
    %v2905 = vunpack.c.l.b16 %v490
    %v2906 = vunpack.c.h.b16 %v490
    %v2907 = vunpack.c.l.b16 %v491
    %v2908 = vunpack.c.h.b16 %v491
    %v2909 = vunpack.c.l.b16 %v492
    %v2910 = vunpack.c.h.b16 %v492
    %v2911 = vunpack.c.l.b16 %v493
    %v2912 = vunpack.c.h.b16 %v493
    %v2913 = vunpack.c.l.b16 %v494
    %v2914 = vunpack.c.h.b16 %v494
    %v2915 = vunpack.c.l.b16 %v495
    %v2916 = vunpack.c.h.b16 %v495
    %v2917 = vunpack.c.l.b16 %v496
    %v2918 = vunpack.c.h.b16 %v496
    %v2919 = vunpack.c.l.b16 %v497
    %v2920 = vunpack.c.h.b16 %v497
    %v2921 = vunpack.c.l.b16 %v498
    %v2922 = vunpack.c.h.b16 %v498
    %v2923 = vunpack.c.l.b16 %v499
    %v2924 = vunpack.c.h.b16 %v499
    %v2925 = vunpack.c.l.b16 %v500
    %v2926 = vunpack.c.h.b16 %v500
    %v2927 = vunpack.c.l.b16 %v501
    %v2928 = vunpack.c.h.b16 %v501
    %v2929 = vunpack.c.l.b16 %v502
    %v2930 = vunpack.c.h.b16 %v502
    %v2931 = vunpack.c.l.b16 %v503
    %v2932 = vunpack.c.h.b16 %v503
    %v2933 = vunpack.c.l.b16 %v504
    %v2934 = vunpack.c.h.b16 %v504
    %v2935 = vunpack.c.l.b16 %v505
    %v2936 = vunpack.c.h.b16 %v505
    %v2937 = vunpack.c.l.b16 %v506
    %v2938 = vunpack.c.h.b16 %v506
    %v2939 = vunpack.c.l.b16 %v507
    %v2940 = vunpack.c.h.b16 %v507
    %v2941 = vunpack.c.l.b16 %v508
    %v2942 = vunpack.c.h.b16 %v508
    %v2943 = vunpack.c.l.b16 %v509
    %v2944 = vunpack.c.h.b16 %v509
    %v2945 = vunpack.c.l.b16 %v510
    %v2946 = vunpack.c.h.b16 %v510
    %v2947 = vunpack.c.l.b16 %v511
    %v2948 = vunpack.c.h.b16 %v511
    %v2949 = vunpack.c.l.b16 %v512
    %v2950 = vunpack.c.h.b16 %v512
    %v2951 = vunpack.c.l.b16 %v513
    %v2952 = vunpack.c.h.b16 %v513
    %v2953 = vunpack.c.l.b16 %v514
    %v2954 = vunpack.c.h.b16 %v514
    %v2955 = vunpack.c.l.b16 %v515
    %v2956 = vunpack.c.h.b16 %v515
    %v2957 = vunpack.c.l.b16 %v516
    %v2958 = vunpack.c.h.b16 %v516
    %v2959 = vunpack.c.l.b16 %v517
    %v2960 = vunpack.c.h.b16 %v517
    %v2961 = vunpack.c.l.b16 %v518
    %v2962 = vunpack.c.h.b16 %v518
    %v2963 = vunpack.c.l.b16 %v519
    %v2964 = vunpack.c.h.b16 %v519
    %v2965 = vunpack.c.l.b16 %v520
    %v2966 = vunpack.c.h.b16 %v520
    %v2967 = vunpack.c.l.b16 %v521
    %v2968 = vunpack.c.h.b16 %v521
    %v2969 = vunpack.c.l.b16 %v522
    %v2970 = vunpack.c.h.b16 %v522
    %v2971 = vunpack.c.l.b16 %v523
    %v2972 = vunpack.c.h.b16 %v523
    %v2973 = vunpack.c.l.b16 %v524
    %v2974 = vunpack.c.h.b16 %v524
    %v2975 = vunpack.c.l.b16 %v525
    %v2976 = vunpack.c.h.b16 %v525
    %v2977 = vunpack.c.l.b16 %v526
    %v2978 = vunpack.c.h.b16 %v526
    %v2979 = vunpack.c.l.b16 %v527
    %v2980 = vunpack.c.h.b16 %v527
    %v2981 = vunpack.c.l.b16 %v528
    %v2982 = vunpack.c.h.b16 %v528
    %v2983 = vunpack.c.l.b16 %v529
    %v2984 = vunpack.c.h.b16 %v529
    %v2985 = vunpack.c.l.b16 %v530
    %v2986 = vunpack.c.h.b16 %v530
    %v2987 = vunpack.c.l.b16 %v531
    %v2988 = vunpack.c.h.b16 %v531
    %v2989 = vunpack.c.l.b16 %v532
    %v2990 = vunpack.c.h.b16 %v532
    %v2991 = vunpack.c.l.b16 %v533
    %v2992 = vunpack.c.h.b16 %v533
    %v2993 = vunpack.c.l.b16 %v534
    %v2994 = vunpack.c.h.b16 %v534
    %v2995 = vunpack.c.l.b16 %v535
    %v2996 = vunpack.c.h.b16 %v535
    %v2997 = vunpack.c.l.b16 %v536
    %v2998 = vunpack.c.h.b16 %v536
    %v2999 = vunpack.c.l.b16 %v537
    %v3000 = vunpack.c.h.b16 %v537
    %v3001 = vunpack.c.l.b16 %v538
    %v3002 = vunpack.c.h.b16 %v538
    %v3003 = vunpack.c.l.b16 %v539
    %v3004 = vunpack.c.h.b16 %v539
    %v3005 = vunpack.c.l.b16 %v540
    %v3006 = vunpack.c.h.b16 %v540
    %v3007 = vunpack.c.l.b16 %v541
    %v3008 = vunpack.c.h.b16 %v541
    %v3009 = vunpack.c.l.b16 %v542
    %v3010 = vunpack.c.h.b16 %v542
    %v3011 = vunpack.c.l.b16 %v543
    %v3012 = vunpack.c.h.b16 %v543
    %v3013 = vunpack.c.l.b16 %v544
    %v3014 = vunpack.c.h.b16 %v544
    %v3015 = vunpack.c.l.b16 %v545
    %v3016 = vunpack.c.h.b16 %v545
    %v3017 = vunpack.c.l.b16 %v546
    %v3018 = vunpack.c.h.b16 %v546
    %v3019 = vunpack.c.l.b16 %v547
    %v3020 = vunpack.c.h.b16 %v547
    %v3021 = vunpack.c.l.b16 %v548
    %v3022 = vunpack.c.h.b16 %v548
    %v3023 = vunpack.c.l.b16 %v549
    %v3024 = vunpack.c.h.b16 %v549
    %v3025 = vunpack.c.l.b16 %v550
    %v3026 = vunpack.c.h.b16 %v550
    %v3027 = vunpack.c.l.b16 %v551
    %v3028 = vunpack.c.h.b16 %v551
    %v3029 = vunpack.c.l.b16 %v552
    %v3030 = vunpack.c.h.b16 %v552
    %v3031 = vunpack.c.l.b16 %v553
    %v3032 = vunpack.c.h.b16 %v553
    %v3033 = vunpack.c.l.b16 %v554
    %v3034 = vunpack.c.h.b16 %v554
    %v3035 = vunpack.c.l.b16 %v555
    %v3036 = vunpack.c.h.b16 %v555
    %v3037 = vunpack.c.l.b16 %v556
    %v3038 = vunpack.c.h.b16 %v556
    %v3039 = vunpack.c.l.b16 %v557
    %v3040 = vunpack.c.h.b16 %v557
    %v3041 = vunpack.c.l.b16 %v558
    %v3042 = vunpack.c.h.b16 %v558
    %v3043 = vunpack.c.l.b16 %v559
    %v3044 = vunpack.c.h.b16 %v559
    %v3045 = vunpack.c.l.b16 %v560
    %v3046 = vunpack.c.h.b16 %v560
    %v3047 = vunpack.c.l.b16 %v561
    %v3048 = vunpack.c.h.b16 %v561
    %v3049 = vunpack.c.l.b16 %v562
    %v3050 = vunpack.c.h.b16 %v562
    %v3051 = vunpack.c.l.b16 %v563
    %v3052 = vunpack.c.h.b16 %v563
    %v3053 = vunpack.c.l.b16 %v564
    %v3054 = vunpack.c.h.b16 %v564
    %v3055 = vunpack.c.l.b16 %v565
    %v3056 = vunpack.c.h.b16 %v565
    %v3057 = vunpack.c.l.b16 %v566
    %v3058 = vunpack.c.h.b16 %v566
    %v3059 = vunpack.c.l.b16 %v567
    %v3060 = vunpack.c.h.b16 %v567
    %v3061 = vunpack.c.l.b16 %v568
    %v3062 = vunpack.c.h.b16 %v568
    %v3063 = vunpack.c.l.b16 %v569
    %v3064 = vunpack.c.h.b16 %v569
    %v3065 = vunpack.c.l.b16 %v570
    %v3066 = vunpack.c.h.b16 %v570
    %v3067 = vunpack.c.l.b16 %v571
    %v3068 = vunpack.c.h.b16 %v571
    %v3069 = vunpack.c.l.b16 %v572
    %v3070 = vunpack.c.h.b16 %v572
    %v3071 = vunpack.c.l.b16 %v573
    %v3072 = vunpack.c.h.b16 %v573
    %v3073 = vunpack.c.l.b16 %v574
    %v3074 = vunpack.c.h.b16 %v574
    %v3075 = vunpack.c.l.b16 %v575
    %v3076 = vunpack.c.h.b16 %v575
    %v3077 = vunpack.c.l.b16 %v576
    %v3078 = vunpack.c.h.b16 %v576
    %v3079 = vunpack.c.l.b16 %v577
    %v3080 = vunpack.c.h.b16 %v577
    %v3081 = vunpack.c.l.b16 %v578
    %v3082 = vunpack.c.h.b16 %v578
    %v3083 = vunpack.c.l.b16 %v579
    %v3084 = vunpack.c.h.b16 %v579
    %v3085 = vunpack.c.l.b16 %v580
    %v3086 = vunpack.c.h.b16 %v580
    %v3087 = vunpack.c.l.b16 %v581
    %v3088 = vunpack.c.h.b16 %v581
    %v3089 = vunpack.c.l.b16 %v582
    %v3090 = vunpack.c.h.b16 %v582
    %v3091 = vunpack.c.l.b16 %v583
    %v3092 = vunpack.c.h.b16 %v583
    %v3093 = vunpack.c.l.b16 %v584
    %v3094 = vunpack.c.h.b16 %v584
    %v3095 = vunpack.c.l.b16 %v585
    %v3096 = vunpack.c.h.b16 %v585
    %v3097 = vunpack.c.l.b16 %v586
    %v3098 = vunpack.c.h.b16 %v586
    %v3099 = vunpack.c.l.b16 %v587
    %v3100 = vunpack.c.h.b16 %v587
    %v3101 = vunpack.c.l.b16 %v588
    %v3102 = vunpack.c.h.b16 %v588
    %v3103 = vunpack.c.l.b16 %v589
    %v3104 = vunpack.c.h.b16 %v589
    %v3105 = vunpack.c.l.b16 %v590
    %v3106 = vunpack.c.h.b16 %v590
    %v3107 = vunpack.c.l.b16 %v591
    %v3108 = vunpack.c.h.b16 %v591
    %v3109 = vunpack.c.l.b16 %v592
    %v3110 = vunpack.c.h.b16 %v592
    %v3111 = vunpack.c.l.b16 %v593
    %v3112 = vunpack.c.h.b16 %v593
    %v3113 = vunpack.c.l.b16 %v594
    %v3114 = vunpack.c.h.b16 %v594
    %v3115 = vunpack.c.l.b16 %v595
    %v3116 = vunpack.c.h.b16 %v595
    %v3117 = vunpack.c.l.b16 %v596
    %v3118 = vunpack.c.h.b16 %v596
    %v3119 = vunpack.c.l.b16 %v597
    %v3120 = vunpack.c.h.b16 %v597
    %v3121 = vunpack.c.l.b16 %v598
    %v3122 = vunpack.c.h.b16 %v598
    %v3123 = vunpack.c.l.b16 %v599
    %v3124 = vunpack.c.h.b16 %v599
    %v3125 = vunpack.c.l.b16 %v600
    %v3126 = vunpack.c.h.b16 %v600
    %v3127 = vunpack.c.l.b16 %v601
    %v3128 = vunpack.c.h.b16 %v601
    %v3129 = vunpack.c.l.b16 %v602
    %v3130 = vunpack.c.h.b16 %v602
    %v3131 = vunpack.c.l.b16 %v603
    %v3132 = vunpack.c.h.b16 %v603
    %v3133 = vunpack.c.l.b16 %v604
    %v3134 = vunpack.c.h.b16 %v604
    %v3135 = vunpack.c.l.b16 %v605
    %v3136 = vunpack.c.h.b16 %v605
    %v3137 = vunpack.c.l.b16 %v606
    %v3138 = vunpack.c.h.b16 %v606
    %v3139 = vunpack.c.l.b16 %v607
    %v3140 = vunpack.c.h.b16 %v607
    %v3141 = vunpack.c.l.b16 %v608
    %v3142 = vunpack.c.h.b16 %v608
    %v3143 = vunpack.c.l.b16 %v609
    %v3144 = vunpack.c.h.b16 %v609
    %v3145 = vunpack.c.l.b16 %v610
    %v3146 = vunpack.c.h.b16 %v610
    %v3147 = vunpack.c.l.b16 %v611
    %v3148 = vunpack.c.h.b16 %v611
    %v3149 = vunpack.c.l.b16 %v612
    %v3150 = vunpack.c.h.b16 %v612
    %v3151 = vunpack.c.l.b16 %v613
    %v3152 = vunpack.c.h.b16 %v613
    %v3153 = vunpack.c.l.b16 %v614
    %v3154 = vunpack.c.h.b16 %v614
    %v3155 = vunpack.c.l.b16 %v615
    %v3156 = vunpack.c.h.b16 %v615
    %v3157 = vunpack.c.l.b16 %v616
    %v3158 = vunpack.c.h.b16 %v616
    %v3159 = vunpack.c.l.b16 %v617
    %v3160 = vunpack.c.h.b16 %v617
    %v3161 = vunpack.c.l.b16 %v618
    %v3162 = vunpack.c.h.b16 %v618
    %v3163 = vunpack.c.l.b16 %v619
    %v3164 = vunpack.c.h.b16 %v619
    %v3165 = vunpack.c.l.b16 %v620
    %v3166 = vunpack.c.h.b16 %v620
    %v3167 = vunpack.c.l.b16 %v621
    %v3168 = vunpack.c.h.b16 %v621
    %v3169 = vunpack.c.l.b16 %v622
    %v3170 = vunpack.c.h.b16 %v622
    %v3171 = vunpack.c.l.b16 %v623
    %v3172 = vunpack.c.h.b16 %v623
    %v3173 = vunpack.c.l.b16 %v624
    %v3174 = vunpack.c.h.b16 %v624
    %v3175 = vunpack.c.l.b16 %v625
    %v3176 = vunpack.c.h.b16 %v625
    %v3177 = vunpack.c.l.b16 %v626
    %v3178 = vunpack.c.h.b16 %v626
    %v3179 = vunpack.c.l.b16 %v627
    %v3180 = vunpack.c.h.b16 %v627
    %v3181 = vunpack.c.l.b16 %v628
    %v3182 = vunpack.c.h.b16 %v628
    %v3183 = vunpack.c.l.b16 %v629
    %v3184 = vunpack.c.h.b16 %v629
    %v3185 = vunpack.c.l.b16 %v630
    %v3186 = vunpack.c.h.b16 %v630
    %v3187 = vunpack.c.l.b16 %v631
    %v3188 = vunpack.c.h.b16 %v631
    %v3189 = vunpack.c.l.b16 %v632
    %v3190 = vunpack.c.h.b16 %v632
    %v3191 = vunpack.c.l.b16 %v633
    %v3192 = vunpack.c.h.b16 %v633
    %v3193 = vunpack.c.l.b16 %v634
    %v3194 = vunpack.c.h.b16 %v634
    %v3195 = vunpack.c.l.b16 %v635
    %v3196 = vunpack.c.h.b16 %v635
    %v3197 = vunpack.c.l.b16 %v636
    %v3198 = vunpack.c.h.b16 %v636
    %v3199 = vunpack.c.l.b16 %v637
    %v3200 = vunpack.c.h.b16 %v637
    %v3201 = vunpack.c.l.b16 %v638
    %v3202 = vunpack.c.h.b16 %v638
    %v3203 = vunpack.c.l.b16 %v639
    %v3204 = vunpack.c.h.b16 %v639
    %v3205 = vunpack.c.l.b16 %v640
    %v3206 = vunpack.c.h.b16 %v640
    %v3207 = vunpack.c.l.b16 %v641
    %v3208 = vunpack.c.h.b16 %v641
    %v3209 = vunpack.c.l.b16 %v642
    %v3210 = vunpack.c.h.b16 %v642
    %v3211 = vunpack.c.l.b16 %v643
    %v3212 = vunpack.c.h.b16 %v643
    %v3213 = vunpack.c.l.b16 %v644
    %v3214 = vunpack.c.h.b16 %v644
    %v3215 = vunpack.c.l.b16 %v645
    %v3216 = vunpack.c.h.b16 %v645
    %v3217 = vunpack.c.l.b16 %v646
    %v3218 = vunpack.c.h.b16 %v646
    %v3219 = vunpack.c.l.b16 %v647
    %v3220 = vunpack.c.h.b16 %v647
    %v3221 = vunpack.c.l.b16 %v648
    %v3222 = vunpack.c.h.b16 %v648
    %v3223 = vunpack.c.l.b16 %v649
    %v3224 = vunpack.c.h.b16 %v649
    %v3225 = vunpack.c.l.b16 %v650
    %v3226 = vunpack.c.h.b16 %v650
    %v3227 = vunpack.c.l.b16 %v651
    %v3228 = vunpack.c.h.b16 %v651
    %v3229 = vunpack.c.l.b16 %v652
    %v3230 = vunpack.c.h.b16 %v652
    %v3231 = vunpack.c.l.b16 %v653
    %v3232 = vunpack.c.h.b16 %v653
    %v3233 = vunpack.c.l.b16 %v654
    %v3234 = vunpack.c.h.b16 %v654
    %v3235 = vunpack.c.l.b16 %v655
    %v3236 = vunpack.c.h.b16 %v655
    %v3237 = vunpack.c.l.b16 %v656
    %v3238 = vunpack.c.h.b16 %v656
    %v3239 = vunpack.c.l.b16 %v657
    %v3240 = vunpack.c.h.b16 %v657
    %v3241 = vunpack.c.l.b16 %v658
    %v3242 = vunpack.c.h.b16 %v658
    %v3243 = vunpack.c.l.b16 %v659
    %v3244 = vunpack.c.h.b16 %v659
    %v3245 = vunpack.c.l.b16 %v660
    %v3246 = vunpack.c.h.b16 %v660
    %v3247 = vunpack.c.l.b16 %v661
    %v3248 = vunpack.c.h.b16 %v661
    %v3249 = vunpack.c.l.b16 %v662
    %v3250 = vunpack.c.h.b16 %v662
    %v3251 = vunpack.c.l.b16 %v663
    %v3252 = vunpack.c.h.b16 %v663
    %v3253 = vunpack.c.l.b16 %v664
    %v3254 = vunpack.c.h.b16 %v664
    %v3255 = vunpack.c.l.b16 %v665
    %v3256 = vunpack.c.h.b16 %v665
    %v3257 = vunpack.c.l.b16 %v666
    %v3258 = vunpack.c.h.b16 %v666
    %v3259 = vunpack.c.l.b16 %v667
    %v3260 = vunpack.c.h.b16 %v667
    %v3261 = vunpack.c.l.b16 %v668
    %v3262 = vunpack.c.h.b16 %v668
    %v3263 = vunpack.c.l.b16 %v669
    %v3264 = vunpack.c.h.b16 %v669
    %v3265 = vunpack.c.l.b16 %v670
    %v3266 = vunpack.c.h.b16 %v670
    %v3267 = vunpack.c.l.b16 %v671
    %v3268 = vunpack.c.h.b16 %v671
    %v3269 = vunpack.c.l.b16 %v672
    %v3270 = vunpack.c.h.b16 %v672
    %v3271 = vunpack.c.l.b16 %v673
    %v3272 = vunpack.c.h.b16 %v673
    %v3273 = vunpack.c.l.b16 %v674
    %v3274 = vunpack.c.h.b16 %v674
    %v3275 = vunpack.c.l.b16 %v675
    %v3276 = vunpack.c.h.b16 %v675
    %v3277 = vunpack.c.l.b16 %v676
    %v3278 = vunpack.c.h.b16 %v676
    %v3279 = vunpack.c.l.b16 %v677
    %v3280 = vunpack.c.h.b16 %v677
    %v3281 = vunpack.c.l.b16 %v678
    %v3282 = vunpack.c.h.b16 %v678
    %v3283 = vunpack.c.l.b16 %v679
    %v3284 = vunpack.c.h.b16 %v679
    %v3285 = vunpack.c.l.b16 %v680
    %v3286 = vunpack.c.h.b16 %v680
    %v3287 = vunpack.c.l.b16 %v681
    %v3288 = vunpack.c.h.b16 %v681
    %v3289 = vunpack.c.l.b16 %v682
    %v3290 = vunpack.c.h.b16 %v682
    %v3291 = vunpack.c.l.b16 %v683
    %v3292 = vunpack.c.h.b16 %v683
    %v3293 = vunpack.c.l.b16 %v684
    %v3294 = vunpack.c.h.b16 %v684
    %v3295 = vunpack.c.l.b16 %v685
    %v3296 = vunpack.c.h.b16 %v685
    %v3297 = vunpack.c.l.b16 %v686
    %v3298 = vunpack.c.h.b16 %v686
    %v3299 = vunpack.c.l.b16 %v687
    %v3300 = vunpack.c.h.b16 %v687
    %v3301 = vunpack.c.l.b16 %v688
    %v3302 = vunpack.c.h.b16 %v688
    %v3303 = vunpack.c.l.b16 %v689
    %v3304 = vunpack.c.h.b16 %v689
    %v3305 = vunpack.c.l.b16 %v690
    %v3306 = vunpack.c.h.b16 %v690
    %v3307 = vunpack.c.l.b16 %v691
    %v3308 = vunpack.c.h.b16 %v691
    %v3309 = vunpack.c.l.b16 %v692
    %v3310 = vunpack.c.h.b16 %v692
    %v3311 = vunpack.c.l.b16 %v693
    %v3312 = vunpack.c.h.b16 %v693
    %v3313 = vunpack.c.l.b16 %v694
    %v3314 = vunpack.c.h.b16 %v694
    %v3315 = vunpack.c.l.b16 %v695
    %v3316 = vunpack.c.h.b16 %v695
    %v3317 = vunpack.c.l.b16 %v696
    %v3318 = vunpack.c.h.b16 %v696
    %v3319 = vunpack.c.l.b16 %v697
    %v3320 = vunpack.c.h.b16 %v697
    %v3321 = vunpack.c.l.b16 %v698
    %v3322 = vunpack.c.h.b16 %v698
    %v3323 = vunpack.c.l.b16 %v699
    %v3324 = vunpack.c.h.b16 %v699
    %v3325 = vunpack.c.l.b16 %v700
    %v3326 = vunpack.c.h.b16 %v700
    %v3327 = vunpack.c.l.b16 %v701
    %v3328 = vunpack.c.h.b16 %v701
    %v3329 = vunpack.c.l.b16 %v702
    %v3330 = vunpack.c.h.b16 %v702
    %v3331 = vunpack.c.l.b16 %v703
    %v3332 = vunpack.c.h.b16 %v703
    %v3333 = vunpack.c.l.b16 %v704
    %v3334 = vunpack.c.h.b16 %v704
    %v3335 = vunpack.c.l.b16 %v705
    %v3336 = vunpack.c.h.b16 %v705
    %v3337 = vunpack.c.l.b16 %v706
    %v3338 = vunpack.c.h.b16 %v706
    %v3339 = vunpack.c.l.b16 %v707
    %v3340 = vunpack.c.h.b16 %v707
    %v3341 = vunpack.c.l.b16 %v708
    %v3342 = vunpack.c.h.b16 %v708
    %v3343 = vunpack.c.l.b16 %v709
    %v3344 = vunpack.c.h.b16 %v709
    %v3345 = vunpack.c.l.b16 %v710
    %v3346 = vunpack.c.h.b16 %v710
    %v3347 = vunpack.c.l.b16 %v711
    %v3348 = vunpack.c.h.b16 %v711
    %v3349 = vunpack.c.l.b16 %v712
    %v3350 = vunpack.c.h.b16 %v712
    %v3351 = vunpack.c.l.b16 %v713
    %v3352 = vunpack.c.h.b16 %v713
    %v3353 = vunpack.c.l.b16 %v714
    %v3354 = vunpack.c.h.b16 %v714
    %v3355 = vunpack.c.l.b16 %v715
    %v3356 = vunpack.c.h.b16 %v715
    %v3357 = vunpack.c.l.b16 %v716
    %v3358 = vunpack.c.h.b16 %v716
    %v3359 = vunpack.c.l.b16 %v717
    %v3360 = vunpack.c.h.b16 %v717
    %v3361 = vunpack.c.l.b16 %v718
    %v3362 = vunpack.c.h.b16 %v718
    %v3363 = vunpack.c.l.b16 %v719
    %v3364 = vunpack.c.h.b16 %v719
    %v3365 = vunpack.c.l.b16 %v720
    %v3366 = vunpack.c.h.b16 %v720
    %v3367 = vunpack.c.l.b16 %v721
    %v3368 = vunpack.c.h.b16 %v721
    %v3369 = vunpack.c.l.b16 %v722
    %v3370 = vunpack.c.h.b16 %v722
    %v3371 = vunpack.c.l.b16 %v723
    %v3372 = vunpack.c.h.b16 %v723
    %v3373 = vunpack.c.l.b16 %v724
    %v3374 = vunpack.c.h.b16 %v724
    %v3375 = vunpack.c.l.b16 %v725
    %v3376 = vunpack.c.h.b16 %v725
    %v3377 = vunpack.c.l.b16 %v726
    %v3378 = vunpack.c.h.b16 %v726
    %v3379 = vunpack.c.l.b16 %v727
    %v3380 = vunpack.c.h.b16 %v727
    %v3381 = vunpack.c.l.b16 %v728
    %v3382 = vunpack.c.h.b16 %v728
    %v3383 = vunpack.c.l.b16 %v729
    %v3384 = vunpack.c.h.b16 %v729
    %v3385 = vunpack.c.l.b16 %v730
    %v3386 = vunpack.c.h.b16 %v730
    %v3387 = vunpack.c.l.b16 %v731
    %v3388 = vunpack.c.h.b16 %v731
    %v3389 = vunpack.c.l.b16 %v732
    %v3390 = vunpack.c.h.b16 %v732
    %v3391 = vunpack.c.l.b16 %v733
    %v3392 = vunpack.c.h.b16 %v733
    %v3393 = vunpack.c.l.b16 %v734
    %v3394 = vunpack.c.h.b16 %v734
    %v3395 = vunpack.c.l.b16 %v735
    %v3396 = vunpack.c.h.b16 %v735
    %v3397 = vunpack.c.l.b16 %v736
    %v3398 = vunpack.c.h.b16 %v736
    %v3399 = vunpack.c.l.b16 %v737
    %v3400 = vunpack.c.h.b16 %v737
    %v3401 = vunpack.c.l.b16 %v738
    %v3402 = vunpack.c.h.b16 %v738
    %v3403 = vunpack.c.l.b16 %v739
    %v3404 = vunpack.c.h.b16 %v739
    %v3405 = vunpack.c.l.b16 %v740
    %v3406 = vunpack.c.h.b16 %v740
    %v3407 = vunpack.c.l.b16 %v741
    %v3408 = vunpack.c.h.b16 %v741
    %v3409 = vunpack.c.l.b16 %v742
    %v3410 = vunpack.c.h.b16 %v742
    %v3411 = vunpack.c.l.b16 %v743
    %v3412 = vunpack.c.h.b16 %v743
    %v3413 = vunpack.c.l.b16 %v744
    %v3414 = vunpack.c.h.b16 %v744
    %v3415 = vunpack.c.l.b16 %v745
    %v3416 = vunpack.c.h.b16 %v745
    %v3417 = vunpack.c.l.b16 %v746
    %v3418 = vunpack.c.h.b16 %v746
    %v3419 = vunpack.c.l.b16 %v747
    %v3420 = vunpack.c.h.b16 %v747
    %v3421 = vunpack.c.l.b16 %v748
    %v3422 = vunpack.c.h.b16 %v748
    %v3423 = vunpack.c.l.b16 %v749
    %v3424 = vunpack.c.h.b16 %v749
    %v3425 = vunpack.c.l.b16 %v750
    %v3426 = vunpack.c.h.b16 %v750
    %v3427 = vunpack.c.l.b16 %v751
    %v3428 = vunpack.c.h.b16 %v751
    %v3429 = vunpack.c.l.b16 %v752
    %v3430 = vunpack.c.h.b16 %v752
    %v3431 = vunpack.c.l.b16 %v753
    %v3432 = vunpack.c.h.b16 %v753
    %v3433 = vunpack.c.l.b16 %v754
    %v3434 = vunpack.c.h.b16 %v754
    %v3435 = vunpack.c.l.b16 %v755
    %v3436 = vunpack.c.h.b16 %v755
    %v3437 = vunpack.c.l.b16 %v756
    %v3438 = vunpack.c.h.b16 %v756
    %v3439 = vunpack.c.l.b16 %v757
    %v3440 = vunpack.c.h.b16 %v757
    %v3441 = vunpack.c.l.b16 %v758
    %v3442 = vunpack.c.h.b16 %v758
    %v3443 = vunpack.c.l.b16 %v759
    %v3444 = vunpack.c.h.b16 %v759
    %v3445 = vunpack.c.l.b16 %v760
    %v3446 = vunpack.c.h.b16 %v760
    %v3447 = vunpack.c.l.b16 %v761
    %v3448 = vunpack.c.h.b16 %v761
    %v3449 = vunpack.c.l.b16 %v762
    %v3450 = vunpack.c.h.b16 %v762
    %v3451 = vunpack.c.l.b16 %v763
    %v3452 = vunpack.c.h.b16 %v763
    %v3453 = vunpack.c.l.b16 %v764
    %v3454 = vunpack.c.h.b16 %v764
    %v3455 = vunpack.c.l.b16 %v765
    %v3456 = vunpack.c.h.b16 %v765
    %v3457 = vunpack.c.l.b16 %v766
    %v3458 = vunpack.c.h.b16 %v766
    %v3459 = vunpack.c.l.b16 %v767
    %v3460 = vunpack.c.h.b16 %v767
    %v3461 = vunpack.c.l.b16 %v768
    %v3462 = vunpack.c.h.b16 %v768
    %v3463 = vunpack.c.l.b16 %v769
    %v3464 = vunpack.c.h.b16 %v769
    %v3465 = vunpack.c.l.b16 %v770
    %v3466 = vunpack.c.h.b16 %v770
    %v3467 = vunpack.c.l.b16 %v771
    %v3468 = vunpack.c.h.b16 %v771
    %v3469 = vunpack.c.l.b16 %v772
    %v3470 = vunpack.c.h.b16 %v772
    %v3471 = vunpack.c.l.b16 %v773
    %v3472 = vunpack.c.h.b16 %v773
    %v3473 = vunpack.c.l.b16 %v774
    %v3474 = vunpack.c.h.b16 %v774
    %v3475 = vunpack.c.l.b16 %v775
    %v3476 = vunpack.c.h.b16 %v775
    %v3477 = vunpack.c.l.b16 %v776
    %v3478 = vunpack.c.h.b16 %v776
    %v3479 = vunpack.c.l.b16 %v777
    %v3480 = vunpack.c.h.b16 %v777
    %v3481 = vunpack.c.l.b16 %v778
    %v3482 = vunpack.c.h.b16 %v778
    %v3483 = vunpack.c.l.b16 %v779
    %v3484 = vunpack.c.h.b16 %v779
    %v3485 = vunpack.c.l.b16 %v780
    %v3486 = vunpack.c.h.b16 %v780
    %v3487 = vunpack.c.l.b16 %v781
    %v3488 = vunpack.c.h.b16 %v781
    %v3489 = vunpack.c.l.b16 %v782
    %v3490 = vunpack.c.h.b16 %v782
    %v3491 = vunpack.c.l.b16 %v783
    %v3492 = vunpack.c.h.b16 %v783
    %v3493 = vunpack.c.l.b16 %v784
    %v3494 = vunpack.c.h.b16 %v784
    %v3495 = vunpack.c.l.b16 %v785
    %v3496 = vunpack.c.h.b16 %v785
    %v3497 = vunpack.c.l.b16 %v786
    %v3498 = vunpack.c.h.b16 %v786
    %v3499 = vunpack.c.l.b16 %v787
    %v3500 = vunpack.c.h.b16 %v787
    %v3501 = vunpack.c.l.b16 %v788
    %v3502 = vunpack.c.h.b16 %v788
    %v3503 = vunpack.c.l.b16 %v789
    %v3504 = vunpack.c.h.b16 %v789
    %v3505 = vunpack.c.l.b16 %v790
    %v3506 = vunpack.c.h.b16 %v790
    %v3507 = vunpack.c.l.b16 %v791
    %v3508 = vunpack.c.h.b16 %v791
    %v3509 = vunpack.c.l.b16 %v792
    %v3510 = vunpack.c.h.b16 %v792
    %v3511 = vunpack.c.l.b16 %v793
    %v3512 = vunpack.c.h.b16 %v793
    %v3513 = vunpack.c.l.b16 %v794
    %v3514 = vunpack.c.h.b16 %v794
    %v3515 = vunpack.c.l.b16 %v795
    %v3516 = vunpack.c.h.b16 %v795
    %v3517 = vunpack.c.l.b16 %v796
    %v3518 = vunpack.c.h.b16 %v796
    %v3519 = vunpack.c.l.b16 %v797
    %v3520 = vunpack.c.h.b16 %v797
    %v3521 = vunpack.c.l.b16 %v798
    %v3522 = vunpack.c.h.b16 %v798
    %v3523 = vunpack.c.l.b16 %v799
    %v3524 = vunpack.c.h.b16 %v799
    %v3525 = vunpack.c.l.b16 %v800
    %v3526 = vunpack.c.h.b16 %v800
    %v3527 = vunpack.c.l.b16 %v801
    %v3528 = vunpack.c.h.b16 %v801
    %v3529 = vunpack.c.l.b16 %v802
    %v3530 = vunpack.c.h.b16 %v802
    %v3531 = vunpack.c.l.b16 %v803
    %v3532 = vunpack.c.h.b16 %v803
    %v3533 = vunpack.c.l.b16 %v804
    %v3534 = vunpack.c.h.b16 %v804
    %v3535 = vunpack.c.l.b16 %v805
    %v3536 = vunpack.c.h.b16 %v805
    %v3537 = vunpack.c.l.b16 %v806
    %v3538 = vunpack.c.h.b16 %v806
    %v3539 = vunpack.c.l.b16 %v807
    %v3540 = vunpack.c.h.b16 %v807
    %v3541 = vunpack.c.l.b16 %v808
    %v3542 = vunpack.c.h.b16 %v808
    %v3543 = vunpack.c.l.b16 %v809
    %v3544 = vunpack.c.h.b16 %v809
    %v3545 = vunpack.c.l.b16 %v810
    %v3546 = vunpack.c.h.b16 %v810
    %v3547 = vunpack.c.l.b16 %v811
    %v3548 = vunpack.c.h.b16 %v811
    %v3549 = vunpack.c.l.b16 %v812
    %v3550 = vunpack.c.h.b16 %v812
    %v3551 = vunpack.c.l.b16 %v813
    %v3552 = vunpack.c.h.b16 %v813
    %v3553 = vunpack.c.l.b16 %v814
    %v3554 = vunpack.c.h.b16 %v814
    %v3555 = vunpack.c.l.b16 %v815
    %v3556 = vunpack.c.h.b16 %v815
    %v3557 = vunpack.c.l.b16 %v816
    %v3558 = vunpack.c.h.b16 %v816
    %v3559 = vunpack.c.l.b16 %v817
    %v3560 = vunpack.c.h.b16 %v817
    %v3561 = vunpack.c.l.b16 %v818
    %v3562 = vunpack.c.h.b16 %v818
    %v3563 = vunpack.c.l.b16 %v819
    %v3564 = vunpack.c.h.b16 %v819
    %v3565 = vunpack.c.l.b16 %v820
    %v3566 = vunpack.c.h.b16 %v820
    %v3567 = vunpack.c.l.b16 %v821
    %v3568 = vunpack.c.h.b16 %v821
    %v3569 = vunpack.c.l.b16 %v822
    %v3570 = vunpack.c.h.b16 %v822
    %v3571 = vunpack.c.l.b16 %v823
    %v3572 = vunpack.c.h.b16 %v823
    %v3573 = vunpack.c.l.b16 %v824
    %v3574 = vunpack.c.h.b16 %v824
    %v3575 = vunpack.c.l.b16 %v825
    %v3576 = vunpack.c.h.b16 %v825
    %v3577 = vunpack.c.l.b16 %v826
    %v3578 = vunpack.c.h.b16 %v826
    %v3579 = vunpack.c.l.b16 %v827
    %v3580 = vunpack.c.h.b16 %v827
    %v3581 = vunpack.c.l.b16 %v828
    %v3582 = vunpack.c.h.b16 %v828
    %v3583 = vunpack.c.l.b16 %v829
    %v3584 = vunpack.c.h.b16 %v829
    %v3585 = vunpack.c.l.b16 %v830
    %v3586 = vunpack.c.h.b16 %v830
    %v3587 = vunpack.c.l.b16 %v831
    %v3588 = vunpack.c.h.b16 %v831
    %v3589 = vunpack.c.l.b16 %v832
    %v3590 = vunpack.c.h.b16 %v832
    %v3591 = vunpack.c.l.b16 %v833
    %v3592 = vunpack.c.h.b16 %v833
    %v3593 = vunpack.c.l.b16 %v834
    %v3594 = vunpack.c.h.b16 %v834
    %v3595 = vunpack.c.l.b16 %v835
    %v3596 = vunpack.c.h.b16 %v835
    %v3597 = vunpack.c.l.b16 %v836
    %v3598 = vunpack.c.h.b16 %v836
    %v3599 = vunpack.c.l.b16 %v837
    %v3600 = vunpack.c.h.b16 %v837
    %v3601 = vunpack.c.l.b16 %v838
    %v3602 = vunpack.c.h.b16 %v838
    %v3603 = vunpack.c.l.b16 %v839
    %v3604 = vunpack.c.h.b16 %v839
    %v3605 = vunpack.c.l.b16 %v840
    %v3606 = vunpack.c.h.b16 %v840
    %v3607 = vunpack.c.l.b16 %v841
    %v3608 = vunpack.c.h.b16 %v841
    %v3609 = vunpack.c.l.b16 %v842
    %v3610 = vunpack.c.h.b16 %v842
    %v3611 = vunpack.c.l.b16 %v843
    %v3612 = vunpack.c.h.b16 %v843
    %v3613 = vunpack.c.l.b16 %v844
    %v3614 = vunpack.c.h.b16 %v844
    %v3615 = vunpack.c.l.b16 %v845
    %v3616 = vunpack.c.h.b16 %v845
    %v3617 = vunpack.c.l.b16 %v846
    %v3618 = vunpack.c.h.b16 %v846
    %v3619 = vunpack.c.l.b16 %v847
    %v3620 = vunpack.c.h.b16 %v847
    %v3621 = vunpack.c.l.b16 %v848
    %v3622 = vunpack.c.h.b16 %v848
    %v3623 = vunpack.c.l.b16 %v849
    %v3624 = vunpack.c.h.b16 %v849
    %v3625 = vunpack.c.l.b16 %v850
    %v3626 = vunpack.c.h.b16 %v850
    %v3627 = vunpack.c.l.b16 %v851
    %v3628 = vunpack.c.h.b16 %v851
    %v3629 = vunpack.c.l.b16 %v852
    %v3630 = vunpack.c.h.b16 %v852
    %v3631 = vunpack.c.l.b16 %v853
    %v3632 = vunpack.c.h.b16 %v853
    %v3633 = vunpack.c.l.b16 %v854
    %v3634 = vunpack.c.h.b16 %v854
    %v3635 = vunpack.c.l.b16 %v855
    %v3636 = vunpack.c.h.b16 %v855
    %v3637 = vunpack.c.l.b16 %v856
    %v3638 = vunpack.c.h.b16 %v856
    %v3639 = vunpack.c.l.b16 %v857
    %v3640 = vunpack.c.h.b16 %v857
    %v3641 = vunpack.c.l.b16 %v858
    %v3642 = vunpack.c.h.b16 %v858
    %v3643 = vunpack.c.l.b16 %v859
    %v3644 = vunpack.c.h.b16 %v859
    %v3645 = vunpack.c.l.b16 %v860
    %v3646 = vunpack.c.h.b16 %v860
    %v3647 = vunpack.c.l.b16 %v861
    %v3648 = vunpack.c.h.b16 %v861
    %v3649 = vunpack.c.l.b16 %v862
    %v3650 = vunpack.c.h.b16 %v862
    %v3651 = vunpack.c.l.b16 %v863
    %v3652 = vunpack.c.h.b16 %v863
    %v3653 = vunpack.c.l.b16 %v864
    %v3654 = vunpack.c.h.b16 %v864
    %v3655 = vunpack.c.l.b16 %v865
    %v3656 = vunpack.c.h.b16 %v865
    %v3657 = vunpack.c.l.b16 %v866
    %v3658 = vunpack.c.h.b16 %v866
    %v3659 = vunpack.c.l.b16 %v867
    %v3660 = vunpack.c.h.b16 %v867
    %v3661 = vunpack.c.l.b16 %v868
    %v3662 = vunpack.c.h.b16 %v868
    %v3663 = vunpack.c.l.b16 %v869
    %v3664 = vunpack.c.h.b16 %v869
    %v3665 = vunpack.c.l.b16 %v870
    %v3666 = vunpack.c.h.b16 %v870
    %v3667 = vunpack.c.l.b16 %v871
    %v3668 = vunpack.c.h.b16 %v871
    %v3669 = vunpack.c.l.b16 %v872
    %v3670 = vunpack.c.h.b16 %v872
    %v3671 = vunpack.c.l.b16 %v873
    %v3672 = vunpack.c.h.b16 %v873
    %v3673 = vunpack.c.l.b16 %v874
    %v3674 = vunpack.c.h.b16 %v874
    %v3675 = vunpack.c.l.b16 %v875
    %v3676 = vunpack.c.h.b16 %v875
    %v3677 = vunpack.c.l.b16 %v876
    %v3678 = vunpack.c.h.b16 %v876
    %v3679 = vunpack.c.l.b16 %v877
    %v3680 = vunpack.c.h.b16 %v877
    %v3681 = vunpack.c.l.b16 %v878
    %v3682 = vunpack.c.h.b16 %v878
    %v3683 = vunpack.c.l.b16 %v879
    %v3684 = vunpack.c.h.b16 %v879
    %v3685 = vunpack.c.l.b16 %v880
    %v3686 = vunpack.c.h.b16 %v880
    %v3687 = vunpack.c.l.b16 %v881
    %v3688 = vunpack.c.h.b16 %v881
    %v3689 = vunpack.c.l.b16 %v882
    %v3690 = vunpack.c.h.b16 %v882
    %v3691 = vunpack.c.l.b16 %v883
    %v3692 = vunpack.c.h.b16 %v883
    %v3693 = vunpack.c.l.b16 %v884
    %v3694 = vunpack.c.h.b16 %v884
    %v3695 = vunpack.c.l.b16 %v885
    %v3696 = vunpack.c.h.b16 %v885
    %v3697 = vunpack.c.l.b16 %v886
    %v3698 = vunpack.c.h.b16 %v886
    %v3699 = vunpack.c.l.b16 %v887
    %v3700 = vunpack.c.h.b16 %v887
    %v3701 = vunpack.c.l.b16 %v888
    %v3702 = vunpack.c.h.b16 %v888
    %v3703 = vunpack.c.l.b16 %v889
    %v3704 = vunpack.c.h.b16 %v889
    %v3705 = vunpack.c.l.b16 %v890
    %v3706 = vunpack.c.h.b16 %v890
    %v3707 = vunpack.c.l.b16 %v891
    %v3708 = vunpack.c.h.b16 %v891
    %v3709 = vunpack.c.l.b16 %v892
    %v3710 = vunpack.c.h.b16 %v892
    %v3711 = vunpack.c.l.b16 %v893
    %v3712 = vunpack.c.h.b16 %v893
    %v3713 = vunpack.c.l.b16 %v894
    %v3714 = vunpack.c.h.b16 %v894
    %v3715 = vunpack.c.l.b16 %v895
    %v3716 = vunpack.c.h.b16 %v895
    %v3717 = vunpack.c.l.b16 %v896
    %v3718 = vunpack.c.h.b16 %v896
    %v3719 = vunpack.c.l.b16 %v897
    %v3720 = vunpack.c.h.b16 %v897
    %v3721 = vunpack.c.l.b16 %v898
    %v3722 = vunpack.c.h.b16 %v898
    %v3723 = vunpack.c.l.b16 %v899
    %v3724 = vunpack.c.h.b16 %v899
    %v3725 = vunpack.c.l.b16 %v900
    %v3726 = vunpack.c.h.b16 %v900
    %v3727 = vunpack.c.l.b16 %v901
    %v3728 = vunpack.c.h.b16 %v901
    %v3729 = vunpack.c.l.b16 %v902
    %v3730 = vunpack.c.h.b16 %v902
    %v3731 = vunpack.c.l.b16 %v903
    %v3732 = vunpack.c.h.b16 %v903
    %v3733 = vunpack.c.l.b16 %v904
    %v3734 = vunpack.c.h.b16 %v904
    %v3735 = vunpack.c.l.b16 %v905
    %v3736 = vunpack.c.h.b16 %v905
    %v3737 = vunpack.c.l.b16 %v906
    %v3738 = vunpack.c.h.b16 %v906
    %v3739 = vunpack.c.l.b16 %v907
    %v3740 = vunpack.c.h.b16 %v907
    %v3741 = vunpack.c.l.b16 %v908
    %v3742 = vunpack.c.h.b16 %v908
    %v3743 = vunpack.c.l.b16 %v909
    %v3744 = vunpack.c.h.b16 %v909
    %v3745 = vunpack.c.l.b16 %v910
    %v3746 = vunpack.c.h.b16 %v910
    %v3747 = vunpack.c.l.b16 %v911
    %v3748 = vunpack.c.h.b16 %v911
    %v3749 = vunpack.c.l.b16 %v912
    %v3750 = vunpack.c.h.b16 %v912
    %v3751 = vunpack.c.l.b16 %v913
    %v3752 = vunpack.c.h.b16 %v913
    %v3753 = vunpack.c.l.b16 %v914
    %v3754 = vunpack.c.h.b16 %v914
    %v3755 = vunpack.c.l.b16 %v915
    %v3756 = vunpack.c.h.b16 %v915
    %v3757 = vunpack.c.l.b16 %v916
    %v3758 = vunpack.c.h.b16 %v916
    %v3759 = vunpack.c.l.b16 %v917
    %v3760 = vunpack.c.h.b16 %v917
    %v3761 = vunpack.c.l.b16 %v918
    %v3762 = vunpack.c.h.b16 %v918
    %v3763 = vunpack.c.l.b16 %v919
    %v3764 = vunpack.c.h.b16 %v919
    %v3765 = vunpack.c.l.b16 %v920
    %v3766 = vunpack.c.h.b16 %v920
    %v3767 = vunpack.c.l.b16 %v921
    %v3768 = vunpack.c.h.b16 %v921
    %v3769 = vunpack.c.l.b16 %v922
    %v3770 = vunpack.c.h.b16 %v922
    %v3771 = vunpack.c.l.b16 %v923
    %v3772 = vunpack.c.h.b16 %v923
    %v3773 = vunpack.c.l.b16 %v924
    %v3774 = vunpack.c.h.b16 %v924
    %v3775 = vunpack.c.l.b16 %v925
    %v3776 = vunpack.c.h.b16 %v925
    %v3777 = vunpack.c.l.b16 %v926
    %v3778 = vunpack.c.h.b16 %v926
    %v3779 = vunpack.c.l.b16 %v927
    %v3780 = vunpack.c.h.b16 %v927
    %v3781 = vunpack.c.l.b16 %v928
    %v3782 = vunpack.c.h.b16 %v928
    %v3783 = vunpack.c.l.b16 %v929
    %v3784 = vunpack.c.h.b16 %v929
    %v3785 = vunpack.c.l.b16 %v930
    %v3786 = vunpack.c.h.b16 %v930
    %v3787 = vunpack.c.l.b16 %v931
    %v3788 = vunpack.c.h.b16 %v931
    %v3789 = vunpack.c.l.b16 %v932
    %v3790 = vunpack.c.h.b16 %v932
    %v3791 = vunpack.c.l.b16 %v933
    %v3792 = vunpack.c.h.b16 %v933
    %v3793 = vunpack.c.l.b16 %v934
    %v3794 = vunpack.c.h.b16 %v934
    %v3795 = vunpack.c.l.b16 %v935
    %v3796 = vunpack.c.h.b16 %v935
    %v3797 = vunpack.c.l.b16 %v936
    %v3798 = vunpack.c.h.b16 %v936
    %v3799 = vunpack.c.l.b16 %v937
    %v3800 = vunpack.c.h.b16 %v937
    %v3801 = vunpack.c.l.b16 %v938
    %v3802 = vunpack.c.h.b16 %v938
    %v3803 = vunpack.c.l.b16 %v939
    %v3804 = vunpack.c.h.b16 %v939
    %v3805 = vunpack.c.l.b16 %v940
    %v3806 = vunpack.c.h.b16 %v940
    %v3807 = vunpack.c.l.b16 %v941
    %v3808 = vunpack.c.h.b16 %v941
    %v3809 = vunpack.c.l.b16 %v942
    %v3810 = vunpack.c.h.b16 %v942
    %v3811 = vunpack.c.l.b16 %v943
    %v3812 = vunpack.c.h.b16 %v943
    %v3813 = vunpack.c.l.b16 %v944
    %v3814 = vunpack.c.h.b16 %v944
    %v3815 = vunpack.c.l.b16 %v945
    %v3816 = vunpack.c.h.b16 %v945
    %v3817 = vunpack.c.l.b16 %v946
    %v3818 = vunpack.c.h.b16 %v946
    %v3819 = vunpack.c.l.b16 %v947
    %v3820 = vunpack.c.h.b16 %v947
    %v3821 = vunpack.c.l.b16 %v948
    %v3822 = vunpack.c.h.b16 %v948
    %v3823 = vunpack.c.l.b16 %v949
    %v3824 = vunpack.c.h.b16 %v949
    %v3825 = vunpack.c.l.b16 %v950
    %v3826 = vunpack.c.h.b16 %v950
    %v3827 = vunpack.c.l.b16 %v951
    %v3828 = vunpack.c.h.b16 %v951
    %v3829 = vunpack.c.l.b16 %v952
    %v3830 = vunpack.c.h.b16 %v952
    %v3831 = vunpack.c.l.b16 %v953
    %v3832 = vunpack.c.h.b16 %v953
    %v3833 = vunpack.c.l.b16 %v954
    %v3834 = vunpack.c.h.b16 %v954
    %v3835 = vunpack.c.l.b16 %v955
    %v3836 = vunpack.c.h.b16 %v955
    %v3837 = vunpack.c.l.b16 %v956
    %v3838 = vunpack.c.h.b16 %v956
    %v3839 = vunpack.c.l.b16 %v957
    %v3840 = vunpack.c.h.b16 %v957
    %v3841 = vunpack.c.l.b16 %v958
    %v3842 = vunpack.c.h.b16 %v958
    %v3843 = vunpack.c.l.b16 %v959
    %v3844 = vunpack.c.h.b16 %v959
    %v3845 = vunpack.c.l.b16 %v960
    %v3846 = vunpack.c.h.b16 %v960
    %v3847 = vunpack.c.l.b16 %v961
    %v3848 = vunpack.c.h.b16 %v961
    %v3849 = vunpack.c.l.b16 %v962
    %v3850 = vunpack.c.h.b16 %v962
    %v3851 = vunpack.c.l.b16 %v963
    %v3852 = vunpack.c.h.b16 %v963
    %v3853 = vunpack.c.l.b16 %v964
    %v3854 = vunpack.c.h.b16 %v964
    %v3855 = vunpack.c.l.b16 %v965
    %v3856 = vunpack.c.h.b16 %v965
    %v3857 = vunpack.c.l.b16 %v966
    %v3858 = vunpack.c.h.b16 %v966
    %v3859 = vunpack.c.l.b16 %v967
    %v3860 = vunpack.c.h.b16 %v967
    %v3861 = vunpack.c.l.b16 %v968
    %v3862 = vunpack.c.h.b16 %v968
    %v3863 = vunpack.c.l.b16 %v969
    %v3864 = vunpack.c.h.b16 %v969
    %v3865 = vunpack.c.l.b16 %v970
    %v3866 = vunpack.c.h.b16 %v970
    %v3867 = vunpack.c.l.b16 %v971
    %v3868 = vunpack.c.h.b16 %v971
    %v3869 = vunpack.c.l.b16 %v972
    %v3870 = vunpack.c.h.b16 %v972
    %v3871 = vunpack.c.l.b16 %v973
    %v3872 = vunpack.c.h.b16 %v973
    %v3873 = vunpack.c.l.b16 %v974
    %v3874 = vunpack.c.h.b16 %v974
    %v3875 = vunpack.c.l.b16 %v975
    %v3876 = vunpack.c.h.b16 %v975
    %v3877 = vunpack.c.l.b16 %v976
    %v3878 = vunpack.c.h.b16 %v976
    %v3879 = vunpack.c.l.b16 %v977
    %v3880 = vunpack.c.h.b16 %v977
    %v3881 = vunpack.c.l.b16 %v978
    %v3882 = vunpack.c.h.b16 %v978
    %v3883 = vunpack.c.l.b16 %v979
    %v3884 = vunpack.c.h.b16 %v979
    %v3885 = vunpack.c.l.b16 %v980
    %v3886 = vunpack.c.h.b16 %v980
    %v3887 = vunpack.c.l.b16 %v981
    %v3888 = vunpack.c.h.b16 %v981
    %v3889 = vunpack.c.l.b16 %v982
    %v3890 = vunpack.c.h.b16 %v982
    %v3891 = vunpack.c.l.b16 %v983
    %v3892 = vunpack.c.h.b16 %v983
    %v3893 = vunpack.c.l.b16 %v984
    %v3894 = vunpack.c.h.b16 %v984
    %v3895 = vunpack.c.l.b16 %v985
    %v3896 = vunpack.c.h.b16 %v985
    %v3897 = vunpack.c.l.b16 %v986
    %v3898 = vunpack.c.h.b16 %v986
    %v3899 = vunpack.c.l.b16 %v987
    %v3900 = vunpack.c.h.b16 %v987
    %v3901 = vunpack.c.l.b16 %v988
    %v3902 = vunpack.c.h.b16 %v988
    %v3903 = vunpack.c.l.b16 %v989
    %v3904 = vunpack.c.h.b16 %v989
    %v3905 = vunpack.c.l.b16 %v990
    %v3906 = vunpack.c.h.b16 %v990
    %v3907 = vunpack.c.l.b16 %v991
    %v3908 = vunpack.c.h.b16 %v991
    %v3909 = vunpack.c.l.b16 %v992
    %v3910 = vunpack.c.h.b16 %v992
    %v3911 = vunpack.c.l.b16 %v993
    %v3912 = vunpack.c.h.b16 %v993
    %v3913 = vunpack.c.l.b16 %v994
    %v3914 = vunpack.c.h.b16 %v994
    %v3915 = vunpack.c.l.b16 %v995
    %v3916 = vunpack.c.h.b16 %v995
    %v3917 = vunpack.c.l.b16 %v996
    %v3918 = vunpack.c.h.b16 %v996
    %v3919 = vunpack.c.l.b16 %v997
    %v3920 = vunpack.c.h.b16 %v997
    %v3921 = vunpack.c.l.b16 %v998
    %v3922 = vunpack.c.h.b16 %v998
    %v3923 = vunpack.c.l.b16 %v999
    %v3924 = vunpack.c.h.b16 %v999
    %v3925 = vunpack.c.l.b16 %v1000
    %v3926 = vunpack.c.h.b16 %v1000
    %v3927 = vunpack.c.l.b16 %v1001
    %v3928 = vunpack.c.h.b16 %v1001
    %v3929 = vunpack.c.l.b16 %v1002
    %v3930 = vunpack.c.h.b16 %v1002
    %v3931 = vunpack.c.l.b16 %v1003
    %v3932 = vunpack.c.h.b16 %v1003
    %v3933 = vunpack.c.l.b16 %v1004
    %v3934 = vunpack.c.h.b16 %v1004
    %v3935 = vunpack.c.l.b16 %v1005
    %v3936 = vunpack.c.h.b16 %v1005
    %v3937 = vunpack.c.l.b16 %v1006
    %v3938 = vunpack.c.h.b16 %v1006
    %v3939 = vunpack.c.l.b16 %v1007
    %v3940 = vunpack.c.h.b16 %v1007
    %v3941 = vunpack.c.l.b16 %v1008
    %v3942 = vunpack.c.h.b16 %v1008
    %v3943 = vunpack.c.l.b16 %v1009
    %v3944 = vunpack.c.h.b16 %v1009
    %v3945 = vunpack.c.l.b16 %v1010
    %v3946 = vunpack.c.h.b16 %v1010
    %v3947 = vunpack.c.l.b16 %v1011
    %v3948 = vunpack.c.h.b16 %v1011
    %v3949 = vunpack.c.l.b16 %v1012
    %v3950 = vunpack.c.h.b16 %v1012
    %v3951 = vunpack.c.l.b16 %v1013
    %v3952 = vunpack.c.h.b16 %v1013
    %v3953 = vunpack.c.l.b16 %v1014
    %v3954 = vunpack.c.h.b16 %v1014
    %v3955 = vunpack.c.l.b16 %v1015
    %v3956 = vunpack.c.h.b16 %v1015
    %v3957 = vunpack.c.l.b16 %v1016
    %v3958 = vunpack.c.h.b16 %v1016
    %v3959 = vunpack.c.l.b16 %v1017
    %v3960 = vunpack.c.h.b16 %v1017
    %v3961 = vunpack.c.l.b16 %v1018
    %v3962 = vunpack.c.h.b16 %v1018
    %v3963 = vunpack.c.l.b16 %v1019
    %v3964 = vunpack.c.h.b16 %v1019
    %v3965 = vunpack.c.l.b16 %v1020
    %v3966 = vunpack.c.h.b16 %v1020
    %v3967 = vunpack.c.l.b16 %v1021
    %v3968 = vunpack.c.h.b16 %v1021
    %v3969 = vunpack.c.l.b16 %v1022
    %v3970 = vunpack.c.h.b16 %v1022
    %v3971 = vunpack.c.l.b16 %v1023
    %v3972 = vunpack.c.h.b16 %v1023
    %v3973 = vunpack.c.l.b16 %v1024
    %v3974 = vunpack.c.h.b16 %v1024
    %v3975 = vunpack.c.l.b16 %v1025
    %v3976 = vunpack.c.h.b16 %v1025
    %v3977 = vunpack.c.l.b16 %v1026
    %v3978 = vunpack.c.h.b16 %v1026
    %v3979 = vunpack.c.l.b16 %v1027
    %v3980 = vunpack.c.h.b16 %v1027
    %v3981 = vunpack.c.l.b16 %v1028
    %v3982 = vunpack.c.h.b16 %v1028
    %v3983 = vunpack.c.l.b16 %v1029
    %v3984 = vunpack.c.h.b16 %v1029
    %v3985 = vunpack.c.l.b16 %v1030
    %v3986 = vunpack.c.h.b16 %v1030
    %v3987 = vunpack.c.l.b16 %v1031
    %v3988 = vunpack.c.h.b16 %v1031
    %v3989 = vunpack.c.l.b16 %v1032
    %v3990 = vunpack.c.h.b16 %v1032
    %v3991 = vunpack.c.l.b16 %v1033
    %v3992 = vunpack.c.h.b16 %v1033
    %v3993 = vunpack.c.l.b16 %v1034
    %v3994 = vunpack.c.h.b16 %v1034
    %v3995 = vunpack.c.l.b16 %v1035
    %v3996 = vunpack.c.h.b16 %v1035
    %v3997 = vunpack.c.l.b16 %v1036
    %v3998 = vunpack.c.h.b16 %v1036
    %v3999 = vunpack.c.l.b16 %v1037
    %v4000 = vunpack.c.h.b16 %v1037
    %v4001 = vunpack.c.l.b16 %v1038
    %v4002 = vunpack.c.h.b16 %v1038
    %v4003 = vunpack.c.l.b16 %v1039
    %v4004 = vunpack.c.h.b16 %v1039
    %v4005 = vunpack.c.l.b16 %v1040
    %v4006 = vunpack.c.h.b16 %v1040
    %v4007 = vunpack.c.l.b16 %v1041
    %v4008 = vunpack.c.h.b16 %v1041
    %v4009 = vunpack.c.l.b16 %v1042
    %v4010 = vunpack.c.h.b16 %v1042
    %v4011 = vunpack.c.l.b16 %v1043
    %v4012 = vunpack.c.h.b16 %v1043
    %v4013 = vunpack.c.l.b16 %v1044
    %v4014 = vunpack.c.h.b16 %v1044
    %v4015 = vunpack.c.l.b16 %v1045
    %v4016 = vunpack.c.h.b16 %v1045
    %v4017 = vunpack.c.l.b16 %v1046
    %v4018 = vunpack.c.h.b16 %v1046
    %v4019 = vunpack.c.l.b16 %v1047
    %v4020 = vunpack.c.h.b16 %v1047
    %v4021 = vunpack.c.l.b16 %v1048
    %v4022 = vunpack.c.h.b16 %v1048
    %v4023 = vunpack.c.l.b16 %v1049
    %v4024 = vunpack.c.h.b16 %v1049
    %v4025 = vunpack.c.l.b16 %v1050
    %v4026 = vunpack.c.h.b16 %v1050
    %v4027 = vunpack.c.l.b16 %v1051
    %v4028 = vunpack.c.h.b16 %v1051
    %v4029 = vunpack.c.l.b16 %v1052
    %v4030 = vunpack.c.h.b16 %v1052
    %v4031 = vunpack.c.l.b16 %v1053
    %v4032 = vunpack.c.h.b16 %v1053
    %v4033 = vunpack.c.l.b16 %v1054
    %v4034 = vunpack.c.h.b16 %v1054
    %v4035 = vunpack.c.l.b16 %v1055
    %v4036 = vunpack.c.h.b16 %v1055
    %v4037 = vunpack.c.l.b16 %v1056
    %v4038 = vunpack.c.h.b16 %v1056
    %v4039 = vunpack.c.l.b16 %v1057
    %v4040 = vunpack.c.h.b16 %v1057
    %v4041 = vunpack.c.l.b16 %v1058
    %v4042 = vunpack.c.h.b16 %v1058
    %v4043 = vunpack.c.l.b16 %v1059
    %v4044 = vunpack.c.h.b16 %v1059
    %v4045 = vunpack.c.l.b16 %v1060
    %v4046 = vunpack.c.h.b16 %v1060
    %v4047 = vunpack.c.l.b16 %v1061
    %v4048 = vunpack.c.h.b16 %v1061
    %v4049 = vunpack.c.l.b16 %v1062
    %v4050 = vunpack.c.h.b16 %v1062
    %v4051 = vunpack.c.l.b16 %v1063
    %v4052 = vunpack.c.h.b16 %v1063
    %v4053 = vunpack.c.l.b16 %v1064
    %v4054 = vunpack.c.h.b16 %v1064
    %v4055 = vunpack.c.l.b16 %v1065
    %v4056 = vunpack.c.h.b16 %v1065
    %v4057 = vunpack.c.l.b16 %v1066
    %v4058 = vunpack.c.h.b16 %v1066
    %v4059 = vunpack.c.l.b16 %v1067
    %v4060 = vunpack.c.h.b16 %v1067
    %v4061 = vunpack.c.l.b16 %v1068
    %v4062 = vunpack.c.h.b16 %v1068
    %v4063 = vunpack.c.l.b16 %v1069
    %v4064 = vunpack.c.h.b16 %v1069
    %v4065 = vunpack.c.l.b16 %v1070
    %v4066 = vunpack.c.h.b16 %v1070
    %v4067 = vunpack.c.l.b16 %v1071
    %v4068 = vunpack.c.h.b16 %v1071
    %v4069 = vunpack.c.l.b16 %v1072
    %v4070 = vunpack.c.h.b16 %v1072
    %v4071 = vunpack.c.l.b16 %v1073
    %v4072 = vunpack.c.h.b16 %v1073
    %v4073 = vunpack.c.l.b16 %v1074
    %v4074 = vunpack.c.h.b16 %v1074
    %v4075 = vunpack.c.l.b16 %v1075
    %v4076 = vunpack.c.h.b16 %v1075
    %v4077 = vunpack.c.l.b16 %v1076
    %v4078 = vunpack.c.h.b16 %v1076
    %v4079 = vunpack.c.l.b16 %v1077
    %v4080 = vunpack.c.h.b16 %v1077
    %v4081 = vunpack.c.l.b16 %v1078
    %v4082 = vunpack.c.h.b16 %v1078
    %v4083 = vunpack.c.l.b16 %v1079
    %v4084 = vunpack.c.h.b16 %v1079
    %v4085 = vunpack.c.l.b16 %v1080
    %v4086 = vunpack.c.h.b16 %v1080
    %v4087 = vunpack.c.l.b16 %v1081
    %v4088 = vunpack.c.h.b16 %v1081
    %v4089 = vunpack.c.l.b16 %v1082
    %v4090 = vunpack.c.h.b16 %v1082
    %v4091 = vunpack.c.l.b16 %v1083
    %v4092 = vunpack.c.h.b16 %v1083
    %v4093 = vunpack.c.l.b16 %v1084
    %v4094 = vunpack.c.h.b16 %v1084
    %v4095 = vunpack.c.l.b16 %v1085
    %v4096 = vunpack.c.h.b16 %v1085
    %v4097 = vunpack.c.l.b16 %v1086
    %v4098 = vunpack.c.h.b16 %v1086
    %v4099 = vunpack.c.l.b16 %v1087
    %v4100 = vunpack.c.h.b16 %v1087
    %v4101 = vunpack.c.l.b16 %v1088
    %v4102 = vunpack.c.h.b16 %v1088
    %v4103 = vunpack.c.l.b16 %v1089
    %v4104 = vunpack.c.h.b16 %v1089
    %v4105 = vunpack.c.l.b16 %v1090
    %v4106 = vunpack.c.h.b16 %v1090
    %v4107 = vunpack.c.l.b16 %v1091
    %v4108 = vunpack.c.h.b16 %v1091
    %v4109 = vunpack.c.l.b16 %v1092
    %v4110 = vunpack.c.h.b16 %v1092
    %v4111 = vunpack.c.l.b16 %v1093
    %v4112 = vunpack.c.h.b16 %v1093
    %v4113 = vunpack.c.l.b16 %v1094
    %v4114 = vunpack.c.h.b16 %v1094
    %v4115 = vunpack.c.l.b16 %v1095
    %v4116 = vunpack.c.h.b16 %v1095
    %v4117 = vunpack.c.l.b16 %v1096
    %v4118 = vunpack.c.h.b16 %v1096
    %v4119 = vunpack.c.l.b16 %v1097
    %v4120 = vunpack.c.h.b16 %v1097
    %v4121 = vunpack.c.l.b16 %v1098
    %v4122 = vunpack.c.h.b16 %v1098
    %v4123 = vunpack.c.l.b16 %v1099
    %v4124 = vunpack.c.h.b16 %v1099
    %v4125 = vunpack.c.l.b16 %v1100
    %v4126 = vunpack.c.h.b16 %v1100
    %v4127 = vunpack.c.l.b16 %v1101
    %v4128 = vunpack.c.h.b16 %v1101
    %v4129 = vunpack.c.l.b16 %v1102
    %v4130 = vunpack.c.h.b16 %v1102
    %v4131 = vunpack.c.l.b16 %v1103
    %v4132 = vunpack.c.h.b16 %v1103
    %v4133 = vunpack.c.l.b16 %v1104
    %v4134 = vunpack.c.h.b16 %v1104
    %v4135 = vunpack.c.l.b16 %v1105
    %v4136 = vunpack.c.h.b16 %v1105
    %v4137 = vunpack.c.l.b16 %v1106
    %v4138 = vunpack.c.h.b16 %v1106
    %v4139 = vunpack.c.l.b16 %v1107
    %v4140 = vunpack.c.h.b16 %v1107
    %v4141 = vunpack.c.l.b16 %v1108
    %v4142 = vunpack.c.h.b16 %v1108
    %v4143 = vunpack.c.l.b16 %v1109
    %v4144 = vunpack.c.h.b16 %v1109
    %v4145 = vunpack.c.l.b16 %v1110
    %v4146 = vunpack.c.h.b16 %v1110
    %v4147 = vunpack.c.l.b16 %v1111
    %v4148 = vunpack.c.h.b16 %v1111
    %v4149 = vunpack.c.l.b16 %v1112
    %v4150 = vunpack.c.h.b16 %v1112
    %v4151 = vunpack.c.l.b16 %v1113
    %v4152 = vunpack.c.h.b16 %v1113
    %v4153 = vunpack.c.l.b16 %v1114
    %v4154 = vunpack.c.h.b16 %v1114
    %v4155 = vunpack.c.l.b16 %v1115
    %v4156 = vunpack.c.h.b16 %v1115
    %v4157 = vunpack.c.l.b16 %v1116
    %v4158 = vunpack.c.h.b16 %v1116
    %v4159 = vunpack.c.l.b16 %v1117
    %v4160 = vunpack.c.h.b16 %v1117
    %v4161 = vunpack.c.l.b16 %v1118
    %v4162 = vunpack.c.h.b16 %v1118
    %v4163 = vunpack.c.l.b16 %v1119
    %v4164 = vunpack.c.h.b16 %v1119
    %v4165 = vunpack.c.l.b16 %v1120
    %v4166 = vunpack.c.h.b16 %v1120
    %v4167 = vunpack.c.l.b16 %v1121
    %v4168 = vunpack.c.h.b16 %v1121
    %v4169 = vunpack.c.l.b16 %v1122
    %v4170 = vunpack.c.h.b16 %v1122
    %v4171 = vunpack.c.l.b16 %v1123
    %v4172 = vunpack.c.h.b16 %v1123
    %v4173 = vunpack.c.l.b16 %v1124
    %v4174 = vunpack.c.h.b16 %v1124
    %v4175 = vunpack.c.l.b16 %v1125
    %v4176 = vunpack.c.h.b16 %v1125
    %v4177 = vunpack.c.l.b16 %v1126
    %v4178 = vunpack.c.h.b16 %v1126
    %v4179 = vunpack.c.l.b16 %v1127
    %v4180 = vunpack.c.h.b16 %v1127
    %v4181 = vunpack.c.l.b16 %v1128
    %v4182 = vunpack.c.h.b16 %v1128
    %v4183 = vunpack.c.l.b16 %v1129
    %v4184 = vunpack.c.h.b16 %v1129
    %v4185 = vunpack.c.l.b16 %v1130
    %v4186 = vunpack.c.h.b16 %v1130
    %v4187 = vunpack.c.l.b16 %v1131
    %v4188 = vunpack.c.h.b16 %v1131
    %v4189 = vunpack.c.l.b16 %v1132
    %v4190 = vunpack.c.h.b16 %v1132
    %v4191 = vunpack.c.l.b16 %v1133
    %v4192 = vunpack.c.h.b16 %v1133
    %v4193 = vunpack.c.l.b16 %v1134
    %v4194 = vunpack.c.h.b16 %v1134
    %v4195 = vunpack.c.l.b16 %v1135
    %v4196 = vunpack.c.h.b16 %v1135
    %v4197 = vunpack.c.l.b16 %v1136
    %v4198 = vunpack.c.h.b16 %v1136
    %v4199 = vunpack.c.l.b16 %v1137
    %v4200 = vunpack.c.h.b16 %v1137
    %v4201 = vunpack.c.l.b16 %v1138
    %v4202 = vunpack.c.h.b16 %v1138
    %v4203 = vunpack.c.l.b16 %v1139
    %v4204 = vunpack.c.h.b16 %v1139
    %v4205 = vunpack.c.l.b16 %v1140
    %v4206 = vunpack.c.h.b16 %v1140
    %v4207 = vunpack.c.l.b16 %v1141
    %v4208 = vunpack.c.h.b16 %v1141
    %v4209 = vunpack.c.l.b16 %v1142
    %v4210 = vunpack.c.h.b16 %v1142
    %v4211 = vunpack.c.l.b16 %v1143
    %v4212 = vunpack.c.h.b16 %v1143
    %v4213 = vunpack.c.l.b16 %v1144
    %v4214 = vunpack.c.h.b16 %v1144
    %v4215 = vunpack.c.l.b16 %v1145
    %v4216 = vunpack.c.h.b16 %v1145
    %v4217 = vunpack.c.l.b16 %v1146
    %v4218 = vunpack.c.h.b16 %v1146
    %v4219 = vunpack.c.l.b16 %v1147
    %v4220 = vunpack.c.h.b16 %v1147
    %v4221 = vunpack.c.l.b16 %v1148
    %v4222 = vunpack.c.h.b16 %v1148
    %v4223 = vunpack.c.l.b16 %v1149
    %v4224 = vunpack.c.h.b16 %v1149
    %v4225 = vunpack.c.l.b16 %v1150
    %v4226 = vunpack.c.h.b16 %v1150
    %v4227 = vunpack.c.l.b16 %v1151
    %v4228 = vunpack.c.h.b16 %v1151
    %v4229 = vunpack.c.l.b16 %v1152
    %v4230 = vunpack.c.h.b16 %v1152
    %v4231 = vunpack.c.l.b16 %v1153
    %v4232 = vunpack.c.h.b16 %v1153
    %v4233 = vunpack.c.l.b16 %v1154
    %v4234 = vunpack.c.h.b16 %v1154
    %v4235 = vunpack.c.l.b16 %v1155
    %v4236 = vunpack.c.h.b16 %v1155
    %v4237 = vunpack.c.l.b16 %v1156
    %v4238 = vunpack.c.h.b16 %v1156
    %v4239 = vunpack.c.l.b16 %v1157
    %v4240 = vunpack.c.h.b16 %v1157
    %v4241 = vunpack.c.l.b16 %v1158
    %v4242 = vunpack.c.h.b16 %v1158
    %v4243 = vunpack.c.l.b16 %v1159
    %v4244 = vunpack.c.h.b16 %v1159
    %v4245 = vunpack.c.l.b16 %v1160
    %v4246 = vunpack.c.h.b16 %v1160
    %v4247 = vunpack.c.l.b16 %v1161
    %v4248 = vunpack.c.h.b16 %v1161
    %v4249 = vunpack.c.l.b16 %v1162
    %v4250 = vunpack.c.h.b16 %v1162
    %v4251 = vunpack.c.l.b16 %v1163
    %v4252 = vunpack.c.h.b16 %v1163
    %v4253 = vunpack.c.l.b16 %v1164
    %v4254 = vunpack.c.h.b16 %v1164
    %v4255 = vpack.c.b16 %v2215, %v2207
    %v4256 = vpack.c.b16 %v2216, %v2208
    %v4257 = vpack.c.b16 %v2217, %v2209
    %v4258 = vpack.c.b16 %v2218, %v2210
    %v4259 = vpack.c.b16 %v2219, %v2211
    %v4260 = vpack.c.b16 %v2220, %v2212
    %v4261 = vpack.c.b16 %v2221, %v2213
    %v4262 = vpack.c.b16 %v2222, %v2214
    %v4263 = vpack.c.b16 %v2231, %v2223
    %v4264 = vpack.c.b16 %v2232, %v2224
    %v4265 = vpack.c.b16 %v2233, %v2225
    %v4266 = vpack.c.b16 %v2234, %v2226
    %v4267 = vpack.c.b16 %v2235, %v2227
    %v4268 = vpack.c.b16 %v2236, %v2228
    %v4269 = vpack.c.b16 %v2237, %v2229
    %v4270 = vpack.c.b16 %v2238, %v2230
    %v4271 = vpack.c.b16 %v2247, %v2239
    %v4272 = vpack.c.b16 %v2248, %v2240
    %v4273 = vpack.c.b16 %v2249, %v2241
    %v4274 = vpack.c.b16 %v2250, %v2242
    %v4275 = vpack.c.b16 %v2251, %v2243
    %v4276 = vpack.c.b16 %v2252, %v2244
    %v4277 = vpack.c.b16 %v2253, %v2245
    %v4278 = vpack.c.b16 %v2254, %v2246
    %v4279 = vpack.c.b16 %v2263, %v2255
    %v4280 = vpack.c.b16 %v2264, %v2256
    %v4281 = vpack.c.b16 %v2265, %v2257
    %v4282 = vpack.c.b16 %v2266, %v2258
    %v4283 = vpack.c.b16 %v2267, %v2259
    %v4284 = vpack.c.b16 %v2268, %v2260
    %v4285 = vpack.c.b16 %v2269, %v2261
    %v4286 = vpack.c.b16 %v2270, %v2262
    %v4287 = vpack.c.b16 %v2279, %v2271
    %v4288 = vpack.c.b16 %v2280, %v2272
    %v4289 = vpack.c.b16 %v2281, %v2273
    %v4290 = vpack.c.b16 %v2282, %v2274
    %v4291 = vpack.c.b16 %v2283, %v2275
    %v4292 = vpack.c.b16 %v2284, %v2276
    %v4293 = vpack.c.b16 %v2285, %v2277
    %v4294 = vpack.c.b16 %v2286, %v2278
    %v4295 = vpack.c.b16 %v2295, %v2287
    %v4296 = vpack.c.b16 %v2296, %v2288
    %v4297 = vpack.c.b16 %v2297, %v2289
    %v4298 = vpack.c.b16 %v2298, %v2290
    %v4299 = vpack.c.b16 %v2299, %v2291
    %v4300 = vpack.c.b16 %v2300, %v2292
    %v4301 = vpack.c.b16 %v2301, %v2293
    %v4302 = vpack.c.b16 %v2302, %v2294
    %v4303 = vpack.c.b16 %v2311, %v2303
    %v4304 = vpack.c.b16 %v2312, %v2304
    %v4305 = vpack.c.b16 %v2313, %v2305
    %v4306 = vpack.c.b16 %v2314, %v2306
    %v4307 = vpack.c.b16 %v2315, %v2307
    %v4308 = vpack.c.b16 %v2316, %v2308
    %v4309 = vpack.c.b16 %v2317, %v2309
    %v4310 = vpack.c.b16 %v2318, %v2310
    %v4311 = vpack.c.b16 %v2327, %v2319
    %v4312 = vpack.c.b16 %v2328, %v2320
    %v4313 = vpack.c.b16 %v2329, %v2321
    %v4314 = vpack.c.b16 %v2330, %v2322
    %v4315 = vpack.c.b16 %v2331, %v2323
    %v4316 = vpack.c.b16 %v2332, %v2324
    %v4317 = vpack.c.b16 %v2333, %v2325
    %v4318 = vpack.c.b16 %v2334, %v2326
    %v4319 = vpack.c.b16 %v2343, %v2335
    %v4320 = vpack.c.b16 %v2344, %v2336
    %v4321 = vpack.c.b16 %v2345, %v2337
    %v4322 = vpack.c.b16 %v2346, %v2338
    %v4323 = vpack.c.b16 %v2347, %v2339
    %v4324 = vpack.c.b16 %v2348, %v2340
    %v4325 = vpack.c.b16 %v2349, %v2341
    %v4326 = vpack.c.b16 %v2350, %v2342
    %v4327 = vpack.c.b16 %v2359, %v2351
    %v4328 = vpack.c.b16 %v2360, %v2352
    %v4329 = vpack.c.b16 %v2361, %v2353
    %v4330 = vpack.c.b16 %v2362, %v2354
    %v4331 = vpack.c.b16 %v2363, %v2355
    %v4332 = vpack.c.b16 %v2364, %v2356
    %v4333 = vpack.c.b16 %v2365, %v2357
    %v4334 = vpack.c.b16 %v2366, %v2358
    %v4335 = vpack.c.b16 %v2375, %v2367
    %v4336 = vpack.c.b16 %v2376, %v2368
    %v4337 = vpack.c.b16 %v2377, %v2369
    %v4338 = vpack.c.b16 %v2378, %v2370
    %v4339 = vpack.c.b16 %v2379, %v2371
    %v4340 = vpack.c.b16 %v2380, %v2372
    %v4341 = vpack.c.b16 %v2381, %v2373
    %v4342 = vpack.c.b16 %v2382, %v2374
    %v4343 = vpack.c.b16 %v2391, %v2383
    %v4344 = vpack.c.b16 %v2392, %v2384
    %v4345 = vpack.c.b16 %v2393, %v2385
    %v4346 = vpack.c.b16 %v2394, %v2386
    %v4347 = vpack.c.b16 %v2395, %v2387
    %v4348 = vpack.c.b16 %v2396, %v2388
    %v4349 = vpack.c.b16 %v2397, %v2389
    %v4350 = vpack.c.b16 %v2398, %v2390
    %v4351 = vpack.c.b16 %v2407, %v2399
    %v4352 = vpack.c.b16 %v2408, %v2400
    %v4353 = vpack.c.b16 %v2409, %v2401
    %v4354 = vpack.c.b16 %v2410, %v2402
    %v4355 = vpack.c.b16 %v2411, %v2403
    %v4356 = vpack.c.b16 %v2412, %v2404
    %v4357 = vpack.c.b16 %v2413, %v2405
    %v4358 = vpack.c.b16 %v2414, %v2406
    %v4359 = vpack.c.b16 %v2423, %v2415
    %v4360 = vpack.c.b16 %v2424, %v2416
    %v4361 = vpack.c.b16 %v2425, %v2417
    %v4362 = vpack.c.b16 %v2426, %v2418
    %v4363 = vpack.c.b16 %v2427, %v2419
    %v4364 = vpack.c.b16 %v2428, %v2420
    %v4365 = vpack.c.b16 %v2429, %v2421
    %v4366 = vpack.c.b16 %v2430, %v2422
    %v4367 = vpack.c.b16 %v2439, %v2431
    %v4368 = vpack.c.b16 %v2440, %v2432
    %v4369 = vpack.c.b16 %v2441, %v2433
    %v4370 = vpack.c.b16 %v2442, %v2434
    %v4371 = vpack.c.b16 %v2443, %v2435
    %v4372 = vpack.c.b16 %v2444, %v2436
    %v4373 = vpack.c.b16 %v2445, %v2437
    %v4374 = vpack.c.b16 %v2446, %v2438
    %v4375 = vpack.c.b16 %v2455, %v2447
    %v4376 = vpack.c.b16 %v2456, %v2448
    %v4377 = vpack.c.b16 %v2457, %v2449
    %v4378 = vpack.c.b16 %v2458, %v2450
    %v4379 = vpack.c.b16 %v2459, %v2451
    %v4380 = vpack.c.b16 %v2460, %v2452
    %v4381 = vpack.c.b16 %v2461, %v2453
    %v4382 = vpack.c.b16 %v2462, %v2454
    %v4383 = vpack.c.b16 %v2471, %v2463
    %v4384 = vpack.c.b16 %v2472, %v2464
    %v4385 = vpack.c.b16 %v2473, %v2465
    %v4386 = vpack.c.b16 %v2474, %v2466
    %v4387 = vpack.c.b16 %v2475, %v2467
    %v4388 = vpack.c.b16 %v2476, %v2468
    %v4389 = vpack.c.b16 %v2477, %v2469
    %v4390 = vpack.c.b16 %v2478, %v2470
    %v4391 = vpack.c.b16 %v2487, %v2479
    %v4392 = vpack.c.b16 %v2488, %v2480
    %v4393 = vpack.c.b16 %v2489, %v2481
    %v4394 = vpack.c.b16 %v2490, %v2482
    %v4395 = vpack.c.b16 %v2491, %v2483
    %v4396 = vpack.c.b16 %v2492, %v2484
    %v4397 = vpack.c.b16 %v2493, %v2485
    %v4398 = vpack.c.b16 %v2494, %v2486
    %v4399 = vpack.c.b16 %v2503, %v2495
    %v4400 = vpack.c.b16 %v2504, %v2496
    %v4401 = vpack.c.b16 %v2505, %v2497
    %v4402 = vpack.c.b16 %v2506, %v2498
    %v4403 = vpack.c.b16 %v2507, %v2499
    %v4404 = vpack.c.b16 %v2508, %v2500
    %v4405 = vpack.c.b16 %v2509, %v2501
    %v4406 = vpack.c.b16 %v2510, %v2502
    %v4407 = vpack.c.b16 %v2519, %v2511
    %v4408 = vpack.c.b16 %v2520, %v2512
    %v4409 = vpack.c.b16 %v2521, %v2513
    %v4410 = vpack.c.b16 %v2522, %v2514
    %v4411 = vpack.c.b16 %v2523, %v2515
    %v4412 = vpack.c.b16 %v2524, %v2516
    %v4413 = vpack.c.b16 %v2525, %v2517
    %v4414 = vpack.c.b16 %v2526, %v2518
    %v4415 = vpack.c.b16 %v2535, %v2527
    %v4416 = vpack.c.b16 %v2536, %v2528
    %v4417 = vpack.c.b16 %v2537, %v2529
    %v4418 = vpack.c.b16 %v2538, %v2530
    %v4419 = vpack.c.b16 %v2539, %v2531
    %v4420 = vpack.c.b16 %v2540, %v2532
    %v4421 = vpack.c.b16 %v2541, %v2533
    %v4422 = vpack.c.b16 %v2542, %v2534
    %v4423 = vpack.c.b16 %v2551, %v2543
    %v4424 = vpack.c.b16 %v2552, %v2544
    %v4425 = vpack.c.b16 %v2553, %v2545
    %v4426 = vpack.c.b16 %v2554, %v2546
    %v4427 = vpack.c.b16 %v2555, %v2547
    %v4428 = vpack.c.b16 %v2556, %v2548
    %v4429 = vpack.c.b16 %v2557, %v2549
    %v4430 = vpack.c.b16 %v2558, %v2550
    %v4431 = vpack.c.b16 %v2567, %v2559
    %v4432 = vpack.c.b16 %v2568, %v2560
    %v4433 = vpack.c.b16 %v2569, %v2561
    %v4434 = vpack.c.b16 %v2570, %v2562
    %v4435 = vpack.c.b16 %v2571, %v2563
    %v4436 = vpack.c.b16 %v2572, %v2564
    %v4437 = vpack.c.b16 %v2573, %v2565
    %v4438 = vpack.c.b16 %v2574, %v2566
    %v4439 = vpack.c.b16 %v2583, %v2575
    %v4440 = vpack.c.b16 %v2584, %v2576
    %v4441 = vpack.c.b16 %v2585, %v2577
    %v4442 = vpack.c.b16 %v2586, %v2578
    %v4443 = vpack.c.b16 %v2587, %v2579
    %v4444 = vpack.c.b16 %v2588, %v2580
    %v4445 = vpack.c.b16 %v2589, %v2581
    %v4446 = vpack.c.b16 %v2590, %v2582
    %v4447 = vpack.c.b16 %v2599, %v2591
    %v4448 = vpack.c.b16 %v2600, %v2592
    %v4449 = vpack.c.b16 %v2601, %v2593
    %v4450 = vpack.c.b16 %v2602, %v2594
    %v4451 = vpack.c.b16 %v2603, %v2595
    %v4452 = vpack.c.b16 %v2604, %v2596
    %v4453 = vpack.c.b16 %v2605, %v2597
    %v4454 = vpack.c.b16 %v2606, %v2598
    %v4455 = vpack.c.b16 %v2615, %v2607
    %v4456 = vpack.c.b16 %v2616, %v2608
    %v4457 = vpack.c.b16 %v2617, %v2609
    %v4458 = vpack.c.b16 %v2618, %v2610
    %v4459 = vpack.c.b16 %v2619, %v2611
    %v4460 = vpack.c.b16 %v2620, %v2612
    %v4461 = vpack.c.b16 %v2621, %v2613
    %v4462 = vpack.c.b16 %v2622, %v2614
    %v4463 = vpack.c.b16 %v2631, %v2623
    %v4464 = vpack.c.b16 %v2632, %v2624
    %v4465 = vpack.c.b16 %v2633, %v2625
    %v4466 = vpack.c.b16 %v2634, %v2626
    %v4467 = vpack.c.b16 %v2635, %v2627
    %v4468 = vpack.c.b16 %v2636, %v2628
    %v4469 = vpack.c.b16 %v2637, %v2629
    %v4470 = vpack.c.b16 %v2638, %v2630
    %v4471 = vpack.c.b16 %v2647, %v2639
    %v4472 = vpack.c.b16 %v2648, %v2640
    %v4473 = vpack.c.b16 %v2649, %v2641
    %v4474 = vpack.c.b16 %v2650, %v2642
    %v4475 = vpack.c.b16 %v2651, %v2643
    %v4476 = vpack.c.b16 %v2652, %v2644
    %v4477 = vpack.c.b16 %v2653, %v2645
    %v4478 = vpack.c.b16 %v2654, %v2646
    %v4479 = vpack.c.b16 %v2663, %v2655
    %v4480 = vpack.c.b16 %v2664, %v2656
    %v4481 = vpack.c.b16 %v2665, %v2657
    %v4482 = vpack.c.b16 %v2666, %v2658
    %v4483 = vpack.c.b16 %v2667, %v2659
    %v4484 = vpack.c.b16 %v2668, %v2660
    %v4485 = vpack.c.b16 %v2669, %v2661
    %v4486 = vpack.c.b16 %v2670, %v2662
    %v4487 = vpack.c.b16 %v2679, %v2671
    %v4488 = vpack.c.b16 %v2680, %v2672
    %v4489 = vpack.c.b16 %v2681, %v2673
    %v4490 = vpack.c.b16 %v2682, %v2674
    %v4491 = vpack.c.b16 %v2683, %v2675
    %v4492 = vpack.c.b16 %v2684, %v2676
    %v4493 = vpack.c.b16 %v2685, %v2677
    %v4494 = vpack.c.b16 %v2686, %v2678
    %v4495 = vpack.c.b16 %v2695, %v2687
    %v4496 = vpack.c.b16 %v2696, %v2688
    %v4497 = vpack.c.b16 %v2697, %v2689
    %v4498 = vpack.c.b16 %v2698, %v2690
    %v4499 = vpack.c.b16 %v2699, %v2691
    %v4500 = vpack.c.b16 %v2700, %v2692
    %v4501 = vpack.c.b16 %v2701, %v2693
    %v4502 = vpack.c.b16 %v2702, %v2694
    %v4503 = vpack.c.b16 %v2711, %v2703
    %v4504 = vpack.c.b16 %v2712, %v2704
    %v4505 = vpack.c.b16 %v2713, %v2705
    %v4506 = vpack.c.b16 %v2714, %v2706
    %v4507 = vpack.c.b16 %v2715, %v2707
    %v4508 = vpack.c.b16 %v2716, %v2708
    %v4509 = vpack.c.b16 %v2717, %v2709
    %v4510 = vpack.c.b16 %v2718, %v2710
    %v4511 = vpack.c.b16 %v2727, %v2719
    %v4512 = vpack.c.b16 %v2728, %v2720
    %v4513 = vpack.c.b16 %v2729, %v2721
    %v4514 = vpack.c.b16 %v2730, %v2722
    %v4515 = vpack.c.b16 %v2731, %v2723
    %v4516 = vpack.c.b16 %v2732, %v2724
    %v4517 = vpack.c.b16 %v2733, %v2725
    %v4518 = vpack.c.b16 %v2734, %v2726
    %v4519 = vpack.c.b16 %v2743, %v2735
    %v4520 = vpack.c.b16 %v2744, %v2736
    %v4521 = vpack.c.b16 %v2745, %v2737
    %v4522 = vpack.c.b16 %v2746, %v2738
    %v4523 = vpack.c.b16 %v2747, %v2739
    %v4524 = vpack.c.b16 %v2748, %v2740
    %v4525 = vpack.c.b16 %v2749, %v2741
    %v4526 = vpack.c.b16 %v2750, %v2742
    %v4527 = vpack.c.b16 %v2759, %v2751
    %v4528 = vpack.c.b16 %v2760, %v2752
    %v4529 = vpack.c.b16 %v2761, %v2753
    %v4530 = vpack.c.b16 %v2762, %v2754
    %v4531 = vpack.c.b16 %v2763, %v2755
    %v4532 = vpack.c.b16 %v2764, %v2756
    %v4533 = vpack.c.b16 %v2765, %v2757
    %v4534 = vpack.c.b16 %v2766, %v2758
    %v4535 = vpack.c.b16 %v2775, %v2767
    %v4536 = vpack.c.b16 %v2776, %v2768
    %v4537 = vpack.c.b16 %v2777, %v2769
    %v4538 = vpack.c.b16 %v2778, %v2770
    %v4539 = vpack.c.b16 %v2779, %v2771
    %v4540 = vpack.c.b16 %v2780, %v2772
    %v4541 = vpack.c.b16 %v2781, %v2773
    %v4542 = vpack.c.b16 %v2782, %v2774
    %v4543 = vpack.c.b16 %v2791, %v2783
    %v4544 = vpack.c.b16 %v2792, %v2784
    %v4545 = vpack.c.b16 %v2793, %v2785
    %v4546 = vpack.c.b16 %v2794, %v2786
    %v4547 = vpack.c.b16 %v2795, %v2787
    %v4548 = vpack.c.b16 %v2796, %v2788
    %v4549 = vpack.c.b16 %v2797, %v2789
    %v4550 = vpack.c.b16 %v2798, %v2790
    %v4551 = vpack.c.b16 %v2807, %v2799
    %v4552 = vpack.c.b16 %v2808, %v2800
    %v4553 = vpack.c.b16 %v2809, %v2801
    %v4554 = vpack.c.b16 %v2810, %v2802
    %v4555 = vpack.c.b16 %v2811, %v2803
    %v4556 = vpack.c.b16 %v2812, %v2804
    %v4557 = vpack.c.b16 %v2813, %v2805
    %v4558 = vpack.c.b16 %v2814, %v2806
    %v4559 = vpack.c.b16 %v2823, %v2815
    %v4560 = vpack.c.b16 %v2824, %v2816
    %v4561 = vpack.c.b16 %v2825, %v2817
    %v4562 = vpack.c.b16 %v2826, %v2818
    %v4563 = vpack.c.b16 %v2827, %v2819
    %v4564 = vpack.c.b16 %v2828, %v2820
    %v4565 = vpack.c.b16 %v2829, %v2821
    %v4566 = vpack.c.b16 %v2830, %v2822
    %v4567 = vpack.c.b16 %v2839, %v2831
    %v4568 = vpack.c.b16 %v2840, %v2832
    %v4569 = vpack.c.b16 %v2841, %v2833
    %v4570 = vpack.c.b16 %v2842, %v2834
    %v4571 = vpack.c.b16 %v2843, %v2835
    %v4572 = vpack.c.b16 %v2844, %v2836
    %v4573 = vpack.c.b16 %v2845, %v2837
    %v4574 = vpack.c.b16 %v2846, %v2838
    %v4575 = vpack.c.b16 %v2855, %v2847
    %v4576 = vpack.c.b16 %v2856, %v2848
    %v4577 = vpack.c.b16 %v2857, %v2849
    %v4578 = vpack.c.b16 %v2858, %v2850
    %v4579 = vpack.c.b16 %v2859, %v2851
    %v4580 = vpack.c.b16 %v2860, %v2852
    %v4581 = vpack.c.b16 %v2861, %v2853
    %v4582 = vpack.c.b16 %v2862, %v2854
    %v4583 = vpack.c.b16 %v2871, %v2863
    %v4584 = vpack.c.b16 %v2872, %v2864
    %v4585 = vpack.c.b16 %v2873, %v2865
    %v4586 = vpack.c.b16 %v2874, %v2866
    %v4587 = vpack.c.b16 %v2875, %v2867
    %v4588 = vpack.c.b16 %v2876, %v2868
    %v4589 = vpack.c.b16 %v2877, %v2869
    %v4590 = vpack.c.b16 %v2878, %v2870
    %v4591 = vpack.c.b16 %v2887, %v2879
    %v4592 = vpack.c.b16 %v2888, %v2880
    %v4593 = vpack.c.b16 %v2889, %v2881
    %v4594 = vpack.c.b16 %v2890, %v2882
    %v4595 = vpack.c.b16 %v2891, %v2883
    %v4596 = vpack.c.b16 %v2892, %v2884
    %v4597 = vpack.c.b16 %v2893, %v2885
    %v4598 = vpack.c.b16 %v2894, %v2886
    %v4599 = vpack.c.b16 %v2903, %v2895
    %v4600 = vpack.c.b16 %v2904, %v2896
    %v4601 = vpack.c.b16 %v2905, %v2897
    %v4602 = vpack.c.b16 %v2906, %v2898
    %v4603 = vpack.c.b16 %v2907, %v2899
    %v4604 = vpack.c.b16 %v2908, %v2900
    %v4605 = vpack.c.b16 %v2909, %v2901
    %v4606 = vpack.c.b16 %v2910, %v2902
    %v4607 = vpack.c.b16 %v2919, %v2911
    %v4608 = vpack.c.b16 %v2920, %v2912
    %v4609 = vpack.c.b16 %v2921, %v2913
    %v4610 = vpack.c.b16 %v2922, %v2914
    %v4611 = vpack.c.b16 %v2923, %v2915
    %v4612 = vpack.c.b16 %v2924, %v2916
    %v4613 = vpack.c.b16 %v2925, %v2917
    %v4614 = vpack.c.b16 %v2926, %v2918
    %v4615 = vpack.c.b16 %v2935, %v2927
    %v4616 = vpack.c.b16 %v2936, %v2928
    %v4617 = vpack.c.b16 %v2937, %v2929
    %v4618 = vpack.c.b16 %v2938, %v2930
    %v4619 = vpack.c.b16 %v2939, %v2931
    %v4620 = vpack.c.b16 %v2940, %v2932
    %v4621 = vpack.c.b16 %v2941, %v2933
    %v4622 = vpack.c.b16 %v2942, %v2934
    %v4623 = vpack.c.b16 %v2951, %v2943
    %v4624 = vpack.c.b16 %v2952, %v2944
    %v4625 = vpack.c.b16 %v2953, %v2945
    %v4626 = vpack.c.b16 %v2954, %v2946
    %v4627 = vpack.c.b16 %v2955, %v2947
    %v4628 = vpack.c.b16 %v2956, %v2948
    %v4629 = vpack.c.b16 %v2957, %v2949
    %v4630 = vpack.c.b16 %v2958, %v2950
    %v4631 = vpack.c.b16 %v2967, %v2959
    %v4632 = vpack.c.b16 %v2968, %v2960
    %v4633 = vpack.c.b16 %v2969, %v2961
    %v4634 = vpack.c.b16 %v2970, %v2962
    %v4635 = vpack.c.b16 %v2971, %v2963
    %v4636 = vpack.c.b16 %v2972, %v2964
    %v4637 = vpack.c.b16 %v2973, %v2965
    %v4638 = vpack.c.b16 %v2974, %v2966
    %v4639 = vpack.c.b16 %v2983, %v2975
    %v4640 = vpack.c.b16 %v2984, %v2976
    %v4641 = vpack.c.b16 %v2985, %v2977
    %v4642 = vpack.c.b16 %v2986, %v2978
    %v4643 = vpack.c.b16 %v2987, %v2979
    %v4644 = vpack.c.b16 %v2988, %v2980
    %v4645 = vpack.c.b16 %v2989, %v2981
    %v4646 = vpack.c.b16 %v2990, %v2982
    %v4647 = vpack.c.b16 %v2999, %v2991
    %v4648 = vpack.c.b16 %v3000, %v2992
    %v4649 = vpack.c.b16 %v3001, %v2993
    %v4650 = vpack.c.b16 %v3002, %v2994
    %v4651 = vpack.c.b16 %v3003, %v2995
    %v4652 = vpack.c.b16 %v3004, %v2996
    %v4653 = vpack.c.b16 %v3005, %v2997
    %v4654 = vpack.c.b16 %v3006, %v2998
    %v4655 = vpack.c.b16 %v3015, %v3007
    %v4656 = vpack.c.b16 %v3016, %v3008
    %v4657 = vpack.c.b16 %v3017, %v3009
    %v4658 = vpack.c.b16 %v3018, %v3010
    %v4659 = vpack.c.b16 %v3019, %v3011
    %v4660 = vpack.c.b16 %v3020, %v3012
    %v4661 = vpack.c.b16 %v3021, %v3013
    %v4662 = vpack.c.b16 %v3022, %v3014
    %v4663 = vpack.c.b16 %v3031, %v3023
    %v4664 = vpack.c.b16 %v3032, %v3024
    %v4665 = vpack.c.b16 %v3033, %v3025
    %v4666 = vpack.c.b16 %v3034, %v3026
    %v4667 = vpack.c.b16 %v3035, %v3027
    %v4668 = vpack.c.b16 %v3036, %v3028
    %v4669 = vpack.c.b16 %v3037, %v3029
    %v4670 = vpack.c.b16 %v3038, %v3030
    %v4671 = vpack.c.b16 %v3047, %v3039
    %v4672 = vpack.c.b16 %v3048, %v3040
    %v4673 = vpack.c.b16 %v3049, %v3041
    %v4674 = vpack.c.b16 %v3050, %v3042
    %v4675 = vpack.c.b16 %v3051, %v3043
    %v4676 = vpack.c.b16 %v3052, %v3044
    %v4677 = vpack.c.b16 %v3053, %v3045
    %v4678 = vpack.c.b16 %v3054, %v3046
    %v4679 = vpack.c.b16 %v3063, %v3055
    %v4680 = vpack.c.b16 %v3064, %v3056
    %v4681 = vpack.c.b16 %v3065, %v3057
    %v4682 = vpack.c.b16 %v3066, %v3058
    %v4683 = vpack.c.b16 %v3067, %v3059
    %v4684 = vpack.c.b16 %v3068, %v3060
    %v4685 = vpack.c.b16 %v3069, %v3061
    %v4686 = vpack.c.b16 %v3070, %v3062
    %v4687 = vpack.c.b16 %v3079, %v3071
    %v4688 = vpack.c.b16 %v3080, %v3072
    %v4689 = vpack.c.b16 %v3081, %v3073
    %v4690 = vpack.c.b16 %v3082, %v3074
    %v4691 = vpack.c.b16 %v3083, %v3075
    %v4692 = vpack.c.b16 %v3084, %v3076
    %v4693 = vpack.c.b16 %v3085, %v3077
    %v4694 = vpack.c.b16 %v3086, %v3078
    %v4695 = vpack.c.b16 %v3095, %v3087
    %v4696 = vpack.c.b16 %v3096, %v3088
    %v4697 = vpack.c.b16 %v3097, %v3089
    %v4698 = vpack.c.b16 %v3098, %v3090
    %v4699 = vpack.c.b16 %v3099, %v3091
    %v4700 = vpack.c.b16 %v3100, %v3092
    %v4701 = vpack.c.b16 %v3101, %v3093
    %v4702 = vpack.c.b16 %v3102, %v3094
    %v4703 = vpack.c.b16 %v3111, %v3103
    %v4704 = vpack.c.b16 %v3112, %v3104
    %v4705 = vpack.c.b16 %v3113, %v3105
    %v4706 = vpack.c.b16 %v3114, %v3106
    %v4707 = vpack.c.b16 %v3115, %v3107
    %v4708 = vpack.c.b16 %v3116, %v3108
    %v4709 = vpack.c.b16 %v3117, %v3109
    %v4710 = vpack.c.b16 %v3118, %v3110
    %v4711 = vpack.c.b16 %v3127, %v3119
    %v4712 = vpack.c.b16 %v3128, %v3120
    %v4713 = vpack.c.b16 %v3129, %v3121
    %v4714 = vpack.c.b16 %v3130, %v3122
    %v4715 = vpack.c.b16 %v3131, %v3123
    %v4716 = vpack.c.b16 %v3132, %v3124
    %v4717 = vpack.c.b16 %v3133, %v3125
    %v4718 = vpack.c.b16 %v3134, %v3126
    %v4719 = vpack.c.b16 %v3143, %v3135
    %v4720 = vpack.c.b16 %v3144, %v3136
    %v4721 = vpack.c.b16 %v3145, %v3137
    %v4722 = vpack.c.b16 %v3146, %v3138
    %v4723 = vpack.c.b16 %v3147, %v3139
    %v4724 = vpack.c.b16 %v3148, %v3140
    %v4725 = vpack.c.b16 %v3149, %v3141
    %v4726 = vpack.c.b16 %v3150, %v3142
    %v4727 = vpack.c.b16 %v3159, %v3151
    %v4728 = vpack.c.b16 %v3160, %v3152
    %v4729 = vpack.c.b16 %v3161, %v3153
    %v4730 = vpack.c.b16 %v3162, %v3154
    %v4731 = vpack.c.b16 %v3163, %v3155
    %v4732 = vpack.c.b16 %v3164, %v3156
    %v4733 = vpack.c.b16 %v3165, %v3157
    %v4734 = vpack.c.b16 %v3166, %v3158
    %v4735 = vpack.c.b16 %v3175, %v3167
    %v4736 = vpack.c.b16 %v3176, %v3168
    %v4737 = vpack.c.b16 %v3177, %v3169
    %v4738 = vpack.c.b16 %v3178, %v3170
    %v4739 = vpack.c.b16 %v3179, %v3171
    %v4740 = vpack.c.b16 %v3180, %v3172
    %v4741 = vpack.c.b16 %v3181, %v3173
    %v4742 = vpack.c.b16 %v3182, %v3174
    %v4743 = vpack.c.b16 %v3191, %v3183
    %v4744 = vpack.c.b16 %v3192, %v3184
    %v4745 = vpack.c.b16 %v3193, %v3185
    %v4746 = vpack.c.b16 %v3194, %v3186
    %v4747 = vpack.c.b16 %v3195, %v3187
    %v4748 = vpack.c.b16 %v3196, %v3188
    %v4749 = vpack.c.b16 %v3197, %v3189
    %v4750 = vpack.c.b16 %v3198, %v3190
    %v4751 = vpack.c.b16 %v3207, %v3199
    %v4752 = vpack.c.b16 %v3208, %v3200
    %v4753 = vpack.c.b16 %v3209, %v3201
    %v4754 = vpack.c.b16 %v3210, %v3202
    %v4755 = vpack.c.b16 %v3211, %v3203
    %v4756 = vpack.c.b16 %v3212, %v3204
    %v4757 = vpack.c.b16 %v3213, %v3205
    %v4758 = vpack.c.b16 %v3214, %v3206
    %v4759 = vpack.c.b16 %v3223, %v3215
    %v4760 = vpack.c.b16 %v3224, %v3216
    %v4761 = vpack.c.b16 %v3225, %v3217
    %v4762 = vpack.c.b16 %v3226, %v3218
    %v4763 = vpack.c.b16 %v3227, %v3219
    %v4764 = vpack.c.b16 %v3228, %v3220
    %v4765 = vpack.c.b16 %v3229, %v3221
    %v4766 = vpack.c.b16 %v3230, %v3222
    %v4767 = vpack.c.b16 %v3239, %v3231
    %v4768 = vpack.c.b16 %v3240, %v3232
    %v4769 = vpack.c.b16 %v3241, %v3233
    %v4770 = vpack.c.b16 %v3242, %v3234
    %v4771 = vpack.c.b16 %v3243, %v3235
    %v4772 = vpack.c.b16 %v3244, %v3236
    %v4773 = vpack.c.b16 %v3245, %v3237
    %v4774 = vpack.c.b16 %v3246, %v3238
    %v4775 = vpack.c.b16 %v3255, %v3247
    %v4776 = vpack.c.b16 %v3256, %v3248
    %v4777 = vpack.c.b16 %v3257, %v3249
    %v4778 = vpack.c.b16 %v3258, %v3250
    %v4779 = vpack.c.b16 %v3259, %v3251
    %v4780 = vpack.c.b16 %v3260, %v3252
    %v4781 = vpack.c.b16 %v3261, %v3253
    %v4782 = vpack.c.b16 %v3262, %v3254
    %v4783 = vpack.c.b16 %v3271, %v3263
    %v4784 = vpack.c.b16 %v3272, %v3264
    %v4785 = vpack.c.b16 %v3273, %v3265
    %v4786 = vpack.c.b16 %v3274, %v3266
    %v4787 = vpack.c.b16 %v3275, %v3267
    %v4788 = vpack.c.b16 %v3276, %v3268
    %v4789 = vpack.c.b16 %v3277, %v3269
    %v4790 = vpack.c.b16 %v3278, %v3270
    %v4791 = vpack.c.b16 %v3287, %v3279
    %v4792 = vpack.c.b16 %v3288, %v3280
    %v4793 = vpack.c.b16 %v3289, %v3281
    %v4794 = vpack.c.b16 %v3290, %v3282
    %v4795 = vpack.c.b16 %v3291, %v3283
    %v4796 = vpack.c.b16 %v3292, %v3284
    %v4797 = vpack.c.b16 %v3293, %v3285
    %v4798 = vpack.c.b16 %v3294, %v3286
    %v4799 = vpack.c.b16 %v3303, %v3295
    %v4800 = vpack.c.b16 %v3304, %v3296
    %v4801 = vpack.c.b16 %v3305, %v3297
    %v4802 = vpack.c.b16 %v3306, %v3298
    %v4803 = vpack.c.b16 %v3307, %v3299
    %v4804 = vpack.c.b16 %v3308, %v3300
    %v4805 = vpack.c.b16 %v3309, %v3301
    %v4806 = vpack.c.b16 %v3310, %v3302
    %v4807 = vpack.c.b16 %v3319, %v3311
    %v4808 = vpack.c.b16 %v3320, %v3312
    %v4809 = vpack.c.b16 %v3321, %v3313
    %v4810 = vpack.c.b16 %v3322, %v3314
    %v4811 = vpack.c.b16 %v3323, %v3315
    %v4812 = vpack.c.b16 %v3324, %v3316
    %v4813 = vpack.c.b16 %v3325, %v3317
    %v4814 = vpack.c.b16 %v3326, %v3318
    %v4815 = vpack.c.b16 %v3335, %v3327
    %v4816 = vpack.c.b16 %v3336, %v3328
    %v4817 = vpack.c.b16 %v3337, %v3329
    %v4818 = vpack.c.b16 %v3338, %v3330
    %v4819 = vpack.c.b16 %v3339, %v3331
    %v4820 = vpack.c.b16 %v3340, %v3332
    %v4821 = vpack.c.b16 %v3341, %v3333
    %v4822 = vpack.c.b16 %v3342, %v3334
    %v4823 = vpack.c.b16 %v3351, %v3343
    %v4824 = vpack.c.b16 %v3352, %v3344
    %v4825 = vpack.c.b16 %v3353, %v3345
    %v4826 = vpack.c.b16 %v3354, %v3346
    %v4827 = vpack.c.b16 %v3355, %v3347
    %v4828 = vpack.c.b16 %v3356, %v3348
    %v4829 = vpack.c.b16 %v3357, %v3349
    %v4830 = vpack.c.b16 %v3358, %v3350
    %v4831 = vpack.c.b16 %v3367, %v3359
    %v4832 = vpack.c.b16 %v3368, %v3360
    %v4833 = vpack.c.b16 %v3369, %v3361
    %v4834 = vpack.c.b16 %v3370, %v3362
    %v4835 = vpack.c.b16 %v3371, %v3363
    %v4836 = vpack.c.b16 %v3372, %v3364
    %v4837 = vpack.c.b16 %v3373, %v3365
    %v4838 = vpack.c.b16 %v3374, %v3366
    %v4839 = vpack.c.b16 %v3383, %v3375
    %v4840 = vpack.c.b16 %v3384, %v3376
    %v4841 = vpack.c.b16 %v3385, %v3377
    %v4842 = vpack.c.b16 %v3386, %v3378
    %v4843 = vpack.c.b16 %v3387, %v3379
    %v4844 = vpack.c.b16 %v3388, %v3380
    %v4845 = vpack.c.b16 %v3389, %v3381
    %v4846 = vpack.c.b16 %v3390, %v3382
    %v4847 = vpack.c.b16 %v3399, %v3391
    %v4848 = vpack.c.b16 %v3400, %v3392
    %v4849 = vpack.c.b16 %v3401, %v3393
    %v4850 = vpack.c.b16 %v3402, %v3394
    %v4851 = vpack.c.b16 %v3403, %v3395
    %v4852 = vpack.c.b16 %v3404, %v3396
    %v4853 = vpack.c.b16 %v3405, %v3397
    %v4854 = vpack.c.b16 %v3406, %v3398
    %v4855 = vpack.c.b16 %v3415, %v3407
    %v4856 = vpack.c.b16 %v3416, %v3408
    %v4857 = vpack.c.b16 %v3417, %v3409
    %v4858 = vpack.c.b16 %v3418, %v3410
    %v4859 = vpack.c.b16 %v3419, %v3411
    %v4860 = vpack.c.b16 %v3420, %v3412
    %v4861 = vpack.c.b16 %v3421, %v3413
    %v4862 = vpack.c.b16 %v3422, %v3414
    %v4863 = vpack.c.b16 %v3431, %v3423
    %v4864 = vpack.c.b16 %v3432, %v3424
    %v4865 = vpack.c.b16 %v3433, %v3425
    %v4866 = vpack.c.b16 %v3434, %v3426
    %v4867 = vpack.c.b16 %v3435, %v3427
    %v4868 = vpack.c.b16 %v3436, %v3428
    %v4869 = vpack.c.b16 %v3437, %v3429
    %v4870 = vpack.c.b16 %v3438, %v3430
    %v4871 = vpack.c.b16 %v3447, %v3439
    %v4872 = vpack.c.b16 %v3448, %v3440
    %v4873 = vpack.c.b16 %v3449, %v3441
    %v4874 = vpack.c.b16 %v3450, %v3442
    %v4875 = vpack.c.b16 %v3451, %v3443
    %v4876 = vpack.c.b16 %v3452, %v3444
    %v4877 = vpack.c.b16 %v3453, %v3445
    %v4878 = vpack.c.b16 %v3454, %v3446
    %v4879 = vpack.c.b16 %v3463, %v3455
    %v4880 = vpack.c.b16 %v3464, %v3456
    %v4881 = vpack.c.b16 %v3465, %v3457
    %v4882 = vpack.c.b16 %v3466, %v3458
    %v4883 = vpack.c.b16 %v3467, %v3459
    %v4884 = vpack.c.b16 %v3468, %v3460
    %v4885 = vpack.c.b16 %v3469, %v3461
    %v4886 = vpack.c.b16 %v3470, %v3462
    %v4887 = vpack.c.b16 %v3479, %v3471
    %v4888 = vpack.c.b16 %v3480, %v3472
    %v4889 = vpack.c.b16 %v3481, %v3473
    %v4890 = vpack.c.b16 %v3482, %v3474
    %v4891 = vpack.c.b16 %v3483, %v3475
    %v4892 = vpack.c.b16 %v3484, %v3476
    %v4893 = vpack.c.b16 %v3485, %v3477
    %v4894 = vpack.c.b16 %v3486, %v3478
    %v4895 = vpack.c.b16 %v3495, %v3487
    %v4896 = vpack.c.b16 %v3496, %v3488
    %v4897 = vpack.c.b16 %v3497, %v3489
    %v4898 = vpack.c.b16 %v3498, %v3490
    %v4899 = vpack.c.b16 %v3499, %v3491
    %v4900 = vpack.c.b16 %v3500, %v3492
    %v4901 = vpack.c.b16 %v3501, %v3493
    %v4902 = vpack.c.b16 %v3502, %v3494
    %v4903 = vpack.c.b16 %v3511, %v3503
    %v4904 = vpack.c.b16 %v3512, %v3504
    %v4905 = vpack.c.b16 %v3513, %v3505
    %v4906 = vpack.c.b16 %v3514, %v3506
    %v4907 = vpack.c.b16 %v3515, %v3507
    %v4908 = vpack.c.b16 %v3516, %v3508
    %v4909 = vpack.c.b16 %v3517, %v3509
    %v4910 = vpack.c.b16 %v3518, %v3510
    %v4911 = vpack.c.b16 %v3527, %v3519
    %v4912 = vpack.c.b16 %v3528, %v3520
    %v4913 = vpack.c.b16 %v3529, %v3521
    %v4914 = vpack.c.b16 %v3530, %v3522
    %v4915 = vpack.c.b16 %v3531, %v3523
    %v4916 = vpack.c.b16 %v3532, %v3524
    %v4917 = vpack.c.b16 %v3533, %v3525
    %v4918 = vpack.c.b16 %v3534, %v3526
    %v4919 = vpack.c.b16 %v3543, %v3535
    %v4920 = vpack.c.b16 %v3544, %v3536
    %v4921 = vpack.c.b16 %v3545, %v3537
    %v4922 = vpack.c.b16 %v3546, %v3538
    %v4923 = vpack.c.b16 %v3547, %v3539
    %v4924 = vpack.c.b16 %v3548, %v3540
    %v4925 = vpack.c.b16 %v3549, %v3541
    %v4926 = vpack.c.b16 %v3550, %v3542
    %v4927 = vpack.c.b16 %v3559, %v3551
    %v4928 = vpack.c.b16 %v3560, %v3552
    %v4929 = vpack.c.b16 %v3561, %v3553
    %v4930 = vpack.c.b16 %v3562, %v3554
    %v4931 = vpack.c.b16 %v3563, %v3555
    %v4932 = vpack.c.b16 %v3564, %v3556
    %v4933 = vpack.c.b16 %v3565, %v3557
    %v4934 = vpack.c.b16 %v3566, %v3558
    %v4935 = vpack.c.b16 %v3575, %v3567
    %v4936 = vpack.c.b16 %v3576, %v3568
    %v4937 = vpack.c.b16 %v3577, %v3569
    %v4938 = vpack.c.b16 %v3578, %v3570
    %v4939 = vpack.c.b16 %v3579, %v3571
    %v4940 = vpack.c.b16 %v3580, %v3572
    %v4941 = vpack.c.b16 %v3581, %v3573
    %v4942 = vpack.c.b16 %v3582, %v3574
    %v4943 = vpack.c.b16 %v3591, %v3583
    %v4944 = vpack.c.b16 %v3592, %v3584
    %v4945 = vpack.c.b16 %v3593, %v3585
    %v4946 = vpack.c.b16 %v3594, %v3586
    %v4947 = vpack.c.b16 %v3595, %v3587
    %v4948 = vpack.c.b16 %v3596, %v3588
    %v4949 = vpack.c.b16 %v3597, %v3589
    %v4950 = vpack.c.b16 %v3598, %v3590
    %v4951 = vpack.c.b16 %v3607, %v3599
    %v4952 = vpack.c.b16 %v3608, %v3600
    %v4953 = vpack.c.b16 %v3609, %v3601
    %v4954 = vpack.c.b16 %v3610, %v3602
    %v4955 = vpack.c.b16 %v3611, %v3603
    %v4956 = vpack.c.b16 %v3612, %v3604
    %v4957 = vpack.c.b16 %v3613, %v3605
    %v4958 = vpack.c.b16 %v3614, %v3606
    %v4959 = vpack.c.b16 %v3623, %v3615
    %v4960 = vpack.c.b16 %v3624, %v3616
    %v4961 = vpack.c.b16 %v3625, %v3617
    %v4962 = vpack.c.b16 %v3626, %v3618
    %v4963 = vpack.c.b16 %v3627, %v3619
    %v4964 = vpack.c.b16 %v3628, %v3620
    %v4965 = vpack.c.b16 %v3629, %v3621
    %v4966 = vpack.c.b16 %v3630, %v3622
    %v4967 = vpack.c.b16 %v3639, %v3631
    %v4968 = vpack.c.b16 %v3640, %v3632
    %v4969 = vpack.c.b16 %v3641, %v3633
    %v4970 = vpack.c.b16 %v3642, %v3634
    %v4971 = vpack.c.b16 %v3643, %v3635
    %v4972 = vpack.c.b16 %v3644, %v3636
    %v4973 = vpack.c.b16 %v3645, %v3637
    %v4974 = vpack.c.b16 %v3646, %v3638
    %v4975 = vpack.c.b16 %v3655, %v3647
    %v4976 = vpack.c.b16 %v3656, %v3648
    %v4977 = vpack.c.b16 %v3657, %v3649
    %v4978 = vpack.c.b16 %v3658, %v3650
    %v4979 = vpack.c.b16 %v3659, %v3651
    %v4980 = vpack.c.b16 %v3660, %v3652
    %v4981 = vpack.c.b16 %v3661, %v3653
    %v4982 = vpack.c.b16 %v3662, %v3654
    %v4983 = vpack.c.b16 %v3671, %v3663
    %v4984 = vpack.c.b16 %v3672, %v3664
    %v4985 = vpack.c.b16 %v3673, %v3665
    %v4986 = vpack.c.b16 %v3674, %v3666
    %v4987 = vpack.c.b16 %v3675, %v3667
    %v4988 = vpack.c.b16 %v3676, %v3668
    %v4989 = vpack.c.b16 %v3677, %v3669
    %v4990 = vpack.c.b16 %v3678, %v3670
    %v4991 = vpack.c.b16 %v3687, %v3679
    %v4992 = vpack.c.b16 %v3688, %v3680
    %v4993 = vpack.c.b16 %v3689, %v3681
    %v4994 = vpack.c.b16 %v3690, %v3682
    %v4995 = vpack.c.b16 %v3691, %v3683
    %v4996 = vpack.c.b16 %v3692, %v3684
    %v4997 = vpack.c.b16 %v3693, %v3685
    %v4998 = vpack.c.b16 %v3694, %v3686
    %v4999 = vpack.c.b16 %v3703, %v3695
    %v5000 = vpack.c.b16 %v3704, %v3696
    %v5001 = vpack.c.b16 %v3705, %v3697
    %v5002 = vpack.c.b16 %v3706, %v3698
    %v5003 = vpack.c.b16 %v3707, %v3699
    %v5004 = vpack.c.b16 %v3708, %v3700
    %v5005 = vpack.c.b16 %v3709, %v3701
    %v5006 = vpack.c.b16 %v3710, %v3702
    %v5007 = vpack.c.b16 %v3719, %v3711
    %v5008 = vpack.c.b16 %v3720, %v3712
    %v5009 = vpack.c.b16 %v3721, %v3713
    %v5010 = vpack.c.b16 %v3722, %v3714
    %v5011 = vpack.c.b16 %v3723, %v3715
    %v5012 = vpack.c.b16 %v3724, %v3716
    %v5013 = vpack.c.b16 %v3725, %v3717
    %v5014 = vpack.c.b16 %v3726, %v3718
    %v5015 = vpack.c.b16 %v3735, %v3727
    %v5016 = vpack.c.b16 %v3736, %v3728
    %v5017 = vpack.c.b16 %v3737, %v3729
    %v5018 = vpack.c.b16 %v3738, %v3730
    %v5019 = vpack.c.b16 %v3739, %v3731
    %v5020 = vpack.c.b16 %v3740, %v3732
    %v5021 = vpack.c.b16 %v3741, %v3733
    %v5022 = vpack.c.b16 %v3742, %v3734
    %v5023 = vpack.c.b16 %v3751, %v3743
    %v5024 = vpack.c.b16 %v3752, %v3744
    %v5025 = vpack.c.b16 %v3753, %v3745
    %v5026 = vpack.c.b16 %v3754, %v3746
    %v5027 = vpack.c.b16 %v3755, %v3747
    %v5028 = vpack.c.b16 %v3756, %v3748
    %v5029 = vpack.c.b16 %v3757, %v3749
    %v5030 = vpack.c.b16 %v3758, %v3750
    %v5031 = vpack.c.b16 %v3767, %v3759
    %v5032 = vpack.c.b16 %v3768, %v3760
    %v5033 = vpack.c.b16 %v3769, %v3761
    %v5034 = vpack.c.b16 %v3770, %v3762
    %v5035 = vpack.c.b16 %v3771, %v3763
    %v5036 = vpack.c.b16 %v3772, %v3764
    %v5037 = vpack.c.b16 %v3773, %v3765
    %v5038 = vpack.c.b16 %v3774, %v3766
    %v5039 = vpack.c.b16 %v3783, %v3775
    %v5040 = vpack.c.b16 %v3784, %v3776
    %v5041 = vpack.c.b16 %v3785, %v3777
    %v5042 = vpack.c.b16 %v3786, %v3778
    %v5043 = vpack.c.b16 %v3787, %v3779
    %v5044 = vpack.c.b16 %v3788, %v3780
    %v5045 = vpack.c.b16 %v3789, %v3781
    %v5046 = vpack.c.b16 %v3790, %v3782
    %v5047 = vpack.c.b16 %v3799, %v3791
    %v5048 = vpack.c.b16 %v3800, %v3792
    %v5049 = vpack.c.b16 %v3801, %v3793
    %v5050 = vpack.c.b16 %v3802, %v3794
    %v5051 = vpack.c.b16 %v3803, %v3795
    %v5052 = vpack.c.b16 %v3804, %v3796
    %v5053 = vpack.c.b16 %v3805, %v3797
    %v5054 = vpack.c.b16 %v3806, %v3798
    %v5055 = vpack.c.b16 %v3815, %v3807
    %v5056 = vpack.c.b16 %v3816, %v3808
    %v5057 = vpack.c.b16 %v3817, %v3809
    %v5058 = vpack.c.b16 %v3818, %v3810
    %v5059 = vpack.c.b16 %v3819, %v3811
    %v5060 = vpack.c.b16 %v3820, %v3812
    %v5061 = vpack.c.b16 %v3821, %v3813
    %v5062 = vpack.c.b16 %v3822, %v3814
    %v5063 = vpack.c.b16 %v3831, %v3823
    %v5064 = vpack.c.b16 %v3832, %v3824
    %v5065 = vpack.c.b16 %v3833, %v3825
    %v5066 = vpack.c.b16 %v3834, %v3826
    %v5067 = vpack.c.b16 %v3835, %v3827
    %v5068 = vpack.c.b16 %v3836, %v3828
    %v5069 = vpack.c.b16 %v3837, %v3829
    %v5070 = vpack.c.b16 %v3838, %v3830
    %v5071 = vpack.c.b16 %v3847, %v3839
    %v5072 = vpack.c.b16 %v3848, %v3840
    %v5073 = vpack.c.b16 %v3849, %v3841
    %v5074 = vpack.c.b16 %v3850, %v3842
    %v5075 = vpack.c.b16 %v3851, %v3843
    %v5076 = vpack.c.b16 %v3852, %v3844
    %v5077 = vpack.c.b16 %v3853, %v3845
    %v5078 = vpack.c.b16 %v3854, %v3846
    %v5079 = vpack.c.b16 %v3863, %v3855
    %v5080 = vpack.c.b16 %v3864, %v3856
    %v5081 = vpack.c.b16 %v3865, %v3857
    %v5082 = vpack.c.b16 %v3866, %v3858
    %v5083 = vpack.c.b16 %v3867, %v3859
    %v5084 = vpack.c.b16 %v3868, %v3860
    %v5085 = vpack.c.b16 %v3869, %v3861
    %v5086 = vpack.c.b16 %v3870, %v3862
    %v5087 = vpack.c.b16 %v3879, %v3871
    %v5088 = vpack.c.b16 %v3880, %v3872
    %v5089 = vpack.c.b16 %v3881, %v3873
    %v5090 = vpack.c.b16 %v3882, %v3874
    %v5091 = vpack.c.b16 %v3883, %v3875
    %v5092 = vpack.c.b16 %v3884, %v3876
    %v5093 = vpack.c.b16 %v3885, %v3877
    %v5094 = vpack.c.b16 %v3886, %v3878
    %v5095 = vpack.c.b16 %v3895, %v3887
    %v5096 = vpack.c.b16 %v3896, %v3888
    %v5097 = vpack.c.b16 %v3897, %v3889
    %v5098 = vpack.c.b16 %v3898, %v3890
    %v5099 = vpack.c.b16 %v3899, %v3891
    %v5100 = vpack.c.b16 %v3900, %v3892
    %v5101 = vpack.c.b16 %v3901, %v3893
    %v5102 = vpack.c.b16 %v3902, %v3894
    %v5103 = vpack.c.b16 %v3911, %v3903
    %v5104 = vpack.c.b16 %v3912, %v3904
    %v5105 = vpack.c.b16 %v3913, %v3905
    %v5106 = vpack.c.b16 %v3914, %v3906
    %v5107 = vpack.c.b16 %v3915, %v3907
    %v5108 = vpack.c.b16 %v3916, %v3908
    %v5109 = vpack.c.b16 %v3917, %v3909
    %v5110 = vpack.c.b16 %v3918, %v3910
    %v5111 = vpack.c.b16 %v3927, %v3919
    %v5112 = vpack.c.b16 %v3928, %v3920
    %v5113 = vpack.c.b16 %v3929, %v3921
    %v5114 = vpack.c.b16 %v3930, %v3922
    %v5115 = vpack.c.b16 %v3931, %v3923
    %v5116 = vpack.c.b16 %v3932, %v3924
    %v5117 = vpack.c.b16 %v3933, %v3925
    %v5118 = vpack.c.b16 %v3934, %v3926
    %v5119 = vpack.c.b16 %v3943, %v3935
    %v5120 = vpack.c.b16 %v3944, %v3936
    %v5121 = vpack.c.b16 %v3945, %v3937
    %v5122 = vpack.c.b16 %v3946, %v3938
    %v5123 = vpack.c.b16 %v3947, %v3939
    %v5124 = vpack.c.b16 %v3948, %v3940
    %v5125 = vpack.c.b16 %v3949, %v3941
    %v5126 = vpack.c.b16 %v3950, %v3942
    %v5127 = vpack.c.b16 %v3959, %v3951
    %v5128 = vpack.c.b16 %v3960, %v3952
    %v5129 = vpack.c.b16 %v3961, %v3953
    %v5130 = vpack.c.b16 %v3962, %v3954
    %v5131 = vpack.c.b16 %v3963, %v3955
    %v5132 = vpack.c.b16 %v3964, %v3956
    %v5133 = vpack.c.b16 %v3965, %v3957
    %v5134 = vpack.c.b16 %v3966, %v3958
    %v5135 = vpack.c.b16 %v3975, %v3967
    %v5136 = vpack.c.b16 %v3976, %v3968
    %v5137 = vpack.c.b16 %v3977, %v3969
    %v5138 = vpack.c.b16 %v3978, %v3970
    %v5139 = vpack.c.b16 %v3979, %v3971
    %v5140 = vpack.c.b16 %v3980, %v3972
    %v5141 = vpack.c.b16 %v3981, %v3973
    %v5142 = vpack.c.b16 %v3982, %v3974
    %v5143 = vpack.c.b16 %v3991, %v3983
    %v5144 = vpack.c.b16 %v3992, %v3984
    %v5145 = vpack.c.b16 %v3993, %v3985
    %v5146 = vpack.c.b16 %v3994, %v3986
    %v5147 = vpack.c.b16 %v3995, %v3987
    %v5148 = vpack.c.b16 %v3996, %v3988
    %v5149 = vpack.c.b16 %v3997, %v3989
    %v5150 = vpack.c.b16 %v3998, %v3990
    %v5151 = vpack.c.b16 %v4007, %v3999
    %v5152 = vpack.c.b16 %v4008, %v4000
    %v5153 = vpack.c.b16 %v4009, %v4001
    %v5154 = vpack.c.b16 %v4010, %v4002
    %v5155 = vpack.c.b16 %v4011, %v4003
    %v5156 = vpack.c.b16 %v4012, %v4004
    %v5157 = vpack.c.b16 %v4013, %v4005
    %v5158 = vpack.c.b16 %v4014, %v4006
    %v5159 = vpack.c.b16 %v4023, %v4015
    %v5160 = vpack.c.b16 %v4024, %v4016
    %v5161 = vpack.c.b16 %v4025, %v4017
    %v5162 = vpack.c.b16 %v4026, %v4018
    %v5163 = vpack.c.b16 %v4027, %v4019
    %v5164 = vpack.c.b16 %v4028, %v4020
    %v5165 = vpack.c.b16 %v4029, %v4021
    %v5166 = vpack.c.b16 %v4030, %v4022
    %v5167 = vpack.c.b16 %v4039, %v4031
    %v5168 = vpack.c.b16 %v4040, %v4032
    %v5169 = vpack.c.b16 %v4041, %v4033
    %v5170 = vpack.c.b16 %v4042, %v4034
    %v5171 = vpack.c.b16 %v4043, %v4035
    %v5172 = vpack.c.b16 %v4044, %v4036
    %v5173 = vpack.c.b16 %v4045, %v4037
    %v5174 = vpack.c.b16 %v4046, %v4038
    %v5175 = vpack.c.b16 %v4055, %v4047
    %v5176 = vpack.c.b16 %v4056, %v4048
    %v5177 = vpack.c.b16 %v4057, %v4049
    %v5178 = vpack.c.b16 %v4058, %v4050
    %v5179 = vpack.c.b16 %v4059, %v4051
    %v5180 = vpack.c.b16 %v4060, %v4052
    %v5181 = vpack.c.b16 %v4061, %v4053
    %v5182 = vpack.c.b16 %v4062, %v4054
    %v5183 = vpack.c.b16 %v4071, %v4063
    %v5184 = vpack.c.b16 %v4072, %v4064
    %v5185 = vpack.c.b16 %v4073, %v4065
    %v5186 = vpack.c.b16 %v4074, %v4066
    %v5187 = vpack.c.b16 %v4075, %v4067
    %v5188 = vpack.c.b16 %v4076, %v4068
    %v5189 = vpack.c.b16 %v4077, %v4069
    %v5190 = vpack.c.b16 %v4078, %v4070
    %v5191 = vpack.c.b16 %v4087, %v4079
    %v5192 = vpack.c.b16 %v4088, %v4080
    %v5193 = vpack.c.b16 %v4089, %v4081
    %v5194 = vpack.c.b16 %v4090, %v4082
    %v5195 = vpack.c.b16 %v4091, %v4083
    %v5196 = vpack.c.b16 %v4092, %v4084
    %v5197 = vpack.c.b16 %v4093, %v4085
    %v5198 = vpack.c.b16 %v4094, %v4086
    %v5199 = vpack.c.b16 %v4103, %v4095
    %v5200 = vpack.c.b16 %v4104, %v4096
    %v5201 = vpack.c.b16 %v4105, %v4097
    %v5202 = vpack.c.b16 %v4106, %v4098
    %v5203 = vpack.c.b16 %v4107, %v4099
    %v5204 = vpack.c.b16 %v4108, %v4100
    %v5205 = vpack.c.b16 %v4109, %v4101
    %v5206 = vpack.c.b16 %v4110, %v4102
    %v5207 = vpack.c.b16 %v4119, %v4111
    %v5208 = vpack.c.b16 %v4120, %v4112
    %v5209 = vpack.c.b16 %v4121, %v4113
    %v5210 = vpack.c.b16 %v4122, %v4114
    %v5211 = vpack.c.b16 %v4123, %v4115
    %v5212 = vpack.c.b16 %v4124, %v4116
    %v5213 = vpack.c.b16 %v4125, %v4117
    %v5214 = vpack.c.b16 %v4126, %v4118
    %v5215 = vpack.c.b16 %v4135, %v4127
    %v5216 = vpack.c.b16 %v4136, %v4128
    %v5217 = vpack.c.b16 %v4137, %v4129
    %v5218 = vpack.c.b16 %v4138, %v4130
    %v5219 = vpack.c.b16 %v4139, %v4131
    %v5220 = vpack.c.b16 %v4140, %v4132
    %v5221 = vpack.c.b16 %v4141, %v4133
    %v5222 = vpack.c.b16 %v4142, %v4134
    %v5223 = vpack.c.b16 %v4151, %v4143
    %v5224 = vpack.c.b16 %v4152, %v4144
    %v5225 = vpack.c.b16 %v4153, %v4145
    %v5226 = vpack.c.b16 %v4154, %v4146
    %v5227 = vpack.c.b16 %v4155, %v4147
    %v5228 = vpack.c.b16 %v4156, %v4148
    %v5229 = vpack.c.b16 %v4157, %v4149
    %v5230 = vpack.c.b16 %v4158, %v4150
    %v5231 = vpack.c.b16 %v4167, %v4159
    %v5232 = vpack.c.b16 %v4168, %v4160
    %v5233 = vpack.c.b16 %v4169, %v4161
    %v5234 = vpack.c.b16 %v4170, %v4162
    %v5235 = vpack.c.b16 %v4171, %v4163
    %v5236 = vpack.c.b16 %v4172, %v4164
    %v5237 = vpack.c.b16 %v4173, %v4165
    %v5238 = vpack.c.b16 %v4174, %v4166
    %v5239 = vpack.c.b16 %v4183, %v4175
    %v5240 = vpack.c.b16 %v4184, %v4176
    %v5241 = vpack.c.b16 %v4185, %v4177
    %v5242 = vpack.c.b16 %v4186, %v4178
    %v5243 = vpack.c.b16 %v4187, %v4179
    %v5244 = vpack.c.b16 %v4188, %v4180
    %v5245 = vpack.c.b16 %v4189, %v4181
    %v5246 = vpack.c.b16 %v4190, %v4182
    %v5247 = vpack.c.b16 %v4199, %v4191
    %v5248 = vpack.c.b16 %v4200, %v4192
    %v5249 = vpack.c.b16 %v4201, %v4193
    %v5250 = vpack.c.b16 %v4202, %v4194
    %v5251 = vpack.c.b16 %v4203, %v4195
    %v5252 = vpack.c.b16 %v4204, %v4196
    %v5253 = vpack.c.b16 %v4205, %v4197
    %v5254 = vpack.c.b16 %v4206, %v4198
    %v5255 = vpack.c.b16 %v4215, %v4207
    %v5256 = vpack.c.b16 %v4216, %v4208
    %v5257 = vpack.c.b16 %v4217, %v4209
    %v5258 = vpack.c.b16 %v4218, %v4210
    %v5259 = vpack.c.b16 %v4219, %v4211
    %v5260 = vpack.c.b16 %v4220, %v4212
    %v5261 = vpack.c.b16 %v4221, %v4213
    %v5262 = vpack.c.b16 %v4222, %v4214
    %v5263 = vpack.c.b16 %v4231, %v4223
    %v5264 = vpack.c.b16 %v4232, %v4224
    %v5265 = vpack.c.b16 %v4233, %v4225
    %v5266 = vpack.c.b16 %v4234, %v4226
    %v5267 = vpack.c.b16 %v4235, %v4227
    %v5268 = vpack.c.b16 %v4236, %v4228
    %v5269 = vpack.c.b16 %v4237, %v4229
    %v5270 = vpack.c.b16 %v4238, %v4230
    %v5271 = vpack.c.b16 %v4247, %v4239
    %v5272 = vpack.c.b16 %v4248, %v4240
    %v5273 = vpack.c.b16 %v4249, %v4241
    %v5274 = vpack.c.b16 %v4250, %v4242
    %v5275 = vpack.c.b16 %v4251, %v4243
    %v5276 = vpack.c.b16 %v4252, %v4244
    %v5277 = vpack.c.b16 %v4253, %v4245
    %v5278 = vpack.c.b16 %v4254, %v4246
    %6303 = vmatpush.bf16.msra.mxu0 %v4311
    %6304 = vmatpush.bf16.msra.mxu0 %v4303
    %6305 = vmatpush.bf16.msra.mxu0 %v4295
    %6306 = vmatpush.bf16.msra.mxu0 %v4287
    %6307 = vmatpush.bf16.msra.mxu0 %v4279
    %6308 = vmatpush.bf16.msra.mxu0 %v4271
    %6309 = vmatpush.bf16.msra.mxu0 %v4263
    %6310 = vmatpush.bf16.msra.mxu0 %v4255
    %6311 = vmatmul.bf16.gmra.mxu0 %v125
    %v6312 = vpop.f32.mrf.mxu0
    %v6313 = vadd.f32 %v1167, %v6312
    %v6314 = vpop.f32.mrf.mxu0
    %6315 = vdwg.mxu0
    %6316 = vmatpush.bf16.msra.mxu0 %v4375
    %6317 = vmatpush.bf16.msra.mxu0 %v4367
    %6318 = vmatpush.bf16.msra.mxu0 %v4359
    %6319 = vmatpush.bf16.msra.mxu0 %v4351
    %6320 = vmatpush.bf16.msra.mxu0 %v4343
    %6321 = vmatpush.bf16.msra.mxu0 %v4335
    %6322 = vmatpush.bf16.msra.mxu0 %v4327
    %6323 = vmatpush.bf16.msra.mxu0 %v4319
    %6324 = vmatmul.bf16.gmra.mxu0 %v126
    %v6325 = vpop.f32.mrf.mxu0
    %v6326 = vadd.f32 %v6313, %v6325
    %v6327 = vpop.f32.mrf.mxu0
    %6328 = vdwg.mxu0
    %6329 = vmatpush.bf16.msra.mxu0 %v4439
    %6330 = vmatpush.bf16.msra.mxu0 %v4431
    %6331 = vmatpush.bf16.msra.mxu0 %v4423
    %6332 = vmatpush.bf16.msra.mxu0 %v4415
    %6333 = vmatpush.bf16.msra.mxu0 %v4407
    %6334 = vmatpush.bf16.msra.mxu0 %v4399
    %6335 = vmatpush.bf16.msra.mxu0 %v4391
    %6336 = vmatpush.bf16.msra.mxu0 %v4383
    %6337 = vmatmul.bf16.gmra.mxu0 %v127
    %v6338 = vpop.f32.mrf.mxu0
    %v6339 = vadd.f32 %v6326, %v6338
    %v6340 = vpop.f32.mrf.mxu0
    %6341 = vdwg.mxu0
    %6342 = vmatpush.bf16.msra.mxu0 %v4503
    %6343 = vmatpush.bf16.msra.mxu0 %v4495
    %6344 = vmatpush.bf16.msra.mxu0 %v4487
    %6345 = vmatpush.bf16.msra.mxu0 %v4479
    %6346 = vmatpush.bf16.msra.mxu0 %v4471
    %6347 = vmatpush.bf16.msra.mxu0 %v4463
    %6348 = vmatpush.bf16.msra.mxu0 %v4455
    %6349 = vmatpush.bf16.msra.mxu0 %v4447
    %6350 = vmatmul.bf16.gmra.mxu0 %v128
    %v6351 = vpop.f32.mrf.mxu0
    %v6352 = vadd.f32 %v6339, %v6351
    %v6353 = vpop.f32.mrf.mxu0
    %6354 = vdwg.mxu0
    %6355 = vmatpush.bf16.msra.mxu0 %v4567
    %6356 = vmatpush.bf16.msra.mxu0 %v4559
    %6357 = vmatpush.bf16.msra.mxu0 %v4551
    %6358 = vmatpush.bf16.msra.mxu0 %v4543
    %6359 = vmatpush.bf16.msra.mxu0 %v4535
    %6360 = vmatpush.bf16.msra.mxu0 %v4527
    %6361 = vmatpush.bf16.msra.mxu0 %v4519
    %6362 = vmatpush.bf16.msra.mxu0 %v4511
    %6363 = vmatmul.bf16.gmra.mxu0 %v129
    %v6364 = vpop.f32.mrf.mxu0
    %v6365 = vadd.f32 %v6352, %v6364
    %v6366 = vpop.f32.mrf.mxu0
    %6367 = vdwg.mxu0
    %6368 = vmatpush.bf16.msra.mxu0 %v4631
    %6369 = vmatpush.bf16.msra.mxu0 %v4623
    %6370 = vmatpush.bf16.msra.mxu0 %v4615
    %6371 = vmatpush.bf16.msra.mxu0 %v4607
    %6372 = vmatpush.bf16.msra.mxu0 %v4599
    %6373 = vmatpush.bf16.msra.mxu0 %v4591
    %6374 = vmatpush.bf16.msra.mxu0 %v4583
    %6375 = vmatpush.bf16.msra.mxu0 %v4575
    %6376 = vmatmul.bf16.gmra.mxu0 %v130
    %v6377 = vpop.f32.mrf.mxu0
    %v6378 = vadd.f32 %v6365, %v6377
    %v6379 = vpop.f32.mrf.mxu0
    %6380 = vdwg.mxu0
    %6381 = vmatpush.bf16.msra.mxu0 %v4695
    %6382 = vmatpush.bf16.msra.mxu0 %v4687
    %6383 = vmatpush.bf16.msra.mxu0 %v4679
    %6384 = vmatpush.bf16.msra.mxu0 %v4671
    %6385 = vmatpush.bf16.msra.mxu0 %v4663
    %6386 = vmatpush.bf16.msra.mxu0 %v4655
    %6387 = vmatpush.bf16.msra.mxu0 %v4647
    %6388 = vmatpush.bf16.msra.mxu0 %v4639
    %6389 = vmatmul.bf16.gmra.mxu0 %v131
    %v6390 = vpop.f32.mrf.mxu0
    %v6391 = vadd.f32 %v6378, %v6390
    %v6392 = vpop.f32.mrf.mxu0
    %6393 = vdwg.mxu0
    %6394 = vmatpush.bf16.msra.mxu0 %v4759
    %6395 = vmatpush.bf16.msra.mxu0 %v4751
    %6396 = vmatpush.bf16.msra.mxu0 %v4743
    %6397 = vmatpush.bf16.msra.mxu0 %v4735
    %6398 = vmatpush.bf16.msra.mxu0 %v4727
    %6399 = vmatpush.bf16.msra.mxu0 %v4719
    %6400 = vmatpush.bf16.msra.mxu0 %v4711
    %6401 = vmatpush.bf16.msra.mxu0 %v4703
    %6402 = vmatmul.bf16.gmra.mxu0 %v132
    %v6403 = vpop.f32.mrf.mxu0
    %v6404 = vadd.f32 %v6391, %v6403
    %v6405 = vpop.f32.mrf.mxu0
    %6406 = vdwg.mxu0
    %6407 = vmatpush.bf16.msra.mxu0 %v4823
    %6408 = vmatpush.bf16.msra.mxu0 %v4815
    %6409 = vmatpush.bf16.msra.mxu0 %v4807
    %6410 = vmatpush.bf16.msra.mxu0 %v4799
    %6411 = vmatpush.bf16.msra.mxu0 %v4791
    %6412 = vmatpush.bf16.msra.mxu0 %v4783
    %6413 = vmatpush.bf16.msra.mxu0 %v4775
    %6414 = vmatpush.bf16.msra.mxu0 %v4767
    %6415 = vmatmul.bf16.gmra.mxu0 %v133
    %v6416 = vpop.f32.mrf.mxu0
    %v6417 = vadd.f32 %v6404, %v6416
    %v6418 = vpop.f32.mrf.mxu0
    %6419 = vdwg.mxu0
    %6420 = vmatpush.bf16.msra.mxu0 %v4887
    %6421 = vmatpush.bf16.msra.mxu0 %v4879
    %6422 = vmatpush.bf16.msra.mxu0 %v4871
    %6423 = vmatpush.bf16.msra.mxu0 %v4863
    %6424 = vmatpush.bf16.msra.mxu0 %v4855
    %6425 = vmatpush.bf16.msra.mxu0 %v4847
    %6426 = vmatpush.bf16.msra.mxu0 %v4839
    %6427 = vmatpush.bf16.msra.mxu0 %v4831
    %6428 = vmatmul.bf16.gmra.mxu0 %v134
    %v6429 = vpop.f32.mrf.mxu0
    %v6430 = vadd.f32 %v6417, %v6429
    %v6431 = vpop.f32.mrf.mxu0
    %6432 = vdwg.mxu0
    %6433 = vmatpush.bf16.msra.mxu0 %v4951
    %6434 = vmatpush.bf16.msra.mxu0 %v4943
    %6435 = vmatpush.bf16.msra.mxu0 %v4935
    %6436 = vmatpush.bf16.msra.mxu0 %v4927
    %6437 = vmatpush.bf16.msra.mxu0 %v4919
    %6438 = vmatpush.bf16.msra.mxu0 %v4911
    %6439 = vmatpush.bf16.msra.mxu0 %v4903
    %6440 = vmatpush.bf16.msra.mxu0 %v4895
    %6441 = vmatmul.bf16.gmra.mxu0 %v135
    %v6442 = vpop.f32.mrf.mxu0
    %v6443 = vadd.f32 %v6430, %v6442
    %v6444 = vpop.f32.mrf.mxu0
    %6445 = vdwg.mxu0
    %6446 = vmatpush.bf16.msra.mxu0 %v5015
    %6447 = vmatpush.bf16.msra.mxu0 %v5007
    %6448 = vmatpush.bf16.msra.mxu0 %v4999
    %6449 = vmatpush.bf16.msra.mxu0 %v4991
    %6450 = vmatpush.bf16.msra.mxu0 %v4983
    %6451 = vmatpush.bf16.msra.mxu0 %v4975
    %6452 = vmatpush.bf16.msra.mxu0 %v4967
    %6453 = vmatpush.bf16.msra.mxu0 %v4959
    %6454 = vmatmul.bf16.gmra.mxu0 %v136
    %v6455 = vpop.f32.mrf.mxu0
    %v6456 = vadd.f32 %v6443, %v6455
    %v6457 = vpop.f32.mrf.mxu0
    %6458 = vdwg.mxu0
    %6459 = vmatpush.bf16.msra.mxu0 %v5079
    %6460 = vmatpush.bf16.msra.mxu0 %v5071
    %6461 = vmatpush.bf16.msra.mxu0 %v5063
    %6462 = vmatpush.bf16.msra.mxu0 %v5055
    %6463 = vmatpush.bf16.msra.mxu0 %v5047
    %6464 = vmatpush.bf16.msra.mxu0 %v5039
    %6465 = vmatpush.bf16.msra.mxu0 %v5031
    %6466 = vmatpush.bf16.msra.mxu0 %v5023
    %6467 = vmatmul.bf16.gmra.mxu0 %v137
    %v6468 = vpop.f32.mrf.mxu0
    %v6469 = vadd.f32 %v6456, %v6468
    %v6470 = vpop.f32.mrf.mxu0
    %6471 = vdwg.mxu0
    %6472 = vmatpush.bf16.msra.mxu0 %v5143
    %6473 = vmatpush.bf16.msra.mxu0 %v5135
    %6474 = vmatpush.bf16.msra.mxu0 %v5127
    %6475 = vmatpush.bf16.msra.mxu0 %v5119
    %6476 = vmatpush.bf16.msra.mxu0 %v5111
    %6477 = vmatpush.bf16.msra.mxu0 %v5103
    %6478 = vmatpush.bf16.msra.mxu0 %v5095
    %6479 = vmatpush.bf16.msra.mxu0 %v5087
    %6480 = vmatmul.bf16.gmra.mxu0 %v138
    %v6481 = vpop.f32.mrf.mxu0
    %v6482 = vadd.f32 %v6469, %v6481
    %v6483 = vpop.f32.mrf.mxu0
    %6484 = vdwg.mxu0
    %6485 = vmatpush.bf16.msra.mxu0 %v5207
    %6486 = vmatpush.bf16.msra.mxu0 %v5199
    %6487 = vmatpush.bf16.msra.mxu0 %v5191
    %6488 = vmatpush.bf16.msra.mxu0 %v5183
    %6489 = vmatpush.bf16.msra.mxu0 %v5175
    %6490 = vmatpush.bf16.msra.mxu0 %v5167
    %6491 = vmatpush.bf16.msra.mxu0 %v5159
    %6492 = vmatpush.bf16.msra.mxu0 %v5151
    %6493 = vmatmul.bf16.gmra.mxu0 %v139
    %v6494 = vpop.f32.mrf.mxu0
    %v6495 = vadd.f32 %v6482, %v6494
    %v6496 = vpop.f32.mrf.mxu0
    %6497 = vdwg.mxu0
    %6498 = vmatpush.bf16.msra.mxu0 %v5271
    %6499 = vmatpush.bf16.msra.mxu0 %v5263
    %6500 = vmatpush.bf16.msra.mxu0 %v5255
    %6501 = vmatpush.bf16.msra.mxu0 %v5247
    %6502 = vmatpush.bf16.msra.mxu0 %v5239
    %6503 = vmatpush.bf16.msra.mxu0 %v5231
    %6504 = vmatpush.bf16.msra.mxu0 %v5223
    %6505 = vmatpush.bf16.msra.mxu0 %v5215
    %6506 = vmatmul.bf16.gmra.mxu0 %v140
    %v6507 = vpop.f32.mrf.mxu0
    %v6508 = vadd.f32 %v6495, %v6507
    %v6509 = vpop.f32.mrf.mxu0
    %6510 = vdwg.mxu0
    %6511 = vmatpush.bf16.msra.mxu0 %v4312
    %6512 = vmatpush.bf16.msra.mxu0 %v4304
    %6513 = vmatpush.bf16.msra.mxu0 %v4296
    %6514 = vmatpush.bf16.msra.mxu0 %v4288
    %6515 = vmatpush.bf16.msra.mxu0 %v4280
    %6516 = vmatpush.bf16.msra.mxu0 %v4272
    %6517 = vmatpush.bf16.msra.mxu0 %v4264
    %6518 = vmatpush.bf16.msra.mxu0 %v4256
    %6519 = vmatmul.bf16.gmra.mxu0 %v125
    %v6520 = vpop.f32.mrf.mxu0
    %v6521 = vadd.f32 %v1168, %v6520
    %v6522 = vpop.f32.mrf.mxu0
    %6523 = vdwg.mxu0
    %6524 = vmatpush.bf16.msra.mxu0 %v4376
    %6525 = vmatpush.bf16.msra.mxu0 %v4368
    %6526 = vmatpush.bf16.msra.mxu0 %v4360
    %6527 = vmatpush.bf16.msra.mxu0 %v4352
    %6528 = vmatpush.bf16.msra.mxu0 %v4344
    %6529 = vmatpush.bf16.msra.mxu0 %v4336
    %6530 = vmatpush.bf16.msra.mxu0 %v4328
    %6531 = vmatpush.bf16.msra.mxu0 %v4320
    %6532 = vmatmul.bf16.gmra.mxu0 %v126
    %v6533 = vpop.f32.mrf.mxu0
    %v6534 = vadd.f32 %v6521, %v6533
    %v6535 = vpop.f32.mrf.mxu0
    %6536 = vdwg.mxu0
    %6537 = vmatpush.bf16.msra.mxu0 %v4440
    %6538 = vmatpush.bf16.msra.mxu0 %v4432
    %6539 = vmatpush.bf16.msra.mxu0 %v4424
    %6540 = vmatpush.bf16.msra.mxu0 %v4416
    %6541 = vmatpush.bf16.msra.mxu0 %v4408
    %6542 = vmatpush.bf16.msra.mxu0 %v4400
    %6543 = vmatpush.bf16.msra.mxu0 %v4392
    %6544 = vmatpush.bf16.msra.mxu0 %v4384
    %6545 = vmatmul.bf16.gmra.mxu0 %v127
    %v6546 = vpop.f32.mrf.mxu0
    %v6547 = vadd.f32 %v6534, %v6546
    %v6548 = vpop.f32.mrf.mxu0
    %6549 = vdwg.mxu0
    %6550 = vmatpush.bf16.msra.mxu0 %v4504
    %6551 = vmatpush.bf16.msra.mxu0 %v4496
    %6552 = vmatpush.bf16.msra.mxu0 %v4488
    %6553 = vmatpush.bf16.msra.mxu0 %v4480
    %6554 = vmatpush.bf16.msra.mxu0 %v4472
    %6555 = vmatpush.bf16.msra.mxu0 %v4464
    %6556 = vmatpush.bf16.msra.mxu0 %v4456
    %6557 = vmatpush.bf16.msra.mxu0 %v4448
    %6558 = vmatmul.bf16.gmra.mxu0 %v128
    %v6559 = vpop.f32.mrf.mxu0
    %v6560 = vadd.f32 %v6547, %v6559
    %v6561 = vpop.f32.mrf.mxu0
    %6562 = vdwg.mxu0
    %6563 = vmatpush.bf16.msra.mxu0 %v4568
    %6564 = vmatpush.bf16.msra.mxu0 %v4560
    %6565 = vmatpush.bf16.msra.mxu0 %v4552
    %6566 = vmatpush.bf16.msra.mxu0 %v4544
    %6567 = vmatpush.bf16.msra.mxu0 %v4536
    %6568 = vmatpush.bf16.msra.mxu0 %v4528
    %6569 = vmatpush.bf16.msra.mxu0 %v4520
    %6570 = vmatpush.bf16.msra.mxu0 %v4512
    %6571 = vmatmul.bf16.gmra.mxu0 %v129
    %v6572 = vpop.f32.mrf.mxu0
    %v6573 = vadd.f32 %v6560, %v6572
    %v6574 = vpop.f32.mrf.mxu0
    %6575 = vdwg.mxu0
    %6576 = vmatpush.bf16.msra.mxu0 %v4632
    %6577 = vmatpush.bf16.msra.mxu0 %v4624
    %6578 = vmatpush.bf16.msra.mxu0 %v4616
    %6579 = vmatpush.bf16.msra.mxu0 %v4608
    %6580 = vmatpush.bf16.msra.mxu0 %v4600
    %6581 = vmatpush.bf16.msra.mxu0 %v4592
    %6582 = vmatpush.bf16.msra.mxu0 %v4584
    %6583 = vmatpush.bf16.msra.mxu0 %v4576
    %6584 = vmatmul.bf16.gmra.mxu0 %v130
    %v6585 = vpop.f32.mrf.mxu0
    %v6586 = vadd.f32 %v6573, %v6585
    %v6587 = vpop.f32.mrf.mxu0
    %6588 = vdwg.mxu0
    %6589 = vmatpush.bf16.msra.mxu0 %v4696
    %6590 = vmatpush.bf16.msra.mxu0 %v4688
    %6591 = vmatpush.bf16.msra.mxu0 %v4680
    %6592 = vmatpush.bf16.msra.mxu0 %v4672
    %6593 = vmatpush.bf16.msra.mxu0 %v4664
    %6594 = vmatpush.bf16.msra.mxu0 %v4656
    %6595 = vmatpush.bf16.msra.mxu0 %v4648
    %6596 = vmatpush.bf16.msra.mxu0 %v4640
    %6597 = vmatmul.bf16.gmra.mxu0 %v131
    %v6598 = vpop.f32.mrf.mxu0
    %v6599 = vadd.f32 %v6586, %v6598
    %v6600 = vpop.f32.mrf.mxu0
    %6601 = vdwg.mxu0
    %6602 = vmatpush.bf16.msra.mxu0 %v4760
    %6603 = vmatpush.bf16.msra.mxu0 %v4752
    %6604 = vmatpush.bf16.msra.mxu0 %v4744
    %6605 = vmatpush.bf16.msra.mxu0 %v4736
    %6606 = vmatpush.bf16.msra.mxu0 %v4728
    %6607 = vmatpush.bf16.msra.mxu0 %v4720
    %6608 = vmatpush.bf16.msra.mxu0 %v4712
    %6609 = vmatpush.bf16.msra.mxu0 %v4704
    %6610 = vmatmul.bf16.gmra.mxu0 %v132
    %v6611 = vpop.f32.mrf.mxu0
    %v6612 = vadd.f32 %v6599, %v6611
    %v6613 = vpop.f32.mrf.mxu0
    %6614 = vdwg.mxu0
    %6615 = vmatpush.bf16.msra.mxu0 %v4824
    %6616 = vmatpush.bf16.msra.mxu0 %v4816
    %6617 = vmatpush.bf16.msra.mxu0 %v4808
    %6618 = vmatpush.bf16.msra.mxu0 %v4800
    %6619 = vmatpush.bf16.msra.mxu0 %v4792
    %6620 = vmatpush.bf16.msra.mxu0 %v4784
    %6621 = vmatpush.bf16.msra.mxu0 %v4776
    %6622 = vmatpush.bf16.msra.mxu0 %v4768
    %6623 = vmatmul.bf16.gmra.mxu0 %v133
    %v6624 = vpop.f32.mrf.mxu0
    %v6625 = vadd.f32 %v6612, %v6624
    %v6626 = vpop.f32.mrf.mxu0
    %6627 = vdwg.mxu0
    %6628 = vmatpush.bf16.msra.mxu0 %v4888
    %6629 = vmatpush.bf16.msra.mxu0 %v4880
    %6630 = vmatpush.bf16.msra.mxu0 %v4872
    %6631 = vmatpush.bf16.msra.mxu0 %v4864
    %6632 = vmatpush.bf16.msra.mxu0 %v4856
    %6633 = vmatpush.bf16.msra.mxu0 %v4848
    %6634 = vmatpush.bf16.msra.mxu0 %v4840
    %6635 = vmatpush.bf16.msra.mxu0 %v4832
    %6636 = vmatmul.bf16.gmra.mxu0 %v134
    %v6637 = vpop.f32.mrf.mxu0
    %v6638 = vadd.f32 %v6625, %v6637
    %v6639 = vpop.f32.mrf.mxu0
    %6640 = vdwg.mxu0
    %6641 = vmatpush.bf16.msra.mxu0 %v4952
    %6642 = vmatpush.bf16.msra.mxu0 %v4944
    %6643 = vmatpush.bf16.msra.mxu0 %v4936
    %6644 = vmatpush.bf16.msra.mxu0 %v4928
    %6645 = vmatpush.bf16.msra.mxu0 %v4920
    %6646 = vmatpush.bf16.msra.mxu0 %v4912
    %6647 = vmatpush.bf16.msra.mxu0 %v4904
    %6648 = vmatpush.bf16.msra.mxu0 %v4896
    %6649 = vmatmul.bf16.gmra.mxu0 %v135
    %v6650 = vpop.f32.mrf.mxu0
    %v6651 = vadd.f32 %v6638, %v6650
    %v6652 = vpop.f32.mrf.mxu0
    %6653 = vdwg.mxu0
    %6654 = vmatpush.bf16.msra.mxu0 %v5016
    %6655 = vmatpush.bf16.msra.mxu0 %v5008
    %6656 = vmatpush.bf16.msra.mxu0 %v5000
    %6657 = vmatpush.bf16.msra.mxu0 %v4992
    %6658 = vmatpush.bf16.msra.mxu0 %v4984
    %6659 = vmatpush.bf16.msra.mxu0 %v4976
    %6660 = vmatpush.bf16.msra.mxu0 %v4968
    %6661 = vmatpush.bf16.msra.mxu0 %v4960
    %6662 = vmatmul.bf16.gmra.mxu0 %v136
    %v6663 = vpop.f32.mrf.mxu0
    %v6664 = vadd.f32 %v6651, %v6663
    %v6665 = vpop.f32.mrf.mxu0
    %6666 = vdwg.mxu0
    %6667 = vmatpush.bf16.msra.mxu0 %v5080
    %6668 = vmatpush.bf16.msra.mxu0 %v5072
    %6669 = vmatpush.bf16.msra.mxu0 %v5064
    %6670 = vmatpush.bf16.msra.mxu0 %v5056
    %6671 = vmatpush.bf16.msra.mxu0 %v5048
    %6672 = vmatpush.bf16.msra.mxu0 %v5040
    %6673 = vmatpush.bf16.msra.mxu0 %v5032
    %6674 = vmatpush.bf16.msra.mxu0 %v5024
    %6675 = vmatmul.bf16.gmra.mxu0 %v137
    %v6676 = vpop.f32.mrf.mxu0
    %v6677 = vadd.f32 %v6664, %v6676
    %v6678 = vpop.f32.mrf.mxu0
    %6679 = vdwg.mxu0
    %6680 = vmatpush.bf16.msra.mxu0 %v5144
    %6681 = vmatpush.bf16.msra.mxu0 %v5136
    %6682 = vmatpush.bf16.msra.mxu0 %v5128
    %6683 = vmatpush.bf16.msra.mxu0 %v5120
    %6684 = vmatpush.bf16.msra.mxu0 %v5112
    %6685 = vmatpush.bf16.msra.mxu0 %v5104
    %6686 = vmatpush.bf16.msra.mxu0 %v5096
    %6687 = vmatpush.bf16.msra.mxu0 %v5088
    %6688 = vmatmul.bf16.gmra.mxu0 %v138
    %v6689 = vpop.f32.mrf.mxu0
    %v6690 = vadd.f32 %v6677, %v6689
    %v6691 = vpop.f32.mrf.mxu0
    %6692 = vdwg.mxu0
    %6693 = vmatpush.bf16.msra.mxu0 %v5208
    %6694 = vmatpush.bf16.msra.mxu0 %v5200
    %6695 = vmatpush.bf16.msra.mxu0 %v5192
    %6696 = vmatpush.bf16.msra.mxu0 %v5184
    %6697 = vmatpush.bf16.msra.mxu0 %v5176
    %6698 = vmatpush.bf16.msra.mxu0 %v5168
    %6699 = vmatpush.bf16.msra.mxu0 %v5160
    %6700 = vmatpush.bf16.msra.mxu0 %v5152
    %6701 = vmatmul.bf16.gmra.mxu0 %v139
    %v6702 = vpop.f32.mrf.mxu0
    %v6703 = vadd.f32 %v6690, %v6702
    %v6704 = vpop.f32.mrf.mxu0
    %6705 = vdwg.mxu0
    %6706 = vmatpush.bf16.msra.mxu0 %v5272
    %6707 = vmatpush.bf16.msra.mxu0 %v5264
    %6708 = vmatpush.bf16.msra.mxu0 %v5256
    %6709 = vmatpush.bf16.msra.mxu0 %v5248
    %6710 = vmatpush.bf16.msra.mxu0 %v5240
    %6711 = vmatpush.bf16.msra.mxu0 %v5232
    %6712 = vmatpush.bf16.msra.mxu0 %v5224
    %6713 = vmatpush.bf16.msra.mxu0 %v5216
    %6714 = vmatmul.bf16.gmra.mxu0 %v140
    %v6715 = vpop.f32.mrf.mxu0
    %v6716 = vadd.f32 %v6703, %v6715
    %v6717 = vpop.f32.mrf.mxu0
    %6718 = vdwg.mxu0
    %6719 = vmatpush.bf16.msra.mxu0 %v4313
    %6720 = vmatpush.bf16.msra.mxu0 %v4305
    %6721 = vmatpush.bf16.msra.mxu0 %v4297
    %6722 = vmatpush.bf16.msra.mxu0 %v4289
    %6723 = vmatpush.bf16.msra.mxu0 %v4281
    %6724 = vmatpush.bf16.msra.mxu0 %v4273
    %6725 = vmatpush.bf16.msra.mxu0 %v4265
    %6726 = vmatpush.bf16.msra.mxu0 %v4257
    %6727 = vmatmul.bf16.gmra.mxu0 %v125
    %v6728 = vpop.f32.mrf.mxu0
    %v6729 = vadd.f32 %v1169, %v6728
    %v6730 = vpop.f32.mrf.mxu0
    %6731 = vdwg.mxu0
    %6732 = vmatpush.bf16.msra.mxu0 %v4377
    %6733 = vmatpush.bf16.msra.mxu0 %v4369
    %6734 = vmatpush.bf16.msra.mxu0 %v4361
    %6735 = vmatpush.bf16.msra.mxu0 %v4353
    %6736 = vmatpush.bf16.msra.mxu0 %v4345
    %6737 = vmatpush.bf16.msra.mxu0 %v4337
    %6738 = vmatpush.bf16.msra.mxu0 %v4329
    %6739 = vmatpush.bf16.msra.mxu0 %v4321
    %6740 = vmatmul.bf16.gmra.mxu0 %v126
    %v6741 = vpop.f32.mrf.mxu0
    %v6742 = vadd.f32 %v6729, %v6741
    %v6743 = vpop.f32.mrf.mxu0
    %6744 = vdwg.mxu0
    %6745 = vmatpush.bf16.msra.mxu0 %v4441
    %6746 = vmatpush.bf16.msra.mxu0 %v4433
    %6747 = vmatpush.bf16.msra.mxu0 %v4425
    %6748 = vmatpush.bf16.msra.mxu0 %v4417
    %6749 = vmatpush.bf16.msra.mxu0 %v4409
    %6750 = vmatpush.bf16.msra.mxu0 %v4401
    %6751 = vmatpush.bf16.msra.mxu0 %v4393
    %6752 = vmatpush.bf16.msra.mxu0 %v4385
    %6753 = vmatmul.bf16.gmra.mxu0 %v127
    %v6754 = vpop.f32.mrf.mxu0
    %v6755 = vadd.f32 %v6742, %v6754
    %v6756 = vpop.f32.mrf.mxu0
    %6757 = vdwg.mxu0
    %6758 = vmatpush.bf16.msra.mxu0 %v4505
    %6759 = vmatpush.bf16.msra.mxu0 %v4497
    %6760 = vmatpush.bf16.msra.mxu0 %v4489
    %6761 = vmatpush.bf16.msra.mxu0 %v4481
    %6762 = vmatpush.bf16.msra.mxu0 %v4473
    %6763 = vmatpush.bf16.msra.mxu0 %v4465
    %6764 = vmatpush.bf16.msra.mxu0 %v4457
    %6765 = vmatpush.bf16.msra.mxu0 %v4449
    %6766 = vmatmul.bf16.gmra.mxu0 %v128
    %v6767 = vpop.f32.mrf.mxu0
    %v6768 = vadd.f32 %v6755, %v6767
    %v6769 = vpop.f32.mrf.mxu0
    %6770 = vdwg.mxu0
    %6771 = vmatpush.bf16.msra.mxu0 %v4569
    %6772 = vmatpush.bf16.msra.mxu0 %v4561
    %6773 = vmatpush.bf16.msra.mxu0 %v4553
    %6774 = vmatpush.bf16.msra.mxu0 %v4545
    %6775 = vmatpush.bf16.msra.mxu0 %v4537
    %6776 = vmatpush.bf16.msra.mxu0 %v4529
    %6777 = vmatpush.bf16.msra.mxu0 %v4521
    %6778 = vmatpush.bf16.msra.mxu0 %v4513
    %6779 = vmatmul.bf16.gmra.mxu0 %v129
    %v6780 = vpop.f32.mrf.mxu0
    %v6781 = vadd.f32 %v6768, %v6780
    %v6782 = vpop.f32.mrf.mxu0
    %6783 = vdwg.mxu0
    %6784 = vmatpush.bf16.msra.mxu0 %v4633
    %6785 = vmatpush.bf16.msra.mxu0 %v4625
    %6786 = vmatpush.bf16.msra.mxu0 %v4617
    %6787 = vmatpush.bf16.msra.mxu0 %v4609
    %6788 = vmatpush.bf16.msra.mxu0 %v4601
    %6789 = vmatpush.bf16.msra.mxu0 %v4593
    %6790 = vmatpush.bf16.msra.mxu0 %v4585
    %6791 = vmatpush.bf16.msra.mxu0 %v4577
    %6792 = vmatmul.bf16.gmra.mxu0 %v130
    %v6793 = vpop.f32.mrf.mxu0
    %v6794 = vadd.f32 %v6781, %v6793
    %v6795 = vpop.f32.mrf.mxu0
    %6796 = vdwg.mxu0
    %6797 = vmatpush.bf16.msra.mxu0 %v4697
    %6798 = vmatpush.bf16.msra.mxu0 %v4689
    %6799 = vmatpush.bf16.msra.mxu0 %v4681
    %6800 = vmatpush.bf16.msra.mxu0 %v4673
    %6801 = vmatpush.bf16.msra.mxu0 %v4665
    %6802 = vmatpush.bf16.msra.mxu0 %v4657
    %6803 = vmatpush.bf16.msra.mxu0 %v4649
    %6804 = vmatpush.bf16.msra.mxu0 %v4641
    %6805 = vmatmul.bf16.gmra.mxu0 %v131
    %v6806 = vpop.f32.mrf.mxu0
    %v6807 = vadd.f32 %v6794, %v6806
    %v6808 = vpop.f32.mrf.mxu0
    %6809 = vdwg.mxu0
    %6810 = vmatpush.bf16.msra.mxu0 %v4761
    %6811 = vmatpush.bf16.msra.mxu0 %v4753
    %6812 = vmatpush.bf16.msra.mxu0 %v4745
    %6813 = vmatpush.bf16.msra.mxu0 %v4737
    %6814 = vmatpush.bf16.msra.mxu0 %v4729
    %6815 = vmatpush.bf16.msra.mxu0 %v4721
    %6816 = vmatpush.bf16.msra.mxu0 %v4713
    %6817 = vmatpush.bf16.msra.mxu0 %v4705
    %6818 = vmatmul.bf16.gmra.mxu0 %v132
    %v6819 = vpop.f32.mrf.mxu0
    %v6820 = vadd.f32 %v6807, %v6819
    %v6821 = vpop.f32.mrf.mxu0
    %6822 = vdwg.mxu0
    %6823 = vmatpush.bf16.msra.mxu0 %v4825
    %6824 = vmatpush.bf16.msra.mxu0 %v4817
    %6825 = vmatpush.bf16.msra.mxu0 %v4809
    %6826 = vmatpush.bf16.msra.mxu0 %v4801
    %6827 = vmatpush.bf16.msra.mxu0 %v4793
    %6828 = vmatpush.bf16.msra.mxu0 %v4785
    %6829 = vmatpush.bf16.msra.mxu0 %v4777
    %6830 = vmatpush.bf16.msra.mxu0 %v4769
    %6831 = vmatmul.bf16.gmra.mxu0 %v133
    %v6832 = vpop.f32.mrf.mxu0
    %v6833 = vadd.f32 %v6820, %v6832
    %v6834 = vpop.f32.mrf.mxu0
    %6835 = vdwg.mxu0
    %6836 = vmatpush.bf16.msra.mxu0 %v4889
    %6837 = vmatpush.bf16.msra.mxu0 %v4881
    %6838 = vmatpush.bf16.msra.mxu0 %v4873
    %6839 = vmatpush.bf16.msra.mxu0 %v4865
    %6840 = vmatpush.bf16.msra.mxu0 %v4857
    %6841 = vmatpush.bf16.msra.mxu0 %v4849
    %6842 = vmatpush.bf16.msra.mxu0 %v4841
    %6843 = vmatpush.bf16.msra.mxu0 %v4833
    %6844 = vmatmul.bf16.gmra.mxu0 %v134
    %v6845 = vpop.f32.mrf.mxu0
    %v6846 = vadd.f32 %v6833, %v6845
    %v6847 = vpop.f32.mrf.mxu0
    %6848 = vdwg.mxu0
    %6849 = vmatpush.bf16.msra.mxu0 %v4953
    %6850 = vmatpush.bf16.msra.mxu0 %v4945
    %6851 = vmatpush.bf16.msra.mxu0 %v4937
    %6852 = vmatpush.bf16.msra.mxu0 %v4929
    %6853 = vmatpush.bf16.msra.mxu0 %v4921
    %6854 = vmatpush.bf16.msra.mxu0 %v4913
    %6855 = vmatpush.bf16.msra.mxu0 %v4905
    %6856 = vmatpush.bf16.msra.mxu0 %v4897
    %6857 = vmatmul.bf16.gmra.mxu0 %v135
    %v6858 = vpop.f32.mrf.mxu0
    %v6859 = vadd.f32 %v6846, %v6858
    %v6860 = vpop.f32.mrf.mxu0
    %6861 = vdwg.mxu0
    %6862 = vmatpush.bf16.msra.mxu0 %v5017
    %6863 = vmatpush.bf16.msra.mxu0 %v5009
    %6864 = vmatpush.bf16.msra.mxu0 %v5001
    %6865 = vmatpush.bf16.msra.mxu0 %v4993
    %6866 = vmatpush.bf16.msra.mxu0 %v4985
    %6867 = vmatpush.bf16.msra.mxu0 %v4977
    %6868 = vmatpush.bf16.msra.mxu0 %v4969
    %6869 = vmatpush.bf16.msra.mxu0 %v4961
    %6870 = vmatmul.bf16.gmra.mxu0 %v136
    %v6871 = vpop.f32.mrf.mxu0
    %v6872 = vadd.f32 %v6859, %v6871
    %v6873 = vpop.f32.mrf.mxu0
    %6874 = vdwg.mxu0
    %6875 = vmatpush.bf16.msra.mxu0 %v5081
    %6876 = vmatpush.bf16.msra.mxu0 %v5073
    %6877 = vmatpush.bf16.msra.mxu0 %v5065
    %6878 = vmatpush.bf16.msra.mxu0 %v5057
    %6879 = vmatpush.bf16.msra.mxu0 %v5049
    %6880 = vmatpush.bf16.msra.mxu0 %v5041
    %6881 = vmatpush.bf16.msra.mxu0 %v5033
    %6882 = vmatpush.bf16.msra.mxu0 %v5025
    %6883 = vmatmul.bf16.gmra.mxu0 %v137
    %v6884 = vpop.f32.mrf.mxu0
    %v6885 = vadd.f32 %v6872, %v6884
    %v6886 = vpop.f32.mrf.mxu0
    %6887 = vdwg.mxu0
    %6888 = vmatpush.bf16.msra.mxu0 %v5145
    %6889 = vmatpush.bf16.msra.mxu0 %v5137
    %6890 = vmatpush.bf16.msra.mxu0 %v5129
    %6891 = vmatpush.bf16.msra.mxu0 %v5121
    %6892 = vmatpush.bf16.msra.mxu0 %v5113
    %6893 = vmatpush.bf16.msra.mxu0 %v5105
    %6894 = vmatpush.bf16.msra.mxu0 %v5097
    %6895 = vmatpush.bf16.msra.mxu0 %v5089
    %6896 = vmatmul.bf16.gmra.mxu0 %v138
    %v6897 = vpop.f32.mrf.mxu0
    %v6898 = vadd.f32 %v6885, %v6897
    %v6899 = vpop.f32.mrf.mxu0
    %6900 = vdwg.mxu0
    %6901 = vmatpush.bf16.msra.mxu0 %v5209
    %6902 = vmatpush.bf16.msra.mxu0 %v5201
    %6903 = vmatpush.bf16.msra.mxu0 %v5193
    %6904 = vmatpush.bf16.msra.mxu0 %v5185
    %6905 = vmatpush.bf16.msra.mxu0 %v5177
    %6906 = vmatpush.bf16.msra.mxu0 %v5169
    %6907 = vmatpush.bf16.msra.mxu0 %v5161
    %6908 = vmatpush.bf16.msra.mxu0 %v5153
    %6909 = vmatmul.bf16.gmra.mxu0 %v139
    %v6910 = vpop.f32.mrf.mxu0
    %v6911 = vadd.f32 %v6898, %v6910
    %v6912 = vpop.f32.mrf.mxu0
    %6913 = vdwg.mxu0
    %6914 = vmatpush.bf16.msra.mxu0 %v5273
    %6915 = vmatpush.bf16.msra.mxu0 %v5265
    %6916 = vmatpush.bf16.msra.mxu0 %v5257
    %6917 = vmatpush.bf16.msra.mxu0 %v5249
    %6918 = vmatpush.bf16.msra.mxu0 %v5241
    %6919 = vmatpush.bf16.msra.mxu0 %v5233
    %6920 = vmatpush.bf16.msra.mxu0 %v5225
    %6921 = vmatpush.bf16.msra.mxu0 %v5217
    %6922 = vmatmul.bf16.gmra.mxu0 %v140
    %v6923 = vpop.f32.mrf.mxu0
    %v6924 = vadd.f32 %v6911, %v6923
    %v6925 = vpop.f32.mrf.mxu0
    %6926 = vdwg.mxu0
    %6927 = vmatpush.bf16.msra.mxu0 %v4314
    %6928 = vmatpush.bf16.msra.mxu0 %v4306
    %6929 = vmatpush.bf16.msra.mxu0 %v4298
    %6930 = vmatpush.bf16.msra.mxu0 %v4290
    %6931 = vmatpush.bf16.msra.mxu0 %v4282
    %6932 = vmatpush.bf16.msra.mxu0 %v4274
    %6933 = vmatpush.bf16.msra.mxu0 %v4266
    %6934 = vmatpush.bf16.msra.mxu0 %v4258
    %6935 = vmatmul.bf16.gmra.mxu0 %v125
    %v6936 = vpop.f32.mrf.mxu0
    %v6937 = vadd.f32 %v1170, %v6936
    %v6938 = vpop.f32.mrf.mxu0
    %6939 = vdwg.mxu0
    %6940 = vmatpush.bf16.msra.mxu0 %v4378
    %6941 = vmatpush.bf16.msra.mxu0 %v4370
    %6942 = vmatpush.bf16.msra.mxu0 %v4362
    %6943 = vmatpush.bf16.msra.mxu0 %v4354
    %6944 = vmatpush.bf16.msra.mxu0 %v4346
    %6945 = vmatpush.bf16.msra.mxu0 %v4338
    %6946 = vmatpush.bf16.msra.mxu0 %v4330
    %6947 = vmatpush.bf16.msra.mxu0 %v4322
    %6948 = vmatmul.bf16.gmra.mxu0 %v126
    %v6949 = vpop.f32.mrf.mxu0
    %v6950 = vadd.f32 %v6937, %v6949
    %v6951 = vpop.f32.mrf.mxu0
    %6952 = vdwg.mxu0
    %6953 = vmatpush.bf16.msra.mxu0 %v4442
    %6954 = vmatpush.bf16.msra.mxu0 %v4434
    %6955 = vmatpush.bf16.msra.mxu0 %v4426
    %6956 = vmatpush.bf16.msra.mxu0 %v4418
    %6957 = vmatpush.bf16.msra.mxu0 %v4410
    %6958 = vmatpush.bf16.msra.mxu0 %v4402
    %6959 = vmatpush.bf16.msra.mxu0 %v4394
    %6960 = vmatpush.bf16.msra.mxu0 %v4386
    %6961 = vmatmul.bf16.gmra.mxu0 %v127
    %v6962 = vpop.f32.mrf.mxu0
    %v6963 = vadd.f32 %v6950, %v6962
    %v6964 = vpop.f32.mrf.mxu0
    %6965 = vdwg.mxu0
    %6966 = vmatpush.bf16.msra.mxu0 %v4506
    %6967 = vmatpush.bf16.msra.mxu0 %v4498
    %6968 = vmatpush.bf16.msra.mxu0 %v4490
    %6969 = vmatpush.bf16.msra.mxu0 %v4482
    %6970 = vmatpush.bf16.msra.mxu0 %v4474
    %6971 = vmatpush.bf16.msra.mxu0 %v4466
    %6972 = vmatpush.bf16.msra.mxu0 %v4458
    %6973 = vmatpush.bf16.msra.mxu0 %v4450
    %6974 = vmatmul.bf16.gmra.mxu0 %v128
    %v6975 = vpop.f32.mrf.mxu0
    %v6976 = vadd.f32 %v6963, %v6975
    %v6977 = vpop.f32.mrf.mxu0
    %6978 = vdwg.mxu0
    %6979 = vmatpush.bf16.msra.mxu0 %v4570
    %6980 = vmatpush.bf16.msra.mxu0 %v4562
    %6981 = vmatpush.bf16.msra.mxu0 %v4554
    %6982 = vmatpush.bf16.msra.mxu0 %v4546
    %6983 = vmatpush.bf16.msra.mxu0 %v4538
    %6984 = vmatpush.bf16.msra.mxu0 %v4530
    %6985 = vmatpush.bf16.msra.mxu0 %v4522
    %6986 = vmatpush.bf16.msra.mxu0 %v4514
    %6987 = vmatmul.bf16.gmra.mxu0 %v129
    %v6988 = vpop.f32.mrf.mxu0
    %v6989 = vadd.f32 %v6976, %v6988
    %v6990 = vpop.f32.mrf.mxu0
    %6991 = vdwg.mxu0
    %6992 = vmatpush.bf16.msra.mxu0 %v4634
    %6993 = vmatpush.bf16.msra.mxu0 %v4626
    %6994 = vmatpush.bf16.msra.mxu0 %v4618
    %6995 = vmatpush.bf16.msra.mxu0 %v4610
    %6996 = vmatpush.bf16.msra.mxu0 %v4602
    %6997 = vmatpush.bf16.msra.mxu0 %v4594
    %6998 = vmatpush.bf16.msra.mxu0 %v4586
    %6999 = vmatpush.bf16.msra.mxu0 %v4578
    %7000 = vmatmul.bf16.gmra.mxu0 %v130
    %v7001 = vpop.f32.mrf.mxu0
    %v7002 = vadd.f32 %v6989, %v7001
    %v7003 = vpop.f32.mrf.mxu0
    %7004 = vdwg.mxu0
    %7005 = vmatpush.bf16.msra.mxu0 %v4698
    %7006 = vmatpush.bf16.msra.mxu0 %v4690
    %7007 = vmatpush.bf16.msra.mxu0 %v4682
    %7008 = vmatpush.bf16.msra.mxu0 %v4674
    %7009 = vmatpush.bf16.msra.mxu0 %v4666
    %7010 = vmatpush.bf16.msra.mxu0 %v4658
    %7011 = vmatpush.bf16.msra.mxu0 %v4650
    %7012 = vmatpush.bf16.msra.mxu0 %v4642
    %7013 = vmatmul.bf16.gmra.mxu0 %v131
    %v7014 = vpop.f32.mrf.mxu0
    %v7015 = vadd.f32 %v7002, %v7014
    %v7016 = vpop.f32.mrf.mxu0
    %7017 = vdwg.mxu0
    %7018 = vmatpush.bf16.msra.mxu0 %v4762
    %7019 = vmatpush.bf16.msra.mxu0 %v4754
    %7020 = vmatpush.bf16.msra.mxu0 %v4746
    %7021 = vmatpush.bf16.msra.mxu0 %v4738
    %7022 = vmatpush.bf16.msra.mxu0 %v4730
    %7023 = vmatpush.bf16.msra.mxu0 %v4722
    %7024 = vmatpush.bf16.msra.mxu0 %v4714
    %7025 = vmatpush.bf16.msra.mxu0 %v4706
    %7026 = vmatmul.bf16.gmra.mxu0 %v132
    %v7027 = vpop.f32.mrf.mxu0
    %v7028 = vadd.f32 %v7015, %v7027
    %v7029 = vpop.f32.mrf.mxu0
    %7030 = vdwg.mxu0
    %7031 = vmatpush.bf16.msra.mxu0 %v4826
    %7032 = vmatpush.bf16.msra.mxu0 %v4818
    %7033 = vmatpush.bf16.msra.mxu0 %v4810
    %7034 = vmatpush.bf16.msra.mxu0 %v4802
    %7035 = vmatpush.bf16.msra.mxu0 %v4794
    %7036 = vmatpush.bf16.msra.mxu0 %v4786
    %7037 = vmatpush.bf16.msra.mxu0 %v4778
    %7038 = vmatpush.bf16.msra.mxu0 %v4770
    %7039 = vmatmul.bf16.gmra.mxu0 %v133
    %v7040 = vpop.f32.mrf.mxu0
    %v7041 = vadd.f32 %v7028, %v7040
    %v7042 = vpop.f32.mrf.mxu0
    %7043 = vdwg.mxu0
    %7044 = vmatpush.bf16.msra.mxu0 %v4890
    %7045 = vmatpush.bf16.msra.mxu0 %v4882
    %7046 = vmatpush.bf16.msra.mxu0 %v4874
    %7047 = vmatpush.bf16.msra.mxu0 %v4866
    %7048 = vmatpush.bf16.msra.mxu0 %v4858
    %7049 = vmatpush.bf16.msra.mxu0 %v4850
    %7050 = vmatpush.bf16.msra.mxu0 %v4842
    %7051 = vmatpush.bf16.msra.mxu0 %v4834
    %7052 = vmatmul.bf16.gmra.mxu0 %v134
    %v7053 = vpop.f32.mrf.mxu0
    %v7054 = vadd.f32 %v7041, %v7053
    %v7055 = vpop.f32.mrf.mxu0
    %7056 = vdwg.mxu0
    %7057 = vmatpush.bf16.msra.mxu0 %v4954
    %7058 = vmatpush.bf16.msra.mxu0 %v4946
    %7059 = vmatpush.bf16.msra.mxu0 %v4938
    %7060 = vmatpush.bf16.msra.mxu0 %v4930
    %7061 = vmatpush.bf16.msra.mxu0 %v4922
    %7062 = vmatpush.bf16.msra.mxu0 %v4914
    %7063 = vmatpush.bf16.msra.mxu0 %v4906
    %7064 = vmatpush.bf16.msra.mxu0 %v4898
    %7065 = vmatmul.bf16.gmra.mxu0 %v135
    %v7066 = vpop.f32.mrf.mxu0
    %v7067 = vadd.f32 %v7054, %v7066
    %v7068 = vpop.f32.mrf.mxu0
    %7069 = vdwg.mxu0
    %7070 = vmatpush.bf16.msra.mxu0 %v5018
    %7071 = vmatpush.bf16.msra.mxu0 %v5010
    %7072 = vmatpush.bf16.msra.mxu0 %v5002
    %7073 = vmatpush.bf16.msra.mxu0 %v4994
    %7074 = vmatpush.bf16.msra.mxu0 %v4986
    %7075 = vmatpush.bf16.msra.mxu0 %v4978
    %7076 = vmatpush.bf16.msra.mxu0 %v4970
    %7077 = vmatpush.bf16.msra.mxu0 %v4962
    %7078 = vmatmul.bf16.gmra.mxu0 %v136
    %v7079 = vpop.f32.mrf.mxu0
    %v7080 = vadd.f32 %v7067, %v7079
    %v7081 = vpop.f32.mrf.mxu0
    %7082 = vdwg.mxu0
    %7083 = vmatpush.bf16.msra.mxu0 %v5082
    %7084 = vmatpush.bf16.msra.mxu0 %v5074
    %7085 = vmatpush.bf16.msra.mxu0 %v5066
    %7086 = vmatpush.bf16.msra.mxu0 %v5058
    %7087 = vmatpush.bf16.msra.mxu0 %v5050
    %7088 = vmatpush.bf16.msra.mxu0 %v5042
    %7089 = vmatpush.bf16.msra.mxu0 %v5034
    %7090 = vmatpush.bf16.msra.mxu0 %v5026
    %7091 = vmatmul.bf16.gmra.mxu0 %v137
    %v7092 = vpop.f32.mrf.mxu0
    %v7093 = vadd.f32 %v7080, %v7092
    %v7094 = vpop.f32.mrf.mxu0
    %7095 = vdwg.mxu0
    %7096 = vmatpush.bf16.msra.mxu0 %v5146
    %7097 = vmatpush.bf16.msra.mxu0 %v5138
    %7098 = vmatpush.bf16.msra.mxu0 %v5130
    %7099 = vmatpush.bf16.msra.mxu0 %v5122
    %7100 = vmatpush.bf16.msra.mxu0 %v5114
    %7101 = vmatpush.bf16.msra.mxu0 %v5106
    %7102 = vmatpush.bf16.msra.mxu0 %v5098
    %7103 = vmatpush.bf16.msra.mxu0 %v5090
    %7104 = vmatmul.bf16.gmra.mxu0 %v138
    %v7105 = vpop.f32.mrf.mxu0
    %v7106 = vadd.f32 %v7093, %v7105
    %v7107 = vpop.f32.mrf.mxu0
    %7108 = vdwg.mxu0
    %7109 = vmatpush.bf16.msra.mxu0 %v5210
    %7110 = vmatpush.bf16.msra.mxu0 %v5202
    %7111 = vmatpush.bf16.msra.mxu0 %v5194
    %7112 = vmatpush.bf16.msra.mxu0 %v5186
    %7113 = vmatpush.bf16.msra.mxu0 %v5178
    %7114 = vmatpush.bf16.msra.mxu0 %v5170
    %7115 = vmatpush.bf16.msra.mxu0 %v5162
    %7116 = vmatpush.bf16.msra.mxu0 %v5154
    %7117 = vmatmul.bf16.gmra.mxu0 %v139
    %v7118 = vpop.f32.mrf.mxu0
    %v7119 = vadd.f32 %v7106, %v7118
    %v7120 = vpop.f32.mrf.mxu0
    %7121 = vdwg.mxu0
    %7122 = vmatpush.bf16.msra.mxu0 %v5274
    %7123 = vmatpush.bf16.msra.mxu0 %v5266
    %7124 = vmatpush.bf16.msra.mxu0 %v5258
    %7125 = vmatpush.bf16.msra.mxu0 %v5250
    %7126 = vmatpush.bf16.msra.mxu0 %v5242
    %7127 = vmatpush.bf16.msra.mxu0 %v5234
    %7128 = vmatpush.bf16.msra.mxu0 %v5226
    %7129 = vmatpush.bf16.msra.mxu0 %v5218
    %7130 = vmatmul.bf16.gmra.mxu0 %v140
    %v7131 = vpop.f32.mrf.mxu0
    %v7132 = vadd.f32 %v7119, %v7131
    %v7133 = vpop.f32.mrf.mxu0
    %7134 = vdwg.mxu0
    %7135 = vmatpush.bf16.msra.mxu0 %v4315
    %7136 = vmatpush.bf16.msra.mxu0 %v4307
    %7137 = vmatpush.bf16.msra.mxu0 %v4299
    %7138 = vmatpush.bf16.msra.mxu0 %v4291
    %7139 = vmatpush.bf16.msra.mxu0 %v4283
    %7140 = vmatpush.bf16.msra.mxu0 %v4275
    %7141 = vmatpush.bf16.msra.mxu0 %v4267
    %7142 = vmatpush.bf16.msra.mxu0 %v4259
    %7143 = vmatmul.bf16.gmra.mxu0 %v125
    %v7144 = vpop.f32.mrf.mxu0
    %v7145 = vadd.f32 %v1171, %v7144
    %v7146 = vpop.f32.mrf.mxu0
    %7147 = vdwg.mxu0
    %7148 = vmatpush.bf16.msra.mxu0 %v4379
    %7149 = vmatpush.bf16.msra.mxu0 %v4371
    %7150 = vmatpush.bf16.msra.mxu0 %v4363
    %7151 = vmatpush.bf16.msra.mxu0 %v4355
    %7152 = vmatpush.bf16.msra.mxu0 %v4347
    %7153 = vmatpush.bf16.msra.mxu0 %v4339
    %7154 = vmatpush.bf16.msra.mxu0 %v4331
    %7155 = vmatpush.bf16.msra.mxu0 %v4323
    %7156 = vmatmul.bf16.gmra.mxu0 %v126
    %v7157 = vpop.f32.mrf.mxu0
    %v7158 = vadd.f32 %v7145, %v7157
    %v7159 = vpop.f32.mrf.mxu0
    %7160 = vdwg.mxu0
    %7161 = vmatpush.bf16.msra.mxu0 %v4443
    %7162 = vmatpush.bf16.msra.mxu0 %v4435
    %7163 = vmatpush.bf16.msra.mxu0 %v4427
    %7164 = vmatpush.bf16.msra.mxu0 %v4419
    %7165 = vmatpush.bf16.msra.mxu0 %v4411
    %7166 = vmatpush.bf16.msra.mxu0 %v4403
    %7167 = vmatpush.bf16.msra.mxu0 %v4395
    %7168 = vmatpush.bf16.msra.mxu0 %v4387
    %7169 = vmatmul.bf16.gmra.mxu0 %v127
    %v7170 = vpop.f32.mrf.mxu0
    %v7171 = vadd.f32 %v7158, %v7170
    %v7172 = vpop.f32.mrf.mxu0
    %7173 = vdwg.mxu0
    %7174 = vmatpush.bf16.msra.mxu0 %v4507
    %7175 = vmatpush.bf16.msra.mxu0 %v4499
    %7176 = vmatpush.bf16.msra.mxu0 %v4491
    %7177 = vmatpush.bf16.msra.mxu0 %v4483
    %7178 = vmatpush.bf16.msra.mxu0 %v4475
    %7179 = vmatpush.bf16.msra.mxu0 %v4467
    %7180 = vmatpush.bf16.msra.mxu0 %v4459
    %7181 = vmatpush.bf16.msra.mxu0 %v4451
    %7182 = vmatmul.bf16.gmra.mxu0 %v128
    %v7183 = vpop.f32.mrf.mxu0
    %v7184 = vadd.f32 %v7171, %v7183
    %v7185 = vpop.f32.mrf.mxu0
    %7186 = vdwg.mxu0
    %7187 = vmatpush.bf16.msra.mxu0 %v4571
    %7188 = vmatpush.bf16.msra.mxu0 %v4563
    %7189 = vmatpush.bf16.msra.mxu0 %v4555
    %7190 = vmatpush.bf16.msra.mxu0 %v4547
    %7191 = vmatpush.bf16.msra.mxu0 %v4539
    %7192 = vmatpush.bf16.msra.mxu0 %v4531
    %7193 = vmatpush.bf16.msra.mxu0 %v4523
    %7194 = vmatpush.bf16.msra.mxu0 %v4515
    %7195 = vmatmul.bf16.gmra.mxu0 %v129
    %v7196 = vpop.f32.mrf.mxu0
    %v7197 = vadd.f32 %v7184, %v7196
    %v7198 = vpop.f32.mrf.mxu0
    %7199 = vdwg.mxu0
    %7200 = vmatpush.bf16.msra.mxu0 %v4635
    %7201 = vmatpush.bf16.msra.mxu0 %v4627
    %7202 = vmatpush.bf16.msra.mxu0 %v4619
    %7203 = vmatpush.bf16.msra.mxu0 %v4611
    %7204 = vmatpush.bf16.msra.mxu0 %v4603
    %7205 = vmatpush.bf16.msra.mxu0 %v4595
    %7206 = vmatpush.bf16.msra.mxu0 %v4587
    %7207 = vmatpush.bf16.msra.mxu0 %v4579
    %7208 = vmatmul.bf16.gmra.mxu0 %v130
    %v7209 = vpop.f32.mrf.mxu0
    %v7210 = vadd.f32 %v7197, %v7209
    %v7211 = vpop.f32.mrf.mxu0
    %7212 = vdwg.mxu0
    %7213 = vmatpush.bf16.msra.mxu0 %v4699
    %7214 = vmatpush.bf16.msra.mxu0 %v4691
    %7215 = vmatpush.bf16.msra.mxu0 %v4683
    %7216 = vmatpush.bf16.msra.mxu0 %v4675
    %7217 = vmatpush.bf16.msra.mxu0 %v4667
    %7218 = vmatpush.bf16.msra.mxu0 %v4659
    %7219 = vmatpush.bf16.msra.mxu0 %v4651
    %7220 = vmatpush.bf16.msra.mxu0 %v4643
    %7221 = vmatmul.bf16.gmra.mxu0 %v131
    %v7222 = vpop.f32.mrf.mxu0
    %v7223 = vadd.f32 %v7210, %v7222
    %v7224 = vpop.f32.mrf.mxu0
    %7225 = vdwg.mxu0
    %7226 = vmatpush.bf16.msra.mxu0 %v4763
    %7227 = vmatpush.bf16.msra.mxu0 %v4755
    %7228 = vmatpush.bf16.msra.mxu0 %v4747
    %7229 = vmatpush.bf16.msra.mxu0 %v4739
    %7230 = vmatpush.bf16.msra.mxu0 %v4731
    %7231 = vmatpush.bf16.msra.mxu0 %v4723
    %7232 = vmatpush.bf16.msra.mxu0 %v4715
    %7233 = vmatpush.bf16.msra.mxu0 %v4707
    %7234 = vmatmul.bf16.gmra.mxu0 %v132
    %v7235 = vpop.f32.mrf.mxu0
    %v7236 = vadd.f32 %v7223, %v7235
    %v7237 = vpop.f32.mrf.mxu0
    %7238 = vdwg.mxu0
    %7239 = vmatpush.bf16.msra.mxu0 %v4827
    %7240 = vmatpush.bf16.msra.mxu0 %v4819
    %7241 = vmatpush.bf16.msra.mxu0 %v4811
    %7242 = vmatpush.bf16.msra.mxu0 %v4803
    %7243 = vmatpush.bf16.msra.mxu0 %v4795
    %7244 = vmatpush.bf16.msra.mxu0 %v4787
    %7245 = vmatpush.bf16.msra.mxu0 %v4779
    %7246 = vmatpush.bf16.msra.mxu0 %v4771
    %7247 = vmatmul.bf16.gmra.mxu0 %v133
    %v7248 = vpop.f32.mrf.mxu0
    %v7249 = vadd.f32 %v7236, %v7248
    %v7250 = vpop.f32.mrf.mxu0
    %7251 = vdwg.mxu0
    %7252 = vmatpush.bf16.msra.mxu0 %v4891
    %7253 = vmatpush.bf16.msra.mxu0 %v4883
    %7254 = vmatpush.bf16.msra.mxu0 %v4875
    %7255 = vmatpush.bf16.msra.mxu0 %v4867
    %7256 = vmatpush.bf16.msra.mxu0 %v4859
    %7257 = vmatpush.bf16.msra.mxu0 %v4851
    %7258 = vmatpush.bf16.msra.mxu0 %v4843
    %7259 = vmatpush.bf16.msra.mxu0 %v4835
    %7260 = vmatmul.bf16.gmra.mxu0 %v134
    %v7261 = vpop.f32.mrf.mxu0
    %v7262 = vadd.f32 %v7249, %v7261
    %v7263 = vpop.f32.mrf.mxu0
    %7264 = vdwg.mxu0
    %7265 = vmatpush.bf16.msra.mxu0 %v4955
    %7266 = vmatpush.bf16.msra.mxu0 %v4947
    %7267 = vmatpush.bf16.msra.mxu0 %v4939
    %7268 = vmatpush.bf16.msra.mxu0 %v4931
    %7269 = vmatpush.bf16.msra.mxu0 %v4923
    %7270 = vmatpush.bf16.msra.mxu0 %v4915
    %7271 = vmatpush.bf16.msra.mxu0 %v4907
    %7272 = vmatpush.bf16.msra.mxu0 %v4899
    %7273 = vmatmul.bf16.gmra.mxu0 %v135
    %v7274 = vpop.f32.mrf.mxu0
    %v7275 = vadd.f32 %v7262, %v7274
    %v7276 = vpop.f32.mrf.mxu0
    %7277 = vdwg.mxu0
    %7278 = vmatpush.bf16.msra.mxu0 %v5019
    %7279 = vmatpush.bf16.msra.mxu0 %v5011
    %7280 = vmatpush.bf16.msra.mxu0 %v5003
    %7281 = vmatpush.bf16.msra.mxu0 %v4995
    %7282 = vmatpush.bf16.msra.mxu0 %v4987
    %7283 = vmatpush.bf16.msra.mxu0 %v4979
    %7284 = vmatpush.bf16.msra.mxu0 %v4971
    %7285 = vmatpush.bf16.msra.mxu0 %v4963
    %7286 = vmatmul.bf16.gmra.mxu0 %v136
    %v7287 = vpop.f32.mrf.mxu0
    %v7288 = vadd.f32 %v7275, %v7287
    %v7289 = vpop.f32.mrf.mxu0
    %7290 = vdwg.mxu0
    %7291 = vmatpush.bf16.msra.mxu0 %v5083
    %7292 = vmatpush.bf16.msra.mxu0 %v5075
    %7293 = vmatpush.bf16.msra.mxu0 %v5067
    %7294 = vmatpush.bf16.msra.mxu0 %v5059
    %7295 = vmatpush.bf16.msra.mxu0 %v5051
    %7296 = vmatpush.bf16.msra.mxu0 %v5043
    %7297 = vmatpush.bf16.msra.mxu0 %v5035
    %7298 = vmatpush.bf16.msra.mxu0 %v5027
    %7299 = vmatmul.bf16.gmra.mxu0 %v137
    %v7300 = vpop.f32.mrf.mxu0
    %v7301 = vadd.f32 %v7288, %v7300
    %v7302 = vpop.f32.mrf.mxu0
    %7303 = vdwg.mxu0
    %7304 = vmatpush.bf16.msra.mxu0 %v5147
    %7305 = vmatpush.bf16.msra.mxu0 %v5139
    %7306 = vmatpush.bf16.msra.mxu0 %v5131
    %7307 = vmatpush.bf16.msra.mxu0 %v5123
    %7308 = vmatpush.bf16.msra.mxu0 %v5115
    %7309 = vmatpush.bf16.msra.mxu0 %v5107
    %7310 = vmatpush.bf16.msra.mxu0 %v5099
    %7311 = vmatpush.bf16.msra.mxu0 %v5091
    %7312 = vmatmul.bf16.gmra.mxu0 %v138
    %v7313 = vpop.f32.mrf.mxu0
    %v7314 = vadd.f32 %v7301, %v7313
    %v7315 = vpop.f32.mrf.mxu0
    %7316 = vdwg.mxu0
    %7317 = vmatpush.bf16.msra.mxu0 %v5211
    %7318 = vmatpush.bf16.msra.mxu0 %v5203
    %7319 = vmatpush.bf16.msra.mxu0 %v5195
    %7320 = vmatpush.bf16.msra.mxu0 %v5187
    %7321 = vmatpush.bf16.msra.mxu0 %v5179
    %7322 = vmatpush.bf16.msra.mxu0 %v5171
    %7323 = vmatpush.bf16.msra.mxu0 %v5163
    %7324 = vmatpush.bf16.msra.mxu0 %v5155
    %7325 = vmatmul.bf16.gmra.mxu0 %v139
    %v7326 = vpop.f32.mrf.mxu0
    %v7327 = vadd.f32 %v7314, %v7326
    %v7328 = vpop.f32.mrf.mxu0
    %7329 = vdwg.mxu0
    %7330 = vmatpush.bf16.msra.mxu0 %v5275
    %7331 = vmatpush.bf16.msra.mxu0 %v5267
    %7332 = vmatpush.bf16.msra.mxu0 %v5259
    %7333 = vmatpush.bf16.msra.mxu0 %v5251
    %7334 = vmatpush.bf16.msra.mxu0 %v5243
    %7335 = vmatpush.bf16.msra.mxu0 %v5235
    %7336 = vmatpush.bf16.msra.mxu0 %v5227
    %7337 = vmatpush.bf16.msra.mxu0 %v5219
    %7338 = vmatmul.bf16.gmra.mxu0 %v140
    %v7339 = vpop.f32.mrf.mxu0
    %v7340 = vadd.f32 %v7327, %v7339
    %v7341 = vpop.f32.mrf.mxu0
    %7342 = vdwg.mxu0
    %7343 = vmatpush.bf16.msra.mxu0 %v4316
    %7344 = vmatpush.bf16.msra.mxu0 %v4308
    %7345 = vmatpush.bf16.msra.mxu0 %v4300
    %7346 = vmatpush.bf16.msra.mxu0 %v4292
    %7347 = vmatpush.bf16.msra.mxu0 %v4284
    %7348 = vmatpush.bf16.msra.mxu0 %v4276
    %7349 = vmatpush.bf16.msra.mxu0 %v4268
    %7350 = vmatpush.bf16.msra.mxu0 %v4260
    %7351 = vmatmul.bf16.gmra.mxu0 %v125
    %v7352 = vpop.f32.mrf.mxu0
    %v7353 = vadd.f32 %v1172, %v7352
    %v7354 = vpop.f32.mrf.mxu0
    %7355 = vdwg.mxu0
    %7356 = vmatpush.bf16.msra.mxu0 %v4380
    %7357 = vmatpush.bf16.msra.mxu0 %v4372
    %7358 = vmatpush.bf16.msra.mxu0 %v4364
    %7359 = vmatpush.bf16.msra.mxu0 %v4356
    %7360 = vmatpush.bf16.msra.mxu0 %v4348
    %7361 = vmatpush.bf16.msra.mxu0 %v4340
    %7362 = vmatpush.bf16.msra.mxu0 %v4332
    %7363 = vmatpush.bf16.msra.mxu0 %v4324
    %7364 = vmatmul.bf16.gmra.mxu0 %v126
    %v7365 = vpop.f32.mrf.mxu0
    %v7366 = vadd.f32 %v7353, %v7365
    %v7367 = vpop.f32.mrf.mxu0
    %7368 = vdwg.mxu0
    %7369 = vmatpush.bf16.msra.mxu0 %v4444
    %7370 = vmatpush.bf16.msra.mxu0 %v4436
    %7371 = vmatpush.bf16.msra.mxu0 %v4428
    %7372 = vmatpush.bf16.msra.mxu0 %v4420
    %7373 = vmatpush.bf16.msra.mxu0 %v4412
    %7374 = vmatpush.bf16.msra.mxu0 %v4404
    %7375 = vmatpush.bf16.msra.mxu0 %v4396
    %7376 = vmatpush.bf16.msra.mxu0 %v4388
    %7377 = vmatmul.bf16.gmra.mxu0 %v127
    %v7378 = vpop.f32.mrf.mxu0
    %v7379 = vadd.f32 %v7366, %v7378
    %v7380 = vpop.f32.mrf.mxu0
    %7381 = vdwg.mxu0
    %7382 = vmatpush.bf16.msra.mxu0 %v4508
    %7383 = vmatpush.bf16.msra.mxu0 %v4500
    %7384 = vmatpush.bf16.msra.mxu0 %v4492
    %7385 = vmatpush.bf16.msra.mxu0 %v4484
    %7386 = vmatpush.bf16.msra.mxu0 %v4476
    %7387 = vmatpush.bf16.msra.mxu0 %v4468
    %7388 = vmatpush.bf16.msra.mxu0 %v4460
    %7389 = vmatpush.bf16.msra.mxu0 %v4452
    %7390 = vmatmul.bf16.gmra.mxu0 %v128
    %v7391 = vpop.f32.mrf.mxu0
    %v7392 = vadd.f32 %v7379, %v7391
    %v7393 = vpop.f32.mrf.mxu0
    %7394 = vdwg.mxu0
    %7395 = vmatpush.bf16.msra.mxu0 %v4572
    %7396 = vmatpush.bf16.msra.mxu0 %v4564
    %7397 = vmatpush.bf16.msra.mxu0 %v4556
    %7398 = vmatpush.bf16.msra.mxu0 %v4548
    %7399 = vmatpush.bf16.msra.mxu0 %v4540
    %7400 = vmatpush.bf16.msra.mxu0 %v4532
    %7401 = vmatpush.bf16.msra.mxu0 %v4524
    %7402 = vmatpush.bf16.msra.mxu0 %v4516
    %7403 = vmatmul.bf16.gmra.mxu0 %v129
    %v7404 = vpop.f32.mrf.mxu0
    %v7405 = vadd.f32 %v7392, %v7404
    %v7406 = vpop.f32.mrf.mxu0
    %7407 = vdwg.mxu0
    %7408 = vmatpush.bf16.msra.mxu0 %v4636
    %7409 = vmatpush.bf16.msra.mxu0 %v4628
    %7410 = vmatpush.bf16.msra.mxu0 %v4620
    %7411 = vmatpush.bf16.msra.mxu0 %v4612
    %7412 = vmatpush.bf16.msra.mxu0 %v4604
    %7413 = vmatpush.bf16.msra.mxu0 %v4596
    %7414 = vmatpush.bf16.msra.mxu0 %v4588
    %7415 = vmatpush.bf16.msra.mxu0 %v4580
    %7416 = vmatmul.bf16.gmra.mxu0 %v130
    %v7417 = vpop.f32.mrf.mxu0
    %v7418 = vadd.f32 %v7405, %v7417
    %v7419 = vpop.f32.mrf.mxu0
    %7420 = vdwg.mxu0
    %7421 = vmatpush.bf16.msra.mxu0 %v4700
    %7422 = vmatpush.bf16.msra.mxu0 %v4692
    %7423 = vmatpush.bf16.msra.mxu0 %v4684
    %7424 = vmatpush.bf16.msra.mxu0 %v4676
    %7425 = vmatpush.bf16.msra.mxu0 %v4668
    %7426 = vmatpush.bf16.msra.mxu0 %v4660
    %7427 = vmatpush.bf16.msra.mxu0 %v4652
    %7428 = vmatpush.bf16.msra.mxu0 %v4644
    %7429 = vmatmul.bf16.gmra.mxu0 %v131
    %v7430 = vpop.f32.mrf.mxu0
    %v7431 = vadd.f32 %v7418, %v7430
    %v7432 = vpop.f32.mrf.mxu0
    %7433 = vdwg.mxu0
    %7434 = vmatpush.bf16.msra.mxu0 %v4764
    %7435 = vmatpush.bf16.msra.mxu0 %v4756
    %7436 = vmatpush.bf16.msra.mxu0 %v4748
    %7437 = vmatpush.bf16.msra.mxu0 %v4740
    %7438 = vmatpush.bf16.msra.mxu0 %v4732
    %7439 = vmatpush.bf16.msra.mxu0 %v4724
    %7440 = vmatpush.bf16.msra.mxu0 %v4716
    %7441 = vmatpush.bf16.msra.mxu0 %v4708
    %7442 = vmatmul.bf16.gmra.mxu0 %v132
    %v7443 = vpop.f32.mrf.mxu0
    %v7444 = vadd.f32 %v7431, %v7443
    %v7445 = vpop.f32.mrf.mxu0
    %7446 = vdwg.mxu0
    %7447 = vmatpush.bf16.msra.mxu0 %v4828
    %7448 = vmatpush.bf16.msra.mxu0 %v4820
    %7449 = vmatpush.bf16.msra.mxu0 %v4812
    %7450 = vmatpush.bf16.msra.mxu0 %v4804
    %7451 = vmatpush.bf16.msra.mxu0 %v4796
    %7452 = vmatpush.bf16.msra.mxu0 %v4788
    %7453 = vmatpush.bf16.msra.mxu0 %v4780
    %7454 = vmatpush.bf16.msra.mxu0 %v4772
    %7455 = vmatmul.bf16.gmra.mxu0 %v133
    %v7456 = vpop.f32.mrf.mxu0
    %v7457 = vadd.f32 %v7444, %v7456
    %v7458 = vpop.f32.mrf.mxu0
    %7459 = vdwg.mxu0
    %7460 = vmatpush.bf16.msra.mxu0 %v4892
    %7461 = vmatpush.bf16.msra.mxu0 %v4884
    %7462 = vmatpush.bf16.msra.mxu0 %v4876
    %7463 = vmatpush.bf16.msra.mxu0 %v4868
    %7464 = vmatpush.bf16.msra.mxu0 %v4860
    %7465 = vmatpush.bf16.msra.mxu0 %v4852
    %7466 = vmatpush.bf16.msra.mxu0 %v4844
    %7467 = vmatpush.bf16.msra.mxu0 %v4836
    %7468 = vmatmul.bf16.gmra.mxu0 %v134
    %v7469 = vpop.f32.mrf.mxu0
    %v7470 = vadd.f32 %v7457, %v7469
    %v7471 = vpop.f32.mrf.mxu0
    %7472 = vdwg.mxu0
    %7473 = vmatpush.bf16.msra.mxu0 %v4956
    %7474 = vmatpush.bf16.msra.mxu0 %v4948
    %7475 = vmatpush.bf16.msra.mxu0 %v4940
    %7476 = vmatpush.bf16.msra.mxu0 %v4932
    %7477 = vmatpush.bf16.msra.mxu0 %v4924
    %7478 = vmatpush.bf16.msra.mxu0 %v4916
    %7479 = vmatpush.bf16.msra.mxu0 %v4908
    %7480 = vmatpush.bf16.msra.mxu0 %v4900
    %7481 = vmatmul.bf16.gmra.mxu0 %v135
    %v7482 = vpop.f32.mrf.mxu0
    %v7483 = vadd.f32 %v7470, %v7482
    %v7484 = vpop.f32.mrf.mxu0
    %7485 = vdwg.mxu0
    %7486 = vmatpush.bf16.msra.mxu0 %v5020
    %7487 = vmatpush.bf16.msra.mxu0 %v5012
    %7488 = vmatpush.bf16.msra.mxu0 %v5004
    %7489 = vmatpush.bf16.msra.mxu0 %v4996
    %7490 = vmatpush.bf16.msra.mxu0 %v4988
    %7491 = vmatpush.bf16.msra.mxu0 %v4980
    %7492 = vmatpush.bf16.msra.mxu0 %v4972
    %7493 = vmatpush.bf16.msra.mxu0 %v4964
    %7494 = vmatmul.bf16.gmra.mxu0 %v136
    %v7495 = vpop.f32.mrf.mxu0
    %v7496 = vadd.f32 %v7483, %v7495
    %v7497 = vpop.f32.mrf.mxu0
    %7498 = vdwg.mxu0
    %7499 = vmatpush.bf16.msra.mxu0 %v5084
    %7500 = vmatpush.bf16.msra.mxu0 %v5076
    %7501 = vmatpush.bf16.msra.mxu0 %v5068
    %7502 = vmatpush.bf16.msra.mxu0 %v5060
    %7503 = vmatpush.bf16.msra.mxu0 %v5052
    %7504 = vmatpush.bf16.msra.mxu0 %v5044
    %7505 = vmatpush.bf16.msra.mxu0 %v5036
    %7506 = vmatpush.bf16.msra.mxu0 %v5028
    %7507 = vmatmul.bf16.gmra.mxu0 %v137
    %v7508 = vpop.f32.mrf.mxu0
    %v7509 = vadd.f32 %v7496, %v7508
    %v7510 = vpop.f32.mrf.mxu0
    %7511 = vdwg.mxu0
    %7512 = vmatpush.bf16.msra.mxu0 %v5148
    %7513 = vmatpush.bf16.msra.mxu0 %v5140
    %7514 = vmatpush.bf16.msra.mxu0 %v5132
    %7515 = vmatpush.bf16.msra.mxu0 %v5124
    %7516 = vmatpush.bf16.msra.mxu0 %v5116
    %7517 = vmatpush.bf16.msra.mxu0 %v5108
    %7518 = vmatpush.bf16.msra.mxu0 %v5100
    %7519 = vmatpush.bf16.msra.mxu0 %v5092
    %7520 = vmatmul.bf16.gmra.mxu0 %v138
    %v7521 = vpop.f32.mrf.mxu0
    %v7522 = vadd.f32 %v7509, %v7521
    %v7523 = vpop.f32.mrf.mxu0
    %7524 = vdwg.mxu0
    %7525 = vmatpush.bf16.msra.mxu0 %v5212
    %7526 = vmatpush.bf16.msra.mxu0 %v5204
    %7527 = vmatpush.bf16.msra.mxu0 %v5196
    %7528 = vmatpush.bf16.msra.mxu0 %v5188
    %7529 = vmatpush.bf16.msra.mxu0 %v5180
    %7530 = vmatpush.bf16.msra.mxu0 %v5172
    %7531 = vmatpush.bf16.msra.mxu0 %v5164
    %7532 = vmatpush.bf16.msra.mxu0 %v5156
    %7533 = vmatmul.bf16.gmra.mxu0 %v139
    %v7534 = vpop.f32.mrf.mxu0
    %v7535 = vadd.f32 %v7522, %v7534
    %v7536 = vpop.f32.mrf.mxu0
    %7537 = vdwg.mxu0
    %7538 = vmatpush.bf16.msra.mxu0 %v5276
    %7539 = vmatpush.bf16.msra.mxu0 %v5268
    %7540 = vmatpush.bf16.msra.mxu0 %v5260
    %7541 = vmatpush.bf16.msra.mxu0 %v5252
    %7542 = vmatpush.bf16.msra.mxu0 %v5244
    %7543 = vmatpush.bf16.msra.mxu0 %v5236
    %7544 = vmatpush.bf16.msra.mxu0 %v5228
    %7545 = vmatpush.bf16.msra.mxu0 %v5220
    %7546 = vmatmul.bf16.gmra.mxu0 %v140
    %v7547 = vpop.f32.mrf.mxu0
    %v7548 = vadd.f32 %v7535, %v7547
    %v7549 = vpop.f32.mrf.mxu0
    %7550 = vdwg.mxu0
    %7551 = vmatpush.bf16.msra.mxu0 %v4317
    %7552 = vmatpush.bf16.msra.mxu0 %v4309
    %7553 = vmatpush.bf16.msra.mxu0 %v4301
    %7554 = vmatpush.bf16.msra.mxu0 %v4293
    %7555 = vmatpush.bf16.msra.mxu0 %v4285
    %7556 = vmatpush.bf16.msra.mxu0 %v4277
    %7557 = vmatpush.bf16.msra.mxu0 %v4269
    %7558 = vmatpush.bf16.msra.mxu0 %v4261
    %7559 = vmatmul.bf16.gmra.mxu0 %v125
    %v7560 = vpop.f32.mrf.mxu0
    %v7561 = vadd.f32 %v1173, %v7560
    %v7562 = vpop.f32.mrf.mxu0
    %7563 = vdwg.mxu0
    %7564 = vmatpush.bf16.msra.mxu0 %v4381
    %7565 = vmatpush.bf16.msra.mxu0 %v4373
    %7566 = vmatpush.bf16.msra.mxu0 %v4365
    %7567 = vmatpush.bf16.msra.mxu0 %v4357
    %7568 = vmatpush.bf16.msra.mxu0 %v4349
    %7569 = vmatpush.bf16.msra.mxu0 %v4341
    %7570 = vmatpush.bf16.msra.mxu0 %v4333
    %7571 = vmatpush.bf16.msra.mxu0 %v4325
    %7572 = vmatmul.bf16.gmra.mxu0 %v126
    %v7573 = vpop.f32.mrf.mxu0
    %v7574 = vadd.f32 %v7561, %v7573
    %v7575 = vpop.f32.mrf.mxu0
    %7576 = vdwg.mxu0
    %7577 = vmatpush.bf16.msra.mxu0 %v4445
    %7578 = vmatpush.bf16.msra.mxu0 %v4437
    %7579 = vmatpush.bf16.msra.mxu0 %v4429
    %7580 = vmatpush.bf16.msra.mxu0 %v4421
    %7581 = vmatpush.bf16.msra.mxu0 %v4413
    %7582 = vmatpush.bf16.msra.mxu0 %v4405
    %7583 = vmatpush.bf16.msra.mxu0 %v4397
    %7584 = vmatpush.bf16.msra.mxu0 %v4389
    %7585 = vmatmul.bf16.gmra.mxu0 %v127
    %v7586 = vpop.f32.mrf.mxu0
    %v7587 = vadd.f32 %v7574, %v7586
    %v7588 = vpop.f32.mrf.mxu0
    %7589 = vdwg.mxu0
    %7590 = vmatpush.bf16.msra.mxu0 %v4509
    %7591 = vmatpush.bf16.msra.mxu0 %v4501
    %7592 = vmatpush.bf16.msra.mxu0 %v4493
    %7593 = vmatpush.bf16.msra.mxu0 %v4485
    %7594 = vmatpush.bf16.msra.mxu0 %v4477
    %7595 = vmatpush.bf16.msra.mxu0 %v4469
    %7596 = vmatpush.bf16.msra.mxu0 %v4461
    %7597 = vmatpush.bf16.msra.mxu0 %v4453
    %7598 = vmatmul.bf16.gmra.mxu0 %v128
    %v7599 = vpop.f32.mrf.mxu0
    %v7600 = vadd.f32 %v7587, %v7599
    %v7601 = vpop.f32.mrf.mxu0
    %7602 = vdwg.mxu0
    %7603 = vmatpush.bf16.msra.mxu0 %v4573
    %7604 = vmatpush.bf16.msra.mxu0 %v4565
    %7605 = vmatpush.bf16.msra.mxu0 %v4557
    %7606 = vmatpush.bf16.msra.mxu0 %v4549
    %7607 = vmatpush.bf16.msra.mxu0 %v4541
    %7608 = vmatpush.bf16.msra.mxu0 %v4533
    %7609 = vmatpush.bf16.msra.mxu0 %v4525
    %7610 = vmatpush.bf16.msra.mxu0 %v4517
    %7611 = vmatmul.bf16.gmra.mxu0 %v129
    %v7612 = vpop.f32.mrf.mxu0
    %v7613 = vadd.f32 %v7600, %v7612
    %v7614 = vpop.f32.mrf.mxu0
    %7615 = vdwg.mxu0
    %7616 = vmatpush.bf16.msra.mxu0 %v4637
    %7617 = vmatpush.bf16.msra.mxu0 %v4629
    %7618 = vmatpush.bf16.msra.mxu0 %v4621
    %7619 = vmatpush.bf16.msra.mxu0 %v4613
    %7620 = vmatpush.bf16.msra.mxu0 %v4605
    %7621 = vmatpush.bf16.msra.mxu0 %v4597
    %7622 = vmatpush.bf16.msra.mxu0 %v4589
    %7623 = vmatpush.bf16.msra.mxu0 %v4581
    %7624 = vmatmul.bf16.gmra.mxu0 %v130
    %v7625 = vpop.f32.mrf.mxu0
    %v7626 = vadd.f32 %v7613, %v7625
    %v7627 = vpop.f32.mrf.mxu0
    %7628 = vdwg.mxu0
    %7629 = vmatpush.bf16.msra.mxu0 %v4701
    %7630 = vmatpush.bf16.msra.mxu0 %v4693
    %7631 = vmatpush.bf16.msra.mxu0 %v4685
    %7632 = vmatpush.bf16.msra.mxu0 %v4677
    %7633 = vmatpush.bf16.msra.mxu0 %v4669
    %7634 = vmatpush.bf16.msra.mxu0 %v4661
    %7635 = vmatpush.bf16.msra.mxu0 %v4653
    %7636 = vmatpush.bf16.msra.mxu0 %v4645
    %7637 = vmatmul.bf16.gmra.mxu0 %v131
    %v7638 = vpop.f32.mrf.mxu0
    %v7639 = vadd.f32 %v7626, %v7638
    %v7640 = vpop.f32.mrf.mxu0
    %7641 = vdwg.mxu0
    %7642 = vmatpush.bf16.msra.mxu0 %v4765
    %7643 = vmatpush.bf16.msra.mxu0 %v4757
    %7644 = vmatpush.bf16.msra.mxu0 %v4749
    %7645 = vmatpush.bf16.msra.mxu0 %v4741
    %7646 = vmatpush.bf16.msra.mxu0 %v4733
    %7647 = vmatpush.bf16.msra.mxu0 %v4725
    %7648 = vmatpush.bf16.msra.mxu0 %v4717
    %7649 = vmatpush.bf16.msra.mxu0 %v4709
    %7650 = vmatmul.bf16.gmra.mxu0 %v132
    %v7651 = vpop.f32.mrf.mxu0
    %v7652 = vadd.f32 %v7639, %v7651
    %v7653 = vpop.f32.mrf.mxu0
    %7654 = vdwg.mxu0
    %7655 = vmatpush.bf16.msra.mxu0 %v4829
    %7656 = vmatpush.bf16.msra.mxu0 %v4821
    %7657 = vmatpush.bf16.msra.mxu0 %v4813
    %7658 = vmatpush.bf16.msra.mxu0 %v4805
    %7659 = vmatpush.bf16.msra.mxu0 %v4797
    %7660 = vmatpush.bf16.msra.mxu0 %v4789
    %7661 = vmatpush.bf16.msra.mxu0 %v4781
    %7662 = vmatpush.bf16.msra.mxu0 %v4773
    %7663 = vmatmul.bf16.gmra.mxu0 %v133
    %v7664 = vpop.f32.mrf.mxu0
    %v7665 = vadd.f32 %v7652, %v7664
    %v7666 = vpop.f32.mrf.mxu0
    %7667 = vdwg.mxu0
    %7668 = vmatpush.bf16.msra.mxu0 %v4893
    %7669 = vmatpush.bf16.msra.mxu0 %v4885
    %7670 = vmatpush.bf16.msra.mxu0 %v4877
    %7671 = vmatpush.bf16.msra.mxu0 %v4869
    %7672 = vmatpush.bf16.msra.mxu0 %v4861
    %7673 = vmatpush.bf16.msra.mxu0 %v4853
    %7674 = vmatpush.bf16.msra.mxu0 %v4845
    %7675 = vmatpush.bf16.msra.mxu0 %v4837
    %7676 = vmatmul.bf16.gmra.mxu0 %v134
    %v7677 = vpop.f32.mrf.mxu0
    %v7678 = vadd.f32 %v7665, %v7677
    %v7679 = vpop.f32.mrf.mxu0
    %7680 = vdwg.mxu0
    %7681 = vmatpush.bf16.msra.mxu0 %v4957
    %7682 = vmatpush.bf16.msra.mxu0 %v4949
    %7683 = vmatpush.bf16.msra.mxu0 %v4941
    %7684 = vmatpush.bf16.msra.mxu0 %v4933
    %7685 = vmatpush.bf16.msra.mxu0 %v4925
    %7686 = vmatpush.bf16.msra.mxu0 %v4917
    %7687 = vmatpush.bf16.msra.mxu0 %v4909
    %7688 = vmatpush.bf16.msra.mxu0 %v4901
    %7689 = vmatmul.bf16.gmra.mxu0 %v135
    %v7690 = vpop.f32.mrf.mxu0
    %v7691 = vadd.f32 %v7678, %v7690
    %v7692 = vpop.f32.mrf.mxu0
    %7693 = vdwg.mxu0
    %7694 = vmatpush.bf16.msra.mxu0 %v5021
    %7695 = vmatpush.bf16.msra.mxu0 %v5013
    %7696 = vmatpush.bf16.msra.mxu0 %v5005
    %7697 = vmatpush.bf16.msra.mxu0 %v4997
    %7698 = vmatpush.bf16.msra.mxu0 %v4989
    %7699 = vmatpush.bf16.msra.mxu0 %v4981
    %7700 = vmatpush.bf16.msra.mxu0 %v4973
    %7701 = vmatpush.bf16.msra.mxu0 %v4965
    %7702 = vmatmul.bf16.gmra.mxu0 %v136
    %v7703 = vpop.f32.mrf.mxu0
    %v7704 = vadd.f32 %v7691, %v7703
    %v7705 = vpop.f32.mrf.mxu0
    %7706 = vdwg.mxu0
    %7707 = vmatpush.bf16.msra.mxu0 %v5085
    %7708 = vmatpush.bf16.msra.mxu0 %v5077
    %7709 = vmatpush.bf16.msra.mxu0 %v5069
    %7710 = vmatpush.bf16.msra.mxu0 %v5061
    %7711 = vmatpush.bf16.msra.mxu0 %v5053
    %7712 = vmatpush.bf16.msra.mxu0 %v5045
    %7713 = vmatpush.bf16.msra.mxu0 %v5037
    %7714 = vmatpush.bf16.msra.mxu0 %v5029
    %7715 = vmatmul.bf16.gmra.mxu0 %v137
    %v7716 = vpop.f32.mrf.mxu0
    %v7717 = vadd.f32 %v7704, %v7716
    %v7718 = vpop.f32.mrf.mxu0
    %7719 = vdwg.mxu0
    %7720 = vmatpush.bf16.msra.mxu0 %v5149
    %7721 = vmatpush.bf16.msra.mxu0 %v5141
    %7722 = vmatpush.bf16.msra.mxu0 %v5133
    %7723 = vmatpush.bf16.msra.mxu0 %v5125
    %7724 = vmatpush.bf16.msra.mxu0 %v5117
    %7725 = vmatpush.bf16.msra.mxu0 %v5109
    %7726 = vmatpush.bf16.msra.mxu0 %v5101
    %7727 = vmatpush.bf16.msra.mxu0 %v5093
    %7728 = vmatmul.bf16.gmra.mxu0 %v138
    %v7729 = vpop.f32.mrf.mxu0
    %v7730 = vadd.f32 %v7717, %v7729
    %v7731 = vpop.f32.mrf.mxu0
    %7732 = vdwg.mxu0
    %7733 = vmatpush.bf16.msra.mxu0 %v5213
    %7734 = vmatpush.bf16.msra.mxu0 %v5205
    %7735 = vmatpush.bf16.msra.mxu0 %v5197
    %7736 = vmatpush.bf16.msra.mxu0 %v5189
    %7737 = vmatpush.bf16.msra.mxu0 %v5181
    %7738 = vmatpush.bf16.msra.mxu0 %v5173
    %7739 = vmatpush.bf16.msra.mxu0 %v5165
    %7740 = vmatpush.bf16.msra.mxu0 %v5157
    %7741 = vmatmul.bf16.gmra.mxu0 %v139
    %v7742 = vpop.f32.mrf.mxu0
    %v7743 = vadd.f32 %v7730, %v7742
    %v7744 = vpop.f32.mrf.mxu0
    %7745 = vdwg.mxu0
    %7746 = vmatpush.bf16.msra.mxu0 %v5277
    %7747 = vmatpush.bf16.msra.mxu0 %v5269
    %7748 = vmatpush.bf16.msra.mxu0 %v5261
    %7749 = vmatpush.bf16.msra.mxu0 %v5253
    %7750 = vmatpush.bf16.msra.mxu0 %v5245
    %7751 = vmatpush.bf16.msra.mxu0 %v5237
    %7752 = vmatpush.bf16.msra.mxu0 %v5229
    %7753 = vmatpush.bf16.msra.mxu0 %v5221
    %7754 = vmatmul.bf16.gmra.mxu0 %v140
    %v7755 = vpop.f32.mrf.mxu0
    %v7756 = vadd.f32 %v7743, %v7755
    %v7757 = vpop.f32.mrf.mxu0
    %7758 = vdwg.mxu0
    %7759 = vmatpush.bf16.msra.mxu0 %v4318
    %7760 = vmatpush.bf16.msra.mxu0 %v4310
    %7761 = vmatpush.bf16.msra.mxu0 %v4302
    %7762 = vmatpush.bf16.msra.mxu0 %v4294
    %7763 = vmatpush.bf16.msra.mxu0 %v4286
    %7764 = vmatpush.bf16.msra.mxu0 %v4278
    %7765 = vmatpush.bf16.msra.mxu0 %v4270
    %7766 = vmatpush.bf16.msra.mxu0 %v4262
    %7767 = vmatmul.bf16.gmra.mxu0 %v125
    %v7768 = vpop.f32.mrf.mxu0
    %v7769 = vadd.f32 %v1174, %v7768
    %v7770 = vpop.f32.mrf.mxu0
    %7771 = vdwg.mxu0
    %7772 = vmatpush.bf16.msra.mxu0 %v4382
    %7773 = vmatpush.bf16.msra.mxu0 %v4374
    %7774 = vmatpush.bf16.msra.mxu0 %v4366
    %7775 = vmatpush.bf16.msra.mxu0 %v4358
    %7776 = vmatpush.bf16.msra.mxu0 %v4350
    %7777 = vmatpush.bf16.msra.mxu0 %v4342
    %7778 = vmatpush.bf16.msra.mxu0 %v4334
    %7779 = vmatpush.bf16.msra.mxu0 %v4326
    %7780 = vmatmul.bf16.gmra.mxu0 %v126
    %v7781 = vpop.f32.mrf.mxu0
    %v7782 = vadd.f32 %v7769, %v7781
    %v7783 = vpop.f32.mrf.mxu0
    %7784 = vdwg.mxu0
    %7785 = vmatpush.bf16.msra.mxu0 %v4446
    %7786 = vmatpush.bf16.msra.mxu0 %v4438
    %7787 = vmatpush.bf16.msra.mxu0 %v4430
    %7788 = vmatpush.bf16.msra.mxu0 %v4422
    %7789 = vmatpush.bf16.msra.mxu0 %v4414
    %7790 = vmatpush.bf16.msra.mxu0 %v4406
    %7791 = vmatpush.bf16.msra.mxu0 %v4398
    %7792 = vmatpush.bf16.msra.mxu0 %v4390
    %7793 = vmatmul.bf16.gmra.mxu0 %v127
    %v7794 = vpop.f32.mrf.mxu0
    %v7795 = vadd.f32 %v7782, %v7794
    %v7796 = vpop.f32.mrf.mxu0
    %7797 = vdwg.mxu0
    %7798 = vmatpush.bf16.msra.mxu0 %v4510
    %7799 = vmatpush.bf16.msra.mxu0 %v4502
    %7800 = vmatpush.bf16.msra.mxu0 %v4494
    %7801 = vmatpush.bf16.msra.mxu0 %v4486
    %7802 = vmatpush.bf16.msra.mxu0 %v4478
    %7803 = vmatpush.bf16.msra.mxu0 %v4470
    %7804 = vmatpush.bf16.msra.mxu0 %v4462
    %7805 = vmatpush.bf16.msra.mxu0 %v4454
    %7806 = vmatmul.bf16.gmra.mxu0 %v128
    %v7807 = vpop.f32.mrf.mxu0
    %v7808 = vadd.f32 %v7795, %v7807
    %v7809 = vpop.f32.mrf.mxu0
    %7810 = vdwg.mxu0
    %7811 = vmatpush.bf16.msra.mxu0 %v4574
    %7812 = vmatpush.bf16.msra.mxu0 %v4566
    %7813 = vmatpush.bf16.msra.mxu0 %v4558
    %7814 = vmatpush.bf16.msra.mxu0 %v4550
    %7815 = vmatpush.bf16.msra.mxu0 %v4542
    %7816 = vmatpush.bf16.msra.mxu0 %v4534
    %7817 = vmatpush.bf16.msra.mxu0 %v4526
    %7818 = vmatpush.bf16.msra.mxu0 %v4518
    %7819 = vmatmul.bf16.gmra.mxu0 %v129
    %v7820 = vpop.f32.mrf.mxu0
    %v7821 = vadd.f32 %v7808, %v7820
    %v7822 = vpop.f32.mrf.mxu0
    %7823 = vdwg.mxu0
    %7824 = vmatpush.bf16.msra.mxu0 %v4638
    %7825 = vmatpush.bf16.msra.mxu0 %v4630
    %7826 = vmatpush.bf16.msra.mxu0 %v4622
    %7827 = vmatpush.bf16.msra.mxu0 %v4614
    %7828 = vmatpush.bf16.msra.mxu0 %v4606
    %7829 = vmatpush.bf16.msra.mxu0 %v4598
    %7830 = vmatpush.bf16.msra.mxu0 %v4590
    %7831 = vmatpush.bf16.msra.mxu0 %v4582
    %7832 = vmatmul.bf16.gmra.mxu0 %v130
    %v7833 = vpop.f32.mrf.mxu0
    %v7834 = vadd.f32 %v7821, %v7833
    %v7835 = vpop.f32.mrf.mxu0
    %7836 = vdwg.mxu0
    %7837 = vmatpush.bf16.msra.mxu0 %v4702
    %7838 = vmatpush.bf16.msra.mxu0 %v4694
    %7839 = vmatpush.bf16.msra.mxu0 %v4686
    %7840 = vmatpush.bf16.msra.mxu0 %v4678
    %7841 = vmatpush.bf16.msra.mxu0 %v4670
    %7842 = vmatpush.bf16.msra.mxu0 %v4662
    %7843 = vmatpush.bf16.msra.mxu0 %v4654
    %7844 = vmatpush.bf16.msra.mxu0 %v4646
    %7845 = vmatmul.bf16.gmra.mxu0 %v131
    %v7846 = vpop.f32.mrf.mxu0
    %v7847 = vadd.f32 %v7834, %v7846
    %v7848 = vpop.f32.mrf.mxu0
    %7849 = vdwg.mxu0
    %7850 = vmatpush.bf16.msra.mxu0 %v4766
    %7851 = vmatpush.bf16.msra.mxu0 %v4758
    %7852 = vmatpush.bf16.msra.mxu0 %v4750
    %7853 = vmatpush.bf16.msra.mxu0 %v4742
    %7854 = vmatpush.bf16.msra.mxu0 %v4734
    %7855 = vmatpush.bf16.msra.mxu0 %v4726
    %7856 = vmatpush.bf16.msra.mxu0 %v4718
    %7857 = vmatpush.bf16.msra.mxu0 %v4710
    %7858 = vmatmul.bf16.gmra.mxu0 %v132
    %v7859 = vpop.f32.mrf.mxu0
    %v7860 = vadd.f32 %v7847, %v7859
    %v7861 = vpop.f32.mrf.mxu0
    %7862 = vdwg.mxu0
    %7863 = vmatpush.bf16.msra.mxu0 %v4830
    %7864 = vmatpush.bf16.msra.mxu0 %v4822
    %7865 = vmatpush.bf16.msra.mxu0 %v4814
    %7866 = vmatpush.bf16.msra.mxu0 %v4806
    %7867 = vmatpush.bf16.msra.mxu0 %v4798
    %7868 = vmatpush.bf16.msra.mxu0 %v4790
    %7869 = vmatpush.bf16.msra.mxu0 %v4782
    %7870 = vmatpush.bf16.msra.mxu0 %v4774
    %7871 = vmatmul.bf16.gmra.mxu0 %v133
    %v7872 = vpop.f32.mrf.mxu0
    %v7873 = vadd.f32 %v7860, %v7872
    %v7874 = vpop.f32.mrf.mxu0
    %7875 = vdwg.mxu0
    %7876 = vmatpush.bf16.msra.mxu0 %v4894
    %7877 = vmatpush.bf16.msra.mxu0 %v4886
    %7878 = vmatpush.bf16.msra.mxu0 %v4878
    %7879 = vmatpush.bf16.msra.mxu0 %v4870
    %7880 = vmatpush.bf16.msra.mxu0 %v4862
    %7881 = vmatpush.bf16.msra.mxu0 %v4854
    %7882 = vmatpush.bf16.msra.mxu0 %v4846
    %7883 = vmatpush.bf16.msra.mxu0 %v4838
    %7884 = vmatmul.bf16.gmra.mxu0 %v134
    %v7885 = vpop.f32.mrf.mxu0
    %v7886 = vadd.f32 %v7873, %v7885
    %v7887 = vpop.f32.mrf.mxu0
    %7888 = vdwg.mxu0
    %7889 = vmatpush.bf16.msra.mxu0 %v4958
    %7890 = vmatpush.bf16.msra.mxu0 %v4950
    %7891 = vmatpush.bf16.msra.mxu0 %v4942
    %7892 = vmatpush.bf16.msra.mxu0 %v4934
    %7893 = vmatpush.bf16.msra.mxu0 %v4926
    %7894 = vmatpush.bf16.msra.mxu0 %v4918
    %7895 = vmatpush.bf16.msra.mxu0 %v4910
    %7896 = vmatpush.bf16.msra.mxu0 %v4902
    %7897 = vmatmul.bf16.gmra.mxu0 %v135
    %v7898 = vpop.f32.mrf.mxu0
    %v7899 = vadd.f32 %v7886, %v7898
    %v7900 = vpop.f32.mrf.mxu0
    %7901 = vdwg.mxu0
    %7902 = vmatpush.bf16.msra.mxu0 %v5022
    %7903 = vmatpush.bf16.msra.mxu0 %v5014
    %7904 = vmatpush.bf16.msra.mxu0 %v5006
    %7905 = vmatpush.bf16.msra.mxu0 %v4998
    %7906 = vmatpush.bf16.msra.mxu0 %v4990
    %7907 = vmatpush.bf16.msra.mxu0 %v4982
    %7908 = vmatpush.bf16.msra.mxu0 %v4974
    %7909 = vmatpush.bf16.msra.mxu0 %v4966
    %7910 = vmatmul.bf16.gmra.mxu0 %v136
    %v7911 = vpop.f32.mrf.mxu0
    %v7912 = vadd.f32 %v7899, %v7911
    %v7913 = vpop.f32.mrf.mxu0
    %7914 = vdwg.mxu0
    %7915 = vmatpush.bf16.msra.mxu0 %v5086
    %7916 = vmatpush.bf16.msra.mxu0 %v5078
    %7917 = vmatpush.bf16.msra.mxu0 %v5070
    %7918 = vmatpush.bf16.msra.mxu0 %v5062
    %7919 = vmatpush.bf16.msra.mxu0 %v5054
    %7920 = vmatpush.bf16.msra.mxu0 %v5046
    %7921 = vmatpush.bf16.msra.mxu0 %v5038
    %7922 = vmatpush.bf16.msra.mxu0 %v5030
    %7923 = vmatmul.bf16.gmra.mxu0 %v137
    %v7924 = vpop.f32.mrf.mxu0
    %v7925 = vadd.f32 %v7912, %v7924
    %v7926 = vpop.f32.mrf.mxu0
    %7927 = vdwg.mxu0
    %7928 = vmatpush.bf16.msra.mxu0 %v5150
    %7929 = vmatpush.bf16.msra.mxu0 %v5142
    %7930 = vmatpush.bf16.msra.mxu0 %v5134
    %7931 = vmatpush.bf16.msra.mxu0 %v5126
    %7932 = vmatpush.bf16.msra.mxu0 %v5118
    %7933 = vmatpush.bf16.msra.mxu0 %v5110
    %7934 = vmatpush.bf16.msra.mxu0 %v5102
    %7935 = vmatpush.bf16.msra.mxu0 %v5094
    %7936 = vmatmul.bf16.gmra.mxu0 %v138
    %v7937 = vpop.f32.mrf.mxu0
    %v7938 = vadd.f32 %v7925, %v7937
    %v7939 = vpop.f32.mrf.mxu0
    %7940 = vdwg.mxu0
    %7941 = vmatpush.bf16.msra.mxu0 %v5214
    %7942 = vmatpush.bf16.msra.mxu0 %v5206
    %7943 = vmatpush.bf16.msra.mxu0 %v5198
    %7944 = vmatpush.bf16.msra.mxu0 %v5190
    %7945 = vmatpush.bf16.msra.mxu0 %v5182
    %7946 = vmatpush.bf16.msra.mxu0 %v5174
    %7947 = vmatpush.bf16.msra.mxu0 %v5166
    %7948 = vmatpush.bf16.msra.mxu0 %v5158
    %7949 = vmatmul.bf16.gmra.mxu0 %v139
    %v7950 = vpop.f32.mrf.mxu0
    %v7951 = vadd.f32 %v7938, %v7950
    %v7952 = vpop.f32.mrf.mxu0
    %7953 = vdwg.mxu0
    %7954 = vmatpush.bf16.msra.mxu0 %v5278
    %7955 = vmatpush.bf16.msra.mxu0 %v5270
    %7956 = vmatpush.bf16.msra.mxu0 %v5262
    %7957 = vmatpush.bf16.msra.mxu0 %v5254
    %7958 = vmatpush.bf16.msra.mxu0 %v5246
    %7959 = vmatpush.bf16.msra.mxu0 %v5238
    %7960 = vmatpush.bf16.msra.mxu0 %v5230
    %7961 = vmatpush.bf16.msra.mxu0 %v5222
    %7962 = vmatmul.bf16.gmra.mxu0 %v140
    %v7963 = vpop.f32.mrf.mxu0
    %v7964 = vadd.f32 %v7951, %v7963
    %v7965 = vpop.f32.mrf.mxu0
    %7966 = vdwg.mxu0
    %v7967 = vmax.f32 %v6508, 0.0
    %v7968 = vmax.f32 %v6716, 0.0
    %v7969 = vmax.f32 %v6924, 0.0
    %v7970 = vmax.f32 %v7132, 0.0
    %v7971 = vmax.f32 %v7340, 0.0
    %v7972 = vmax.f32 %v7548, 0.0
    %v7973 = vmax.f32 %v7756, 0.0
    %v7974 = vmax.f32 %v7964, 0.0
    %v7975 = vpack.c.bf16 %v7967, %v7967
    %v7976 = vpack.c.bf16 %v7968, %v7968
    %v7977 = vpack.c.bf16 %v7969, %v7969
    %v7978 = vpack.c.bf16 %v7970, %v7970
    %v7979 = vpack.c.bf16 %v7971, %v7971
    %v7980 = vpack.c.bf16 %v7972, %v7972
    %v7981 = vpack.c.bf16 %v7973, %v7973
    %v7982 = vpack.c.bf16 %v7974, %v7974
    %v7983 = vld [vmem:[#allocation7] sm:$0xf]
    %v7984 = vld [vmem:[#allocation7 + $0x4] sm:$0xf]
    %v7985 = vld [vmem:[#allocation7 + $0x8] sm:$0xf]
    %v7986 = vld [vmem:[#allocation7 + $0xc] sm:$0xf]
    %v7987 = vld [vmem:[#allocation7 + $0x10] sm:$0xf]
    %v7988 = vld [vmem:[#allocation7 + $0x14] sm:$0xf]
    %v7989 = vld [vmem:[#allocation7 + $0x18] sm:$0xf]
    %v7990 = vld [vmem:[#allocation7 + $0x1c] sm:$0xf]
    %v7991 = vld [vmem:[#allocation7 + $0x20] sm:$0xf]
    %v7992 = vld [vmem:[#allocation7 + $0x24] sm:$0xf]
    %v7993 = vld [vmem:[#allocation7 + $0x28] sm:$0xf]
    %v7994 = vld [vmem:[#allocation7 + $0x2c] sm:$0xf]
    %v7995 = vld [vmem:[#allocation7 + $0x30] sm:$0xf]
    %v7996 = vld [vmem:[#allocation7 + $0x34] sm:$0xf]
    %v7997 = vld [vmem:[#allocation7 + $0x38] sm:$0xf]
    %v7998 = vld [vmem:[#allocation7 + $0x3c] sm:$0xf]
    %v7999 = vld [vmem:[#allocation7 + $0x40] sm:$0xf]
    %v8000 = vld [vmem:[#allocation7 + $0x44] sm:$0xf]
    %v8001 = vld [vmem:[#allocation7 + $0x48] sm:$0xf]
    %v8002 = vld [vmem:[#allocation7 + $0x4c] sm:$0xf]
    %v8003 = vld [vmem:[#allocation7 + $0x50] sm:$0xf]
    %v8004 = vld [vmem:[#allocation7 + $0x54] sm:$0xf]
    %v8005 = vld [vmem:[#allocation7 + $0x58] sm:$0xf]
    %v8006 = vld [vmem:[#allocation7 + $0x5c] sm:$0xf]
    %v8007 = vld [vmem:[#allocation7 + $0x60] sm:$0xf]
    %v8008 = vld [vmem:[#allocation7 + $0x64] sm:$0xf]
    %v8009 = vld [vmem:[#allocation7 + $0x68] sm:$0xf]
    %v8010 = vld [vmem:[#allocation7 + $0x6c] sm:$0xf]
    %v8011 = vld [vmem:[#allocation7 + $0x70] sm:$0xf]
    %v8012 = vld [vmem:[#allocation7 + $0x74] sm:$0xf]
    %v8013 = vld [vmem:[#allocation7 + $0x78] sm:$0xf]
    %v8014 = vld [vmem:[#allocation7 + $0x7c] sm:$0xf]
    %v8015 = vld [vmem:[#allocation7 + $0x80] sm:$0xf]
    %v8016 = vld [vmem:[#allocation7 + $0x84] sm:$0xf]
    %v8017 = vld [vmem:[#allocation7 + $0x88] sm:$0xf]
    %v8018 = vld [vmem:[#allocation7 + $0x8c] sm:$0xf]
    %v8019 = vld [vmem:[#allocation7 + $0x90] sm:$0xf]
    %v8020 = vld [vmem:[#allocation7 + $0x94] sm:$0xf]
    %v8021 = vld [vmem:[#allocation7 + $0x98] sm:$0xf]
    %v8022 = vld [vmem:[#allocation7 + $0x9c] sm:$0xf]
    %v8023 = vld [vmem:[#allocation7 + $0xa0] sm:$0xf]
    %v8024 = vld [vmem:[#allocation7 + $0xa4] sm:$0xf]
    %v8025 = vld [vmem:[#allocation7 + $0xa8] sm:$0xf]
    %v8026 = vld [vmem:[#allocation7 + $0xac] sm:$0xf]
    %v8027 = vld [vmem:[#allocation7 + $0xb0] sm:$0xf]
    %v8028 = vld [vmem:[#allocation7 + $0xb4] sm:$0xf]
    %v8029 = vld [vmem:[#allocation7 + $0xb8] sm:$0xf]
    %v8030 = vld [vmem:[#allocation7 + $0xbc] sm:$0xf]
    %v8031 = vld [vmem:[#allocation7 + $0xc0] sm:$0xf]
    %v8032 = vld [vmem:[#allocation7 + $0xc4] sm:$0xf]
    %v8033 = vld [vmem:[#allocation7 + $0xc8] sm:$0xf]
    %v8034 = vld [vmem:[#allocation7 + $0xcc] sm:$0xf]
    %v8035 = vld [vmem:[#allocation7 + $0xd0] sm:$0xf]
    %v8036 = vld [vmem:[#allocation7 + $0xd4] sm:$0xf]
    %v8037 = vld [vmem:[#allocation7 + $0xd8] sm:$0xf]
    %v8038 = vld [vmem:[#allocation7 + $0xdc] sm:$0xf]
    %v8039 = vld [vmem:[#allocation7 + $0xe0] sm:$0xf]
    %v8040 = vld [vmem:[#allocation7 + $0xe4] sm:$0xf]
    %v8041 = vld [vmem:[#allocation7 + $0xe8] sm:$0xf]
    %v8042 = vld [vmem:[#allocation7 + $0xec] sm:$0xf]
    %v8043 = vld [vmem:[#allocation7 + $0xf0] sm:$0xf]
    %v8044 = vld [vmem:[#allocation7 + $0xf4] sm:$0xf]
    %v8045 = vld [vmem:[#allocation7 + $0xf8] sm:$0xf]
    %v8046 = vld [vmem:[#allocation7 + $0xfc] sm:$0xf]
    %v8047 = vld [vmem:[#allocation7 + $0x100] sm:$0xf]
    %v8048 = vld [vmem:[#allocation7 + $0x104] sm:$0xf]
    %v8049 = vld [vmem:[#allocation7 + $0x108] sm:$0xf]
    %v8050 = vld [vmem:[#allocation7 + $0x10c] sm:$0xf]
    %v8051 = vld [vmem:[#allocation7 + $0x110] sm:$0xf]
    %v8052 = vld [vmem:[#allocation7 + $0x114] sm:$0xf]
    %v8053 = vld [vmem:[#allocation7 + $0x118] sm:$0xf]
    %v8054 = vld [vmem:[#allocation7 + $0x11c] sm:$0xf]
    %v8055 = vld [vmem:[#allocation7 + $0x120] sm:$0xf]
    %v8056 = vld [vmem:[#allocation7 + $0x124] sm:$0xf]
    %v8057 = vld [vmem:[#allocation7 + $0x128] sm:$0xf]
    %v8058 = vld [vmem:[#allocation7 + $0x12c] sm:$0xf]
    %v8059 = vld [vmem:[#allocation7 + $0x130] sm:$0xf]
    %v8060 = vld [vmem:[#allocation7 + $0x134] sm:$0xf]
    %v8061 = vld [vmem:[#allocation7 + $0x138] sm:$0xf]
    %v8062 = vld [vmem:[#allocation7 + $0x13c] sm:$0xf]
    %v8063 = vld [vmem:[#allocation7 + $0x140] sm:$0xf]
    %v8064 = vld [vmem:[#allocation7 + $0x144] sm:$0xf]
    %v8065 = vld [vmem:[#allocation7 + $0x148] sm:$0xf]
    %v8066 = vld [vmem:[#allocation7 + $0x14c] sm:$0xf]
    %v8067 = vld [vmem:[#allocation7 + $0x150] sm:$0xf]
    %v8068 = vld [vmem:[#allocation7 + $0x154] sm:$0xf]
    %v8069 = vld [vmem:[#allocation7 + $0x158] sm:$0xf]
    %v8070 = vld [vmem:[#allocation7 + $0x15c] sm:$0xf]
    %v8071 = vld [vmem:[#allocation7 + $0x160] sm:$0xf]
    %v8072 = vld [vmem:[#allocation7 + $0x164] sm:$0xf]
    %v8073 = vld [vmem:[#allocation7 + $0x168] sm:$0xf]
    %v8074 = vld [vmem:[#allocation7 + $0x16c] sm:$0xf]
    %v8075 = vld [vmem:[#allocation7 + $0x170] sm:$0xf]
    %v8076 = vld [vmem:[#allocation7 + $0x174] sm:$0xf]
    %v8077 = vld [vmem:[#allocation7 + $0x178] sm:$0xf]
    %v8078 = vld [vmem:[#allocation7 + $0x17c] sm:$0xf]
    %v8079 = vld [vmem:[#allocation7 + $0x180] sm:$0xf]
    %v8080 = vld [vmem:[#allocation7 + $0x184] sm:$0xf]
    %v8081 = vld [vmem:[#allocation7 + $0x188] sm:$0xf]
    %v8082 = vld [vmem:[#allocation7 + $0x18c] sm:$0xf]
    %v8083 = vld [vmem:[#allocation7 + $0x190] sm:$0xf]
    %v8084 = vld [vmem:[#allocation7 + $0x194] sm:$0xf]
    %v8085 = vld [vmem:[#allocation7 + $0x198] sm:$0xf]
    %v8086 = vld [vmem:[#allocation7 + $0x19c] sm:$0xf]
    %v8087 = vld [vmem:[#allocation7 + $0x1a0] sm:$0xf]
    %v8088 = vld [vmem:[#allocation7 + $0x1a4] sm:$0xf]
    %v8089 = vld [vmem:[#allocation7 + $0x1a8] sm:$0xf]
    %v8090 = vld [vmem:[#allocation7 + $0x1ac] sm:$0xf]
    %v8091 = vld [vmem:[#allocation7 + $0x1b0] sm:$0xf]
    %v8092 = vld [vmem:[#allocation7 + $0x1b4] sm:$0xf]
    %v8093 = vld [vmem:[#allocation7 + $0x1b8] sm:$0xf]
    %v8094 = vld [vmem:[#allocation7 + $0x1bc] sm:$0xf]
    %v8095 = vld [vmem:[#allocation7 + $0x1c0] sm:$0xf]
    %v8096 = vld [vmem:[#allocation7 + $0x1c4] sm:$0xf]
    %v8097 = vld [vmem:[#allocation7 + $0x1c8] sm:$0xf]
    %v8098 = vld [vmem:[#allocation7 + $0x1cc] sm:$0xf]
    %v8099 = vld [vmem:[#allocation7 + $0x1d0] sm:$0xf]
    %v8100 = vld [vmem:[#allocation7 + $0x1d4] sm:$0xf]
    %v8101 = vld [vmem:[#allocation7 + $0x1d8] sm:$0xf]
    %v8102 = vld [vmem:[#allocation7 + $0x1dc] sm:$0xf]
    %v8103 = vld [vmem:[#allocation7 + $0x1e0] sm:$0xf]
    %v8104 = vld [vmem:[#allocation7 + $0x1e4] sm:$0xf]
    %v8105 = vld [vmem:[#allocation7 + $0x1e8] sm:$0xf]
    %v8106 = vld [vmem:[#allocation7 + $0x1ec] sm:$0xf]
    %v8107 = vld [vmem:[#allocation7 + $0x1f0] sm:$0xf]
    %v8108 = vld [vmem:[#allocation7 + $0x1f4] sm:$0xf]
    %v8109 = vld [vmem:[#allocation7 + $0x1f8] sm:$0xf]
    %v8110 = vld [vmem:[#allocation7 + $0x1fc] sm:$0xf]
    %v8111 = vld [vmem:[#allocation8] sm:$0x1]
    %v8113 = vperm.slane %v8111, 0
    %v8243 = vunpack.c.l.b16 %v7983
    %v8244 = vunpack.c.l.b16 %v7984
    %v8245 = vunpack.c.l.b16 %v7985
    %v8246 = vunpack.c.l.b16 %v7986
    %v8247 = vunpack.c.l.b16 %v7987
    %v8248 = vunpack.c.l.b16 %v7988
    %v8249 = vunpack.c.l.b16 %v7989
    %v8250 = vunpack.c.l.b16 %v7990
    %v8251 = vunpack.c.l.b16 %v7991
    %v8252 = vunpack.c.l.b16 %v7992
    %v8253 = vunpack.c.l.b16 %v7993
    %v8254 = vunpack.c.l.b16 %v7994
    %v8255 = vunpack.c.l.b16 %v7995
    %v8256 = vunpack.c.l.b16 %v7996
    %v8257 = vunpack.c.l.b16 %v7997
    %v8258 = vunpack.c.l.b16 %v7998
    %v8259 = vunpack.c.l.b16 %v7999
    %v8260 = vunpack.c.l.b16 %v8000
    %v8261 = vunpack.c.l.b16 %v8001
    %v8262 = vunpack.c.l.b16 %v8002
    %v8263 = vunpack.c.l.b16 %v8003
    %v8264 = vunpack.c.l.b16 %v8004
    %v8265 = vunpack.c.l.b16 %v8005
    %v8266 = vunpack.c.l.b16 %v8006
    %v8267 = vunpack.c.l.b16 %v8007
    %v8268 = vunpack.c.l.b16 %v8008
    %v8269 = vunpack.c.l.b16 %v8009
    %v8270 = vunpack.c.l.b16 %v8010
    %v8271 = vunpack.c.l.b16 %v8011
    %v8272 = vunpack.c.l.b16 %v8012
    %v8273 = vunpack.c.l.b16 %v8013
    %v8274 = vunpack.c.l.b16 %v8014
    %v8275 = vunpack.c.l.b16 %v8015
    %v8276 = vunpack.c.l.b16 %v8016
    %v8277 = vunpack.c.l.b16 %v8017
    %v8278 = vunpack.c.l.b16 %v8018
    %v8279 = vunpack.c.l.b16 %v8019
    %v8280 = vunpack.c.l.b16 %v8020
    %v8281 = vunpack.c.l.b16 %v8021
    %v8282 = vunpack.c.l.b16 %v8022
    %v8283 = vunpack.c.l.b16 %v8023
    %v8284 = vunpack.c.l.b16 %v8024
    %v8285 = vunpack.c.l.b16 %v8025
    %v8286 = vunpack.c.l.b16 %v8026
    %v8287 = vunpack.c.l.b16 %v8027
    %v8288 = vunpack.c.l.b16 %v8028
    %v8289 = vunpack.c.l.b16 %v8029
    %v8290 = vunpack.c.l.b16 %v8030
    %v8291 = vunpack.c.l.b16 %v8031
    %v8292 = vunpack.c.l.b16 %v8032
    %v8293 = vunpack.c.l.b16 %v8033
    %v8294 = vunpack.c.l.b16 %v8034
    %v8295 = vunpack.c.l.b16 %v8035
    %v8296 = vunpack.c.l.b16 %v8036
    %v8297 = vunpack.c.l.b16 %v8037
    %v8298 = vunpack.c.l.b16 %v8038
    %v8299 = vunpack.c.l.b16 %v8039
    %v8300 = vunpack.c.l.b16 %v8040
    %v8301 = vunpack.c.l.b16 %v8041
    %v8302 = vunpack.c.l.b16 %v8042
    %v8303 = vunpack.c.l.b16 %v8043
    %v8304 = vunpack.c.l.b16 %v8044
    %v8305 = vunpack.c.l.b16 %v8045
    %v8306 = vunpack.c.l.b16 %v8046
    %v8307 = vunpack.c.l.b16 %v8047
    %v8308 = vunpack.c.l.b16 %v8048
    %v8309 = vunpack.c.l.b16 %v8049
    %v8310 = vunpack.c.l.b16 %v8050
    %v8311 = vunpack.c.l.b16 %v8051
    %v8312 = vunpack.c.l.b16 %v8052
    %v8313 = vunpack.c.l.b16 %v8053
    %v8314 = vunpack.c.l.b16 %v8054
    %v8315 = vunpack.c.l.b16 %v8055
    %v8316 = vunpack.c.l.b16 %v8056
    %v8317 = vunpack.c.l.b16 %v8057
    %v8318 = vunpack.c.l.b16 %v8058
    %v8319 = vunpack.c.l.b16 %v8059
    %v8320 = vunpack.c.l.b16 %v8060
    %v8321 = vunpack.c.l.b16 %v8061
    %v8322 = vunpack.c.l.b16 %v8062
    %v8323 = vunpack.c.l.b16 %v8063
    %v8324 = vunpack.c.l.b16 %v8064
    %v8325 = vunpack.c.l.b16 %v8065
    %v8326 = vunpack.c.l.b16 %v8066
    %v8327 = vunpack.c.l.b16 %v8067
    %v8328 = vunpack.c.l.b16 %v8068
    %v8329 = vunpack.c.l.b16 %v8069
    %v8330 = vunpack.c.l.b16 %v8070
    %v8331 = vunpack.c.l.b16 %v8071
    %v8332 = vunpack.c.l.b16 %v8072
    %v8333 = vunpack.c.l.b16 %v8073
    %v8334 = vunpack.c.l.b16 %v8074
    %v8335 = vunpack.c.l.b16 %v8075
    %v8336 = vunpack.c.l.b16 %v8076
    %v8337 = vunpack.c.l.b16 %v8077
    %v8338 = vunpack.c.l.b16 %v8078
    %v8339 = vunpack.c.l.b16 %v8079
    %v8340 = vunpack.c.l.b16 %v8080
    %v8341 = vunpack.c.l.b16 %v8081
    %v8342 = vunpack.c.l.b16 %v8082
    %v8343 = vunpack.c.l.b16 %v8083
    %v8344 = vunpack.c.l.b16 %v8084
    %v8345 = vunpack.c.l.b16 %v8085
    %v8346 = vunpack.c.l.b16 %v8086
    %v8347 = vunpack.c.l.b16 %v8087
    %v8348 = vunpack.c.l.b16 %v8088
    %v8349 = vunpack.c.l.b16 %v8089
    %v8350 = vunpack.c.l.b16 %v8090
    %v8351 = vunpack.c.l.b16 %v8091
    %v8352 = vunpack.c.l.b16 %v8092
    %v8353 = vunpack.c.l.b16 %v8093
    %v8354 = vunpack.c.l.b16 %v8094
    %v8355 = vunpack.c.l.b16 %v8095
    %v8356 = vunpack.c.l.b16 %v8096
    %v8357 = vunpack.c.l.b16 %v8097
    %v8358 = vunpack.c.l.b16 %v8098
    %v8359 = vunpack.c.l.b16 %v8099
    %v8360 = vunpack.c.l.b16 %v8100
    %v8361 = vunpack.c.l.b16 %v8101
    %v8362 = vunpack.c.l.b16 %v8102
    %v8363 = vunpack.c.l.b16 %v8103
    %v8364 = vunpack.c.l.b16 %v8104
    %v8365 = vunpack.c.l.b16 %v8105
    %v8366 = vunpack.c.l.b16 %v8106
    %v8367 = vunpack.c.l.b16 %v8107
    %v8368 = vunpack.c.l.b16 %v8108
    %v8369 = vunpack.c.l.b16 %v8109
    %v8370 = vunpack.c.l.b16 %v8110
    %v8371 = vpack.c.b16 %v8244, %v8243
    %v8372 = vpack.c.b16 %v8246, %v8245
    %v8373 = vpack.c.b16 %v8248, %v8247
    %v8374 = vpack.c.b16 %v8250, %v8249
    %v8375 = vpack.c.b16 %v8252, %v8251
    %v8376 = vpack.c.b16 %v8254, %v8253
    %v8377 = vpack.c.b16 %v8256, %v8255
    %v8378 = vpack.c.b16 %v8258, %v8257
    %v8379 = vpack.c.b16 %v8260, %v8259
    %v8380 = vpack.c.b16 %v8262, %v8261
    %v8381 = vpack.c.b16 %v8264, %v8263
    %v8382 = vpack.c.b16 %v8266, %v8265
    %v8383 = vpack.c.b16 %v8268, %v8267
    %v8384 = vpack.c.b16 %v8270, %v8269
    %v8385 = vpack.c.b16 %v8272, %v8271
    %v8386 = vpack.c.b16 %v8274, %v8273
    %v8387 = vpack.c.b16 %v8276, %v8275
    %v8388 = vpack.c.b16 %v8278, %v8277
    %v8389 = vpack.c.b16 %v8280, %v8279
    %v8390 = vpack.c.b16 %v8282, %v8281
    %v8391 = vpack.c.b16 %v8284, %v8283
    %v8392 = vpack.c.b16 %v8286, %v8285
    %v8393 = vpack.c.b16 %v8288, %v8287
    %v8394 = vpack.c.b16 %v8290, %v8289
    %v8395 = vpack.c.b16 %v8292, %v8291
    %v8396 = vpack.c.b16 %v8294, %v8293
    %v8397 = vpack.c.b16 %v8296, %v8295
    %v8398 = vpack.c.b16 %v8298, %v8297
    %v8399 = vpack.c.b16 %v8300, %v8299
    %v8400 = vpack.c.b16 %v8302, %v8301
    %v8401 = vpack.c.b16 %v8304, %v8303
    %v8402 = vpack.c.b16 %v8306, %v8305
    %v8403 = vpack.c.b16 %v8308, %v8307
    %v8404 = vpack.c.b16 %v8310, %v8309
    %v8405 = vpack.c.b16 %v8312, %v8311
    %v8406 = vpack.c.b16 %v8314, %v8313
    %v8407 = vpack.c.b16 %v8316, %v8315
    %v8408 = vpack.c.b16 %v8318, %v8317
    %v8409 = vpack.c.b16 %v8320, %v8319
    %v8410 = vpack.c.b16 %v8322, %v8321
    %v8411 = vpack.c.b16 %v8324, %v8323
    %v8412 = vpack.c.b16 %v8326, %v8325
    %v8413 = vpack.c.b16 %v8328, %v8327
    %v8414 = vpack.c.b16 %v8330, %v8329
    %v8415 = vpack.c.b16 %v8332, %v8331
    %v8416 = vpack.c.b16 %v8334, %v8333
    %v8417 = vpack.c.b16 %v8336, %v8335
    %v8418 = vpack.c.b16 %v8338, %v8337
    %v8419 = vpack.c.b16 %v8340, %v8339
    %v8420 = vpack.c.b16 %v8342, %v8341
    %v8421 = vpack.c.b16 %v8344, %v8343
    %v8422 = vpack.c.b16 %v8346, %v8345
    %v8423 = vpack.c.b16 %v8348, %v8347
    %v8424 = vpack.c.b16 %v8350, %v8349
    %v8425 = vpack.c.b16 %v8352, %v8351
    %v8426 = vpack.c.b16 %v8354, %v8353
    %v8427 = vpack.c.b16 %v8356, %v8355
    %v8428 = vpack.c.b16 %v8358, %v8357
    %v8429 = vpack.c.b16 %v8360, %v8359
    %v8430 = vpack.c.b16 %v8362, %v8361
    %v8431 = vpack.c.b16 %v8364, %v8363
    %v8432 = vpack.c.b16 %v8366, %v8365
    %v8433 = vpack.c.b16 %v8368, %v8367
    %v8434 = vpack.c.b16 %v8370, %v8369
    %8499 = vmatpush.bf16.msra.mxu0 %v8378
    %8500 = vmatpush.bf16.msra.mxu0 %v8377
    %8501 = vmatpush.bf16.msra.mxu0 %v8376
    %8502 = vmatpush.bf16.msra.mxu0 %v8375
    %8503 = vmatpush.bf16.msra.mxu0 %v8374
    %8504 = vmatpush.bf16.msra.mxu0 %v8373
    %8505 = vmatpush.bf16.msra.mxu0 %v8372
    %8506 = vmatpush.bf16.msra.mxu0 %v8371
    %8507 = vmatmul.bf16.gmra.mxu0 %v7975
    %v8508 = vpop.f32.mrf.mxu0
    %v8509 = vadd.f32 %v8113, %v8508
    %v8510 = vpop.f32.mrf.mxu0
    %8511 = vdwg.mxu0
    %8512 = vmatpush.bf16.msra.mxu0 %v8386
    %8513 = vmatpush.bf16.msra.mxu0 %v8385
    %8514 = vmatpush.bf16.msra.mxu0 %v8384
    %8515 = vmatpush.bf16.msra.mxu0 %v8383
    %8516 = vmatpush.bf16.msra.mxu0 %v8382
    %8517 = vmatpush.bf16.msra.mxu0 %v8381
    %8518 = vmatpush.bf16.msra.mxu0 %v8380
    %8519 = vmatpush.bf16.msra.mxu0 %v8379
    %8520 = vmatmul.bf16.gmra.mxu0 %v7976
    %v8521 = vpop.f32.mrf.mxu0
    %v8522 = vadd.f32 %v8509, %v8521
    %v8523 = vpop.f32.mrf.mxu0
    %8524 = vdwg.mxu0
    %8525 = vmatpush.bf16.msra.mxu0 %v8394
    %8526 = vmatpush.bf16.msra.mxu0 %v8393
    %8527 = vmatpush.bf16.msra.mxu0 %v8392
    %8528 = vmatpush.bf16.msra.mxu0 %v8391
    %8529 = vmatpush.bf16.msra.mxu0 %v8390
    %8530 = vmatpush.bf16.msra.mxu0 %v8389
    %8531 = vmatpush.bf16.msra.mxu0 %v8388
    %8532 = vmatpush.bf16.msra.mxu0 %v8387
    %8533 = vmatmul.bf16.gmra.mxu0 %v7977
    %v8534 = vpop.f32.mrf.mxu0
    %v8535 = vadd.f32 %v8522, %v8534
    %v8536 = vpop.f32.mrf.mxu0
    %8537 = vdwg.mxu0
    %8538 = vmatpush.bf16.msra.mxu0 %v8402
    %8539 = vmatpush.bf16.msra.mxu0 %v8401
    %8540 = vmatpush.bf16.msra.mxu0 %v8400
    %8541 = vmatpush.bf16.msra.mxu0 %v8399
    %8542 = vmatpush.bf16.msra.mxu0 %v8398
    %8543 = vmatpush.bf16.msra.mxu0 %v8397
    %8544 = vmatpush.bf16.msra.mxu0 %v8396
    %8545 = vmatpush.bf16.msra.mxu0 %v8395
    %8546 = vmatmul.bf16.gmra.mxu0 %v7978
    %v8547 = vpop.f32.mrf.mxu0
    %v8548 = vadd.f32 %v8535, %v8547
    %v8549 = vpop.f32.mrf.mxu0
    %8550 = vdwg.mxu0
    %8551 = vmatpush.bf16.msra.mxu0 %v8410
    %8552 = vmatpush.bf16.msra.mxu0 %v8409
    %8553 = vmatpush.bf16.msra.mxu0 %v8408
    %8554 = vmatpush.bf16.msra.mxu0 %v8407
    %8555 = vmatpush.bf16.msra.mxu0 %v8406
    %8556 = vmatpush.bf16.msra.mxu0 %v8405
    %8557 = vmatpush.bf16.msra.mxu0 %v8404
    %8558 = vmatpush.bf16.msra.mxu0 %v8403
    %8559 = vmatmul.bf16.gmra.mxu0 %v7979
    %v8560 = vpop.f32.mrf.mxu0
    %v8561 = vadd.f32 %v8548, %v8560
    %v8562 = vpop.f32.mrf.mxu0
    %8563 = vdwg.mxu0
    %8564 = vmatpush.bf16.msra.mxu0 %v8418
    %8565 = vmatpush.bf16.msra.mxu0 %v8417
    %8566 = vmatpush.bf16.msra.mxu0 %v8416
    %8567 = vmatpush.bf16.msra.mxu0 %v8415
    %8568 = vmatpush.bf16.msra.mxu0 %v8414
    %8569 = vmatpush.bf16.msra.mxu0 %v8413
    %8570 = vmatpush.bf16.msra.mxu0 %v8412
    %8571 = vmatpush.bf16.msra.mxu0 %v8411
    %8572 = vmatmul.bf16.gmra.mxu0 %v7980
    %v8573 = vpop.f32.mrf.mxu0
    %v8574 = vadd.f32 %v8561, %v8573
    %v8575 = vpop.f32.mrf.mxu0
    %8576 = vdwg.mxu0
    %8577 = vmatpush.bf16.msra.mxu0 %v8426
    %8578 = vmatpush.bf16.msra.mxu0 %v8425
    %8579 = vmatpush.bf16.msra.mxu0 %v8424
    %8580 = vmatpush.bf16.msra.mxu0 %v8423
    %8581 = vmatpush.bf16.msra.mxu0 %v8422
    %8582 = vmatpush.bf16.msra.mxu0 %v8421
    %8583 = vmatpush.bf16.msra.mxu0 %v8420
    %8584 = vmatpush.bf16.msra.mxu0 %v8419
    %8585 = vmatmul.bf16.gmra.mxu0 %v7981
    %v8586 = vpop.f32.mrf.mxu0
    %v8587 = vadd.f32 %v8574, %v8586
    %v8588 = vpop.f32.mrf.mxu0
    %8589 = vdwg.mxu0
    %8590 = vmatpush.bf16.msra.mxu0 %v8434
    %8591 = vmatpush.bf16.msra.mxu0 %v8433
    %8592 = vmatpush.bf16.msra.mxu0 %v8432
    %8593 = vmatpush.bf16.msra.mxu0 %v8431
    %8594 = vmatpush.bf16.msra.mxu0 %v8430
    %8595 = vmatpush.bf16.msra.mxu0 %v8429
    %8596 = vmatpush.bf16.msra.mxu0 %v8428
    %8597 = vmatpush.bf16.msra.mxu0 %v8427
    %8598 = vmatmul.bf16.gmra.mxu0 %v7982
    %v8599 = vpop.f32.mrf.mxu0
    %v8600 = vadd.f32 %v8587, %v8599
    %v8601 = vpop.f32.mrf.mxu0
    %8602 = vdwg.mxu0
    %8603 = vst [vmem:[#allocation10] sm:$0x3] %v8600
    // Predicated region
    $region38: #{inception_aux_forward.3} parent=1 // pred_check
      _
    $region39: #{inception_aux_forward.3} parent=1 // pred_check_branch
      %8605 = sbr.rel (0) target = $region41
    $region40: #{inception_aux_forward.3} parent=1 // pred_region
      %8607 = vsyncadd [#allocation4], 0
      %s8609 = sshll.u32 [#allocation10], 4
      %s8610 = int_to_ptr.vmem [resolvable:$true] %s8609
      %s8611 = sshll.u32 %s5, 4
      %s8612 = int_to_ptr.hbm [resolvable:$true] %s8611
      %8614 = dma.vmem_to_hbm [thread:$0]  %s8610, 32, %s8612, [#allocation4]
    $region41: #{inception_aux_forward.3} parent=1 // pred_fallthru
      _
    // Predicated region
    $region42: #{inception_aux_forward.3} parent=1 // pred_check
      _
    $region43: #{inception_aux_forward.3} parent=1 // pred_check_branch
      %8616 = sbr.rel (0) target = $region45
    $region44: #{inception_aux_forward.3} parent=1 // pred_region
      %8618 = dma.done [#allocation4], 32
    $region45: #{inception_aux_forward.3} parent=1 // pred_fallthru
      _
    %8619 = vsyncpa [#allocation3], 1
    %8620 = vsyncpa [#allocation6], 1
    %8621 = vsyncpa [#allocation9], 1
    %8622 = vsyncpa [#allocation4], 1

</llo_original>
